<compile_context>
chip_gen: v7x
topology: tpu7x:2x2x1
jax: 0.10.0
libtpu: 0.0.40
codegen_flags: <defaults>
</compile_context>

<pallas_src>
import numpy as np
import jax
import jax.numpy as jnp
from jax.experimental import pallas as pl
from jax.experimental.pallas import tpu as pltpu


# ----------------------------------------------------------------------------
# Fused Pallas kernel: 3x ChannelAttention + 3x SpatialAttention + concat +
# final 1x1 conv + bilinear upsample + sigmoid; one batch element per grid step
# ----------------------------------------------------------------------------
def _fused_kernel(*refs):
    (sc, f1r, f2r, f3r, f4r,
     wc0, bc0, w10, b10, w20, b20,
     wc1, bc1, w11, b11, w21, b21,
     wc2, bc2, w12, b12, w22, b22,
     mt1, mt2, mt3, wf1, wf2, wf3, wf4, mfinT, out_ref) = refs

    # features, channels-first flattened: (C_k, H_k*W_k)
    f1 = f1r[0]
    f2 = f2r[0]
    f3 = f3r[0]
    f4 = f4r[0]

    def channel_attention(fn, fn1, wconv, bconv, w1, b1, w2, b2):
        # conv1x1-then-spatial-mean == spatial-mean-then-linear (exact).
        pooled = jnp.mean(fn1, axis=1, keepdims=True)                      # (Cn1, 1)
        v = jnp.dot(wconv[...], pooled,
                    preferred_element_type=jnp.float32) + bconv[...]       # (Cn, 1)
        h = jnp.maximum(jnp.dot(w1[...], v,
                                preferred_element_type=jnp.float32) + b1[...], 0.0)
        g = jax.nn.sigmoid(jnp.dot(w2[...], h,
                                   preferred_element_type=jnp.float32) + b2[...])
        return fn * g                                                      # broadcast over lanes (HW)

    # channel attention: deepest -> shallowest (uses already-updated deeper feats)
    f3 = channel_attention(f3, f4, wc2, bc2, w12, b12, w22, b22)
    f2 = channel_attention(f2, f3, wc1, bc1, w11, b11, w21, b21)
    f1 = channel_attention(f1, f2, wc0, bc0, w10, b10, w20, b20)

    def spatial_attention(fn, fn1, mt, wavg, wmax, bias):
        avg = jnp.mean(fn, axis=0, keepdims=True)                          # (1, HW0)
        mx = jnp.max(fn, axis=0, keepdims=True)                            # (1, HW0)
        gate = jax.nn.sigmoid(wavg * avg + wmax * mx + bias)
        up = jnp.dot(fn1, mt[...], preferred_element_type=jnp.float32)     # (Cn1, HW0)
        return gate * up

    # spatial attention: shallow -> deep (gate from the previously-updated feat)
    f2 = spatial_attention(f1, f2, mt1, sc[0], sc[1], sc[2])
    f3 = spatial_attention(f2, f3, mt2, sc[3], sc[4], sc[5])
    f4 = spatial_attention(f3, f4, mt3, sc[6], sc[7], sc[8])

    # final 1x1 conv over the (virtual) channel concat, accumulated per scale;
    # weight slices are pre-split on the host => no in-kernel lane slicing.
    pred = (jnp.dot(wf1[...], f1, preferred_element_type=jnp.float32)
            + jnp.dot(wf2[...], f2, preferred_element_type=jnp.float32)
            + jnp.dot(wf3[...], f3, preferred_element_type=jnp.float32)
            + jnp.dot(wf4[...], f4, preferred_element_type=jnp.float32)
            + sc[9])                                                       # (1, HW0)

    # bilinear upsample to input resolution: lane-dense transposed product,
    # bf16 operands (exact power-of-2 bilinear weights), f32 MXU accumulation.
    up = jnp.dot(pred.astype(jnp.bfloat16), mfinT[...],
                 preferred_element_type=jnp.float32)                       # (1, H*W)
    out_ref[0] = jax.nn.sigmoid(up)


_CPARAMS = pltpu.CompilerParams(dimension_semantics=("parallel",))


def _const_spec(a):
    zeros = (0,) * a.ndim
    return pl.BlockSpec(a.shape, lambda b, _z=zeros: _z)


def _feat_spec(shape):  # array shape (B, C, HW) -> per-batch block
    return pl.BlockSpec((1,) + tuple(shape[1:]), lambda b: (b, 0, 0))


# ----------------------------------------------------------------------------
# Bilinear interpolation matrices (PyTorch align_corners=False semantics)
# ----------------------------------------------------------------------------
def _bilinear_matrix_1d(out_size, in_size):
    o = np.arange(out_size, dtype=np.float64)
    src = (o + 0.5) * (in_size / out_size) - 0.5
    src = np.clip(src, 0.0, in_size - 1)
    i0 = np.floor(src).astype(np.int64)
    i1 = np.minimum(i0 + 1, in_size - 1)
    frac = (src - i0).astype(np.float32)
    M = np.zeros((out_size, in_size), dtype=np.float32)
    M[np.arange(out_size), i0] += 1.0 - frac
    M[np.arange(out_size), i1] += frac
    return M


def _interp_mats(H, W):
    h0, w0 = H // 4, W // 4
    # spatial-attention upsample matrices, transposed: (Hin*Win, h0*w0), small
    mts = []
    for s in (8, 16, 32):
        hin, win = H // s, W // s
        m = np.kron(_bilinear_matrix_1d(h0, hin), _bilinear_matrix_1d(w0, win))
        mts.append(jnp.asarray(m.T, dtype=jnp.float32))
    # final upsample matrix, transposed so the kernel output is lane-dense.
    # bf16 is exact for these power-of-2 bilinear weights.
    # TODO(synk): for large resolutions replace this dense kron with a separable
    #             row/column factorisation (needs an in-kernel (1,HW)->(H,W)
    #             relayout or a 2-D spatial pipeline).
    mfin = np.kron(_bilinear_matrix_1d(H, h0), _bilinear_matrix_1d(W, w0))
    mfinT = jnp.asarray(mfin.T, dtype=jnp.bfloat16)        # (h0*w0, H*W)
    return mts, mfinT


# ----------------------------------------------------------------------------
# Deterministic backbone/ASPP stub + parameter construction (channels-first)
# ----------------------------------------------------------------------------
def backbone_stub(x_nchw, proj_ws, proj_bs, strides):
    # TODO(synk): stand-in for timm hrnet_w18 + ASPP (external modules): strided
    # average pooling + 1x1 conv; only reproduces the pyramid shapes.
    B, C, H, W = x_nchw.shape
    feats = []
    for w, b, s in zip(proj_ws, proj_bs, strides):
        pooled = x_nchw.reshape(B, C, H // s, s, W // s, s).mean(axis=(3, 5))
        f = jnp.einsum("bchw,cd->bdhw", pooled, w) + b[None, :, None, None]
        feats.append(f.reshape(B, w.shape[1], (H // s) * (W // s)).astype(jnp.float32))
    return feats


def init_params(key, channels, in_ch=3, reduction=4):
    c1, c2, c3, c4 = channels
    keys = iter(jax.random.split(key, 32))

    def dense(shape, scale=0.2):
        return (scale * jax.random.normal(next(keys), shape)).astype(jnp.float32)

    params = {
        "stub_w": [dense((in_ch, c)) for c in channels],
        "stub_b": [0.01 * jnp.ones((c,), jnp.float32) for c in channels],
        "ca": [],
    }
    for fn_c, fn1_c in [(c1, c2), (c2, c3), (c3, c4)]:
        cr = fn_c // reduction
        params["ca"].append(dict(
            wconv=dense((fn_c, fn1_c)),
            bconv=0.01 * jnp.ones((fn_c, 1), jnp.float32),
            w1=dense((cr, fn_c)), b1=jnp.zeros((cr, 1), jnp.float32),
            w2=dense((fn_c, cr)), b2=jnp.zeros((fn_c, 1), jnp.float32)))
    params["sa_scalars"] = (0.5 * jax.random.normal(next(keys), (3, 3))).astype(jnp.float32)
    params["final_w"] = dense((1, c1 + c2 + c3 + c4))
    params["final_b"] = jnp.zeros((1,), jnp.float32)
    return params


# ----------------------------------------------------------------------------
# Forward pass (RGB-only branch of TwoBranchNetwork) -- single fused pallas_call
# ----------------------------------------------------------------------------
def two_branch_forward(params, rgb_nchw):
    B, _, H, W = rgb_nchw.shape
    strides = (4, 8, 16, 32)
    feats = backbone_stub(rgb_nchw, params["stub_w"], params["stub_b"], strides)
    mts, mfinT = _interp_mats(H, W)

    # SMEM scalar table: 3x(wavg, wmax, b) for spatial attention + final bias
    sc = jnp.concatenate([params["sa_scalars"].reshape(-1),
                          params["final_b"].reshape(1)]).astype(jnp.float32)

    ca_flat = []
    for p in params["ca"]:
        ca_flat += [p["wconv"], p["bconv"], p["w1"], p["b1"], p["w2"], p["b2"]]

    # pre-split the final 1x1-conv weight per scale (host side, zero cost)
    c_sizes = [f.shape[1] for f in feats]
    offs = np.cumsum([0] + c_sizes)
    wf_parts = [params["final_w"][:, offs[k]:offs[k + 1]] for k in range(4)]

    consts = ca_flat + list(mts) + wf_parts + [mfinT]

    in_specs = ([pl.BlockSpec(memory_space=pltpu.MemorySpace.SMEM)]
                + [_feat_spec(f.shape) for f in feats]
                + [_const_spec(a) for a in consts])

    HWfull = H * W
    out = pl.pallas_call(
        _fused_kernel,
        out_shape=jax.ShapeDtypeStruct((B, 1, HWfull), jnp.float32),
        grid=(B,),
        in_specs=in_specs,
        out_specs=pl.BlockSpec((1, 1, HWfull), lambda b: (b, 0, 0)),
        compiler_params=_CPARAMS,
    )(sc, *feats, *consts)
    return out.reshape(B, 1, H, W)


# ----------------------------------------------------------------------------
# Pure-JAX reference (same math, no Pallas) for the correctness check
# ----------------------------------------------------------------------------
def reference_forward(params, rgb_nchw):
    B, _, H, W = rgb_nchw.shape
    strides = (4, 8, 16, 32)
    # stub runs with default precision so it is bit-identical to the kernel path
    feats = backbone_stub(rgb_nchw, params["stub_w"], params["stub_b"], strides)
    mts, mfinT = _interp_mats(H, W)

    with jax.default_matmul_precision("highest"):
        for i in range(len(feats) - 2, -1, -1):
            p = params["ca"][i]
            pooled = feats[i + 1].mean(axis=2)                              # (B, Cn1)
            v = pooled @ p["wconv"].T + p["bconv"][:, 0]
            h = jnp.maximum(v @ p["w1"].T + p["b1"][:, 0], 0.0)
            g = jax.nn.sigmoid(h @ p["w2"].T + p["b2"][:, 0])
            feats[i] = feats[i] * g[:, :, None]

        sa = params["sa_scalars"]
        for i in range(1, len(feats)):
            fn = feats[i - 1]
            avg = fn.mean(axis=1, keepdims=True)
            mx = fn.max(axis=1, keepdims=True)
            gate = jax.nn.sigmoid(sa[i - 1, 0] * avg + sa[i - 1, 1] * mx + sa[i - 1, 2])
            up = jnp.einsum("bck,ko->bco", feats[i], mts[i - 1])
            feats[i] = gate * up

        concat = jnp.concatenate(feats, axis=1)                             # (B, Ctot, HW0)
        pred = jnp.einsum("oc,bck->bok", params["final_w"], concat)[:, 0, :]
        pred = pred + params["final_b"]                                     # (B, HW0)
        up = jnp.dot(pred.astype(jnp.bfloat16), mfinT,
                     preferred_element_type=jnp.float32)                    # (B, H*W)
    return jax.nn.sigmoid(up).reshape(B, 1, H, W)


if __name__ == "__main__":
    channels = (8, 16, 32, 64)          # c1, c2, c3, c4
    key = jax.random.PRNGKey(0)
    pkey, xkey = jax.random.split(key)
    params = init_params(pkey, channels)
    rgb_input = jax.random.normal(xkey, (2, 3, 64, 64), jnp.float32)  # NCHW

    fwd = jax.jit(two_branch_forward)
    out = jax.block_until_ready(fwd(params, rgb_input))

    ref = reference_forward(params, rgb_input)
    np.testing.assert_allclose(np.asarray(out), np.asarray(ref), rtol=5e-4, atol=5e-4)
    assert out.shape == (2, 1, 64, 64) and out.dtype == jnp.float32
    print("KERNEL_OK")
</pallas_src>

<mosaic_0001>
module attributes {stable_mosaic.version = 11 : i64} {
  func.func @_fused_kernel(%arg0: i32, %arg1: memref<10xf32, #tpu.memory_space<smem>>, %arg2: memref<1x8x256xf32, #tpu.memory_space<vmem>>, %arg3: memref<1x16x64xf32, #tpu.memory_space<vmem>>, %arg4: memref<1x32x16xf32, #tpu.memory_space<vmem>>, %arg5: memref<1x64x4xf32, #tpu.memory_space<vmem>>, %arg6: memref<8x16xf32, #tpu.memory_space<vmem>>, %arg7: memref<8x1xf32, #tpu.memory_space<vmem>>, %arg8: memref<2x8xf32, #tpu.memory_space<vmem>>, %arg9: memref<2x1xf32, #tpu.memory_space<vmem>>, %arg10: memref<8x2xf32, #tpu.memory_space<vmem>>, %arg11: memref<8x1xf32, #tpu.memory_space<vmem>>, %arg12: memref<16x32xf32, #tpu.memory_space<vmem>>, %arg13: memref<16x1xf32, #tpu.memory_space<vmem>>, %arg14: memref<4x16xf32, #tpu.memory_space<vmem>>, %arg15: memref<4x1xf32, #tpu.memory_space<vmem>>, %arg16: memref<16x4xf32, #tpu.memory_space<vmem>>, %arg17: memref<16x1xf32, #tpu.memory_space<vmem>>, %arg18: memref<32x64xf32, #tpu.memory_space<vmem>>, %arg19: memref<32x1xf32, #tpu.memory_space<vmem>>, %arg20: memref<8x32xf32, #tpu.memory_space<vmem>>, %arg21: memref<8x1xf32, #tpu.memory_space<vmem>>, %arg22: memref<32x8xf32, #tpu.memory_space<vmem>>, %arg23: memref<32x1xf32, #tpu.memory_space<vmem>>, %arg24: memref<64x256xf32, #tpu.memory_space<vmem>>, %arg25: memref<16x256xf32, #tpu.memory_space<vmem>>, %arg26: memref<4x256xf32, #tpu.memory_space<vmem>>, %arg27: memref<1x8xf32, #tpu.memory_space<vmem>>, %arg28: memref<1x16xf32, #tpu.memory_space<vmem>>, %arg29: memref<1x32xf32, #tpu.memory_space<vmem>>, %arg30: memref<1x64xf32, #tpu.memory_space<vmem>>, %arg31: memref<256x4096xbf16, #tpu.memory_space<vmem>>, %arg32: memref<1x1x4096xf32, #tpu.memory_space<vmem>>) attributes {dimension_semantics = [#tpu.dimension_semantics<parallel>], iteration_bounds = array<i64: 2>, scalar_prefetch = 0 : i64, scratch_operands = 0 : i64, tpu.core_type = #tpu.core_type<tc>, window_params = [{transform_indices = @transform_0, window_bounds = array<i64: 10>}, {transform_indices = @transform_1, window_bounds = array<i64: 1, 8, 256>}, {transform_indices = @transform_2, window_bounds = array<i64: 1, 16, 64>}, {transform_indices = @transform_3, window_bounds = array<i64: 1, 32, 16>}, {transform_indices = @transform_4, window_bounds = array<i64: 1, 64, 4>}, {pipeline_mode = #tpu.pipeline_mode<synchronous>, transform_indices = @transform_5, window_bounds = array<i64: 8, 16>}, {pipeline_mode = #tpu.pipeline_mode<synchronous>, transform_indices = @transform_6, window_bounds = array<i64: 8, 1>}, {pipeline_mode = #tpu.pipeline_mode<synchronous>, transform_indices = @transform_7, window_bounds = array<i64: 2, 8>}, {pipeline_mode = #tpu.pipeline_mode<synchronous>, transform_indices = @transform_8, window_bounds = array<i64: 2, 1>}, {pipeline_mode = #tpu.pipeline_mode<synchronous>, transform_indices = @transform_9, window_bounds = array<i64: 8, 2>}, {pipeline_mode = #tpu.pipeline_mode<synchronous>, transform_indices = @transform_10, window_bounds = array<i64: 8, 1>}, {pipeline_mode = #tpu.pipeline_mode<synchronous>, transform_indices = @transform_11, window_bounds = array<i64: 16, 32>}, {pipeline_mode = #tpu.pipeline_mode<synchronous>, transform_indices = @transform_12, window_bounds = array<i64: 16, 1>}, {pipeline_mode = #tpu.pipeline_mode<synchronous>, transform_indices = @transform_13, window_bounds = array<i64: 4, 16>}, {pipeline_mode = #tpu.pipeline_mode<synchronous>, transform_indices = @transform_14, window_bounds = array<i64: 4, 1>}, {pipeline_mode = #tpu.pipeline_mode<synchronous>, transform_indices = @transform_15, window_bounds = array<i64: 16, 4>}, {pipeline_mode = #tpu.pipeline_mode<synchronous>, transform_indices = @transform_16, window_bounds = array<i64: 16, 1>}, {pipeline_mode = #tpu.pipeline_mode<synchronous>, transform_indices = @transform_17, window_bounds = array<i64: 32, 64>}, {pipeline_mode = #tpu.pipeline_mode<synchronous>, transform_indices = @transform_18, window_bounds = array<i64: 32, 1>}, {pipeline_mode = #tpu.pipeline_mode<synchronous>, transform_indices = @transform_19, window_bounds = array<i64: 8, 32>}, {pipeline_mode = #tpu.pipeline_mode<synchronous>, transform_indices = @transform_20, window_bounds = array<i64: 8, 1>}, {pipeline_mode = #tpu.pipeline_mode<synchronous>, transform_indices = @transform_21, window_bounds = array<i64: 32, 8>}, {pipeline_mode = #tpu.pipeline_mode<synchronous>, transform_indices = @transform_22, window_bounds = array<i64: 32, 1>}, {pipeline_mode = #tpu.pipeline_mode<synchronous>, transform_indices = @transform_23, window_bounds = array<i64: 64, 256>}, {pipeline_mode = #tpu.pipeline_mode<synchronous>, transform_indices = @transform_24, window_bounds = array<i64: 16, 256>}, {pipeline_mode = #tpu.pipeline_mode<synchronous>, transform_indices = @transform_25, window_bounds = array<i64: 4, 256>}, {pipeline_mode = #tpu.pipeline_mode<synchronous>, transform_indices = @transform_26, window_bounds = array<i64: 1, 8>}, {pipeline_mode = #tpu.pipeline_mode<synchronous>, transform_indices = @transform_27, window_bounds = array<i64: 1, 16>}, {pipeline_mode = #tpu.pipeline_mode<synchronous>, transform_indices = @transform_28, window_bounds = array<i64: 1, 32>}, {pipeline_mode = #tpu.pipeline_mode<synchronous>, transform_indices = @transform_29, window_bounds = array<i64: 1, 64>}, {pipeline_mode = #tpu.pipeline_mode<synchronous>, transform_indices = @transform_30, window_bounds = array<i64: 256, 4096>}, {transform_indices = @transform_31, window_bounds = array<i64: 1, 1, 4096>}]} {
    %c0 = arith.constant 0 : index
    %c0_0 = arith.constant 0 : index
    %c0_1 = arith.constant 0 : index
    %0 = vector.load %arg2[%c0, %c0_0, %c0_1] : memref<1x8x256xf32, #tpu.memory_space<vmem>>, vector<1x8x256xf32>
    %1 = vector.shape_cast %0 : vector<1x8x256xf32> to vector<8x256xf32>
    %c0_2 = arith.constant 0 : index
    %c0_3 = arith.constant 0 : index
    %c0_4 = arith.constant 0 : index
    %2 = vector.load %arg3[%c0_2, %c0_3, %c0_4] : memref<1x16x64xf32, #tpu.memory_space<vmem>>, vector<1x16x64xf32>
    %3 = vector.shape_cast %2 : vector<1x16x64xf32> to vector<16x64xf32>
    %c0_5 = arith.constant 0 : index
    %c0_6 = arith.constant 0 : index
    %c0_7 = arith.constant 0 : index
    %4 = vector.load %arg4[%c0_5, %c0_6, %c0_7] : memref<1x32x16xf32, #tpu.memory_space<vmem>>, vector<1x32x16xf32>
    %5 = vector.shape_cast %4 : vector<1x32x16xf32> to vector<32x16xf32>
    %c0_8 = arith.constant 0 : index
    %c0_9 = arith.constant 0 : index
    %c0_10 = arith.constant 0 : index
    %6 = vector.load %arg5[%c0_8, %c0_9, %c0_10] : memref<1x64x4xf32, #tpu.memory_space<vmem>>, vector<1x64x4xf32>
    %7 = vector.shape_cast %6 : vector<1x64x4xf32> to vector<64x4xf32>
    %cst = arith.constant dense<0.000000e+00> : vector<64xf32>
    %8 = vector.multi_reduction <add>, %7, %cst [1] : vector<64x4xf32> to vector<64xf32>
    %9 = vector.shape_cast %8 : vector<64xf32> to vector<64x1xf32>
    %cst_11 = arith.constant 4.000000e+00 : f32
    %10 = vector.broadcast %cst_11 : f32 to vector<64x1xf32>
    %11 = arith.divf %9, %10 : vector<64x1xf32>
    %c0_12 = arith.constant 0 : index
    %c0_13 = arith.constant 0 : index
    %12 = vector.load %arg18[%c0_12, %c0_13] : memref<32x64xf32, #tpu.memory_space<vmem>>, vector<32x64xf32>
    %cst_14 = arith.constant dense<0.000000e+00> : vector<32x1xf32>
    %13 = tpu.matmul %12, %11, %cst_14 {dimension_numbers = #tpu.dot_dimension_numbers<[1], [0], [0], [1], [0, 0, 1, 1], [], []>} : vector<32x64xf32>, vector<64x1xf32>, vector<32x1xf32> -> vector<32x1xf32>
    %c0_15 = arith.constant 0 : index
    %c0_16 = arith.constant 0 : index
    %14 = vector.load %arg19[%c0_15, %c0_16] : memref<32x1xf32, #tpu.memory_space<vmem>>, vector<32x1xf32>
    %15 = arith.addf %13, %14 : vector<32x1xf32>
    %c0_17 = arith.constant 0 : index
    %c0_18 = arith.constant 0 : index
    %16 = vector.load %arg20[%c0_17, %c0_18] : memref<8x32xf32, #tpu.memory_space<vmem>>, vector<8x32xf32>
    %cst_19 = arith.constant dense<0.000000e+00> : vector<8x1xf32>
    %17 = tpu.matmul %16, %15, %cst_19 {dimension_numbers = #tpu.dot_dimension_numbers<[1], [0], [0], [1], [0, 0, 1, 1], [], []>} : vector<8x32xf32>, vector<32x1xf32>, vector<8x1xf32> -> vector<8x1xf32>
    %c0_20 = arith.constant 0 : index
    %c0_21 = arith.constant 0 : index
    %18 = vector.load %arg21[%c0_20, %c0_21] : memref<8x1xf32, #tpu.memory_space<vmem>>, vector<8x1xf32>
    %19 = arith.addf %17, %18 : vector<8x1xf32>
    %cst_22 = arith.constant 0.000000e+00 : f32
    %20 = vector.broadcast %cst_22 : f32 to vector<8x1xf32>
    %21 = arith.maximumf %19, %20 : vector<8x1xf32>
    %c0_23 = arith.constant 0 : index
    %c0_24 = arith.constant 0 : index
    %22 = vector.load %arg22[%c0_23, %c0_24] : memref<32x8xf32, #tpu.memory_space<vmem>>, vector<32x8xf32>
    %cst_25 = arith.constant dense<0.000000e+00> : vector<32x1xf32>
    %23 = tpu.matmul %22, %21, %cst_25 {dimension_numbers = #tpu.dot_dimension_numbers<[1], [0], [0], [1], [0, 0, 1, 1], [], []>} : vector<32x8xf32>, vector<8x1xf32>, vector<32x1xf32> -> vector<32x1xf32>
    %c0_26 = arith.constant 0 : index
    %c0_27 = arith.constant 0 : index
    %24 = vector.load %arg23[%c0_26, %c0_27] : memref<32x1xf32, #tpu.memory_space<vmem>>, vector<32x1xf32>
    %25 = arith.addf %23, %24 : vector<32x1xf32>
    %26 = arith.negf %25 : vector<32x1xf32>
    %27 = math.exp %26 : vector<32x1xf32>
    %cst_28 = arith.constant 1.000000e+00 : f32
    %28 = vector.broadcast %cst_28 : f32 to vector<32x1xf32>
    %29 = arith.addf %28, %27 : vector<32x1xf32>
    %30 = arith.divf %28, %29 : vector<32x1xf32>
    %31 = vector.broadcast %30 : vector<32x1xf32> to vector<32x16xf32>
    %32 = arith.mulf %5, %31 : vector<32x16xf32>
    %cst_29 = arith.constant dense<0.000000e+00> : vector<32xf32>
    %33 = vector.multi_reduction <add>, %32, %cst_29 [1] : vector<32x16xf32> to vector<32xf32>
    %34 = vector.shape_cast %33 : vector<32xf32> to vector<32x1xf32>
    %cst_30 = arith.constant 1.600000e+01 : f32
    %35 = vector.broadcast %cst_30 : f32 to vector<32x1xf32>
    %36 = arith.divf %34, %35 : vector<32x1xf32>
    %c0_31 = arith.constant 0 : index
    %c0_32 = arith.constant 0 : index
    %37 = vector.load %arg12[%c0_31, %c0_32] : memref<16x32xf32, #tpu.memory_space<vmem>>, vector<16x32xf32>
    %cst_33 = arith.constant dense<0.000000e+00> : vector<16x1xf32>
    %38 = tpu.matmul %37, %36, %cst_33 {dimension_numbers = #tpu.dot_dimension_numbers<[1], [0], [0], [1], [0, 0, 1, 1], [], []>} : vector<16x32xf32>, vector<32x1xf32>, vector<16x1xf32> -> vector<16x1xf32>
    %c0_34 = arith.constant 0 : index
    %c0_35 = arith.constant 0 : index
    %39 = vector.load %arg13[%c0_34, %c0_35] : memref<16x1xf32, #tpu.memory_space<vmem>>, vector<16x1xf32>
    %40 = arith.addf %38, %39 : vector<16x1xf32>
    %c0_36 = arith.constant 0 : index
    %c0_37 = arith.constant 0 : index
    %41 = vector.load %arg14[%c0_36, %c0_37] : memref<4x16xf32, #tpu.memory_space<vmem>>, vector<4x16xf32>
    %cst_38 = arith.constant dense<0.000000e+00> : vector<4x1xf32>
    %42 = tpu.matmul %41, %40, %cst_38 {dimension_numbers = #tpu.dot_dimension_numbers<[1], [0], [0], [1], [0, 0, 1, 1], [], []>} : vector<4x16xf32>, vector<16x1xf32>, vector<4x1xf32> -> vector<4x1xf32>
    %c0_39 = arith.constant 0 : index
    %c0_40 = arith.constant 0 : index
    %43 = vector.load %arg15[%c0_39, %c0_40] : memref<4x1xf32, #tpu.memory_space<vmem>>, vector<4x1xf32>
    %44 = arith.addf %42, %43 : vector<4x1xf32>
    %cst_41 = arith.constant 0.000000e+00 : f32
    %45 = vector.broadcast %cst_41 : f32 to vector<4x1xf32>
    %46 = arith.maximumf %44, %45 : vector<4x1xf32>
    %c0_42 = arith.constant 0 : index
    %c0_43 = arith.constant 0 : index
    %47 = vector.load %arg16[%c0_42, %c0_43] : memref<16x4xf32, #tpu.memory_space<vmem>>, vector<16x4xf32>
    %cst_44 = arith.constant dense<0.000000e+00> : vector<16x1xf32>
    %48 = tpu.matmul %47, %46, %cst_44 {dimension_numbers = #tpu.dot_dimension_numbers<[1], [0], [0], [1], [0, 0, 1, 1], [], []>} : vector<16x4xf32>, vector<4x1xf32>, vector<16x1xf32> -> vector<16x1xf32>
    %c0_45 = arith.constant 0 : index
    %c0_46 = arith.constant 0 : index
    %49 = vector.load %arg17[%c0_45, %c0_46] : memref<16x1xf32, #tpu.memory_space<vmem>>, vector<16x1xf32>
    %50 = arith.addf %48, %49 : vector<16x1xf32>
    %51 = arith.negf %50 : vector<16x1xf32>
    %52 = math.exp %51 : vector<16x1xf32>
    %cst_47 = arith.constant 1.000000e+00 : f32
    %53 = vector.broadcast %cst_47 : f32 to vector<16x1xf32>
    %54 = arith.addf %53, %52 : vector<16x1xf32>
    %55 = arith.divf %53, %54 : vector<16x1xf32>
    %56 = vector.broadcast %55 : vector<16x1xf32> to vector<16x64xf32>
    %57 = arith.mulf %3, %56 : vector<16x64xf32>
    %cst_48 = arith.constant dense<0.000000e+00> : vector<16xf32>
    %58 = vector.multi_reduction <add>, %57, %cst_48 [1] : vector<16x64xf32> to vector<16xf32>
    %59 = vector.shape_cast %58 : vector<16xf32> to vector<16x1xf32>
    %cst_49 = arith.constant 6.400000e+01 : f32
    %60 = vector.broadcast %cst_49 : f32 to vector<16x1xf32>
    %61 = arith.divf %59, %60 : vector<16x1xf32>
    %c0_50 = arith.constant 0 : index
    %c0_51 = arith.constant 0 : index
    %62 = vector.load %arg6[%c0_50, %c0_51] : memref<8x16xf32, #tpu.memory_space<vmem>>, vector<8x16xf32>
    %cst_52 = arith.constant dense<0.000000e+00> : vector<8x1xf32>
    %63 = tpu.matmul %62, %61, %cst_52 {dimension_numbers = #tpu.dot_dimension_numbers<[1], [0], [0], [1], [0, 0, 1, 1], [], []>} : vector<8x16xf32>, vector<16x1xf32>, vector<8x1xf32> -> vector<8x1xf32>
    %c0_53 = arith.constant 0 : index
    %c0_54 = arith.constant 0 : index
    %64 = vector.load %arg7[%c0_53, %c0_54] : memref<8x1xf32, #tpu.memory_space<vmem>>, vector<8x1xf32>
    %65 = arith.addf %63, %64 : vector<8x1xf32>
    %c0_55 = arith.constant 0 : index
    %c0_56 = arith.constant 0 : index
    %66 = vector.load %arg8[%c0_55, %c0_56] : memref<2x8xf32, #tpu.memory_space<vmem>>, vector<2x8xf32>
    %cst_57 = arith.constant dense<0.000000e+00> : vector<2x1xf32>
    %67 = tpu.matmul %66, %65, %cst_57 {dimension_numbers = #tpu.dot_dimension_numbers<[1], [0], [0], [1], [0, 0, 1, 1], [], []>} : vector<2x8xf32>, vector<8x1xf32>, vector<2x1xf32> -> vector<2x1xf32>
    %c0_58 = arith.constant 0 : index
    %c0_59 = arith.constant 0 : index
    %68 = vector.load %arg9[%c0_58, %c0_59] : memref<2x1xf32, #tpu.memory_space<vmem>>, vector<2x1xf32>
    %69 = arith.addf %67, %68 : vector<2x1xf32>
    %cst_60 = arith.constant 0.000000e+00 : f32
    %70 = vector.broadcast %cst_60 : f32 to vector<2x1xf32>
    %71 = arith.maximumf %69, %70 : vector<2x1xf32>
    %c0_61 = arith.constant 0 : index
    %c0_62 = arith.constant 0 : index
    %72 = vector.load %arg10[%c0_61, %c0_62] : memref<8x2xf32, #tpu.memory_space<vmem>>, vector<8x2xf32>
    %cst_63 = arith.constant dense<0.000000e+00> : vector<8x1xf32>
    %73 = tpu.matmul %72, %71, %cst_63 {dimension_numbers = #tpu.dot_dimension_numbers<[1], [0], [0], [1], [0, 0, 1, 1], [], []>} : vector<8x2xf32>, vector<2x1xf32>, vector<8x1xf32> -> vector<8x1xf32>
    %c0_64 = arith.constant 0 : index
    %c0_65 = arith.constant 0 : index
    %74 = vector.load %arg11[%c0_64, %c0_65] : memref<8x1xf32, #tpu.memory_space<vmem>>, vector<8x1xf32>
    %75 = arith.addf %73, %74 : vector<8x1xf32>
    %76 = arith.negf %75 : vector<8x1xf32>
    %77 = math.exp %76 : vector<8x1xf32>
    %cst_66 = arith.constant 1.000000e+00 : f32
    %78 = vector.broadcast %cst_66 : f32 to vector<8x1xf32>
    %79 = arith.addf %78, %77 : vector<8x1xf32>
    %80 = arith.divf %78, %79 : vector<8x1xf32>
    %81 = vector.broadcast %80 : vector<8x1xf32> to vector<8x256xf32>
    %82 = arith.mulf %1, %81 : vector<8x256xf32>
    %c0_67 = arith.constant 0 : index
    %83 = memref.load %arg1[%c0_67] : memref<10xf32, #tpu.memory_space<smem>>
    %c1 = arith.constant 1 : index
    %84 = memref.load %arg1[%c1] : memref<10xf32, #tpu.memory_space<smem>>
    %c2 = arith.constant 2 : index
    %85 = memref.load %arg1[%c2] : memref<10xf32, #tpu.memory_space<smem>>
    %cst_68 = arith.constant dense<0.000000e+00> : vector<256xf32>
    %86 = vector.multi_reduction <add>, %82, %cst_68 [0] : vector<8x256xf32> to vector<256xf32>
    %87 = vector.shape_cast %86 : vector<256xf32> to vector<1x256xf32>
    %cst_69 = arith.constant 8.000000e+00 : f32
    %88 = vector.broadcast %cst_69 : f32 to vector<1x256xf32>
    %89 = arith.divf %87, %88 : vector<1x256xf32>
    %cst_70 = arith.constant dense<0xFF800000> : vector<256xf32>
    %90 = vector.multi_reduction <maximumf>, %82, %cst_70 [0] : vector<8x256xf32> to vector<256xf32>
    %91 = vector.shape_cast %90 : vector<256xf32> to vector<1x256xf32>
    %92 = vector.broadcast %83 : f32 to vector<1x256xf32>
    %93 = arith.mulf %92, %89 : vector<1x256xf32>
    %94 = vector.broadcast %84 : f32 to vector<1x256xf32>
    %95 = arith.mulf %94, %91 : vector<1x256xf32>
    %96 = arith.addf %93, %95 : vector<1x256xf32>
    %97 = vector.broadcast %85 : f32 to vector<1x256xf32>
    %98 = arith.addf %96, %97 : vector<1x256xf32>
    %99 = arith.negf %98 : vector<1x256xf32>
    %100 = math.exp %99 : vector<1x256xf32>
    %cst_71 = arith.constant 1.000000e+00 : f32
    %101 = vector.broadcast %cst_71 : f32 to vector<1x256xf32>
    %102 = arith.addf %101, %100 : vector<1x256xf32>
    %103 = arith.divf %101, %102 : vector<1x256xf32>
    %c0_72 = arith.constant 0 : index
    %c0_73 = arith.constant 0 : index
    %104 = vector.load %arg24[%c0_72, %c0_73] : memref<64x256xf32, #tpu.memory_space<vmem>>, vector<64x256xf32>
    %cst_74 = arith.constant dense<0.000000e+00> : vector<16x256xf32>
    %105 = tpu.matmul %57, %104, %cst_74 {dimension_numbers = #tpu.dot_dimension_numbers<[1], [0], [0], [1], [0, 0, 1, 1], [], []>} : vector<16x64xf32>, vector<64x256xf32>, vector<16x256xf32> -> vector<16x256xf32>
    %106 = vector.broadcast %103 : vector<1x256xf32> to vector<16x256xf32>
    %107 = arith.mulf %106, %105 : vector<16x256xf32>
    %c3 = arith.constant 3 : index
    %108 = memref.load %arg1[%c3] : memref<10xf32, #tpu.memory_space<smem>>
    %c4 = arith.constant 4 : index
    %109 = memref.load %arg1[%c4] : memref<10xf32, #tpu.memory_space<smem>>
    %c5 = arith.constant 5 : index
    %110 = memref.load %arg1[%c5] : memref<10xf32, #tpu.memory_space<smem>>
    %cst_75 = arith.constant dense<0.000000e+00> : vector<256xf32>
    %111 = vector.multi_reduction <add>, %107, %cst_75 [0] : vector<16x256xf32> to vector<256xf32>
    %112 = vector.shape_cast %111 : vector<256xf32> to vector<1x256xf32>
    %cst_76 = arith.constant 1.600000e+01 : f32
    %113 = vector.broadcast %cst_76 : f32 to vector<1x256xf32>
    %114 = arith.divf %112, %113 : vector<1x256xf32>
    %cst_77 = arith.constant dense<0xFF800000> : vector<256xf32>
    %115 = vector.multi_reduction <maximumf>, %107, %cst_77 [0] : vector<16x256xf32> to vector<256xf32>
    %116 = vector.shape_cast %115 : vector<256xf32> to vector<1x256xf32>
    %117 = vector.broadcast %108 : f32 to vector<1x256xf32>
    %118 = arith.mulf %117, %114 : vector<1x256xf32>
    %119 = vector.broadcast %109 : f32 to vector<1x256xf32>
    %120 = arith.mulf %119, %116 : vector<1x256xf32>
    %121 = arith.addf %118, %120 : vector<1x256xf32>
    %122 = vector.broadcast %110 : f32 to vector<1x256xf32>
    %123 = arith.addf %121, %122 : vector<1x256xf32>
    %124 = arith.negf %123 : vector<1x256xf32>
    %125 = math.exp %124 : vector<1x256xf32>
    %cst_78 = arith.constant 1.000000e+00 : f32
    %126 = vector.broadcast %cst_78 : f32 to vector<1x256xf32>
    %127 = arith.addf %126, %125 : vector<1x256xf32>
    %128 = arith.divf %126, %127 : vector<1x256xf32>
    %c0_79 = arith.constant 0 : index
    %c0_80 = arith.constant 0 : index
    %129 = vector.load %arg25[%c0_79, %c0_80] : memref<16x256xf32, #tpu.memory_space<vmem>>, vector<16x256xf32>
    %cst_81 = arith.constant dense<0.000000e+00> : vector<32x256xf32>
    %130 = tpu.matmul %32, %129, %cst_81 {dimension_numbers = #tpu.dot_dimension_numbers<[1], [0], [0], [1], [0, 0, 1, 1], [], []>} : vector<32x16xf32>, vector<16x256xf32>, vector<32x256xf32> -> vector<32x256xf32>
    %131 = vector.broadcast %128 : vector<1x256xf32> to vector<32x256xf32>
    %132 = arith.mulf %131, %130 : vector<32x256xf32>
    %c6 = arith.constant 6 : index
    %133 = memref.load %arg1[%c6] : memref<10xf32, #tpu.memory_space<smem>>
    %c7 = arith.constant 7 : index
    %134 = memref.load %arg1[%c7] : memref<10xf32, #tpu.memory_space<smem>>
    %c8 = arith.constant 8 : index
    %135 = memref.load %arg1[%c8] : memref<10xf32, #tpu.memory_space<smem>>
    %cst_82 = arith.constant dense<0.000000e+00> : vector<256xf32>
    %136 = vector.multi_reduction <add>, %132, %cst_82 [0] : vector<32x256xf32> to vector<256xf32>
    %137 = vector.shape_cast %136 : vector<256xf32> to vector<1x256xf32>
    %cst_83 = arith.constant 3.200000e+01 : f32
    %138 = vector.broadcast %cst_83 : f32 to vector<1x256xf32>
    %139 = arith.divf %137, %138 : vector<1x256xf32>
    %cst_84 = arith.constant dense<0xFF800000> : vector<256xf32>
    %140 = vector.multi_reduction <maximumf>, %132, %cst_84 [0] : vector<32x256xf32> to vector<256xf32>
    %141 = vector.shape_cast %140 : vector<256xf32> to vector<1x256xf32>
    %142 = vector.broadcast %133 : f32 to vector<1x256xf32>
    %143 = arith.mulf %142, %139 : vector<1x256xf32>
    %144 = vector.broadcast %134 : f32 to vector<1x256xf32>
    %145 = arith.mulf %144, %141 : vector<1x256xf32>
    %146 = arith.addf %143, %145 : vector<1x256xf32>
    %147 = vector.broadcast %135 : f32 to vector<1x256xf32>
    %148 = arith.addf %146, %147 : vector<1x256xf32>
    %149 = arith.negf %148 : vector<1x256xf32>
    %150 = math.exp %149 : vector<1x256xf32>
    %cst_85 = arith.constant 1.000000e+00 : f32
    %151 = vector.broadcast %cst_85 : f32 to vector<1x256xf32>
    %152 = arith.addf %151, %150 : vector<1x256xf32>
    %153 = arith.divf %151, %152 : vector<1x256xf32>
    %c0_86 = arith.constant 0 : index
    %c0_87 = arith.constant 0 : index
    %154 = vector.load %arg26[%c0_86, %c0_87] : memref<4x256xf32, #tpu.memory_space<vmem>>, vector<4x256xf32>
    %cst_88 = arith.constant dense<0.000000e+00> : vector<64x256xf32>
    %155 = tpu.matmul %7, %154, %cst_88 {dimension_numbers = #tpu.dot_dimension_numbers<[1], [0], [0], [1], [0, 0, 1, 1], [], []>} : vector<64x4xf32>, vector<4x256xf32>, vector<64x256xf32> -> vector<64x256xf32>
    %156 = vector.broadcast %153 : vector<1x256xf32> to vector<64x256xf32>
    %157 = arith.mulf %156, %155 : vector<64x256xf32>
    %c0_89 = arith.constant 0 : index
    %c0_90 = arith.constant 0 : index
    %158 = vector.load %arg27[%c0_89, %c0_90] : memref<1x8xf32, #tpu.memory_space<vmem>>, vector<1x8xf32>
    %cst_91 = arith.constant dense<0.000000e+00> : vector<1x256xf32>
    %159 = tpu.matmul %158, %82, %cst_91 {dimension_numbers = #tpu.dot_dimension_numbers<[1], [0], [0], [1], [0, 0, 1, 1], [], []>} : vector<1x8xf32>, vector<8x256xf32>, vector<1x256xf32> -> vector<1x256xf32>
    %c0_92 = arith.constant 0 : index
    %c0_93 = arith.constant 0 : index
    %160 = vector.load %arg28[%c0_92, %c0_93] : memref<1x16xf32, #tpu.memory_space<vmem>>, vector<1x16xf32>
    %cst_94 = arith.constant dense<0.000000e+00> : vector<1x256xf32>
    %161 = tpu.matmul %160, %107, %cst_94 {dimension_numbers = #tpu.dot_dimension_numbers<[1], [0], [0], [1], [0, 0, 1, 1], [], []>} : vector<1x16xf32>, vector<16x256xf32>, vector<1x256xf32> -> vector<1x256xf32>
    %162 = arith.addf %159, %161 : vector<1x256xf32>
    %c0_95 = arith.constant 0 : index
    %c0_96 = arith.constant 0 : index
    %163 = vector.load %arg29[%c0_95, %c0_96] : memref<1x32xf32, #tpu.memory_space<vmem>>, vector<1x32xf32>
    %cst_97 = arith.constant dense<0.000000e+00> : vector<1x256xf32>
    %164 = tpu.matmul %163, %132, %cst_97 {dimension_numbers = #tpu.dot_dimension_numbers<[1], [0], [0], [1], [0, 0, 1, 1], [], []>} : vector<1x32xf32>, vector<32x256xf32>, vector<1x256xf32> -> vector<1x256xf32>
    %165 = arith.addf %162, %164 : vector<1x256xf32>
    %c0_98 = arith.constant 0 : index
    %c0_99 = arith.constant 0 : index
    %166 = vector.load %arg30[%c0_98, %c0_99] : memref<1x64xf32, #tpu.memory_space<vmem>>, vector<1x64xf32>
    %cst_100 = arith.constant dense<0.000000e+00> : vector<1x256xf32>
    %167 = tpu.matmul %166, %157, %cst_100 {dimension_numbers = #tpu.dot_dimension_numbers<[1], [0], [0], [1], [0, 0, 1, 1], [], []>} : vector<1x64xf32>, vector<64x256xf32>, vector<1x256xf32> -> vector<1x256xf32>
    %168 = arith.addf %165, %167 : vector<1x256xf32>
    %c9 = arith.constant 9 : index
    %169 = memref.load %arg1[%c9] : memref<10xf32, #tpu.memory_space<smem>>
    %170 = vector.broadcast %169 : f32 to vector<1x256xf32>
    %171 = arith.addf %168, %170 : vector<1x256xf32>
    %172 = arith.truncf %171 : vector<1x256xf32> to vector<1x256xbf16>
    %c0_101 = arith.constant 0 : index
    %c0_102 = arith.constant 0 : index
    %173 = vector.load %arg31[%c0_101, %c0_102] : memref<256x4096xbf16, #tpu.memory_space<vmem>>, vector<256x4096xbf16>
    %cst_103 = arith.constant dense<0.000000e+00> : vector<1x4096xf32>
    %174 = tpu.matmul %172, %173, %cst_103 {dimension_numbers = #tpu.dot_dimension_numbers<[1], [0], [0], [1], [0, 0, 1, 1], [], []>} : vector<1x256xbf16>, vector<256x4096xbf16>, vector<1x4096xf32> -> vector<1x4096xf32>
    %175 = arith.negf %174 : vector<1x4096xf32>
    %176 = math.exp %175 : vector<1x4096xf32>
    %cst_104 = arith.constant 1.000000e+00 : f32
    %177 = vector.broadcast %cst_104 : f32 to vector<1x4096xf32>
    %178 = arith.addf %177, %176 : vector<1x4096xf32>
    %179 = arith.divf %177, %178 : vector<1x4096xf32>
    %c0_105 = arith.constant 0 : index
    %c0_106 = arith.constant 0 : index
    %c0_107 = arith.constant 0 : index
    %180 = vector.load %arg32[%c0_105, %c0_106, %c0_107] : memref<1x1x4096xf32, #tpu.memory_space<vmem>>, vector<1x1x4096xf32>
    %181 = vector.shape_cast %180 : vector<1x1x4096xf32> to vector<1x4096xf32>
    %182 = vector.shape_cast %179 : vector<1x4096xf32> to vector<1x1x4096xf32>
    tpu.vector_store %arg32[%c0_105, %c0_106, %c0_107], %182 {strides = array<i32>} : memref<1x1x4096xf32, #tpu.memory_space<vmem>>, vector<1x1x4096xf32>,
    return
  }
  func.func @transform_0(%arg0: i32) -> i32 {
    %c0_i32 = arith.constant 0 : i32
    %c0_i32_0 = arith.constant 0 : i32
    return %c0_i32 : i32
  }
  func.func @transform_1(%arg0: i32) -> (i32, i32, i32) {
    %c0_i32 = arith.constant 0 : i32
    %c0_i32_0 = arith.constant 0 : i32
    %c0_i32_1 = arith.constant 0 : i32
    return %arg0, %c0_i32, %c0_i32_0 : i32, i32, i32
  }
  func.func @transform_2(%arg0: i32) -> (i32, i32, i32) {
    %c0_i32 = arith.constant 0 : i32
    %c0_i32_0 = arith.constant 0 : i32
    %c0_i32_1 = arith.constant 0 : i32
    return %arg0, %c0_i32, %c0_i32_0 : i32, i32, i32
  }
  func.func @transform_3(%arg0: i32) -> (i32, i32, i32) {
    %c0_i32 = arith.constant 0 : i32
    %c0_i32_0 = arith.constant 0 : i32
    %c0_i32_1 = arith.constant 0 : i32
    return %arg0, %c0_i32, %c0_i32_0 : i32, i32, i32
  }
  func.func @transform_4(%arg0: i32) -> (i32, i32, i32) {
    %c0_i32 = arith.constant 0 : i32
    %c0_i32_0 = arith.constant 0 : i32
    %c0_i32_1 = arith.constant 0 : i32
    return %arg0, %c0_i32, %c0_i32_0 : i32, i32, i32
  }
  func.func @transform_5(%arg0: i32) -> (i32, i32) {
    %c0_i32 = arith.constant 0 : i32
    %c0_i32_0 = arith.constant 0 : i32
    %c0_i32_1 = arith.constant 0 : i32
    return %c0_i32, %c0_i32_0 : i32, i32
  }
  func.func @transform_6(%arg0: i32) -> (i32, i32) {
    %c0_i32 = arith.constant 0 : i32
    %c0_i32_0 = arith.constant 0 : i32
    %c0_i32_1 = arith.constant 0 : i32
    return %c0_i32, %c0_i32_0 : i32, i32
  }
  func.func @transform_7(%arg0: i32) -> (i32, i32) {
    %c0_i32 = arith.constant 0 : i32
    %c0_i32_0 = arith.constant 0 : i32
    %c0_i32_1 = arith.constant 0 : i32
    return %c0_i32, %c0_i32_0 : i32, i32
  }
  func.func @transform_8(%arg0: i32) -> (i32, i32) {
    %c0_i32 = arith.constant 0 : i32
    %c0_i32_0 = arith.constant 0 : i32
    %c0_i32_1 = arith.constant 0 : i32
    return %c0_i32, %c0_i32_0 : i32, i32
  }
  func.func @transform_9(%arg0: i32) -> (i32, i32) {
    %c0_i32 = arith.constant 0 : i32
    %c0_i32_0 = arith.constant 0 : i32
    %c0_i32_1 = arith.constant 0 : i32
    return %c0_i32, %c0_i32_0 : i32, i32
  }
  func.func @transform_10(%arg0: i32) -> (i32, i32) {
    %c0_i32 = arith.constant 0 : i32
    %c0_i32_0 = arith.constant 0 : i32
    %c0_i32_1 = arith.constant 0 : i32
    return %c0_i32, %c0_i32_0 : i32, i32
  }
  func.func @transform_11(%arg0: i32) -> (i32, i32) {
    %c0_i32 = arith.constant 0 : i32
    %c0_i32_0 = arith.constant 0 : i32
    %c0_i32_1 = arith.constant 0 : i32
    return %c0_i32, %c0_i32_0 : i32, i32
  }
  func.func @transform_12(%arg0: i32) -> (i32, i32) {
    %c0_i32 = arith.constant 0 : i32
    %c0_i32_0 = arith.constant 0 : i32
    %c0_i32_1 = arith.constant 0 : i32
    return %c0_i32, %c0_i32_0 : i32, i32
  }
  func.func @transform_13(%arg0: i32) -> (i32, i32) {
    %c0_i32 = arith.constant 0 : i32
    %c0_i32_0 = arith.constant 0 : i32
    %c0_i32_1 = arith.constant 0 : i32
    return %c0_i32, %c0_i32_0 : i32, i32
  }
  func.func @transform_14(%arg0: i32) -> (i32, i32) {
    %c0_i32 = arith.constant 0 : i32
    %c0_i32_0 = arith.constant 0 : i32
    %c0_i32_1 = arith.constant 0 : i32
    return %c0_i32, %c0_i32_0 : i32, i32
  }
  func.func @transform_15(%arg0: i32) -> (i32, i32) {
    %c0_i32 = arith.constant 0 : i32
    %c0_i32_0 = arith.constant 0 : i32
    %c0_i32_1 = arith.constant 0 : i32
    return %c0_i32, %c0_i32_0 : i32, i32
  }
  func.func @transform_16(%arg0: i32) -> (i32, i32) {
    %c0_i32 = arith.constant 0 : i32
    %c0_i32_0 = arith.constant 0 : i32
    %c0_i32_1 = arith.constant 0 : i32
    return %c0_i32, %c0_i32_0 : i32, i32
  }
  func.func @transform_17(%arg0: i32) -> (i32, i32) {
    %c0_i32 = arith.constant 0 : i32
    %c0_i32_0 = arith.constant 0 : i32
    %c0_i32_1 = arith.constant 0 : i32
    return %c0_i32, %c0_i32_0 : i32, i32
  }
  func.func @transform_18(%arg0: i32) -> (i32, i32) {
    %c0_i32 = arith.constant 0 : i32
    %c0_i32_0 = arith.constant 0 : i32
    %c0_i32_1 = arith.constant 0 : i32
    return %c0_i32, %c0_i32_0 : i32, i32
  }
  func.func @transform_19(%arg0: i32) -> (i32, i32) {
    %c0_i32 = arith.constant 0 : i32
    %c0_i32_0 = arith.constant 0 : i32
    %c0_i32_1 = arith.constant 0 : i32
    return %c0_i32, %c0_i32_0 : i32, i32
  }
  func.func @transform_20(%arg0: i32) -> (i32, i32) {
    %c0_i32 = arith.constant 0 : i32
    %c0_i32_0 = arith.constant 0 : i32
    %c0_i32_1 = arith.constant 0 : i32
    return %c0_i32, %c0_i32_0 : i32, i32
  }
  func.func @transform_21(%arg0: i32) -> (i32, i32) {
    %c0_i32 = arith.constant 0 : i32
    %c0_i32_0 = arith.constant 0 : i32
    %c0_i32_1 = arith.constant 0 : i32
    return %c0_i32, %c0_i32_0 : i32, i32
  }
  func.func @transform_22(%arg0: i32) -> (i32, i32) {
    %c0_i32 = arith.constant 0 : i32
    %c0_i32_0 = arith.constant 0 : i32
    %c0_i32_1 = arith.constant 0 : i32
    return %c0_i32, %c0_i32_0 : i32, i32
  }
  func.func @transform_23(%arg0: i32) -> (i32, i32) {
    %c0_i32 = arith.constant 0 : i32
    %c0_i32_0 = arith.constant 0 : i32
    %c0_i32_1 = arith.constant 0 : i32
    return %c0_i32, %c0_i32_0 : i32, i32
  }
  func.func @transform_24(%arg0: i32) -> (i32, i32) {
    %c0_i32 = arith.constant 0 : i32
    %c0_i32_0 = arith.constant 0 : i32
    %c0_i32_1 = arith.constant 0 : i32
    return %c0_i32, %c0_i32_0 : i32, i32
  }
  func.func @transform_25(%arg0: i32) -> (i32, i32) {
    %c0_i32 = arith.constant 0 : i32
    %c0_i32_0 = arith.constant 0 : i32
    %c0_i32_1 = arith.constant 0 : i32
    return %c0_i32, %c0_i32_0 : i32, i32
  }
  func.func @transform_26(%arg0: i32) -> (i32, i32) {
    %c0_i32 = arith.constant 0 : i32
    %c0_i32_0 = arith.constant 0 : i32
    %c0_i32_1 = arith.constant 0 : i32
    return %c0_i32, %c0_i32_0 : i32, i32
  }
  func.func @transform_27(%arg0: i32) -> (i32, i32) {
    %c0_i32 = arith.constant 0 : i32
    %c0_i32_0 = arith.constant 0 : i32
    %c0_i32_1 = arith.constant 0 : i32
    return %c0_i32, %c0_i32_0 : i32, i32
  }
  func.func @transform_28(%arg0: i32) -> (i32, i32) {
    %c0_i32 = arith.constant 0 : i32
    %c0_i32_0 = arith.constant 0 : i32
    %c0_i32_1 = arith.constant 0 : i32
    return %c0_i32, %c0_i32_0 : i32, i32
  }
  func.func @transform_29(%arg0: i32) -> (i32, i32) {
    %c0_i32 = arith.constant 0 : i32
    %c0_i32_0 = arith.constant 0 : i32
    %c0_i32_1 = arith.constant 0 : i32
    return %c0_i32, %c0_i32_0 : i32, i32
  }
  func.func @transform_30(%arg0: i32) -> (i32, i32) {
    %c0_i32 = arith.constant 0 : i32
    %c0_i32_0 = arith.constant 0 : i32
    %c0_i32_1 = arith.constant 0 : i32
    return %c0_i32, %c0_i32_0 : i32, i32
  }
  func.func @transform_31(%arg0: i32) -> (i32, i32, i32) {
    %c0_i32 = arith.constant 0 : i32
    %c0_i32_0 = arith.constant 0 : i32
    %c0_i32_1 = arith.constant 0 : i32
    return %arg0, %c0_i32, %c0_i32_0 : i32, i32, i32
  }
}

</mosaic_0001>

<llo_original>
// kernel: two_branch_forward.1
$region0: #{two_branch_forward.1}
  #allocation0 [shape = 'u32[]', space=smem, size = 0x4, offset = 0x4, fixed_abs, tag = 'smem constant byte address 0x4 - core index']
  #allocation1 [shape = 'u32[144,128]{1,0:T(1,128)}', space=vmem, size = 0x12000, scoped, tag = 'internal scratch']
  %s0 = inlined_call_operand.smem [shape: u32[32], index: -1, kind: input, shape index: {}]
  %s1 = sld [smem:[%s0]]
  %s2 = scalar_lea.smem %s0, 1
  %s3 = sld [smem:[%s2]]
  %s4 = scalar_lea.smem %s0, 2
  %s5 = sld [smem:[%s4]]
  %s6 = scalar_lea.smem %s0, 3
  %s7 = sld [smem:[%s6]]
  %s8 = scalar_lea.smem %s0, 4
  %s9 = sld [smem:[%s8]]
  %s10 = scalar_lea.smem %s0, 5
  %s11 = sld [smem:[%s10]]
  %s12 = scalar_lea.smem %s0, 6
  %s13 = sld [smem:[%s12]]
  %s14 = scalar_lea.smem %s0, 7
  %s15 = sld [smem:[%s14]]
  %s16 = scalar_lea.smem %s0, 8
  %s17 = sld [smem:[%s16]]
  %s18 = scalar_lea.smem %s0, 9
  %s19 = sld [smem:[%s18]]
  %s20 = scalar_lea.smem %s0, 10
  %s21 = sld [smem:[%s20]]
  %s22 = scalar_lea.smem %s0, 11
  %s23 = sld [smem:[%s22]]
  %s24 = scalar_lea.smem %s0, 12
  %s25 = sld [smem:[%s24]]
  %s26 = scalar_lea.smem %s0, 13
  %s27 = sld [smem:[%s26]]
  %s28 = scalar_lea.smem %s0, 14
  %s29 = sld [smem:[%s28]]
  %s30 = scalar_lea.smem %s0, 15
  %s31 = sld [smem:[%s30]]
  %s32 = scalar_lea.smem %s0, 16
  %s33 = sld [smem:[%s32]]
  %s34 = scalar_lea.smem %s0, 17
  %s35 = sld [smem:[%s34]]
  %s36 = scalar_lea.smem %s0, 18
  %s37 = sld [smem:[%s36]]
  %s38 = scalar_lea.smem %s0, 19
  %s39 = sld [smem:[%s38]]
  %s40 = scalar_lea.smem %s0, 20
  %s41 = sld [smem:[%s40]]
  %s42 = scalar_lea.smem %s0, 21
  %s43 = sld [smem:[%s42]]
  %s44 = scalar_lea.smem %s0, 22
  %s45 = sld [smem:[%s44]]
  %s46 = scalar_lea.smem %s0, 23
  %s47 = sld [smem:[%s46]]
  %s48 = scalar_lea.smem %s0, 24
  %s49 = sld [smem:[%s48]]
  %s50 = scalar_lea.smem %s0, 25
  %s51 = sld [smem:[%s50]]
  %s52 = scalar_lea.smem %s0, 26
  %s53 = sld [smem:[%s52]]
  %s54 = scalar_lea.smem %s0, 27
  %s55 = sld [smem:[%s54]]
  %s56 = scalar_lea.smem %s0, 28
  %s57 = sld [smem:[%s56]]
  %s58 = scalar_lea.smem %s0, 29
  %s59 = sld [smem:[%s58]]
  %s60 = scalar_lea.smem %s0, 30
  %s61 = sld [smem:[%s60]]
  %s62 = scalar_lea.smem %s0, 31
  %s63 = sld [smem:[%s62]]
  %s64 = sld [smem:[#allocation0]]
  $region161: #{two_branch_forward.1} parent=0
    _
  %s66 = ssub.s32 1, %s64
  %s67 = scalar_select 0, %s66, %s64
  $region1: #{two_branch_forward.1} parent=0
    #allocation2 [shape = 'u8[512]{0}', space=smem, size = 0x200, scoped, tag = 'input window, operand 0, single buffered']
    #allocation3 [shape = 's32[2]{0}', space=sflag, size = 0x8, scoped, tag = 'scoped memory for two_branch_forward.1']
    %68 = vsyncpa [#allocation3], 0
    loop: start=0, step=1, limit=4
    $region2: #{two_branch_forward.1} parent=1 // loop_pre_header
      _
    $region3: #{two_branch_forward.1} parent=1 // loop_header
      %s70 = sphi 0, %s74
      %p71 = scmp.ge.s32.totalorder %s70, 4
      %s78 = sphi 0, %s78
      %s80 = sphi 0, %s78
      %s81 = sphi 0, %s80
      %s95 = sphi 0, %s81
      %s101 = sphi 0, %s103
      %s104 = sphi 0, %s101
      %s105 = sphi 0, %s104
      %s121 = sphi 0, %s105
      %s127 = sphi 0, %s129
      %s130 = sphi 0, %s127
      %s131 = sphi 0, %s130
      %s147 = sphi 0, %s131
      %s153 = sphi 0, %s155
      %s156 = sphi 0, %s153
      %s157 = sphi 0, %s156
      %s173 = sphi 0, %s157
      %s179 = sphi 0, %s181
      %s182 = sphi 0, %s179
      %s183 = sphi 0, %s182
      %s199 = sphi 0, %s183
      %s203 = sphi 0, %s203
      %s205 = sphi 0, %s203
      %s206 = sphi 0, %s205
      %s220 = sphi 0, %s206
      %s224 = sphi 0, %s224
      %s226 = sphi 0, %s224
      %s227 = sphi 0, %s226
      %s241 = sphi 0, %s227
      %s245 = sphi 0, %s245
      %s247 = sphi 0, %s245
      %s248 = sphi 0, %s247
      %s262 = sphi 0, %s248
      %s266 = sphi 0, %s266
      %s268 = sphi 0, %s266
      %s269 = sphi 0, %s268
      %s283 = sphi 0, %s269
      %s287 = sphi 0, %s287
      %s289 = sphi 0, %s287
      %s290 = sphi 0, %s289
      %s304 = sphi 0, %s290
      %s308 = sphi 0, %s308
      %s310 = sphi 0, %s308
      %s311 = sphi 0, %s310
      %s325 = sphi 0, %s311
      %s329 = sphi 0, %s329
      %s331 = sphi 0, %s329
      %s332 = sphi 0, %s331
      %s346 = sphi 0, %s332
      %s350 = sphi 0, %s350
      %s352 = sphi 0, %s350
      %s353 = sphi 0, %s352
      %s367 = sphi 0, %s353
      %s371 = sphi 0, %s371
      %s373 = sphi 0, %s371
      %s374 = sphi 0, %s373
      %s388 = sphi 0, %s374
      %s392 = sphi 0, %s392
      %s394 = sphi 0, %s392
      %s395 = sphi 0, %s394
      %s409 = sphi 0, %s395
      %s413 = sphi 0, %s413
      %s415 = sphi 0, %s413
      %s416 = sphi 0, %s415
      %s430 = sphi 0, %s416
      %s434 = sphi 0, %s434
      %s436 = sphi 0, %s434
      %s437 = sphi 0, %s436
      %s451 = sphi 0, %s437
      %s455 = sphi 0, %s455
      %s457 = sphi 0, %s455
      %s458 = sphi 0, %s457
      %s472 = sphi 0, %s458
      %s476 = sphi 0, %s476
      %s478 = sphi 0, %s476
      %s479 = sphi 0, %s478
      %s493 = sphi 0, %s479
      %s497 = sphi 0, %s497
      %s499 = sphi 0, %s497
      %s500 = sphi 0, %s499
      %s514 = sphi 0, %s500
      %s518 = sphi 0, %s518
      %s520 = sphi 0, %s518
      %s521 = sphi 0, %s520
      %s535 = sphi 0, %s521
      %s539 = sphi 0, %s539
      %s541 = sphi 0, %s539
      %s542 = sphi 0, %s541
      %s556 = sphi 0, %s542
      %s560 = sphi 0, %s560
      %s562 = sphi 0, %s560
      %s563 = sphi 0, %s562
      %s577 = sphi 0, %s563
      %s581 = sphi 0, %s581
      %s583 = sphi 0, %s581
      %s584 = sphi 0, %s583
      %s598 = sphi 0, %s584
      %s602 = sphi 0, %s602
      %s604 = sphi 0, %s602
      %s605 = sphi 0, %s604
      %s619 = sphi 0, %s605
      %s623 = sphi 0, %s623
      %s625 = sphi 0, %s623
      %s626 = sphi 0, %s625
      %s640 = sphi 0, %s626
      %s644 = sphi 0, %s644
      %s646 = sphi 0, %s644
      %s647 = sphi 0, %s646
      %s661 = sphi 0, %s647
      %s665 = sphi 0, %s665
      %s667 = sphi 0, %s665
      %s668 = sphi 0, %s667
      %s682 = sphi 0, %s668
      %s686 = sphi 0, %s686
      %s688 = sphi 0, %s686
      %s689 = sphi 0, %s688
      %s703 = sphi 0, %s689
      %s707 = sphi 0, %s707
      %s709 = sphi 0, %s707
      %s710 = sphi 0, %s709
      %s724 = sphi 0, %s710
      %s728 = sphi 0, %s728
      %s730 = sphi 0, %s728
      %s731 = sphi 0, %s730
      %s745 = sphi 0, %s731
      %s751 = sphi 0, %s753
      %s754 = sphi 0, %s751
      %s755 = sphi 0, %s754
      %s771 = sphi 0, %s755
    $region4: #{two_branch_forward.1} parent=1 // loop_header_branch
      %73 = sbr.rel (%p71) target = $region8
    $region5: #{two_branch_forward.1} parent=1 // loop_body
      %s75 = ssub.s32 %s70, 1
      %s76 = ssub.s32 %s70, 2
      %s77 = sadd.s32 %s70, 1
      %s79 = sadd.s32 %s78, 1
      %p82 = scmp.eq.s32.totalorder %s70, 1
      %p83 = scmp.ne.s32.totalorder %s78, %s80
      %p84 = scmp.eq.s32.totalorder %s70, 0
      %p85 = por %p83, %p84
      %p86 = scmp.ne.s32.totalorder %s78, %s80
      %p87 = scmp.eq.s32.totalorder %s75, 1
      %p88 = por %p86, %p87
      %p89 = scmp.ne.s32.totalorder %s80, %s81
      %p90 = scmp.eq.s32.totalorder %s75, 0
      %p91 = por %p89, %p90
      %p92 = scmp.ne.s32.totalorder %s80, %s81
      %p93 = scmp.eq.s32.totalorder %s76, 1
      %p94 = por %p92, %p93
      %p96 = scmp.ne.s32.totalorder %s81, %s95
      %p97 = scmp.eq.s32.totalorder %s76, 0
      %p98 = por %p96, %p97
      %s99 = ssub.s32 %s70, %s77
      %p100 = scmp.eq.s32.totalorder %s99, 0
      %s102 = sadd.s32 %s101, 1
      %s103 = scalar_select %p100, %s101, %s102
      %p106 = pneg %p100
      %p107 = scmp.eq.s32.totalorder %s70, 1
      %p108 = por %p106, %p107
      %p109 = scmp.ne.s32.totalorder %s101, %s104
      %p110 = scmp.eq.s32.totalorder %s70, 0
      %p111 = por %p109, %p110
      %p112 = scmp.ne.s32.totalorder %s101, %s104
      %p113 = scmp.eq.s32.totalorder %s75, 1
      %p114 = por %p112, %p113
      %p115 = scmp.ne.s32.totalorder %s104, %s105
      %p116 = scmp.eq.s32.totalorder %s75, 0
      %p117 = por %p115, %p116
      %p118 = scmp.ne.s32.totalorder %s104, %s105
      %p119 = scmp.eq.s32.totalorder %s76, 1
      %p120 = por %p118, %p119
      %p122 = scmp.ne.s32.totalorder %s105, %s121
      %p123 = scmp.eq.s32.totalorder %s76, 0
      %p124 = por %p122, %p123
      %s125 = ssub.s32 %s70, %s77
      %p126 = scmp.eq.s32.totalorder %s125, 0
      %s128 = sadd.s32 %s127, 1
      %s129 = scalar_select %p126, %s127, %s128
      %p132 = pneg %p126
      %p133 = scmp.eq.s32.totalorder %s70, 1
      %p134 = por %p132, %p133
      %p135 = scmp.ne.s32.totalorder %s127, %s130
      %p136 = scmp.eq.s32.totalorder %s70, 0
      %p137 = por %p135, %p136
      %p138 = scmp.ne.s32.totalorder %s127, %s130
      %p139 = scmp.eq.s32.totalorder %s75, 1
      %p140 = por %p138, %p139
      %p141 = scmp.ne.s32.totalorder %s130, %s131
      %p142 = scmp.eq.s32.totalorder %s75, 0
      %p143 = por %p141, %p142
      %p144 = scmp.ne.s32.totalorder %s130, %s131
      %p145 = scmp.eq.s32.totalorder %s76, 1
      %p146 = por %p144, %p145
      %p148 = scmp.ne.s32.totalorder %s131, %s147
      %p149 = scmp.eq.s32.totalorder %s76, 0
      %p150 = por %p148, %p149
      %s151 = ssub.s32 %s70, %s77
      %p152 = scmp.eq.s32.totalorder %s151, 0
      %s154 = sadd.s32 %s153, 1
      %s155 = scalar_select %p152, %s153, %s154
      %p158 = pneg %p152
      %p159 = scmp.eq.s32.totalorder %s70, 1
      %p160 = por %p158, %p159
      %p161 = scmp.ne.s32.totalorder %s153, %s156
      %p162 = scmp.eq.s32.totalorder %s70, 0
      %p163 = por %p161, %p162
      %p164 = scmp.ne.s32.totalorder %s153, %s156
      %p165 = scmp.eq.s32.totalorder %s75, 1
      %p166 = por %p164, %p165
      %p167 = scmp.ne.s32.totalorder %s156, %s157
      %p168 = scmp.eq.s32.totalorder %s75, 0
      %p169 = por %p167, %p168
      %p170 = scmp.ne.s32.totalorder %s156, %s157
      %p171 = scmp.eq.s32.totalorder %s76, 1
      %p172 = por %p170, %p171
      %p174 = scmp.ne.s32.totalorder %s157, %s173
      %p175 = scmp.eq.s32.totalorder %s76, 0
      %p176 = por %p174, %p175
      %s177 = ssub.s32 %s70, %s77
      %p178 = scmp.eq.s32.totalorder %s177, 0
      %s180 = sadd.s32 %s179, 1
      %s181 = scalar_select %p178, %s179, %s180
      %p184 = pneg %p178
      %p185 = scmp.eq.s32.totalorder %s70, 1
      %p186 = por %p184, %p185
      %p187 = scmp.ne.s32.totalorder %s179, %s182
      %p188 = scmp.eq.s32.totalorder %s70, 0
      %p189 = por %p187, %p188
      %p190 = scmp.ne.s32.totalorder %s179, %s182
      %p191 = scmp.eq.s32.totalorder %s75, 1
      %p192 = por %p190, %p191
      %p193 = scmp.ne.s32.totalorder %s182, %s183
      %p194 = scmp.eq.s32.totalorder %s75, 0
      %p195 = por %p193, %p194
      %p196 = scmp.ne.s32.totalorder %s182, %s183
      %p197 = scmp.eq.s32.totalorder %s76, 1
      %p198 = por %p196, %p197
      %p200 = scmp.ne.s32.totalorder %s183, %s199
      %p201 = scmp.eq.s32.totalorder %s76, 0
      %p202 = por %p200, %p201
      %s204 = sadd.s32 %s203, 1
      %p207 = scmp.eq.s32.totalorder %s70, 1
      %p208 = scmp.ne.s32.totalorder %s203, %s205
      %p209 = scmp.eq.s32.totalorder %s70, 0
      %p210 = por %p208, %p209
      %p211 = scmp.ne.s32.totalorder %s203, %s205
      %p212 = scmp.eq.s32.totalorder %s75, 1
      %p213 = por %p211, %p212
      %p214 = scmp.ne.s32.totalorder %s205, %s206
      %p215 = scmp.eq.s32.totalorder %s75, 0
      %p216 = por %p214, %p215
      %p217 = scmp.ne.s32.totalorder %s205, %s206
      %p218 = scmp.eq.s32.totalorder %s76, 1
      %p219 = por %p217, %p218
      %p221 = scmp.ne.s32.totalorder %s206, %s220
      %p222 = scmp.eq.s32.totalorder %s76, 0
      %p223 = por %p221, %p222
      %s225 = sadd.s32 %s224, 1
      %p228 = scmp.eq.s32.totalorder %s70, 1
      %p229 = scmp.ne.s32.totalorder %s224, %s226
      %p230 = scmp.eq.s32.totalorder %s70, 0
      %p231 = por %p229, %p230
      %p232 = scmp.ne.s32.totalorder %s224, %s226
      %p233 = scmp.eq.s32.totalorder %s75, 1
      %p234 = por %p232, %p233
      %p235 = scmp.ne.s32.totalorder %s226, %s227
      %p236 = scmp.eq.s32.totalorder %s75, 0
      %p237 = por %p235, %p236
      %p238 = scmp.ne.s32.totalorder %s226, %s227
      %p239 = scmp.eq.s32.totalorder %s76, 1
      %p240 = por %p238, %p239
      %p242 = scmp.ne.s32.totalorder %s227, %s241
      %p243 = scmp.eq.s32.totalorder %s76, 0
      %p244 = por %p242, %p243
      %s246 = sadd.s32 %s245, 1
      %p249 = scmp.eq.s32.totalorder %s70, 1
      %p250 = scmp.ne.s32.totalorder %s245, %s247
      %p251 = scmp.eq.s32.totalorder %s70, 0
      %p252 = por %p250, %p251
      %p253 = scmp.ne.s32.totalorder %s245, %s247
      %p254 = scmp.eq.s32.totalorder %s75, 1
      %p255 = por %p253, %p254
      %p256 = scmp.ne.s32.totalorder %s247, %s248
      %p257 = scmp.eq.s32.totalorder %s75, 0
      %p258 = por %p256, %p257
      %p259 = scmp.ne.s32.totalorder %s247, %s248
      %p260 = scmp.eq.s32.totalorder %s76, 1
      %p261 = por %p259, %p260
      %p263 = scmp.ne.s32.totalorder %s248, %s262
      %p264 = scmp.eq.s32.totalorder %s76, 0
      %p265 = por %p263, %p264
      %s267 = sadd.s32 %s266, 1
      %p270 = scmp.eq.s32.totalorder %s70, 1
      %p271 = scmp.ne.s32.totalorder %s266, %s268
      %p272 = scmp.eq.s32.totalorder %s70, 0
      %p273 = por %p271, %p272
      %p274 = scmp.ne.s32.totalorder %s266, %s268
      %p275 = scmp.eq.s32.totalorder %s75, 1
      %p276 = por %p274, %p275
      %p277 = scmp.ne.s32.totalorder %s268, %s269
      %p278 = scmp.eq.s32.totalorder %s75, 0
      %p279 = por %p277, %p278
      %p280 = scmp.ne.s32.totalorder %s268, %s269
      %p281 = scmp.eq.s32.totalorder %s76, 1
      %p282 = por %p280, %p281
      %p284 = scmp.ne.s32.totalorder %s269, %s283
      %p285 = scmp.eq.s32.totalorder %s76, 0
      %p286 = por %p284, %p285
      %s288 = sadd.s32 %s287, 1
      %p291 = scmp.eq.s32.totalorder %s70, 1
      %p292 = scmp.ne.s32.totalorder %s287, %s289
      %p293 = scmp.eq.s32.totalorder %s70, 0
      %p294 = por %p292, %p293
      %p295 = scmp.ne.s32.totalorder %s287, %s289
      %p296 = scmp.eq.s32.totalorder %s75, 1
      %p297 = por %p295, %p296
      %p298 = scmp.ne.s32.totalorder %s289, %s290
      %p299 = scmp.eq.s32.totalorder %s75, 0
      %p300 = por %p298, %p299
      %p301 = scmp.ne.s32.totalorder %s289, %s290
      %p302 = scmp.eq.s32.totalorder %s76, 1
      %p303 = por %p301, %p302
      %p305 = scmp.ne.s32.totalorder %s290, %s304
      %p306 = scmp.eq.s32.totalorder %s76, 0
      %p307 = por %p305, %p306
      %s309 = sadd.s32 %s308, 1
      %p312 = scmp.eq.s32.totalorder %s70, 1
      %p313 = scmp.ne.s32.totalorder %s308, %s310
      %p314 = scmp.eq.s32.totalorder %s70, 0
      %p315 = por %p313, %p314
      %p316 = scmp.ne.s32.totalorder %s308, %s310
      %p317 = scmp.eq.s32.totalorder %s75, 1
      %p318 = por %p316, %p317
      %p319 = scmp.ne.s32.totalorder %s310, %s311
      %p320 = scmp.eq.s32.totalorder %s75, 0
      %p321 = por %p319, %p320
      %p322 = scmp.ne.s32.totalorder %s310, %s311
      %p323 = scmp.eq.s32.totalorder %s76, 1
      %p324 = por %p322, %p323
      %p326 = scmp.ne.s32.totalorder %s311, %s325
      %p327 = scmp.eq.s32.totalorder %s76, 0
      %p328 = por %p326, %p327
      %s330 = sadd.s32 %s329, 1
      %p333 = scmp.eq.s32.totalorder %s70, 1
      %p334 = scmp.ne.s32.totalorder %s329, %s331
      %p335 = scmp.eq.s32.totalorder %s70, 0
      %p336 = por %p334, %p335
      %p337 = scmp.ne.s32.totalorder %s329, %s331
      %p338 = scmp.eq.s32.totalorder %s75, 1
      %p339 = por %p337, %p338
      %p340 = scmp.ne.s32.totalorder %s331, %s332
      %p341 = scmp.eq.s32.totalorder %s75, 0
      %p342 = por %p340, %p341
      %p343 = scmp.ne.s32.totalorder %s331, %s332
      %p344 = scmp.eq.s32.totalorder %s76, 1
      %p345 = por %p343, %p344
      %p347 = scmp.ne.s32.totalorder %s332, %s346
      %p348 = scmp.eq.s32.totalorder %s76, 0
      %p349 = por %p347, %p348
      %s351 = sadd.s32 %s350, 1
      %p354 = scmp.eq.s32.totalorder %s70, 1
      %p355 = scmp.ne.s32.totalorder %s350, %s352
      %p356 = scmp.eq.s32.totalorder %s70, 0
      %p357 = por %p355, %p356
      %p358 = scmp.ne.s32.totalorder %s350, %s352
      %p359 = scmp.eq.s32.totalorder %s75, 1
      %p360 = por %p358, %p359
      %p361 = scmp.ne.s32.totalorder %s352, %s353
      %p362 = scmp.eq.s32.totalorder %s75, 0
      %p363 = por %p361, %p362
      %p364 = scmp.ne.s32.totalorder %s352, %s353
      %p365 = scmp.eq.s32.totalorder %s76, 1
      %p366 = por %p364, %p365
      %p368 = scmp.ne.s32.totalorder %s353, %s367
      %p369 = scmp.eq.s32.totalorder %s76, 0
      %p370 = por %p368, %p369
      %s372 = sadd.s32 %s371, 1
      %p375 = scmp.eq.s32.totalorder %s70, 1
      %p376 = scmp.ne.s32.totalorder %s371, %s373
      %p377 = scmp.eq.s32.totalorder %s70, 0
      %p378 = por %p376, %p377
      %p379 = scmp.ne.s32.totalorder %s371, %s373
      %p380 = scmp.eq.s32.totalorder %s75, 1
      %p381 = por %p379, %p380
      %p382 = scmp.ne.s32.totalorder %s373, %s374
      %p383 = scmp.eq.s32.totalorder %s75, 0
      %p384 = por %p382, %p383
      %p385 = scmp.ne.s32.totalorder %s373, %s374
      %p386 = scmp.eq.s32.totalorder %s76, 1
      %p387 = por %p385, %p386
      %p389 = scmp.ne.s32.totalorder %s374, %s388
      %p390 = scmp.eq.s32.totalorder %s76, 0
      %p391 = por %p389, %p390
      %s393 = sadd.s32 %s392, 1
      %p396 = scmp.eq.s32.totalorder %s70, 1
      %p397 = scmp.ne.s32.totalorder %s392, %s394
      %p398 = scmp.eq.s32.totalorder %s70, 0
      %p399 = por %p397, %p398
      %p400 = scmp.ne.s32.totalorder %s392, %s394
      %p401 = scmp.eq.s32.totalorder %s75, 1
      %p402 = por %p400, %p401
      %p403 = scmp.ne.s32.totalorder %s394, %s395
      %p404 = scmp.eq.s32.totalorder %s75, 0
      %p405 = por %p403, %p404
      %p406 = scmp.ne.s32.totalorder %s394, %s395
      %p407 = scmp.eq.s32.totalorder %s76, 1
      %p408 = por %p406, %p407
      %p410 = scmp.ne.s32.totalorder %s395, %s409
      %p411 = scmp.eq.s32.totalorder %s76, 0
      %p412 = por %p410, %p411
      %s414 = sadd.s32 %s413, 1
      %p417 = scmp.eq.s32.totalorder %s70, 1
      %p418 = scmp.ne.s32.totalorder %s413, %s415
      %p419 = scmp.eq.s32.totalorder %s70, 0
      %p420 = por %p418, %p419
      %p421 = scmp.ne.s32.totalorder %s413, %s415
      %p422 = scmp.eq.s32.totalorder %s75, 1
      %p423 = por %p421, %p422
      %p424 = scmp.ne.s32.totalorder %s415, %s416
      %p425 = scmp.eq.s32.totalorder %s75, 0
      %p426 = por %p424, %p425
      %p427 = scmp.ne.s32.totalorder %s415, %s416
      %p428 = scmp.eq.s32.totalorder %s76, 1
      %p429 = por %p427, %p428
      %p431 = scmp.ne.s32.totalorder %s416, %s430
      %p432 = scmp.eq.s32.totalorder %s76, 0
      %p433 = por %p431, %p432
      %s435 = sadd.s32 %s434, 1
      %p438 = scmp.eq.s32.totalorder %s70, 1
      %p439 = scmp.ne.s32.totalorder %s434, %s436
      %p440 = scmp.eq.s32.totalorder %s70, 0
      %p441 = por %p439, %p440
      %p442 = scmp.ne.s32.totalorder %s434, %s436
      %p443 = scmp.eq.s32.totalorder %s75, 1
      %p444 = por %p442, %p443
      %p445 = scmp.ne.s32.totalorder %s436, %s437
      %p446 = scmp.eq.s32.totalorder %s75, 0
      %p447 = por %p445, %p446
      %p448 = scmp.ne.s32.totalorder %s436, %s437
      %p449 = scmp.eq.s32.totalorder %s76, 1
      %p450 = por %p448, %p449
      %p452 = scmp.ne.s32.totalorder %s437, %s451
      %p453 = scmp.eq.s32.totalorder %s76, 0
      %p454 = por %p452, %p453
      %s456 = sadd.s32 %s455, 1
      %p459 = scmp.eq.s32.totalorder %s70, 1
      %p460 = scmp.ne.s32.totalorder %s455, %s457
      %p461 = scmp.eq.s32.totalorder %s70, 0
      %p462 = por %p460, %p461
      %p463 = scmp.ne.s32.totalorder %s455, %s457
      %p464 = scmp.eq.s32.totalorder %s75, 1
      %p465 = por %p463, %p464
      %p466 = scmp.ne.s32.totalorder %s457, %s458
      %p467 = scmp.eq.s32.totalorder %s75, 0
      %p468 = por %p466, %p467
      %p469 = scmp.ne.s32.totalorder %s457, %s458
      %p470 = scmp.eq.s32.totalorder %s76, 1
      %p471 = por %p469, %p470
      %p473 = scmp.ne.s32.totalorder %s458, %s472
      %p474 = scmp.eq.s32.totalorder %s76, 0
      %p475 = por %p473, %p474
      %s477 = sadd.s32 %s476, 1
      %p480 = scmp.eq.s32.totalorder %s70, 1
      %p481 = scmp.ne.s32.totalorder %s476, %s478
      %p482 = scmp.eq.s32.totalorder %s70, 0
      %p483 = por %p481, %p482
      %p484 = scmp.ne.s32.totalorder %s476, %s478
      %p485 = scmp.eq.s32.totalorder %s75, 1
      %p486 = por %p484, %p485
      %p487 = scmp.ne.s32.totalorder %s478, %s479
      %p488 = scmp.eq.s32.totalorder %s75, 0
      %p489 = por %p487, %p488
      %p490 = scmp.ne.s32.totalorder %s478, %s479
      %p491 = scmp.eq.s32.totalorder %s76, 1
      %p492 = por %p490, %p491
      %p494 = scmp.ne.s32.totalorder %s479, %s493
      %p495 = scmp.eq.s32.totalorder %s76, 0
      %p496 = por %p494, %p495
      %s498 = sadd.s32 %s497, 1
      %p501 = scmp.eq.s32.totalorder %s70, 1
      %p502 = scmp.ne.s32.totalorder %s497, %s499
      %p503 = scmp.eq.s32.totalorder %s70, 0
      %p504 = por %p502, %p503
      %p505 = scmp.ne.s32.totalorder %s497, %s499
      %p506 = scmp.eq.s32.totalorder %s75, 1
      %p507 = por %p505, %p506
      %p508 = scmp.ne.s32.totalorder %s499, %s500
      %p509 = scmp.eq.s32.totalorder %s75, 0
      %p510 = por %p508, %p509
      %p511 = scmp.ne.s32.totalorder %s499, %s500
      %p512 = scmp.eq.s32.totalorder %s76, 1
      %p513 = por %p511, %p512
      %p515 = scmp.ne.s32.totalorder %s500, %s514
      %p516 = scmp.eq.s32.totalorder %s76, 0
      %p517 = por %p515, %p516
      %s519 = sadd.s32 %s518, 1
      %p522 = scmp.eq.s32.totalorder %s70, 1
      %p523 = scmp.ne.s32.totalorder %s518, %s520
      %p524 = scmp.eq.s32.totalorder %s70, 0
      %p525 = por %p523, %p524
      %p526 = scmp.ne.s32.totalorder %s518, %s520
      %p527 = scmp.eq.s32.totalorder %s75, 1
      %p528 = por %p526, %p527
      %p529 = scmp.ne.s32.totalorder %s520, %s521
      %p530 = scmp.eq.s32.totalorder %s75, 0
      %p531 = por %p529, %p530
      %p532 = scmp.ne.s32.totalorder %s520, %s521
      %p533 = scmp.eq.s32.totalorder %s76, 1
      %p534 = por %p532, %p533
      %p536 = scmp.ne.s32.totalorder %s521, %s535
      %p537 = scmp.eq.s32.totalorder %s76, 0
      %p538 = por %p536, %p537
      %s540 = sadd.s32 %s539, 1
      %p543 = scmp.eq.s32.totalorder %s70, 1
      %p544 = scmp.ne.s32.totalorder %s539, %s541
      %p545 = scmp.eq.s32.totalorder %s70, 0
      %p546 = por %p544, %p545
      %p547 = scmp.ne.s32.totalorder %s539, %s541
      %p548 = scmp.eq.s32.totalorder %s75, 1
      %p549 = por %p547, %p548
      %p550 = scmp.ne.s32.totalorder %s541, %s542
      %p551 = scmp.eq.s32.totalorder %s75, 0
      %p552 = por %p550, %p551
      %p553 = scmp.ne.s32.totalorder %s541, %s542
      %p554 = scmp.eq.s32.totalorder %s76, 1
      %p555 = por %p553, %p554
      %p557 = scmp.ne.s32.totalorder %s542, %s556
      %p558 = scmp.eq.s32.totalorder %s76, 0
      %p559 = por %p557, %p558
      %s561 = sadd.s32 %s560, 1
      %p564 = scmp.eq.s32.totalorder %s70, 1
      %p565 = scmp.ne.s32.totalorder %s560, %s562
      %p566 = scmp.eq.s32.totalorder %s70, 0
      %p567 = por %p565, %p566
      %p568 = scmp.ne.s32.totalorder %s560, %s562
      %p569 = scmp.eq.s32.totalorder %s75, 1
      %p570 = por %p568, %p569
      %p571 = scmp.ne.s32.totalorder %s562, %s563
      %p572 = scmp.eq.s32.totalorder %s75, 0
      %p573 = por %p571, %p572
      %p574 = scmp.ne.s32.totalorder %s562, %s563
      %p575 = scmp.eq.s32.totalorder %s76, 1
      %p576 = por %p574, %p575
      %p578 = scmp.ne.s32.totalorder %s563, %s577
      %p579 = scmp.eq.s32.totalorder %s76, 0
      %p580 = por %p578, %p579
      %s582 = sadd.s32 %s581, 1
      %p585 = scmp.eq.s32.totalorder %s70, 1
      %p586 = scmp.ne.s32.totalorder %s581, %s583
      %p587 = scmp.eq.s32.totalorder %s70, 0
      %p588 = por %p586, %p587
      %p589 = scmp.ne.s32.totalorder %s581, %s583
      %p590 = scmp.eq.s32.totalorder %s75, 1
      %p591 = por %p589, %p590
      %p592 = scmp.ne.s32.totalorder %s583, %s584
      %p593 = scmp.eq.s32.totalorder %s75, 0
      %p594 = por %p592, %p593
      %p595 = scmp.ne.s32.totalorder %s583, %s584
      %p596 = scmp.eq.s32.totalorder %s76, 1
      %p597 = por %p595, %p596
      %p599 = scmp.ne.s32.totalorder %s584, %s598
      %p600 = scmp.eq.s32.totalorder %s76, 0
      %p601 = por %p599, %p600
      %s603 = sadd.s32 %s602, 1
      %p606 = scmp.eq.s32.totalorder %s70, 1
      %p607 = scmp.ne.s32.totalorder %s602, %s604
      %p608 = scmp.eq.s32.totalorder %s70, 0
      %p609 = por %p607, %p608
      %p610 = scmp.ne.s32.totalorder %s602, %s604
      %p611 = scmp.eq.s32.totalorder %s75, 1
      %p612 = por %p610, %p611
      %p613 = scmp.ne.s32.totalorder %s604, %s605
      %p614 = scmp.eq.s32.totalorder %s75, 0
      %p615 = por %p613, %p614
      %p616 = scmp.ne.s32.totalorder %s604, %s605
      %p617 = scmp.eq.s32.totalorder %s76, 1
      %p618 = por %p616, %p617
      %p620 = scmp.ne.s32.totalorder %s605, %s619
      %p621 = scmp.eq.s32.totalorder %s76, 0
      %p622 = por %p620, %p621
      %s624 = sadd.s32 %s623, 1
      %p627 = scmp.eq.s32.totalorder %s70, 1
      %p628 = scmp.ne.s32.totalorder %s623, %s625
      %p629 = scmp.eq.s32.totalorder %s70, 0
      %p630 = por %p628, %p629
      %p631 = scmp.ne.s32.totalorder %s623, %s625
      %p632 = scmp.eq.s32.totalorder %s75, 1
      %p633 = por %p631, %p632
      %p634 = scmp.ne.s32.totalorder %s625, %s626
      %p635 = scmp.eq.s32.totalorder %s75, 0
      %p636 = por %p634, %p635
      %p637 = scmp.ne.s32.totalorder %s625, %s626
      %p638 = scmp.eq.s32.totalorder %s76, 1
      %p639 = por %p637, %p638
      %p641 = scmp.ne.s32.totalorder %s626, %s640
      %p642 = scmp.eq.s32.totalorder %s76, 0
      %p643 = por %p641, %p642
      %s645 = sadd.s32 %s644, 1
      %p648 = scmp.eq.s32.totalorder %s70, 1
      %p649 = scmp.ne.s32.totalorder %s644, %s646
      %p650 = scmp.eq.s32.totalorder %s70, 0
      %p651 = por %p649, %p650
      %p652 = scmp.ne.s32.totalorder %s644, %s646
      %p653 = scmp.eq.s32.totalorder %s75, 1
      %p654 = por %p652, %p653
      %p655 = scmp.ne.s32.totalorder %s646, %s647
      %p656 = scmp.eq.s32.totalorder %s75, 0
      %p657 = por %p655, %p656
      %p658 = scmp.ne.s32.totalorder %s646, %s647
      %p659 = scmp.eq.s32.totalorder %s76, 1
      %p660 = por %p658, %p659
      %p662 = scmp.ne.s32.totalorder %s647, %s661
      %p663 = scmp.eq.s32.totalorder %s76, 0
      %p664 = por %p662, %p663
      %s666 = sadd.s32 %s665, 1
      %p669 = scmp.eq.s32.totalorder %s70, 1
      %p670 = scmp.ne.s32.totalorder %s665, %s667
      %p671 = scmp.eq.s32.totalorder %s70, 0
      %p672 = por %p670, %p671
      %p673 = scmp.ne.s32.totalorder %s665, %s667
      %p674 = scmp.eq.s32.totalorder %s75, 1
      %p675 = por %p673, %p674
      %p676 = scmp.ne.s32.totalorder %s667, %s668
      %p677 = scmp.eq.s32.totalorder %s75, 0
      %p678 = por %p676, %p677
      %p679 = scmp.ne.s32.totalorder %s667, %s668
      %p680 = scmp.eq.s32.totalorder %s76, 1
      %p681 = por %p679, %p680
      %p683 = scmp.ne.s32.totalorder %s668, %s682
      %p684 = scmp.eq.s32.totalorder %s76, 0
      %p685 = por %p683, %p684
      %s687 = sadd.s32 %s686, 1
      %p690 = scmp.eq.s32.totalorder %s70, 1
      %p691 = scmp.ne.s32.totalorder %s686, %s688
      %p692 = scmp.eq.s32.totalorder %s70, 0
      %p693 = por %p691, %p692
      %p694 = scmp.ne.s32.totalorder %s686, %s688
      %p695 = scmp.eq.s32.totalorder %s75, 1
      %p696 = por %p694, %p695
      %p697 = scmp.ne.s32.totalorder %s688, %s689
      %p698 = scmp.eq.s32.totalorder %s75, 0
      %p699 = por %p697, %p698
      %p700 = scmp.ne.s32.totalorder %s688, %s689
      %p701 = scmp.eq.s32.totalorder %s76, 1
      %p702 = por %p700, %p701
      %p704 = scmp.ne.s32.totalorder %s689, %s703
      %p705 = scmp.eq.s32.totalorder %s76, 0
      %p706 = por %p704, %p705
      %s708 = sadd.s32 %s707, 1
      %p711 = scmp.eq.s32.totalorder %s70, 1
      %p712 = scmp.ne.s32.totalorder %s707, %s709
      %p713 = scmp.eq.s32.totalorder %s70, 0
      %p714 = por %p712, %p713
      %p715 = scmp.ne.s32.totalorder %s707, %s709
      %p716 = scmp.eq.s32.totalorder %s75, 1
      %p717 = por %p715, %p716
      %p718 = scmp.ne.s32.totalorder %s709, %s710
      %p719 = scmp.eq.s32.totalorder %s75, 0
      %p720 = por %p718, %p719
      %p721 = scmp.ne.s32.totalorder %s709, %s710
      %p722 = scmp.eq.s32.totalorder %s76, 1
      %p723 = por %p721, %p722
      %p725 = scmp.ne.s32.totalorder %s710, %s724
      %p726 = scmp.eq.s32.totalorder %s76, 0
      %p727 = por %p725, %p726
      %s729 = sadd.s32 %s728, 1
      %p732 = scmp.eq.s32.totalorder %s70, 1
      %p733 = scmp.ne.s32.totalorder %s728, %s730
      %p734 = scmp.eq.s32.totalorder %s70, 0
      %p735 = por %p733, %p734
      %p736 = scmp.ne.s32.totalorder %s728, %s730
      %p737 = scmp.eq.s32.totalorder %s75, 1
      %p738 = por %p736, %p737
      %p739 = scmp.ne.s32.totalorder %s730, %s731
      %p740 = scmp.eq.s32.totalorder %s75, 0
      %p741 = por %p739, %p740
      %p742 = scmp.ne.s32.totalorder %s730, %s731
      %p743 = scmp.eq.s32.totalorder %s76, 1
      %p744 = por %p742, %p743
      %p746 = scmp.ne.s32.totalorder %s731, %s745
      %p747 = scmp.eq.s32.totalorder %s76, 0
      %p748 = por %p746, %p747
      %s749 = ssub.s32 %s70, %s77
      %p750 = scmp.eq.s32.totalorder %s749, 0
      %s752 = sadd.s32 %s751, 1
      %s753 = scalar_select %p750, %s751, %s752
      %p756 = pneg %p750
      %p757 = scmp.eq.s32.totalorder %s70, 1
      %p758 = por %p756, %p757
      %p759 = scmp.ne.s32.totalorder %s751, %s754
      %p760 = scmp.eq.s32.totalorder %s70, 0
      %p761 = por %p759, %p760
      %p762 = scmp.ne.s32.totalorder %s751, %s754
      %p763 = scmp.eq.s32.totalorder %s75, 1
      %p764 = por %p762, %p763
      %p765 = scmp.ne.s32.totalorder %s754, %s755
      %p766 = scmp.eq.s32.totalorder %s75, 0
      %p767 = por %p765, %p766
      %p768 = scmp.ne.s32.totalorder %s754, %s755
      %p769 = scmp.eq.s32.totalorder %s76, 1
      %p770 = por %p768, %p769
      %p772 = scmp.ne.s32.totalorder %s755, %s771
      %p773 = scmp.eq.s32.totalorder %s76, 0
      %p774 = por %p772, %p773
      %p775 = scmp.le.s32.totalorder 1, %s70
      %p776 = scmp.lt.s32.totalorder %s70, 3
      %p777 = pnand %p775, %p776
      %p778 = pneg %p777
      // Predicated region
      $region9: #{two_branch_forward.1} parent=5 // pred_check
        _
      $region10: #{two_branch_forward.1} parent=5 // pred_check_branch
        %780 = sbr.rel (%p777) target = $region12
      $region11: #{two_branch_forward.1} parent=5 // pred_region
        %s781 = ssub.s32 %s70, 1
        // Predicated region
        $region13: #{two_branch_forward.1} parent=11 // pred_check
          %p782 = pneg %p91
        $region14: #{two_branch_forward.1} parent=11 // pred_check_branch
          %784 = sbr.rel (%p782) target = $region16
        $region15: #{two_branch_forward.1} parent=11 // pred_region
          %s786 = ssub.s32 16, 16
          %787 = vsyncadd [#allocation3], %s786
          %s789 = sshll.u32 %s1, 4
          %s790 = int_to_ptr.vmem [resolvable:$true] %s789
          %792 = dma.vmem_to_smem %s790, 16, [#allocation2], [#allocation3]
        $region16: #{two_branch_forward.1} parent=11 // pred_fallthru
          _
        // Predicated region
        $region17: #{two_branch_forward.1} parent=11 // pred_check
          %p793 = pneg %p216
        $region18: #{two_branch_forward.1} parent=11 // pred_check_branch
          %795 = sbr.rel (%p793) target = $region20
        $region19: #{two_branch_forward.1} parent=11 // pred_region
          _
        $region20: #{two_branch_forward.1} parent=11 // pred_fallthru
          _
        // Predicated region
        $region21: #{two_branch_forward.1} parent=11 // pred_check
          %p796 = pneg %p237
        $region22: #{two_branch_forward.1} parent=11 // pred_check_branch
          %798 = sbr.rel (%p796) target = $region24
        $region23: #{two_branch_forward.1} parent=11 // pred_region
          _
        $region24: #{two_branch_forward.1} parent=11 // pred_fallthru
          _
        // Predicated region
        $region25: #{two_branch_forward.1} parent=11 // pred_check
          %p799 = pneg %p258
        $region26: #{two_branch_forward.1} parent=11 // pred_check_branch
          %801 = sbr.rel (%p799) target = $region28
        $region27: #{two_branch_forward.1} parent=11 // pred_region
          _
        $region28: #{two_branch_forward.1} parent=11 // pred_fallthru
          _
        // Predicated region
        $region29: #{two_branch_forward.1} parent=11 // pred_check
          %p802 = pneg %p279
        $region30: #{two_branch_forward.1} parent=11 // pred_check_branch
          %804 = sbr.rel (%p802) target = $region32
        $region31: #{two_branch_forward.1} parent=11 // pred_region
          _
        $region32: #{two_branch_forward.1} parent=11 // pred_fallthru
          _
        // Predicated region
        $region33: #{two_branch_forward.1} parent=11 // pred_check
          %p805 = pneg %p300
        $region34: #{two_branch_forward.1} parent=11 // pred_check_branch
          %807 = sbr.rel (%p805) target = $region36
        $region35: #{two_branch_forward.1} parent=11 // pred_region
          _
        $region36: #{two_branch_forward.1} parent=11 // pred_fallthru
          _
        // Predicated region
        $region37: #{two_branch_forward.1} parent=11 // pred_check
          %p808 = pneg %p321
        $region38: #{two_branch_forward.1} parent=11 // pred_check_branch
          %810 = sbr.rel (%p808) target = $region40
        $region39: #{two_branch_forward.1} parent=11 // pred_region
          _
        $region40: #{two_branch_forward.1} parent=11 // pred_fallthru
          _
        // Predicated region
        $region41: #{two_branch_forward.1} parent=11 // pred_check
          %p811 = pneg %p342
        $region42: #{two_branch_forward.1} parent=11 // pred_check_branch
          %813 = sbr.rel (%p811) target = $region44
        $region43: #{two_branch_forward.1} parent=11 // pred_region
          _
        $region44: #{two_branch_forward.1} parent=11 // pred_fallthru
          _
        // Predicated region
        $region45: #{two_branch_forward.1} parent=11 // pred_check
          %p814 = pneg %p363
        $region46: #{two_branch_forward.1} parent=11 // pred_check_branch
          %816 = sbr.rel (%p814) target = $region48
        $region47: #{two_branch_forward.1} parent=11 // pred_region
          _
        $region48: #{two_branch_forward.1} parent=11 // pred_fallthru
          _
        // Predicated region
        $region49: #{two_branch_forward.1} parent=11 // pred_check
          %p817 = pneg %p384
        $region50: #{two_branch_forward.1} parent=11 // pred_check_branch
          %819 = sbr.rel (%p817) target = $region52
        $region51: #{two_branch_forward.1} parent=11 // pred_region
          _
        $region52: #{two_branch_forward.1} parent=11 // pred_fallthru
          _
        // Predicated region
        $region53: #{two_branch_forward.1} parent=11 // pred_check
          %p820 = pneg %p405
        $region54: #{two_branch_forward.1} parent=11 // pred_check_branch
          %822 = sbr.rel (%p820) target = $region56
        $region55: #{two_branch_forward.1} parent=11 // pred_region
          _
        $region56: #{two_branch_forward.1} parent=11 // pred_fallthru
          _
        // Predicated region
        $region57: #{two_branch_forward.1} parent=11 // pred_check
          %p823 = pneg %p426
        $region58: #{two_branch_forward.1} parent=11 // pred_check_branch
          %825 = sbr.rel (%p823) target = $region60
        $region59: #{two_branch_forward.1} parent=11 // pred_region
          _
        $region60: #{two_branch_forward.1} parent=11 // pred_fallthru
          _
        // Predicated region
        $region61: #{two_branch_forward.1} parent=11 // pred_check
          %p826 = pneg %p447
        $region62: #{two_branch_forward.1} parent=11 // pred_check_branch
          %828 = sbr.rel (%p826) target = $region64
        $region63: #{two_branch_forward.1} parent=11 // pred_region
          _
        $region64: #{two_branch_forward.1} parent=11 // pred_fallthru
          _
        // Predicated region
        $region65: #{two_branch_forward.1} parent=11 // pred_check
          %p829 = pneg %p468
        $region66: #{two_branch_forward.1} parent=11 // pred_check_branch
          %831 = sbr.rel (%p829) target = $region68
        $region67: #{two_branch_forward.1} parent=11 // pred_region
          _
        $region68: #{two_branch_forward.1} parent=11 // pred_fallthru
          _
        // Predicated region
        $region69: #{two_branch_forward.1} parent=11 // pred_check
          %p832 = pneg %p489
        $region70: #{two_branch_forward.1} parent=11 // pred_check_branch
          %834 = sbr.rel (%p832) target = $region72
        $region71: #{two_branch_forward.1} parent=11 // pred_region
          _
        $region72: #{two_branch_forward.1} parent=11 // pred_fallthru
          _
        // Predicated region
        $region73: #{two_branch_forward.1} parent=11 // pred_check
          %p835 = pneg %p510
        $region74: #{two_branch_forward.1} parent=11 // pred_check_branch
          %837 = sbr.rel (%p835) target = $region76
        $region75: #{two_branch_forward.1} parent=11 // pred_region
          _
        $region76: #{two_branch_forward.1} parent=11 // pred_fallthru
          _
        // Predicated region
        $region77: #{two_branch_forward.1} parent=11 // pred_check
          %p838 = pneg %p531
        $region78: #{two_branch_forward.1} parent=11 // pred_check_branch
          %840 = sbr.rel (%p838) target = $region80
        $region79: #{two_branch_forward.1} parent=11 // pred_region
          _
        $region80: #{two_branch_forward.1} parent=11 // pred_fallthru
          _
        // Predicated region
        $region81: #{two_branch_forward.1} parent=11 // pred_check
          %p841 = pneg %p552
        $region82: #{two_branch_forward.1} parent=11 // pred_check_branch
          %843 = sbr.rel (%p841) target = $region84
        $region83: #{two_branch_forward.1} parent=11 // pred_region
          _
        $region84: #{two_branch_forward.1} parent=11 // pred_fallthru
          _
        // Predicated region
        $region85: #{two_branch_forward.1} parent=11 // pred_check
          %p844 = pneg %p573
        $region86: #{two_branch_forward.1} parent=11 // pred_check_branch
          %846 = sbr.rel (%p844) target = $region88
        $region87: #{two_branch_forward.1} parent=11 // pred_region
          _
        $region88: #{two_branch_forward.1} parent=11 // pred_fallthru
          _
        // Predicated region
        $region89: #{two_branch_forward.1} parent=11 // pred_check
          %p847 = pneg %p594
        $region90: #{two_branch_forward.1} parent=11 // pred_check_branch
          %849 = sbr.rel (%p847) target = $region92
        $region91: #{two_branch_forward.1} parent=11 // pred_region
          _
        $region92: #{two_branch_forward.1} parent=11 // pred_fallthru
          _
        // Predicated region
        $region93: #{two_branch_forward.1} parent=11 // pred_check
          %p850 = pneg %p615
        $region94: #{two_branch_forward.1} parent=11 // pred_check_branch
          %852 = sbr.rel (%p850) target = $region96
        $region95: #{two_branch_forward.1} parent=11 // pred_region
          _
        $region96: #{two_branch_forward.1} parent=11 // pred_fallthru
          _
        // Predicated region
        $region97: #{two_branch_forward.1} parent=11 // pred_check
          %p853 = pneg %p636
        $region98: #{two_branch_forward.1} parent=11 // pred_check_branch
          %855 = sbr.rel (%p853) target = $region100
        $region99: #{two_branch_forward.1} parent=11 // pred_region
          _
        $region100: #{two_branch_forward.1} parent=11 // pred_fallthru
          _
        // Predicated region
        $region101: #{two_branch_forward.1} parent=11 // pred_check
          %p856 = pneg %p657
        $region102: #{two_branch_forward.1} parent=11 // pred_check_branch
          %858 = sbr.rel (%p856) target = $region104
        $region103: #{two_branch_forward.1} parent=11 // pred_region
          _
        $region104: #{two_branch_forward.1} parent=11 // pred_fallthru
          _
        // Predicated region
        $region105: #{two_branch_forward.1} parent=11 // pred_check
          %p859 = pneg %p678
        $region106: #{two_branch_forward.1} parent=11 // pred_check_branch
          %861 = sbr.rel (%p859) target = $region108
        $region107: #{two_branch_forward.1} parent=11 // pred_region
          _
        $region108: #{two_branch_forward.1} parent=11 // pred_fallthru
          _
        // Predicated region
        $region109: #{two_branch_forward.1} parent=11 // pred_check
          %p862 = pneg %p699
        $region110: #{two_branch_forward.1} parent=11 // pred_check_branch
          %864 = sbr.rel (%p862) target = $region112
        $region111: #{two_branch_forward.1} parent=11 // pred_region
          _
        $region112: #{two_branch_forward.1} parent=11 // pred_fallthru
          _
        // Predicated region
        $region113: #{two_branch_forward.1} parent=11 // pred_check
          %p865 = pneg %p720
        $region114: #{two_branch_forward.1} parent=11 // pred_check_branch
          %867 = sbr.rel (%p865) target = $region116
        $region115: #{two_branch_forward.1} parent=11 // pred_region
          _
        $region116: #{two_branch_forward.1} parent=11 // pred_fallthru
          _
        // Predicated region
        $region117: #{two_branch_forward.1} parent=11 // pred_check
          %p868 = pneg %p741
        $region118: #{two_branch_forward.1} parent=11 // pred_check_branch
          %870 = sbr.rel (%p868) target = $region120
        $region119: #{two_branch_forward.1} parent=11 // pred_region
          _
        $region120: #{two_branch_forward.1} parent=11 // pred_fallthru
          _
      $region12: #{two_branch_forward.1} parent=5 // pred_fallthru
        _
      %p871 = scmp.lt.s32.totalorder %s70, 2
      // Predicated region
      $region121: #{two_branch_forward.1} parent=5 // pred_check
        %p872 = pneg %p871
      $region122: #{two_branch_forward.1} parent=5 // pred_check_branch
        %874 = sbr.rel (%p872) target = $region124
      $region123: #{two_branch_forward.1} parent=5 // pred_region
        // Predicated region
        $region125: #{two_branch_forward.1} parent=123 // pred_check
          %p875 = pneg %p111
        $region126: #{two_branch_forward.1} parent=123 // pred_check_branch
          %877 = sbr.rel (%p875) target = $region128
        $region127: #{two_branch_forward.1} parent=123 // pred_region
          %p878 = scmp.lt.s32.totalorder %s70, 1
          %s879 = scalar_select %p878, %s70, 1
          %s880 = smul.addr %s879, 2
          %s881 = smul.addr %s880, 8
          %s882 = scalar_lea.vmem %s3, %s881
        $region128: #{two_branch_forward.1} parent=123 // pred_fallthru
          _
        // Predicated region
        $region129: #{two_branch_forward.1} parent=123 // pred_check
          %p883 = pneg %p137
        $region130: #{two_branch_forward.1} parent=123 // pred_check_branch
          %885 = sbr.rel (%p883) target = $region132
        $region131: #{two_branch_forward.1} parent=123 // pred_region
          %p886 = scmp.lt.s32.totalorder %s70, 1
          %s887 = scalar_select %p886, %s70, 1
          %s888 = smul.addr %s887, 2
          %s889 = smul.addr %s888, 8
          %s890 = scalar_lea.vmem %s5, %s889
        $region132: #{two_branch_forward.1} parent=123 // pred_fallthru
          _
        // Predicated region
        $region133: #{two_branch_forward.1} parent=123 // pred_check
          %p891 = pneg %p163
        $region134: #{two_branch_forward.1} parent=123 // pred_check_branch
          %893 = sbr.rel (%p891) target = $region136
        $region135: #{two_branch_forward.1} parent=123 // pred_region
          %p894 = scmp.lt.s32.totalorder %s70, 1
          %s895 = scalar_select %p894, %s70, 1
          %s896 = smul.addr %s895, 4
          %s897 = smul.addr %s896, 8
          %s898 = scalar_lea.vmem %s7, %s897
        $region136: #{two_branch_forward.1} parent=123 // pred_fallthru
          _
        // Predicated region
        $region137: #{two_branch_forward.1} parent=123 // pred_check
          %p899 = pneg %p189
        $region138: #{two_branch_forward.1} parent=123 // pred_check_branch
          %901 = sbr.rel (%p899) target = $region140
        $region139: #{two_branch_forward.1} parent=123 // pred_region
          %p902 = scmp.lt.s32.totalorder %s70, 1
          %s903 = scalar_select %p902, %s70, 1
          %s904 = smul.addr %s903, 8
          %s905 = smul.addr %s904, 8
          %s906 = scalar_lea.vmem %s9, %s905
        $region140: #{two_branch_forward.1} parent=123 // pred_fallthru
          _
      $region124: #{two_branch_forward.1} parent=5 // pred_fallthru
        _
      %p907 = scmp.le.s32.totalorder 1, %s70
      %p908 = scmp.lt.s32.totalorder %s70, 3
      %p909 = pnand %p907, %p908
      %p910 = pneg %p909
      // Predicated region
      $region141: #{two_branch_forward.1} parent=5 // pred_check
        _
      $region142: #{two_branch_forward.1} parent=5 // pred_check_branch
        %912 = sbr.rel (%p909) target = $region144
      $region143: #{two_branch_forward.1} parent=5 // pred_region
        %s913 = ssub.s32 %s70, 1
        // Predicated region
        $region145: #{two_branch_forward.1} parent=143 // pred_check
          %p914 = pneg %p91
        $region146: #{two_branch_forward.1} parent=143 // pred_check_branch
          %916 = sbr.rel (%p914) target = $region148
        $region147: #{two_branch_forward.1} parent=143 // pred_region
          %917 = dma.done [#allocation3], 16
        $region148: #{two_branch_forward.1} parent=143 // pred_fallthru
          _
        %918 = sfence
        %p919 = pneg %p91
        %p920 = pneg %p88
        %p921 = scmp.lt.s32.totalorder %s75, 1
        %s922 = scalar_select %p921, %s75, 1
        %s923 = smul.addr %s922, 2
        %s924 = smul.addr %s923, 8
        %s925 = scalar_lea.vmem %s3, %s924
        %p926 = pneg %p117
        %p927 = pneg %p114
        %p928 = scmp.lt.s32.totalorder %s75, 1
        %s929 = scalar_select %p928, %s75, 1
        %s930 = smul.addr %s929, 2
        %s931 = smul.addr %s930, 8
        %s932 = scalar_lea.vmem %s5, %s931
        %p933 = pneg %p143
        %p934 = pneg %p140
        %p935 = scmp.lt.s32.totalorder %s75, 1
        %s936 = scalar_select %p935, %s75, 1
        %s937 = smul.addr %s936, 4
        %s938 = smul.addr %s937, 8
        %s939 = scalar_lea.vmem %s7, %s938
        %p940 = pneg %p169
        %p941 = pneg %p166
        %p942 = scmp.lt.s32.totalorder %s75, 1
        %s943 = scalar_select %p942, %s75, 1
        %s944 = smul.addr %s943, 8
        %s945 = smul.addr %s944, 8
        %s946 = scalar_lea.vmem %s9, %s945
        %p947 = pneg %p195
        %p948 = pneg %p192
        %p949 = pneg %p216
        %p950 = pneg %p213
        %p951 = pneg %p237
        %p952 = pneg %p234
        %p953 = pneg %p258
        %p954 = pneg %p255
        %p955 = pneg %p279
        %p956 = pneg %p276
        %p957 = pneg %p300
        %p958 = pneg %p297
        %p959 = pneg %p321
        %p960 = pneg %p318
        %p961 = pneg %p342
        %p962 = pneg %p339
        %p963 = pneg %p363
        %p964 = pneg %p360
        %p965 = pneg %p384
        %p966 = pneg %p381
        %p967 = pneg %p405
        %p968 = pneg %p402
        %p969 = pneg %p426
        %p970 = pneg %p423
        %p971 = pneg %p447
        %p972 = pneg %p444
        %p973 = pneg %p468
        %p974 = pneg %p465
        %p975 = pneg %p489
        %p976 = pneg %p486
        %p977 = pneg %p510
        %p978 = pneg %p507
        %p979 = pneg %p531
        %p980 = pneg %p528
        %p981 = pneg %p552
        %p982 = pneg %p549
        %p983 = pneg %p573
        %p984 = pneg %p570
        %p985 = pneg %p594
        %p986 = pneg %p591
        %p987 = pneg %p615
        %p988 = pneg %p612
        %p989 = pneg %p636
        %p990 = pneg %p633
        %p991 = pneg %p657
        %p992 = pneg %p654
        %p993 = pneg %p678
        %p994 = pneg %p675
        %p995 = pneg %p699
        %p996 = pneg %p696
        %p997 = pneg %p720
        %p998 = pneg %p717
        %p999 = pneg %p741
        %p1000 = pneg %p738
        %p1001 = pneg %p767
        %p1002 = pneg %p764
        %p1003 = scmp.lt.s32.totalorder %s75, 1
        %s1004 = scalar_select %p1003, %s75, 1
        %s1005 = smul.addr %s1004, 32
        %s1006 = scalar_lea.vmem %s63, %s1005
        %p1007 = scmp.lt.s32.totalorder %s75, 1
        %s1008 = scalar_select %p1007, %s75, 1
        %s1009 = smul.addr %s1008, 2
        %s1010 = smul.addr %s1009, 8
        %s1011 = scalar_lea.vmem %s3, %s1010
        %p1012 = scmp.lt.s32.totalorder %s75, 1
        %s1013 = scalar_select %p1012, %s75, 1
        %s1014 = smul.addr %s1013, 2
        %s1015 = smul.addr %s1014, 8
        %s1016 = scalar_lea.vmem %s5, %s1015
        %p1017 = scmp.lt.s32.totalorder %s75, 1
        %s1018 = scalar_select %p1017, %s75, 1
        %s1019 = smul.addr %s1018, 4
        %s1020 = smul.addr %s1019, 8
        %s1021 = scalar_lea.vmem %s7, %s1020
        %p1022 = scmp.lt.s32.totalorder %s75, 1
        %s1023 = scalar_select %p1022, %s75, 1
        %s1024 = smul.addr %s1023, 8
        %s1025 = smul.addr %s1024, 8
        %s1026 = scalar_lea.vmem %s9, %s1025
        %p1027 = scmp.lt.s32.totalorder %s75, 1
        %s1028 = scalar_select %p1027, %s75, 1
        %s1029 = smul.addr %s1028, 32
        %s1030 = scalar_lea.vmem %s63, %s1029
        %v1031 = vld [vmem:[%s1011] sm:$0xff]
        %v1032 = vld [vmem:[%s1011 + $0x8] sm:$0xff]
        %v1033 = vld [vmem:[%s1016] sm:$0xff]
        %v1034 = vld [vmem:[%s1016 + $0x8] sm:$0xff]
        %v1035 = vld [vmem:[%s1021] sm:$0xff]
        %v1036 = vld [vmem:[%s1021 + $0x8] sm:$0xff]
        %v1037 = vld [vmem:[%s1021 + $0x10] sm:$0xff]
        %v1038 = vld [vmem:[%s1021 + $0x18] sm:$0xff]
        %v1039 = vld [vmem:[%s1026] sm:$0xff]
        %v1040 = vld [vmem:[%s1026 + $0x8] sm:$0xff]
        %v1041 = vld [vmem:[%s1026 + $0x10] sm:$0xff]
        %v1042 = vld [vmem:[%s1026 + $0x18] sm:$0xff]
        %v1043 = vld [vmem:[%s1026 + $0x20] sm:$0xff]
        %v1044 = vld [vmem:[%s1026 + $0x28] sm:$0xff]
        %v1045 = vld [vmem:[%s1026 + $0x30] sm:$0xff]
        %v1046 = vld [vmem:[%s1026 + $0x38] sm:$0xff]
        %vm1047 = vcmask 31744
        %v1048 = vsel %vm1047, %v1039, 0.0
        %1049 = vadd.xlane.f32.xlu0 %v1048
        %v1050 = vpop.xlane.xlu0 %1049
        %v1051 = vsel %vm1047, %v1040, 0.0
        %1052 = vadd.xlane.f32.xlu0 %v1051
        %v1053 = vpop.xlane.xlu0 %1052
        %v1054 = vsel %vm1047, %v1041, 0.0
        %1055 = vadd.xlane.f32.xlu0 %v1054
        %v1056 = vpop.xlane.xlu0 %1055
        %v1057 = vsel %vm1047, %v1042, 0.0
        %1058 = vadd.xlane.f32.xlu0 %v1057
        %v1059 = vpop.xlane.xlu0 %1058
        %v1060 = vsel %vm1047, %v1043, 0.0
        %1061 = vadd.xlane.f32.xlu0 %v1060
        %v1062 = vpop.xlane.xlu0 %1061
        %v1063 = vsel %vm1047, %v1044, 0.0
        %1064 = vadd.xlane.f32.xlu0 %v1063
        %v1065 = vpop.xlane.xlu0 %1064
        %v1066 = vsel %vm1047, %v1045, 0.0
        %1067 = vadd.xlane.f32.xlu0 %v1066
        %v1068 = vpop.xlane.xlu0 %1067
        %v1069 = vsel %vm1047, %v1046, 0.0
        %1070 = vadd.xlane.f32.xlu0 %v1069
        %v1071 = vpop.xlane.xlu0 %1070
        %v1072 = vrcp.pop 4.0
        %v1073 = vmul.f32 %v1050, %v1072
        %v1074 = vmul.f32 %v1053, %v1072
        %v1075 = vmul.f32 %v1056, %v1072
        %v1076 = vmul.f32 %v1059, %v1072
        %v1077 = vmul.f32 %v1062, %v1072
        %v1078 = vmul.f32 %v1065, %v1072
        %v1079 = vmul.f32 %v1068, %v1072
        %v1080 = vmul.f32 %v1071, %v1072
        %v1081 = vld [vmem:[%s35] sm:$0xff]
        %v1082 = vld [vmem:[%s35 + $0x8] sm:$0xff]
        %v1083 = vld [vmem:[%s35 + $0x10] sm:$0xff]
        %v1084 = vld [vmem:[%s35 + $0x18] sm:$0xff]
        %v1085 = vld [vmem:[%s37] sm:$0xff]
        %v1086 = vld [vmem:[%s37 + $0x8] sm:$0xff]
        %v1087 = vld [vmem:[%s37 + $0x10] sm:$0xff]
        %v1088 = vld [vmem:[%s37 + $0x18] sm:$0xff]
        %vm1089 = vcmask 523264
        %v1091 = vsel %vm1089, %v1081, 0
        %v1094 = vsel %vm1089, %v1082, 0
        %v1097 = vsel %vm1089, %v1083, 0
        %v1100 = vsel %vm1089, %v1084, 0
        %1102 = vmatprep.subr.mxu0 0.0
        %1103 = vmatpush1.msra.mxu0 %v1073
        %1104 = vmatprep.subr.mxu0 0.0
        %1105 = vmatpush1.msra.mxu0 %v1074
        %1106 = vmatprep.subr.mxu0 0.0
        %1107 = vmatpush1.msra.mxu0 %v1075
        %1108 = vmatprep.subr.mxu0 0.0
        %1109 = vmatpush1.msra.mxu0 %v1076
        %1110 = vmatprep.subr.mxu0 0.0
        %1111 = vmatpush1.msra.mxu0 %v1077
        %1112 = vmatprep.subr.mxu0 0.0
        %1113 = vmatpush1.msra.mxu0 %v1078
        %1114 = vmatprep.subr.mxu0 0.0
        %1115 = vmatpush1.msra.mxu0 %v1079
        %1116 = vmatprep.subr.mxu0 0.0
        %1117 = vmatpush1.msra.mxu0 %v1080
        %1118 = vmatprep.subr.mxu0 0.0
        %1119 = vmatpush1.msra.mxu0 0.0
        %1120 = vmatprep.subr.mxu0 0.0
        %1121 = vmatpush1.msra.mxu0 0.0
        %1122 = vmatprep.subr.mxu0 0.0
        %1123 = vmatpush1.msra.mxu0 0.0
        %1124 = vmatprep.subr.mxu0 0.0
        %1125 = vmatpush1.msra.mxu0 0.0
        %1126 = vmatprep.subr.mxu0 0.0
        %1127 = vmatpush1.msra.mxu0 0.0
        %1128 = vmatprep.subr.mxu0 0.0
        %1129 = vmatpush1.msra.mxu0 0.0
        %1130 = vmatprep.subr.mxu0 0.0
        %1131 = vmatpush1.msra.mxu0 0.0
        %1132 = vmatprep.subr.mxu0 0.0
        %1133 = vmatpush1.msra.mxu0 0.0
        %1134 = vmatprep.subr.mxu0 0.0
        %1135 = vmatpush1.msra.mxu0 0.0
        %1136 = vmatprep.subr.mxu0 0.0
        %1137 = vmatpush1.msra.mxu0 0.0
        %1138 = vmatprep.subr.mxu0 0.0
        %1139 = vmatpush1.msra.mxu0 0.0
        %1140 = vmatprep.subr.mxu0 0.0
        %1141 = vmatpush1.msra.mxu0 0.0
        %1142 = vmatprep.subr.mxu0 0.0
        %1143 = vmatpush1.msra.mxu0 0.0
        %1144 = vmatprep.subr.mxu0 0.0
        %1145 = vmatpush1.msra.mxu0 0.0
        %1146 = vmatprep.subr.mxu0 0.0
        %1147 = vmatpush1.msra.mxu0 0.0
        %1148 = vmatprep.subr.mxu0 0.0
        %1149 = vmatpush1.msra.mxu0 0.0
        %1150 = vmatprep.subr.mxu0 0.0
        %1151 = vmatpush1.msra.mxu0 0.0
        %1152 = vmatprep.subr.mxu0 0.0
        %1153 = vmatpush1.msra.mxu0 0.0
        %1154 = vmatprep.subr.mxu0 0.0
        %1155 = vmatpush1.msra.mxu0 0.0
        %1156 = vmatprep.subr.mxu0 0.0
        %1157 = vmatpush1.msra.mxu0 0.0
        %1158 = vmatprep.subr.mxu0 0.0
        %1159 = vmatpush1.msra.mxu0 0.0
        %1160 = vmatprep.subr.mxu0 0.0
        %1161 = vmatpush1.msra.mxu0 0.0
        %1162 = vmatprep.subr.mxu0 0.0
        %1163 = vmatpush1.msra.mxu0 0.0
        %1164 = vmatprep.subr.mxu0 0.0
        %1165 = vmatpush1.msra.mxu0 0.0
        %1166 = vmatprep.mubr.f32.mxu0 0.0
        %1167 = vmatmul.mubr.f32.gmra.mrb[0].mxu0 %v1091
        %v1168 = vpop.f32.mrb[0].mxu0
        %v1169 = vadd.f32 %v1085, %v1168
        %v1170 = vpop.f32.mrb[0].mxu0
        %1171 = vmatprep.mubr.f32.mxu0 0.0
        %1172 = vmatmul.mubr.f32.gmra.mrb[0].mxu0 %v1094
        %v1173 = vpop.f32.mrb[0].mxu0
        %v1174 = vadd.f32 %v1086, %v1173
        %v1175 = vpop.f32.mrb[0].mxu0
        %1176 = vmatprep.mubr.f32.mxu0 0.0
        %1177 = vmatmul.mubr.f32.gmra.mrb[0].mxu0 %v1097
        %v1178 = vpop.f32.mrb[0].mxu0
        %v1179 = vadd.f32 %v1087, %v1178
        %v1180 = vpop.f32.mrb[0].mxu0
        %1181 = vmatprep.mubr.f32.mxu0 0.0
        %1182 = vmatmul.mubr.f32.gmra.mrb[0].mxu0 %v1100
        %v1183 = vpop.f32.mrb[0].mxu0
        %v1184 = vadd.f32 %v1088, %v1183
        %v1185 = vpop.f32.mrb[0].mxu0
        %1186 = vdwg.mxu0
        %v1187 = vld [vmem:[%s39] sm:$0xff]
        %v1188 = vld [vmem:[%s41] sm:$0xff]
        %vm1189 = vcmask 261120
        %v1191 = vsel %vm1189, %v1187, 0
        %1193 = vmatprep.subr.mxu0 0.0
        %1194 = vmatpush1.msra.mxu0 %v1169
        %1195 = vmatprep.subr.mxu0 0.0
        %1196 = vmatpush1.msra.mxu0 %v1174
        %1197 = vmatprep.subr.mxu0 0.0
        %1198 = vmatpush1.msra.mxu0 %v1179
        %1199 = vmatprep.subr.mxu0 0.0
        %1200 = vmatpush1.msra.mxu0 %v1184
        %1201 = vmatprep.subr.mxu0 0.0
        %1202 = vmatpush1.msra.mxu0 0.0
        %1203 = vmatprep.subr.mxu0 0.0
        %1204 = vmatpush1.msra.mxu0 0.0
        %1205 = vmatprep.subr.mxu0 0.0
        %1206 = vmatpush1.msra.mxu0 0.0
        %1207 = vmatprep.subr.mxu0 0.0
        %1208 = vmatpush1.msra.mxu0 0.0
        %1209 = vmatprep.subr.mxu0 0.0
        %1210 = vmatpush1.msra.mxu0 0.0
        %1211 = vmatprep.subr.mxu0 0.0
        %1212 = vmatpush1.msra.mxu0 0.0
        %1213 = vmatprep.subr.mxu0 0.0
        %1214 = vmatpush1.msra.mxu0 0.0
        %1215 = vmatprep.subr.mxu0 0.0
        %1216 = vmatpush1.msra.mxu0 0.0
        %1217 = vmatprep.subr.mxu0 0.0
        %1218 = vmatpush1.msra.mxu0 0.0
        %1219 = vmatprep.subr.mxu0 0.0
        %1220 = vmatpush1.msra.mxu0 0.0
        %1221 = vmatprep.subr.mxu0 0.0
        %1222 = vmatpush1.msra.mxu0 0.0
        %1223 = vmatprep.subr.mxu0 0.0
        %1224 = vmatpush1.msra.mxu0 0.0
        %1225 = vmatprep.subr.mxu0 0.0
        %1226 = vmatpush1.msra.mxu0 0.0
        %1227 = vmatprep.subr.mxu0 0.0
        %1228 = vmatpush1.msra.mxu0 0.0
        %1229 = vmatprep.subr.mxu0 0.0
        %1230 = vmatpush1.msra.mxu0 0.0
        %1231 = vmatprep.subr.mxu0 0.0
        %1232 = vmatpush1.msra.mxu0 0.0
        %1233 = vmatprep.subr.mxu0 0.0
        %1234 = vmatpush1.msra.mxu0 0.0
        %1235 = vmatprep.subr.mxu0 0.0
        %1236 = vmatpush1.msra.mxu0 0.0
        %1237 = vmatprep.subr.mxu0 0.0
        %1238 = vmatpush1.msra.mxu0 0.0
        %1239 = vmatprep.subr.mxu0 0.0
        %1240 = vmatpush1.msra.mxu0 0.0
        %1241 = vmatprep.subr.mxu0 0.0
        %1242 = vmatpush1.msra.mxu0 0.0
        %1243 = vmatprep.subr.mxu0 0.0
        %1244 = vmatpush1.msra.mxu0 0.0
        %1245 = vmatprep.subr.mxu0 0.0
        %1246 = vmatpush1.msra.mxu0 0.0
        %1247 = vmatprep.subr.mxu0 0.0
        %1248 = vmatpush1.msra.mxu0 0.0
        %1249 = vmatprep.subr.mxu0 0.0
        %1250 = vmatpush1.msra.mxu0 0.0
        %1251 = vmatprep.subr.mxu0 0.0
        %1252 = vmatpush1.msra.mxu0 0.0
        %1253 = vmatprep.subr.mxu0 0.0
        %1254 = vmatpush1.msra.mxu0 0.0
        %1255 = vmatprep.subr.mxu0 0.0
        %1256 = vmatpush1.msra.mxu0 0.0
        %1257 = vmatprep.mubr.f32.mxu0 0.0
        %1258 = vmatmul.mubr.f32.gmra.mrb[0].mxu0 %v1191
        %v1259 = vpop.f32.mrb[0].mxu0
        %v1260 = vadd.f32 %v1188, %v1259
        %v1261 = vpop.f32.mrb[0].mxu0
        %1262 = vdwg.mxu0
        %v1263 = vmax.f32 %v1260, 0.0
        %v1264 = vld [vmem:[%s43] sm:$0xff]
        %v1265 = vld [vmem:[%s43 + $0x8] sm:$0xff]
        %v1266 = vld [vmem:[%s43 + $0x10] sm:$0xff]
        %v1267 = vld [vmem:[%s43 + $0x18] sm:$0xff]
        %v1268 = vld [vmem:[%s45] sm:$0xff]
        %v1269 = vld [vmem:[%s45 + $0x8] sm:$0xff]
        %v1270 = vld [vmem:[%s45 + $0x10] sm:$0xff]
        %v1271 = vld [vmem:[%s45 + $0x18] sm:$0xff]
        %vm1272 = vcmask 64512
        %v1274 = vsel %vm1272, %v1264, 0
        %v1277 = vsel %vm1272, %v1265, 0
        %v1280 = vsel %vm1272, %v1266, 0
        %v1283 = vsel %vm1272, %v1267, 0
        %1285 = vmatprep.subr.mxu0 0.0
        %1286 = vmatpush1.msra.mxu0 %v1263
        %1287 = vmatprep.subr.mxu0 0.0
        %1288 = vmatpush1.msra.mxu0 0.0
        %1289 = vmatprep.subr.mxu0 0.0
        %1290 = vmatpush1.msra.mxu0 0.0
        %1291 = vmatprep.subr.mxu0 0.0
        %1292 = vmatpush1.msra.mxu0 0.0
        %1293 = vmatprep.subr.mxu0 0.0
        %1294 = vmatpush1.msra.mxu0 0.0
        %1295 = vmatprep.subr.mxu0 0.0
        %1296 = vmatpush1.msra.mxu0 0.0
        %1297 = vmatprep.subr.mxu0 0.0
        %1298 = vmatpush1.msra.mxu0 0.0
        %1299 = vmatprep.subr.mxu0 0.0
        %1300 = vmatpush1.msra.mxu0 0.0
        %1301 = vmatprep.subr.mxu0 0.0
        %1302 = vmatpush1.msra.mxu0 0.0
        %1303 = vmatprep.subr.mxu0 0.0
        %1304 = vmatpush1.msra.mxu0 0.0
        %1305 = vmatprep.subr.mxu0 0.0
        %1306 = vmatpush1.msra.mxu0 0.0
        %1307 = vmatprep.subr.mxu0 0.0
        %1308 = vmatpush1.msra.mxu0 0.0
        %1309 = vmatprep.subr.mxu0 0.0
        %1310 = vmatpush1.msra.mxu0 0.0
        %1311 = vmatprep.subr.mxu0 0.0
        %1312 = vmatpush1.msra.mxu0 0.0
        %1313 = vmatprep.subr.mxu0 0.0
        %1314 = vmatpush1.msra.mxu0 0.0
        %1315 = vmatprep.subr.mxu0 0.0
        %1316 = vmatpush1.msra.mxu0 0.0
        %1317 = vmatprep.subr.mxu0 0.0
        %1318 = vmatpush1.msra.mxu0 0.0
        %1319 = vmatprep.subr.mxu0 0.0
        %1320 = vmatpush1.msra.mxu0 0.0
        %1321 = vmatprep.subr.mxu0 0.0
        %1322 = vmatpush1.msra.mxu0 0.0
        %1323 = vmatprep.subr.mxu0 0.0
        %1324 = vmatpush1.msra.mxu0 0.0
        %1325 = vmatprep.subr.mxu0 0.0
        %1326 = vmatpush1.msra.mxu0 0.0
        %1327 = vmatprep.subr.mxu0 0.0
        %1328 = vmatpush1.msra.mxu0 0.0
        %1329 = vmatprep.subr.mxu0 0.0
        %1330 = vmatpush1.msra.mxu0 0.0
        %1331 = vmatprep.subr.mxu0 0.0
        %1332 = vmatpush1.msra.mxu0 0.0
        %1333 = vmatprep.subr.mxu0 0.0
        %1334 = vmatpush1.msra.mxu0 0.0
        %1335 = vmatprep.subr.mxu0 0.0
        %1336 = vmatpush1.msra.mxu0 0.0
        %1337 = vmatprep.subr.mxu0 0.0
        %1338 = vmatpush1.msra.mxu0 0.0
        %1339 = vmatprep.subr.mxu0 0.0
        %1340 = vmatpush1.msra.mxu0 0.0
        %1341 = vmatprep.subr.mxu0 0.0
        %1342 = vmatpush1.msra.mxu0 0.0
        %1343 = vmatprep.subr.mxu0 0.0
        %1344 = vmatpush1.msra.mxu0 0.0
        %1345 = vmatprep.subr.mxu0 0.0
        %1346 = vmatpush1.msra.mxu0 0.0
        %1347 = vmatprep.subr.mxu0 0.0
        %1348 = vmatpush1.msra.mxu0 0.0
        %1349 = vmatprep.mubr.f32.mxu0 0.0
        %1350 = vmatmul.mubr.f32.gmra.mrb[0].mxu0 %v1274
        %v1351 = vpop.f32.mrb[0].mxu0
        %v1352 = vadd.f32 %v1268, %v1351
        %v1353 = vpop.f32.mrb[0].mxu0
        %1354 = vmatprep.mubr.f32.mxu0 0.0
        %1355 = vmatmul.mubr.f32.gmra.mrb[0].mxu0 %v1277
        %v1356 = vpop.f32.mrb[0].mxu0
        %v1357 = vadd.f32 %v1269, %v1356
        %v1358 = vpop.f32.mrb[0].mxu0
        %1359 = vmatprep.mubr.f32.mxu0 0.0
        %1360 = vmatmul.mubr.f32.gmra.mrb[0].mxu0 %v1280
        %v1361 = vpop.f32.mrb[0].mxu0
        %v1362 = vadd.f32 %v1270, %v1361
        %v1363 = vpop.f32.mrb[0].mxu0
        %1364 = vmatprep.mubr.f32.mxu0 0.0
        %1365 = vmatmul.mubr.f32.gmra.mrb[0].mxu0 %v1283
        %v1366 = vpop.f32.mrb[0].mxu0
        %v1367 = vadd.f32 %v1271, %v1366
        %v1368 = vpop.f32.mrb[0].mxu0
        %1369 = vdwg.mxu0
        %v1370 = vxor.u32 %v1352, 2147483648
        %v1371 = vxor.u32 %v1357, 2147483648
        %v1372 = vxor.u32 %v1362, 2147483648
        %v1373 = vxor.u32 %v1367, 2147483648
        %v1374 = vmul.f32 %v1370, 1.442695
        %v1375 = vpow.pop %v1374
        %v1376 = vmul.f32 %v1371, 1.442695
        %v1377 = vpow.pop %v1376
        %v1378 = vmul.f32 %v1372, 1.442695
        %v1379 = vpow.pop %v1378
        %v1380 = vmul.f32 %v1373, 1.442695
        %v1381 = vpow.pop %v1380
        %v1382 = vadd.f32 %v1375, 1.0
        %v1383 = vadd.f32 %v1377, 1.0
        %v1384 = vadd.f32 %v1379, 1.0
        %v1385 = vadd.f32 %v1381, 1.0
        %v1386 = vrcp.pop %v1382
        %v1387 = vmul.f32 1.0, %v1386
        %v1388 = vrcp.pop %v1383
        %v1389 = vmul.f32 1.0, %v1388
        %v1390 = vrcp.pop %v1384
        %v1391 = vmul.f32 1.0, %v1390
        %v1392 = vrcp.pop %v1385
        %v1393 = vmul.f32 1.0, %v1392
        %1395 = vset.pattern.permute.xlu0 0
        %1396 = vperm.xlu0 %1395, %v1387
        %v1397 = vpop.permute.xlu0 %1396
        %1400 = vset.pattern.permute.xlu0 0
        %1401 = vperm.xlu0 %1400, %v1389
        %v1402 = vpop.permute.xlu0 %1401
        %1405 = vset.pattern.permute.xlu0 0
        %1406 = vperm.xlu0 %1405, %v1391
        %v1407 = vpop.permute.xlu0 %1406
        %1410 = vset.pattern.permute.xlu0 0
        %1411 = vperm.xlu0 %1410, %v1393
        %v1412 = vpop.permute.xlu0 %1411
        %v1414 = vmul.f32 %v1035, %v1397
        %v1415 = vmul.f32 %v1036, %v1402
        %v1416 = vmul.f32 %v1037, %v1407
        %v1417 = vmul.f32 %v1038, %v1412
        %vm1418 = vcmask 130048
        %v1419 = vsel %vm1418, %v1414, 0.0
        %1420 = vadd.xlane.f32.xlu0 %v1419
        %v1421 = vpop.xlane.xlu0 %1420
        %v1422 = vsel %vm1418, %v1415, 0.0
        %1423 = vadd.xlane.f32.xlu0 %v1422
        %v1424 = vpop.xlane.xlu0 %1423
        %v1425 = vsel %vm1418, %v1416, 0.0
        %1426 = vadd.xlane.f32.xlu0 %v1425
        %v1427 = vpop.xlane.xlu0 %1426
        %v1428 = vsel %vm1418, %v1417, 0.0
        %1429 = vadd.xlane.f32.xlu0 %v1428
        %v1430 = vpop.xlane.xlu0 %1429
        %v1431 = vrcp.pop 16.0
        %v1432 = vmul.f32 %v1421, %v1431
        %v1433 = vmul.f32 %v1424, %v1431
        %v1434 = vmul.f32 %v1427, %v1431
        %v1435 = vmul.f32 %v1430, %v1431
        %v1436 = vld [vmem:[%s23] sm:$0xff]
        %v1437 = vld [vmem:[%s23 + $0x8] sm:$0xff]
        %v1438 = vld [vmem:[%s25] sm:$0xff]
        %v1439 = vld [vmem:[%s25 + $0x8] sm:$0xff]
        %v1441 = vsel %vm1189, %v1436, 0
        %v1444 = vsel %vm1189, %v1437, 0
        %1446 = vmatprep.subr.mxu0 0.0
        %1447 = vmatpush1.msra.mxu0 %v1432
        %1448 = vmatprep.subr.mxu0 0.0
        %1449 = vmatpush1.msra.mxu0 %v1433
        %1450 = vmatprep.subr.mxu0 0.0
        %1451 = vmatpush1.msra.mxu0 %v1434
        %1452 = vmatprep.subr.mxu0 0.0
        %1453 = vmatpush1.msra.mxu0 %v1435
        %1454 = vmatprep.subr.mxu0 0.0
        %1455 = vmatpush1.msra.mxu0 0.0
        %1456 = vmatprep.subr.mxu0 0.0
        %1457 = vmatpush1.msra.mxu0 0.0
        %1458 = vmatprep.subr.mxu0 0.0
        %1459 = vmatpush1.msra.mxu0 0.0
        %1460 = vmatprep.subr.mxu0 0.0
        %1461 = vmatpush1.msra.mxu0 0.0
        %1462 = vmatprep.subr.mxu0 0.0
        %1463 = vmatpush1.msra.mxu0 0.0
        %1464 = vmatprep.subr.mxu0 0.0
        %1465 = vmatpush1.msra.mxu0 0.0
        %1466 = vmatprep.subr.mxu0 0.0
        %1467 = vmatpush1.msra.mxu0 0.0
        %1468 = vmatprep.subr.mxu0 0.0
        %1469 = vmatpush1.msra.mxu0 0.0
        %1470 = vmatprep.subr.mxu0 0.0
        %1471 = vmatpush1.msra.mxu0 0.0
        %1472 = vmatprep.subr.mxu0 0.0
        %1473 = vmatpush1.msra.mxu0 0.0
        %1474 = vmatprep.subr.mxu0 0.0
        %1475 = vmatpush1.msra.mxu0 0.0
        %1476 = vmatprep.subr.mxu0 0.0
        %1477 = vmatpush1.msra.mxu0 0.0
        %1478 = vmatprep.subr.mxu0 0.0
        %1479 = vmatpush1.msra.mxu0 0.0
        %1480 = vmatprep.subr.mxu0 0.0
        %1481 = vmatpush1.msra.mxu0 0.0
        %1482 = vmatprep.subr.mxu0 0.0
        %1483 = vmatpush1.msra.mxu0 0.0
        %1484 = vmatprep.subr.mxu0 0.0
        %1485 = vmatpush1.msra.mxu0 0.0
        %1486 = vmatprep.subr.mxu0 0.0
        %1487 = vmatpush1.msra.mxu0 0.0
        %1488 = vmatprep.subr.mxu0 0.0
        %1489 = vmatpush1.msra.mxu0 0.0
        %1490 = vmatprep.subr.mxu0 0.0
        %1491 = vmatpush1.msra.mxu0 0.0
        %1492 = vmatprep.subr.mxu0 0.0
        %1493 = vmatpush1.msra.mxu0 0.0
        %1494 = vmatprep.subr.mxu0 0.0
        %1495 = vmatpush1.msra.mxu0 0.0
        %1496 = vmatprep.subr.mxu0 0.0
        %1497 = vmatpush1.msra.mxu0 0.0
        %1498 = vmatprep.subr.mxu0 0.0
        %1499 = vmatpush1.msra.mxu0 0.0
        %1500 = vmatprep.subr.mxu0 0.0
        %1501 = vmatpush1.msra.mxu0 0.0
        %1502 = vmatprep.subr.mxu0 0.0
        %1503 = vmatpush1.msra.mxu0 0.0
        %1504 = vmatprep.subr.mxu0 0.0
        %1505 = vmatpush1.msra.mxu0 0.0
        %1506 = vmatprep.subr.mxu0 0.0
        %1507 = vmatpush1.msra.mxu0 0.0
        %1508 = vmatprep.subr.mxu0 0.0
        %1509 = vmatpush1.msra.mxu0 0.0
        %1510 = vmatprep.mubr.f32.mxu0 0.0
        %1511 = vmatmul.mubr.f32.gmra.mrb[0].mxu0 %v1441
        %v1512 = vpop.f32.mrb[0].mxu0
        %v1513 = vadd.f32 %v1438, %v1512
        %v1514 = vpop.f32.mrb[0].mxu0
        %1515 = vmatprep.mubr.f32.mxu0 0.0
        %1516 = vmatmul.mubr.f32.gmra.mrb[0].mxu0 %v1444
        %v1517 = vpop.f32.mrb[0].mxu0
        %v1518 = vadd.f32 %v1439, %v1517
        %v1519 = vpop.f32.mrb[0].mxu0
        %1520 = vdwg.mxu0
        %v1521 = vld [vmem:[%s27] sm:$0xf]
        %v1522 = vld [vmem:[%s29] sm:$0xf]
        %v1524 = vsel %vm1418, %v1521, 0
        %1526 = vmatprep.subr.mxu0 0.0
        %1527 = vmatpush1.msra.mxu0 %v1513
        %1528 = vmatprep.subr.mxu0 0.0
        %1529 = vmatpush1.msra.mxu0 %v1518
        %1530 = vmatprep.subr.mxu0 0.0
        %1531 = vmatpush1.msra.mxu0 0.0
        %1532 = vmatprep.subr.mxu0 0.0
        %1533 = vmatpush1.msra.mxu0 0.0
        %1534 = vmatprep.subr.mxu0 0.0
        %1535 = vmatpush1.msra.mxu0 0.0
        %1536 = vmatprep.subr.mxu0 0.0
        %1537 = vmatpush1.msra.mxu0 0.0
        %1538 = vmatprep.subr.mxu0 0.0
        %1539 = vmatpush1.msra.mxu0 0.0
        %1540 = vmatprep.subr.mxu0 0.0
        %1541 = vmatpush1.msra.mxu0 0.0
        %1542 = vmatprep.subr.mxu0 0.0
        %1543 = vmatpush1.msra.mxu0 0.0
        %1544 = vmatprep.subr.mxu0 0.0
        %1545 = vmatpush1.msra.mxu0 0.0
        %1546 = vmatprep.subr.mxu0 0.0
        %1547 = vmatpush1.msra.mxu0 0.0
        %1548 = vmatprep.subr.mxu0 0.0
        %1549 = vmatpush1.msra.mxu0 0.0
        %1550 = vmatprep.subr.mxu0 0.0
        %1551 = vmatpush1.msra.mxu0 0.0
        %1552 = vmatprep.subr.mxu0 0.0
        %1553 = vmatpush1.msra.mxu0 0.0
        %1554 = vmatprep.subr.mxu0 0.0
        %1555 = vmatpush1.msra.mxu0 0.0
        %1556 = vmatprep.subr.mxu0 0.0
        %1557 = vmatpush1.msra.mxu0 0.0
        %1558 = vmatprep.subr.mxu0 0.0
        %1559 = vmatpush1.msra.mxu0 0.0
        %1560 = vmatprep.subr.mxu0 0.0
        %1561 = vmatpush1.msra.mxu0 0.0
        %1562 = vmatprep.subr.mxu0 0.0
        %1563 = vmatpush1.msra.mxu0 0.0
        %1564 = vmatprep.subr.mxu0 0.0
        %1565 = vmatpush1.msra.mxu0 0.0
        %1566 = vmatprep.subr.mxu0 0.0
        %1567 = vmatpush1.msra.mxu0 0.0
        %1568 = vmatprep.subr.mxu0 0.0
        %1569 = vmatpush1.msra.mxu0 0.0
        %1570 = vmatprep.subr.mxu0 0.0
        %1571 = vmatpush1.msra.mxu0 0.0
        %1572 = vmatprep.subr.mxu0 0.0
        %1573 = vmatpush1.msra.mxu0 0.0
        %1574 = vmatprep.subr.mxu0 0.0
        %1575 = vmatpush1.msra.mxu0 0.0
        %1576 = vmatprep.subr.mxu0 0.0
        %1577 = vmatpush1.msra.mxu0 0.0
        %1578 = vmatprep.subr.mxu0 0.0
        %1579 = vmatpush1.msra.mxu0 0.0
        %1580 = vmatprep.subr.mxu0 0.0
        %1581 = vmatpush1.msra.mxu0 0.0
        %1582 = vmatprep.subr.mxu0 0.0
        %1583 = vmatpush1.msra.mxu0 0.0
        %1584 = vmatprep.subr.mxu0 0.0
        %1585 = vmatpush1.msra.mxu0 0.0
        %1586 = vmatprep.subr.mxu0 0.0
        %1587 = vmatpush1.msra.mxu0 0.0
        %1588 = vmatprep.subr.mxu0 0.0
        %1589 = vmatpush1.msra.mxu0 0.0
        %1590 = vmatprep.mubr.f32.mxu0 0.0
        %1591 = vmatmul.mubr.f32.gmra.mrb[0].mxu0 %v1524
        %v1592 = vpop.f32.mrb[0].mxu0
        %v1593 = vadd.f32 %v1522, %v1592
        %v1594 = vpop.f32.mrb[0].mxu0
        %1595 = vdwg.mxu0
        %v1596 = vmax.f32 %v1593, 0.0
        %v1597 = vld [vmem:[%s31] sm:$0xff]
        %v1598 = vld [vmem:[%s31 + $0x8] sm:$0xff]
        %v1599 = vld [vmem:[%s33] sm:$0xff]
        %v1600 = vld [vmem:[%s33 + $0x8] sm:$0xff]
        %v1602 = vsel %vm1047, %v1597, 0
        %v1605 = vsel %vm1047, %v1598, 0
        %vm1607 = vcmask 1043456
        %v1609 = vsel %vm1607, %v1596, 0
        %1611 = vmatprep.subr.mxu0 0.0
        %1612 = vmatpush1.msra.mxu0 %v1609
        %1613 = vmatprep.subr.mxu0 0.0
        %1614 = vmatpush1.msra.mxu0 0.0
        %1615 = vmatprep.subr.mxu0 0.0
        %1616 = vmatpush1.msra.mxu0 0.0
        %1617 = vmatprep.subr.mxu0 0.0
        %1618 = vmatpush1.msra.mxu0 0.0
        %1619 = vmatprep.subr.mxu0 0.0
        %1620 = vmatpush1.msra.mxu0 0.0
        %1621 = vmatprep.subr.mxu0 0.0
        %1622 = vmatpush1.msra.mxu0 0.0
        %1623 = vmatprep.subr.mxu0 0.0
        %1624 = vmatpush1.msra.mxu0 0.0
        %1625 = vmatprep.subr.mxu0 0.0
        %1626 = vmatpush1.msra.mxu0 0.0
        %1627 = vmatprep.subr.mxu0 0.0
        %1628 = vmatpush1.msra.mxu0 0.0
        %1629 = vmatprep.subr.mxu0 0.0
        %1630 = vmatpush1.msra.mxu0 0.0
        %1631 = vmatprep.subr.mxu0 0.0
        %1632 = vmatpush1.msra.mxu0 0.0
        %1633 = vmatprep.subr.mxu0 0.0
        %1634 = vmatpush1.msra.mxu0 0.0
        %1635 = vmatprep.subr.mxu0 0.0
        %1636 = vmatpush1.msra.mxu0 0.0
        %1637 = vmatprep.subr.mxu0 0.0
        %1638 = vmatpush1.msra.mxu0 0.0
        %1639 = vmatprep.subr.mxu0 0.0
        %1640 = vmatpush1.msra.mxu0 0.0
        %1641 = vmatprep.subr.mxu0 0.0
        %1642 = vmatpush1.msra.mxu0 0.0
        %1643 = vmatprep.subr.mxu0 0.0
        %1644 = vmatpush1.msra.mxu0 0.0
        %1645 = vmatprep.subr.mxu0 0.0
        %1646 = vmatpush1.msra.mxu0 0.0
        %1647 = vmatprep.subr.mxu0 0.0
        %1648 = vmatpush1.msra.mxu0 0.0
        %1649 = vmatprep.subr.mxu0 0.0
        %1650 = vmatpush1.msra.mxu0 0.0
        %1651 = vmatprep.subr.mxu0 0.0
        %1652 = vmatpush1.msra.mxu0 0.0
        %1653 = vmatprep.subr.mxu0 0.0
        %1654 = vmatpush1.msra.mxu0 0.0
        %1655 = vmatprep.subr.mxu0 0.0
        %1656 = vmatpush1.msra.mxu0 0.0
        %1657 = vmatprep.subr.mxu0 0.0
        %1658 = vmatpush1.msra.mxu0 0.0
        %1659 = vmatprep.subr.mxu0 0.0
        %1660 = vmatpush1.msra.mxu0 0.0
        %1661 = vmatprep.subr.mxu0 0.0
        %1662 = vmatpush1.msra.mxu0 0.0
        %1663 = vmatprep.subr.mxu0 0.0
        %1664 = vmatpush1.msra.mxu0 0.0
        %1665 = vmatprep.subr.mxu0 0.0
        %1666 = vmatpush1.msra.mxu0 0.0
        %1667 = vmatprep.subr.mxu0 0.0
        %1668 = vmatpush1.msra.mxu0 0.0
        %1669 = vmatprep.subr.mxu0 0.0
        %1670 = vmatpush1.msra.mxu0 0.0
        %1671 = vmatprep.subr.mxu0 0.0
        %1672 = vmatpush1.msra.mxu0 0.0
        %1673 = vmatprep.subr.mxu0 0.0
        %1674 = vmatpush1.msra.mxu0 0.0
        %1675 = vmatprep.mubr.f32.mxu0 0.0
        %1676 = vmatmul.mubr.f32.gmra.mrb[0].mxu0 %v1602
        %v1677 = vpop.f32.mrb[0].mxu0
        %v1678 = vadd.f32 %v1599, %v1677
        %v1679 = vpop.f32.mrb[0].mxu0
        %1680 = vmatprep.mubr.f32.mxu0 0.0
        %1681 = vmatmul.mubr.f32.gmra.mrb[0].mxu0 %v1605
        %v1682 = vpop.f32.mrb[0].mxu0
        %v1683 = vadd.f32 %v1600, %v1682
        %v1684 = vpop.f32.mrb[0].mxu0
        %1685 = vdwg.mxu0
        %v1686 = vxor.u32 %v1678, 2147483648
        %v1687 = vxor.u32 %v1683, 2147483648
        %v1688 = vmul.f32 %v1686, 1.442695
        %v1689 = vpow.pop %v1688
        %v1690 = vmul.f32 %v1687, 1.442695
        %v1691 = vpow.pop %v1690
        %v1692 = vadd.f32 %v1689, 1.0
        %v1693 = vadd.f32 %v1691, 1.0
        %v1694 = vrcp.pop %v1692
        %v1695 = vmul.f32 1.0, %v1694
        %v1696 = vrcp.pop %v1693
        %v1697 = vmul.f32 1.0, %v1696
        %1699 = vset.pattern.permute.xlu0 0
        %1700 = vperm.xlu0 %1699, %v1695
        %v1701 = vpop.permute.xlu0 %1700
        %1704 = vset.pattern.permute.xlu0 0
        %1705 = vperm.xlu0 %1704, %v1697
        %v1706 = vpop.permute.xlu0 %1705
        %v1708 = vmul.f32 %v1033, %v1701
        %v1709 = vmul.f32 %v1034, %v1706
        %v1710 = vsel %vm1089, %v1708, 0.0
        %1711 = vadd.xlane.f32.xlu0 %v1710
        %v1712 = vpop.xlane.xlu0 %1711
        %v1713 = vsel %vm1089, %v1709, 0.0
        %1714 = vadd.xlane.f32.xlu0 %v1713
        %v1715 = vpop.xlane.xlu0 %1714
        %v1716 = vrcp.pop 64.0
        %v1717 = vmul.f32 %v1712, %v1716
        %v1718 = vmul.f32 %v1715, %v1716
        %v1719 = vld [vmem:[%s11] sm:$0xff]
        %v1720 = vld [vmem:[%s13] sm:$0xff]
        %v1722 = vsel %vm1418, %v1719, 0
        %1724 = vmatprep.subr.mxu0 0.0
        %1725 = vmatpush1.msra.mxu0 %v1717
        %1726 = vmatprep.subr.mxu0 0.0
        %1727 = vmatpush1.msra.mxu0 %v1718
        %1728 = vmatprep.subr.mxu0 0.0
        %1729 = vmatpush1.msra.mxu0 0.0
        %1730 = vmatprep.subr.mxu0 0.0
        %1731 = vmatpush1.msra.mxu0 0.0
        %1732 = vmatprep.subr.mxu0 0.0
        %1733 = vmatpush1.msra.mxu0 0.0
        %1734 = vmatprep.subr.mxu0 0.0
        %1735 = vmatpush1.msra.mxu0 0.0
        %1736 = vmatprep.subr.mxu0 0.0
        %1737 = vmatpush1.msra.mxu0 0.0
        %1738 = vmatprep.subr.mxu0 0.0
        %1739 = vmatpush1.msra.mxu0 0.0
        %1740 = vmatprep.subr.mxu0 0.0
        %1741 = vmatpush1.msra.mxu0 0.0
        %1742 = vmatprep.subr.mxu0 0.0
        %1743 = vmatpush1.msra.mxu0 0.0
        %1744 = vmatprep.subr.mxu0 0.0
        %1745 = vmatpush1.msra.mxu0 0.0
        %1746 = vmatprep.subr.mxu0 0.0
        %1747 = vmatpush1.msra.mxu0 0.0
        %1748 = vmatprep.subr.mxu0 0.0
        %1749 = vmatpush1.msra.mxu0 0.0
        %1750 = vmatprep.subr.mxu0 0.0
        %1751 = vmatpush1.msra.mxu0 0.0
        %1752 = vmatprep.subr.mxu0 0.0
        %1753 = vmatpush1.msra.mxu0 0.0
        %1754 = vmatprep.subr.mxu0 0.0
        %1755 = vmatpush1.msra.mxu0 0.0
        %1756 = vmatprep.subr.mxu0 0.0
        %1757 = vmatpush1.msra.mxu0 0.0
        %1758 = vmatprep.subr.mxu0 0.0
        %1759 = vmatpush1.msra.mxu0 0.0
        %1760 = vmatprep.subr.mxu0 0.0
        %1761 = vmatpush1.msra.mxu0 0.0
        %1762 = vmatprep.subr.mxu0 0.0
        %1763 = vmatpush1.msra.mxu0 0.0
        %1764 = vmatprep.subr.mxu0 0.0
        %1765 = vmatpush1.msra.mxu0 0.0
        %1766 = vmatprep.subr.mxu0 0.0
        %1767 = vmatpush1.msra.mxu0 0.0
        %1768 = vmatprep.subr.mxu0 0.0
        %1769 = vmatpush1.msra.mxu0 0.0
        %1770 = vmatprep.subr.mxu0 0.0
        %1771 = vmatpush1.msra.mxu0 0.0
        %1772 = vmatprep.subr.mxu0 0.0
        %1773 = vmatpush1.msra.mxu0 0.0
        %1774 = vmatprep.subr.mxu0 0.0
        %1775 = vmatpush1.msra.mxu0 0.0
        %1776 = vmatprep.subr.mxu0 0.0
        %1777 = vmatpush1.msra.mxu0 0.0
        %1778 = vmatprep.subr.mxu0 0.0
        %1779 = vmatpush1.msra.mxu0 0.0
        %1780 = vmatprep.subr.mxu0 0.0
        %1781 = vmatpush1.msra.mxu0 0.0
        %1782 = vmatprep.subr.mxu0 0.0
        %1783 = vmatpush1.msra.mxu0 0.0
        %1784 = vmatprep.subr.mxu0 0.0
        %1785 = vmatpush1.msra.mxu0 0.0
        %1786 = vmatprep.subr.mxu0 0.0
        %1787 = vmatpush1.msra.mxu0 0.0
        %1788 = vmatprep.mubr.f32.mxu0 0.0
        %1789 = vmatmul.mubr.f32.gmra.mrb[0].mxu0 %v1722
        %v1790 = vpop.f32.mrb[0].mxu0
        %v1791 = vadd.f32 %v1720, %v1790
        %v1792 = vpop.f32.mrb[0].mxu0
        %1793 = vdwg.mxu0
        %v1794 = vld [vmem:[%s15] sm:$0x3]
        %v1795 = vld [vmem:[%s17] sm:$0x3]
        %v1797 = vsel %vm1272, %v1794, 0
        %1799 = vmatprep.subr.mxu0 0.0
        %1800 = vmatpush1.msra.mxu0 %v1791
        %1801 = vmatprep.subr.mxu0 0.0
        %1802 = vmatpush1.msra.mxu0 0.0
        %1803 = vmatprep.subr.mxu0 0.0
        %1804 = vmatpush1.msra.mxu0 0.0
        %1805 = vmatprep.subr.mxu0 0.0
        %1806 = vmatpush1.msra.mxu0 0.0
        %1807 = vmatprep.subr.mxu0 0.0
        %1808 = vmatpush1.msra.mxu0 0.0
        %1809 = vmatprep.subr.mxu0 0.0
        %1810 = vmatpush1.msra.mxu0 0.0
        %1811 = vmatprep.subr.mxu0 0.0
        %1812 = vmatpush1.msra.mxu0 0.0
        %1813 = vmatprep.subr.mxu0 0.0
        %1814 = vmatpush1.msra.mxu0 0.0
        %1815 = vmatprep.subr.mxu0 0.0
        %1816 = vmatpush1.msra.mxu0 0.0
        %1817 = vmatprep.subr.mxu0 0.0
        %1818 = vmatpush1.msra.mxu0 0.0
        %1819 = vmatprep.subr.mxu0 0.0
        %1820 = vmatpush1.msra.mxu0 0.0
        %1821 = vmatprep.subr.mxu0 0.0
        %1822 = vmatpush1.msra.mxu0 0.0
        %1823 = vmatprep.subr.mxu0 0.0
        %1824 = vmatpush1.msra.mxu0 0.0
        %1825 = vmatprep.subr.mxu0 0.0
        %1826 = vmatpush1.msra.mxu0 0.0
        %1827 = vmatprep.subr.mxu0 0.0
        %1828 = vmatpush1.msra.mxu0 0.0
        %1829 = vmatprep.subr.mxu0 0.0
        %1830 = vmatpush1.msra.mxu0 0.0
        %1831 = vmatprep.subr.mxu0 0.0
        %1832 = vmatpush1.msra.mxu0 0.0
        %1833 = vmatprep.subr.mxu0 0.0
        %1834 = vmatpush1.msra.mxu0 0.0
        %1835 = vmatprep.subr.mxu0 0.0
        %1836 = vmatpush1.msra.mxu0 0.0
        %1837 = vmatprep.subr.mxu0 0.0
        %1838 = vmatpush1.msra.mxu0 0.0
        %1839 = vmatprep.subr.mxu0 0.0
        %1840 = vmatpush1.msra.mxu0 0.0
        %1841 = vmatprep.subr.mxu0 0.0
        %1842 = vmatpush1.msra.mxu0 0.0
        %1843 = vmatprep.subr.mxu0 0.0
        %1844 = vmatpush1.msra.mxu0 0.0
        %1845 = vmatprep.subr.mxu0 0.0
        %1846 = vmatpush1.msra.mxu0 0.0
        %1847 = vmatprep.subr.mxu0 0.0
        %1848 = vmatpush1.msra.mxu0 0.0
        %1849 = vmatprep.subr.mxu0 0.0
        %1850 = vmatpush1.msra.mxu0 0.0
        %1851 = vmatprep.subr.mxu0 0.0
        %1852 = vmatpush1.msra.mxu0 0.0
        %1853 = vmatprep.subr.mxu0 0.0
        %1854 = vmatpush1.msra.mxu0 0.0
        %1855 = vmatprep.subr.mxu0 0.0
        %1856 = vmatpush1.msra.mxu0 0.0
        %1857 = vmatprep.subr.mxu0 0.0
        %1858 = vmatpush1.msra.mxu0 0.0
        %1859 = vmatprep.subr.mxu0 0.0
        %1860 = vmatpush1.msra.mxu0 0.0
        %1861 = vmatprep.subr.mxu0 0.0
        %1862 = vmatpush1.msra.mxu0 0.0
        %1863 = vmatprep.mubr.f32.mxu0 0.0
        %1864 = vmatmul.mubr.f32.gmra.mrb[0].mxu0 %v1797
        %v1865 = vpop.f32.mrb[0].mxu0
        %v1866 = vadd.f32 %v1795, %v1865
        %v1867 = vpop.f32.mrb[0].mxu0
        %1868 = vdwg.mxu0
        %v1869 = vmax.f32 %v1866, 0.0
        %v1870 = vld [vmem:[%s19] sm:$0xff]
        %v1871 = vld [vmem:[%s21] sm:$0xff]
        %vm1872 = vcmask 15360
        %v1874 = vsel %vm1872, %v1870, 0
        %vm1876 = vcmask 1041408
        %v1878 = vsel %vm1876, %v1869, 0
        %1880 = vmatprep.subr.mxu0 0.0
        %1881 = vmatpush1.msra.mxu0 %v1878
        %1882 = vmatprep.subr.mxu0 0.0
        %1883 = vmatpush1.msra.mxu0 0.0
        %1884 = vmatprep.subr.mxu0 0.0
        %1885 = vmatpush1.msra.mxu0 0.0
        %1886 = vmatprep.subr.mxu0 0.0
        %1887 = vmatpush1.msra.mxu0 0.0
        %1888 = vmatprep.subr.mxu0 0.0
        %1889 = vmatpush1.msra.mxu0 0.0
        %1890 = vmatprep.subr.mxu0 0.0
        %1891 = vmatpush1.msra.mxu0 0.0
        %1892 = vmatprep.subr.mxu0 0.0
        %1893 = vmatpush1.msra.mxu0 0.0
        %1894 = vmatprep.subr.mxu0 0.0
        %1895 = vmatpush1.msra.mxu0 0.0
        %1896 = vmatprep.subr.mxu0 0.0
        %1897 = vmatpush1.msra.mxu0 0.0
        %1898 = vmatprep.subr.mxu0 0.0
        %1899 = vmatpush1.msra.mxu0 0.0
        %1900 = vmatprep.subr.mxu0 0.0
        %1901 = vmatpush1.msra.mxu0 0.0
        %1902 = vmatprep.subr.mxu0 0.0
        %1903 = vmatpush1.msra.mxu0 0.0
        %1904 = vmatprep.subr.mxu0 0.0
        %1905 = vmatpush1.msra.mxu0 0.0
        %1906 = vmatprep.subr.mxu0 0.0
        %1907 = vmatpush1.msra.mxu0 0.0
        %1908 = vmatprep.subr.mxu0 0.0
        %1909 = vmatpush1.msra.mxu0 0.0
        %1910 = vmatprep.subr.mxu0 0.0
        %1911 = vmatpush1.msra.mxu0 0.0
        %1912 = vmatprep.subr.mxu0 0.0
        %1913 = vmatpush1.msra.mxu0 0.0
        %1914 = vmatprep.subr.mxu0 0.0
        %1915 = vmatpush1.msra.mxu0 0.0
        %1916 = vmatprep.subr.mxu0 0.0
        %1917 = vmatpush1.msra.mxu0 0.0
        %1918 = vmatprep.subr.mxu0 0.0
        %1919 = vmatpush1.msra.mxu0 0.0
        %1920 = vmatprep.subr.mxu0 0.0
        %1921 = vmatpush1.msra.mxu0 0.0
        %1922 = vmatprep.subr.mxu0 0.0
        %1923 = vmatpush1.msra.mxu0 0.0
        %1924 = vmatprep.subr.mxu0 0.0
        %1925 = vmatpush1.msra.mxu0 0.0
        %1926 = vmatprep.subr.mxu0 0.0
        %1927 = vmatpush1.msra.mxu0 0.0
        %1928 = vmatprep.subr.mxu0 0.0
        %1929 = vmatpush1.msra.mxu0 0.0
        %1930 = vmatprep.subr.mxu0 0.0
        %1931 = vmatpush1.msra.mxu0 0.0
        %1932 = vmatprep.subr.mxu0 0.0
        %1933 = vmatpush1.msra.mxu0 0.0
        %1934 = vmatprep.subr.mxu0 0.0
        %1935 = vmatpush1.msra.mxu0 0.0
        %1936 = vmatprep.subr.mxu0 0.0
        %1937 = vmatpush1.msra.mxu0 0.0
        %1938 = vmatprep.subr.mxu0 0.0
        %1939 = vmatpush1.msra.mxu0 0.0
        %1940 = vmatprep.subr.mxu0 0.0
        %1941 = vmatpush1.msra.mxu0 0.0
        %1942 = vmatprep.subr.mxu0 0.0
        %1943 = vmatpush1.msra.mxu0 0.0
        %1944 = vmatprep.mubr.f32.mxu0 0.0
        %1945 = vmatmul.mubr.f32.gmra.mrb[0].mxu0 %v1874
        %v1946 = vpop.f32.mrb[0].mxu0
        %v1947 = vadd.f32 %v1871, %v1946
        %v1948 = vpop.f32.mrb[0].mxu0
        %1949 = vdwg.mxu0
        %v1950 = vxor.u32 %v1947, 2147483648
        %v1951 = vmul.f32 %v1950, 1.442695
        %v1952 = vpow.pop %v1951
        %v1953 = vadd.f32 %v1952, 1.0
        %v1954 = vrcp.pop %v1953
        %v1955 = vmul.f32 1.0, %v1954
        %1957 = vset.pattern.permute.xlu0 0
        %1958 = vperm.xlu0 %1957, %v1955
        %v1959 = vpop.permute.xlu0 %1958
        %v1961 = vmul.f32 %v1031, %v1959
        %v1962 = vmul.f32 %v1032, %v1959
        %s1963 = sld [smem:[#allocation2]]
        %s1964 = sld [smem:[#allocation2 + $0x1]]
        %s1965 = sld [smem:[#allocation2 + $0x2]]
        %v1966 = vrot.slane %v1961, 4
        %v1967 = vadd.f32 %v1961, %v1966
        %v1968 = vrot.slane %v1967, 2
        %v1969 = vadd.f32 %v1967, %v1968
        %v1970 = vrot.slane %v1969, 1
        %v1971 = vadd.f32 %v1969, %v1970
        %v1972 = vrot.slane %v1962, 4
        %v1973 = vadd.f32 %v1962, %v1972
        %v1974 = vrot.slane %v1973, 2
        %v1975 = vadd.f32 %v1973, %v1974
        %v1976 = vrot.slane %v1975, 1
        %v1977 = vadd.f32 %v1975, %v1976
        %v1978 = vrcp.pop 8.0
        %v1979 = vmul.f32 %v1971, %v1978
        %v1980 = vmul.f32 %v1977, %v1978
        %v1981 = vrot.slane %v1961, 4
        %v1982 = vmax.f32 %v1961, %v1981
        %v1983 = vrot.slane %v1982, 2
        %v1984 = vmax.f32 %v1982, %v1983
        %v1985 = vrot.slane %v1984, 1
        %v1986 = vmax.f32 %v1984, %v1985
        %v1987 = vrot.slane %v1962, 4
        %v1988 = vmax.f32 %v1962, %v1987
        %v1989 = vrot.slane %v1988, 2
        %v1990 = vmax.f32 %v1988, %v1989
        %v1991 = vrot.slane %v1990, 1
        %v1992 = vmax.f32 %v1990, %v1991
        %v1993 = vstv %s1963
        %v1994 = vmul.f32 %v1993, %v1979
        %v1995 = vmul.f32 %v1993, %v1980
        %v1996 = vstv %s1964
        %v1997 = vmul.f32 %v1996, %v1986
        %v1998 = vmul.f32 %v1996, %v1992
        %v1999 = vadd.f32 %v1994, %v1997
        %v2000 = vadd.f32 %v1995, %v1998
        %v2001 = vstv %s1965
        %v2002 = vadd.f32 %v1999, %v2001
        %v2003 = vadd.f32 %v2000, %v2001
        %v2004 = vxor.u32 %v2002, 2147483648
        %v2005 = vxor.u32 %v2003, 2147483648
        %v2006 = vmul.f32 %v2004, 1.442695
        %v2007 = vpow.pop %v2006
        %v2008 = vmul.f32 %v2005, 1.442695
        %v2009 = vpow.pop %v2008
        %v2010 = vadd.f32 %v2007, 1.0
        %v2011 = vadd.f32 %v2009, 1.0
        %v2012 = vrcp.pop %v2010
        %v2013 = vmul.f32 1.0, %v2012
        %v2014 = vrcp.pop %v2011
        %v2015 = vmul.f32 1.0, %v2014
        %v2016 = vld [vmem:[%s47] sm:$0xff]
        %v2017 = vld [vmem:[%s47 + $0x8] sm:$0xff]
        %v2018 = vld [vmem:[%s47 + $0x10] sm:$0xff]
        %v2019 = vld [vmem:[%s47 + $0x18] sm:$0xff]
        %v2020 = vld [vmem:[%s47 + $0x20] sm:$0xff]
        %v2021 = vld [vmem:[%s47 + $0x28] sm:$0xff]
        %v2022 = vld [vmem:[%s47 + $0x30] sm:$0xff]
        %v2023 = vld [vmem:[%s47 + $0x38] sm:$0xff]
        %v2024 = vld [vmem:[%s47 + $0x40] sm:$0xff]
        %v2025 = vld [vmem:[%s47 + $0x48] sm:$0xff]
        %v2026 = vld [vmem:[%s47 + $0x50] sm:$0xff]
        %v2027 = vld [vmem:[%s47 + $0x58] sm:$0xff]
        %v2028 = vld [vmem:[%s47 + $0x60] sm:$0xff]
        %v2029 = vld [vmem:[%s47 + $0x68] sm:$0xff]
        %v2030 = vld [vmem:[%s47 + $0x70] sm:$0xff]
        %v2031 = vld [vmem:[%s47 + $0x78] sm:$0xff]
        %v2033 = vsel %vm1089, %v1708, 0
        %v2036 = vsel %vm1089, %v1709, 0
        %2038 = vmatprep.subr.mxu0 %v2017
        %2039 = vmatpush1.msra.mxu0 %v2016
        %2040 = vmatprep.subr.mxu0 %v2019
        %2041 = vmatpush1.msra.mxu0 %v2018
        %2042 = vmatprep.subr.mxu0 %v2021
        %2043 = vmatpush1.msra.mxu0 %v2020
        %2044 = vmatprep.subr.mxu0 %v2023
        %2045 = vmatpush1.msra.mxu0 %v2022
        %2046 = vmatprep.subr.mxu0 %v2025
        %2047 = vmatpush1.msra.mxu0 %v2024
        %2048 = vmatprep.subr.mxu0 %v2027
        %2049 = vmatpush1.msra.mxu0 %v2026
        %2050 = vmatprep.subr.mxu0 %v2029
        %2051 = vmatpush1.msra.mxu0 %v2028
        %2052 = vmatprep.subr.mxu0 %v2031
        %2053 = vmatpush1.msra.mxu0 %v2030
        %2054 = vmatprep.subr.mxu0 0.0
        %2055 = vmatpush1.msra.mxu0 0.0
        %2056 = vmatprep.subr.mxu0 0.0
        %2057 = vmatpush1.msra.mxu0 0.0
        %2058 = vmatprep.subr.mxu0 0.0
        %2059 = vmatpush1.msra.mxu0 0.0
        %2060 = vmatprep.subr.mxu0 0.0
        %2061 = vmatpush1.msra.mxu0 0.0
        %2062 = vmatprep.subr.mxu0 0.0
        %2063 = vmatpush1.msra.mxu0 0.0
        %2064 = vmatprep.subr.mxu0 0.0
        %2065 = vmatpush1.msra.mxu0 0.0
        %2066 = vmatprep.subr.mxu0 0.0
        %2067 = vmatpush1.msra.mxu0 0.0
        %2068 = vmatprep.subr.mxu0 0.0
        %2069 = vmatpush1.msra.mxu0 0.0
        %2070 = vmatprep.subr.mxu0 0.0
        %2071 = vmatpush1.msra.mxu0 0.0
        %2072 = vmatprep.subr.mxu0 0.0
        %2073 = vmatpush1.msra.mxu0 0.0
        %2074 = vmatprep.subr.mxu0 0.0
        %2075 = vmatpush1.msra.mxu0 0.0
        %2076 = vmatprep.subr.mxu0 0.0
        %2077 = vmatpush1.msra.mxu0 0.0
        %2078 = vmatprep.subr.mxu0 0.0
        %2079 = vmatpush1.msra.mxu0 0.0
        %2080 = vmatprep.subr.mxu0 0.0
        %2081 = vmatpush1.msra.mxu0 0.0
        %2082 = vmatprep.subr.mxu0 0.0
        %2083 = vmatpush1.msra.mxu0 0.0
        %2084 = vmatprep.subr.mxu0 0.0
        %2085 = vmatpush1.msra.mxu0 0.0
        %2086 = vmatprep.subr.mxu0 0.0
        %2087 = vmatpush1.msra.mxu0 0.0
        %2088 = vmatprep.subr.mxu0 0.0
        %2089 = vmatpush1.msra.mxu0 0.0
        %2090 = vmatprep.subr.mxu0 0.0
        %2091 = vmatpush1.msra.mxu0 0.0
        %2092 = vmatprep.subr.mxu0 0.0
        %2093 = vmatpush1.msra.mxu0 0.0
        %2094 = vmatprep.subr.mxu0 0.0
        %2095 = vmatpush1.msra.mxu0 0.0
        %2096 = vmatprep.subr.mxu0 0.0
        %2097 = vmatpush1.msra.mxu0 0.0
        %2098 = vmatprep.subr.mxu0 0.0
        %2099 = vmatpush1.msra.mxu0 0.0
        %2100 = vmatprep.subr.mxu0 0.0
        %2101 = vmatpush1.msra.mxu0 0.0
        %2102 = vmatprep.mubr.f32.mxu0 0.0
        %2103 = vmatmul.mubr.f32.gmra.mrb[0].mxu0 %v2033
        %v2104 = vpop.f32.mrb[0].mxu0
        %v2105 = vadd.f32 0.0, %v2104
        %v2106 = vpop.f32.mrb[0].mxu0
        %v2107 = vadd.f32 0.0, %v2106
        %2108 = vmatprep.mubr.f32.mxu0 0.0
        %2109 = vmatmul.mubr.f32.gmra.mrb[0].mxu0 %v2036
        %v2110 = vpop.f32.mrb[0].mxu0
        %v2111 = vadd.f32 0.0, %v2110
        %v2112 = vpop.f32.mrb[0].mxu0
        %v2113 = vadd.f32 0.0, %v2112
        %2114 = vdwg.mxu0
        %v2115 = vmul.f32 %v2013, %v2105
        %v2116 = vmul.f32 %v2015, %v2107
        %v2117 = vmul.f32 %v2013, %v2111
        %v2118 = vmul.f32 %v2015, %v2113
        %s2119 = sld [smem:[#allocation2 + $0x3]]
        %s2120 = sld [smem:[#allocation2 + $0x4]]
        %s2121 = sld [smem:[#allocation2 + $0x5]]
        %v2122 = vadd.f32 %v2115, %v2117
        %v2123 = vrot.slane %v2122, 4
        %v2124 = vadd.f32 %v2122, %v2123
        %v2125 = vrot.slane %v2124, 2
        %v2126 = vadd.f32 %v2124, %v2125
        %v2127 = vrot.slane %v2126, 1
        %v2128 = vadd.f32 %v2126, %v2127
        %v2129 = vadd.f32 %v2116, %v2118
        %v2130 = vrot.slane %v2129, 4
        %v2131 = vadd.f32 %v2129, %v2130
        %v2132 = vrot.slane %v2131, 2
        %v2133 = vadd.f32 %v2131, %v2132
        %v2134 = vrot.slane %v2133, 1
        %v2135 = vadd.f32 %v2133, %v2134
        %v2136 = vmul.f32 %v2128, %v1431
        %v2137 = vmul.f32 %v2135, %v1431
        %v2138 = vmax.f32 %v2115, %v2117
        %v2139 = vrot.slane %v2138, 4
        %v2140 = vmax.f32 %v2138, %v2139
        %v2141 = vrot.slane %v2140, 2
        %v2142 = vmax.f32 %v2140, %v2141
        %v2143 = vrot.slane %v2142, 1
        %v2144 = vmax.f32 %v2142, %v2143
        %v2145 = vmax.f32 %v2116, %v2118
        %v2146 = vrot.slane %v2145, 4
        %v2147 = vmax.f32 %v2145, %v2146
        %v2148 = vrot.slane %v2147, 2
        %v2149 = vmax.f32 %v2147, %v2148
        %v2150 = vrot.slane %v2149, 1
        %v2151 = vmax.f32 %v2149, %v2150
        %v2152 = vstv %s2119
        %v2153 = vmul.f32 %v2152, %v2136
        %v2154 = vmul.f32 %v2152, %v2137
        %v2155 = vstv %s2120
        %v2156 = vmul.f32 %v2155, %v2144
        %v2157 = vmul.f32 %v2155, %v2151
        %v2158 = vadd.f32 %v2153, %v2156
        %v2159 = vadd.f32 %v2154, %v2157
        %v2160 = vstv %s2121
        %v2161 = vadd.f32 %v2158, %v2160
        %v2162 = vadd.f32 %v2159, %v2160
        %v2163 = vxor.u32 %v2161, 2147483648
        %v2164 = vxor.u32 %v2162, 2147483648
        %v2165 = vmul.f32 %v2163, 1.442695
        %v2166 = vpow.pop %v2165
        %v2167 = vmul.f32 %v2164, 1.442695
        %v2168 = vpow.pop %v2167
        %v2169 = vadd.f32 %v2166, 1.0
        %v2170 = vadd.f32 %v2168, 1.0
        %v2171 = vrcp.pop %v2169
        %v2172 = vmul.f32 1.0, %v2171
        %v2173 = vrcp.pop %v2170
        %v2174 = vmul.f32 1.0, %v2173
        %v2175 = vld [vmem:[%s49] sm:$0xff]
        %v2176 = vld [vmem:[%s49 + $0x8] sm:$0xff]
        %v2177 = vld [vmem:[%s49 + $0x10] sm:$0xff]
        %v2178 = vld [vmem:[%s49 + $0x18] sm:$0xff]
        %v2180 = vsel %vm1418, %v1414, 0
        %v2183 = vsel %vm1418, %v1415, 0
        %v2186 = vsel %vm1418, %v1416, 0
        %v2189 = vsel %vm1418, %v1417, 0
        %2191 = vmatprep.subr.mxu0 %v2176
        %2192 = vmatpush1.msra.mxu0 %v2175
        %2193 = vmatprep.subr.mxu0 %v2178
        %2194 = vmatpush1.msra.mxu0 %v2177
        %2195 = vmatprep.subr.mxu0 0.0
        %2196 = vmatpush1.msra.mxu0 0.0
        %2197 = vmatprep.subr.mxu0 0.0
        %2198 = vmatpush1.msra.mxu0 0.0
        %2199 = vmatprep.subr.mxu0 0.0
        %2200 = vmatpush1.msra.mxu0 0.0
        %2201 = vmatprep.subr.mxu0 0.0
        %2202 = vmatpush1.msra.mxu0 0.0
        %2203 = vmatprep.subr.mxu0 0.0
        %2204 = vmatpush1.msra.mxu0 0.0
        %2205 = vmatprep.subr.mxu0 0.0
        %2206 = vmatpush1.msra.mxu0 0.0
        %2207 = vmatprep.subr.mxu0 0.0
        %2208 = vmatpush1.msra.mxu0 0.0
        %2209 = vmatprep.subr.mxu0 0.0
        %2210 = vmatpush1.msra.mxu0 0.0
        %2211 = vmatprep.subr.mxu0 0.0
        %2212 = vmatpush1.msra.mxu0 0.0
        %2213 = vmatprep.subr.mxu0 0.0
        %2214 = vmatpush1.msra.mxu0 0.0
        %2215 = vmatprep.subr.mxu0 0.0
        %2216 = vmatpush1.msra.mxu0 0.0
        %2217 = vmatprep.subr.mxu0 0.0
        %2218 = vmatpush1.msra.mxu0 0.0
        %2219 = vmatprep.subr.mxu0 0.0
        %2220 = vmatpush1.msra.mxu0 0.0
        %2221 = vmatprep.subr.mxu0 0.0
        %2222 = vmatpush1.msra.mxu0 0.0
        %2223 = vmatprep.subr.mxu0 0.0
        %2224 = vmatpush1.msra.mxu0 0.0
        %2225 = vmatprep.subr.mxu0 0.0
        %2226 = vmatpush1.msra.mxu0 0.0
        %2227 = vmatprep.subr.mxu0 0.0
        %2228 = vmatpush1.msra.mxu0 0.0
        %2229 = vmatprep.subr.mxu0 0.0
        %2230 = vmatpush1.msra.mxu0 0.0
        %2231 = vmatprep.subr.mxu0 0.0
        %2232 = vmatpush1.msra.mxu0 0.0
        %2233 = vmatprep.subr.mxu0 0.0
        %2234 = vmatpush1.msra.mxu0 0.0
        %2235 = vmatprep.subr.mxu0 0.0
        %2236 = vmatpush1.msra.mxu0 0.0
        %2237 = vmatprep.subr.mxu0 0.0
        %2238 = vmatpush1.msra.mxu0 0.0
        %2239 = vmatprep.subr.mxu0 0.0
        %2240 = vmatpush1.msra.mxu0 0.0
        %2241 = vmatprep.subr.mxu0 0.0
        %2242 = vmatpush1.msra.mxu0 0.0
        %2243 = vmatprep.subr.mxu0 0.0
        %2244 = vmatpush1.msra.mxu0 0.0
        %2245 = vmatprep.subr.mxu0 0.0
        %2246 = vmatpush1.msra.mxu0 0.0
        %2247 = vmatprep.subr.mxu0 0.0
        %2248 = vmatpush1.msra.mxu0 0.0
        %2249 = vmatprep.subr.mxu0 0.0
        %2250 = vmatpush1.msra.mxu0 0.0
        %2251 = vmatprep.subr.mxu0 0.0
        %2252 = vmatpush1.msra.mxu0 0.0
        %2253 = vmatprep.subr.mxu0 0.0
        %2254 = vmatpush1.msra.mxu0 0.0
        %2255 = vmatprep.mubr.f32.mxu0 0.0
        %2256 = vmatmul.mubr.f32.gmra.mrb[0].mxu0 %v2180
        %v2257 = vpop.f32.mrb[0].mxu0
        %v2258 = vadd.f32 0.0, %v2257
        %v2259 = vpop.f32.mrb[0].mxu0
        %v2260 = vadd.f32 0.0, %v2259
        %2261 = vmatprep.mubr.f32.mxu0 0.0
        %2262 = vmatmul.mubr.f32.gmra.mrb[0].mxu0 %v2183
        %v2263 = vpop.f32.mrb[0].mxu0
        %v2264 = vadd.f32 0.0, %v2263
        %v2265 = vpop.f32.mrb[0].mxu0
        %v2266 = vadd.f32 0.0, %v2265
        %2267 = vmatprep.mubr.f32.mxu0 0.0
        %2268 = vmatmul.mubr.f32.gmra.mrb[0].mxu0 %v2186
        %v2269 = vpop.f32.mrb[0].mxu0
        %v2270 = vadd.f32 0.0, %v2269
        %v2271 = vpop.f32.mrb[0].mxu0
        %v2272 = vadd.f32 0.0, %v2271
        %2273 = vmatprep.mubr.f32.mxu0 0.0
        %2274 = vmatmul.mubr.f32.gmra.mrb[0].mxu0 %v2189
        %v2275 = vpop.f32.mrb[0].mxu0
        %v2276 = vadd.f32 0.0, %v2275
        %v2277 = vpop.f32.mrb[0].mxu0
        %v2278 = vadd.f32 0.0, %v2277
        %2279 = vdwg.mxu0
        %v2280 = vmul.f32 %v2172, %v2258
        %v2281 = vmul.f32 %v2174, %v2260
        %v2282 = vmul.f32 %v2172, %v2264
        %v2283 = vmul.f32 %v2174, %v2266
        %v2284 = vmul.f32 %v2172, %v2270
        %v2285 = vmul.f32 %v2174, %v2272
        %v2286 = vmul.f32 %v2172, %v2276
        %v2287 = vmul.f32 %v2174, %v2278
        %s2288 = sld [smem:[#allocation2 + $0x6]]
        %s2289 = sld [smem:[#allocation2 + $0x7]]
        %s2290 = sld [smem:[#allocation2 + $0x8]]
        %v2291 = vadd.f32 %v2280, %v2282
        %v2292 = vadd.f32 %v2291, %v2284
        %v2293 = vadd.f32 %v2292, %v2286
        %v2294 = vrot.slane %v2293, 4
        %v2295 = vadd.f32 %v2293, %v2294
        %v2296 = vrot.slane %v2295, 2
        %v2297 = vadd.f32 %v2295, %v2296
        %v2298 = vrot.slane %v2297, 1
        %v2299 = vadd.f32 %v2297, %v2298
        %v2300 = vadd.f32 %v2281, %v2283
        %v2301 = vadd.f32 %v2300, %v2285
        %v2302 = vadd.f32 %v2301, %v2287
        %v2303 = vrot.slane %v2302, 4
        %v2304 = vadd.f32 %v2302, %v2303
        %v2305 = vrot.slane %v2304, 2
        %v2306 = vadd.f32 %v2304, %v2305
        %v2307 = vrot.slane %v2306, 1
        %v2308 = vadd.f32 %v2306, %v2307
        %v2309 = vrcp.pop 32.0
        %v2310 = vmul.f32 %v2299, %v2309
        %v2311 = vmul.f32 %v2308, %v2309
        %v2312 = vmax.f32 %v2280, %v2284
        %v2313 = vmax.f32 %v2282, %v2286
        %v2314 = vmax.f32 %v2312, %v2313
        %v2315 = vrot.slane %v2314, 4
        %v2316 = vmax.f32 %v2314, %v2315
        %v2317 = vrot.slane %v2316, 2
        %v2318 = vmax.f32 %v2316, %v2317
        %v2319 = vrot.slane %v2318, 1
        %v2320 = vmax.f32 %v2318, %v2319
        %v2321 = vmax.f32 %v2281, %v2285
        %v2322 = vmax.f32 %v2283, %v2287
        %v2323 = vmax.f32 %v2321, %v2322
        %v2324 = vrot.slane %v2323, 4
        %v2325 = vmax.f32 %v2323, %v2324
        %v2326 = vrot.slane %v2325, 2
        %v2327 = vmax.f32 %v2325, %v2326
        %v2328 = vrot.slane %v2327, 1
        %v2329 = vmax.f32 %v2327, %v2328
        %v2330 = vstv %s2288
        %v2331 = vmul.f32 %v2330, %v2310
        %v2332 = vmul.f32 %v2330, %v2311
        %v2333 = vstv %s2289
        %v2334 = vmul.f32 %v2333, %v2320
        %v2335 = vmul.f32 %v2333, %v2329
        %v2336 = vadd.f32 %v2331, %v2334
        %v2337 = vadd.f32 %v2332, %v2335
        %v2338 = vstv %s2290
        %v2339 = vadd.f32 %v2336, %v2338
        %v2340 = vadd.f32 %v2337, %v2338
        %v2341 = vxor.u32 %v2339, 2147483648
        %v2342 = vxor.u32 %v2340, 2147483648
        %v2343 = vmul.f32 %v2341, 1.442695
        %v2344 = vpow.pop %v2343
        %v2345 = vmul.f32 %v2342, 1.442695
        %v2346 = vpow.pop %v2345
        %v2347 = vadd.f32 %v2344, 1.0
        %v2348 = vadd.f32 %v2346, 1.0
        %v2349 = vrcp.pop %v2347
        %v2350 = vmul.f32 1.0, %v2349
        %v2351 = vrcp.pop %v2348
        %v2352 = vmul.f32 1.0, %v2351
        %v2353 = vld [vmem:[%s51] sm:$0xff]
        %v2355 = vcombine.high %v2353, %v2353
        %v2357 = vsel %vm1047, %v1039, 0
        %v2360 = vsel %vm1047, %v1040, 0
        %v2363 = vsel %vm1047, %v1041, 0
        %v2366 = vsel %vm1047, %v1042, 0
        %v2369 = vsel %vm1047, %v1043, 0
        %v2372 = vsel %vm1047, %v1044, 0
        %v2375 = vsel %vm1047, %v1045, 0
        %v2378 = vsel %vm1047, %v1046, 0
        %v2380 = vsel %vm1607, %v2353, 0
        %v2382 = vsel %vm1607, %v2355, 0
        %2384 = vmatprep.subr.mxu0 %v2382
        %2385 = vmatpush1.msra.mxu0 %v2380
        %2386 = vmatprep.subr.mxu0 0.0
        %2387 = vmatpush1.msra.mxu0 0.0
        %2388 = vmatprep.subr.mxu0 0.0
        %2389 = vmatpush1.msra.mxu0 0.0
        %2390 = vmatprep.subr.mxu0 0.0
        %2391 = vmatpush1.msra.mxu0 0.0
        %2392 = vmatprep.subr.mxu0 0.0
        %2393 = vmatpush1.msra.mxu0 0.0
        %2394 = vmatprep.subr.mxu0 0.0
        %2395 = vmatpush1.msra.mxu0 0.0
        %2396 = vmatprep.subr.mxu0 0.0
        %2397 = vmatpush1.msra.mxu0 0.0
        %2398 = vmatprep.subr.mxu0 0.0
        %2399 = vmatpush1.msra.mxu0 0.0
        %2400 = vmatprep.subr.mxu0 0.0
        %2401 = vmatpush1.msra.mxu0 0.0
        %2402 = vmatprep.subr.mxu0 0.0
        %2403 = vmatpush1.msra.mxu0 0.0
        %2404 = vmatprep.subr.mxu0 0.0
        %2405 = vmatpush1.msra.mxu0 0.0
        %2406 = vmatprep.subr.mxu0 0.0
        %2407 = vmatpush1.msra.mxu0 0.0
        %2408 = vmatprep.subr.mxu0 0.0
        %2409 = vmatpush1.msra.mxu0 0.0
        %2410 = vmatprep.subr.mxu0 0.0
        %2411 = vmatpush1.msra.mxu0 0.0
        %2412 = vmatprep.subr.mxu0 0.0
        %2413 = vmatpush1.msra.mxu0 0.0
        %2414 = vmatprep.subr.mxu0 0.0
        %2415 = vmatpush1.msra.mxu0 0.0
        %2416 = vmatprep.subr.mxu0 0.0
        %2417 = vmatpush1.msra.mxu0 0.0
        %2418 = vmatprep.subr.mxu0 0.0
        %2419 = vmatpush1.msra.mxu0 0.0
        %2420 = vmatprep.subr.mxu0 0.0
        %2421 = vmatpush1.msra.mxu0 0.0
        %2422 = vmatprep.subr.mxu0 0.0
        %2423 = vmatpush1.msra.mxu0 0.0
        %2424 = vmatprep.subr.mxu0 0.0
        %2425 = vmatpush1.msra.mxu0 0.0
        %2426 = vmatprep.subr.mxu0 0.0
        %2427 = vmatpush1.msra.mxu0 0.0
        %2428 = vmatprep.subr.mxu0 0.0
        %2429 = vmatpush1.msra.mxu0 0.0
        %2430 = vmatprep.subr.mxu0 0.0
        %2431 = vmatpush1.msra.mxu0 0.0
        %2432 = vmatprep.subr.mxu0 0.0
        %2433 = vmatpush1.msra.mxu0 0.0
        %2434 = vmatprep.subr.mxu0 0.0
        %2435 = vmatpush1.msra.mxu0 0.0
        %2436 = vmatprep.subr.mxu0 0.0
        %2437 = vmatpush1.msra.mxu0 0.0
        %2438 = vmatprep.subr.mxu0 0.0
        %2439 = vmatpush1.msra.mxu0 0.0
        %2440 = vmatprep.subr.mxu0 0.0
        %2441 = vmatpush1.msra.mxu0 0.0
        %2442 = vmatprep.subr.mxu0 0.0
        %2443 = vmatpush1.msra.mxu0 0.0
        %2444 = vmatprep.subr.mxu0 0.0
        %2445 = vmatpush1.msra.mxu0 0.0
        %2446 = vmatprep.subr.mxu0 0.0
        %2447 = vmatpush1.msra.mxu0 0.0
        %2448 = vmatprep.mubr.f32.mxu0 0.0
        %2449 = vmatmul.mubr.f32.gmra.mrb[0].mxu0 %v2357
        %v2450 = vpop.f32.mrb[0].mxu0
        %v2451 = vadd.f32 0.0, %v2450
        %v2452 = vpop.f32.mrb[0].mxu0
        %v2453 = vadd.f32 0.0, %v2452
        %2454 = vmatprep.mubr.f32.mxu0 0.0
        %2455 = vmatmul.mubr.f32.gmra.mrb[0].mxu0 %v2360
        %v2456 = vpop.f32.mrb[0].mxu0
        %v2457 = vadd.f32 0.0, %v2456
        %v2458 = vpop.f32.mrb[0].mxu0
        %v2459 = vadd.f32 0.0, %v2458
        %2460 = vmatprep.mubr.f32.mxu0 0.0
        %2461 = vmatmul.mubr.f32.gmra.mrb[0].mxu0 %v2363
        %v2462 = vpop.f32.mrb[0].mxu0
        %v2463 = vadd.f32 0.0, %v2462
        %v2464 = vpop.f32.mrb[0].mxu0
        %v2465 = vadd.f32 0.0, %v2464
        %2466 = vmatprep.mubr.f32.mxu0 0.0
        %2467 = vmatmul.mubr.f32.gmra.mrb[0].mxu0 %v2366
        %v2468 = vpop.f32.mrb[0].mxu0
        %v2469 = vadd.f32 0.0, %v2468
        %v2470 = vpop.f32.mrb[0].mxu0
        %v2471 = vadd.f32 0.0, %v2470
        %2472 = vmatprep.mubr.f32.mxu0 0.0
        %2473 = vmatmul.mubr.f32.gmra.mrb[0].mxu0 %v2369
        %v2474 = vpop.f32.mrb[0].mxu0
        %v2475 = vadd.f32 0.0, %v2474
        %v2476 = vpop.f32.mrb[0].mxu0
        %v2477 = vadd.f32 0.0, %v2476
        %2478 = vmatprep.mubr.f32.mxu0 0.0
        %2479 = vmatmul.mubr.f32.gmra.mrb[0].mxu0 %v2372
        %v2480 = vpop.f32.mrb[0].mxu0
        %v2481 = vadd.f32 0.0, %v2480
        %v2482 = vpop.f32.mrb[0].mxu0
        %v2483 = vadd.f32 0.0, %v2482
        %2484 = vmatprep.mubr.f32.mxu0 0.0
        %2485 = vmatmul.mubr.f32.gmra.mrb[0].mxu0 %v2375
        %v2486 = vpop.f32.mrb[0].mxu0
        %v2487 = vadd.f32 0.0, %v2486
        %v2488 = vpop.f32.mrb[0].mxu0
        %v2489 = vadd.f32 0.0, %v2488
        %2490 = vmatprep.mubr.f32.mxu0 0.0
        %2491 = vmatmul.mubr.f32.gmra.mrb[0].mxu0 %v2378
        %v2492 = vpop.f32.mrb[0].mxu0
        %v2493 = vadd.f32 0.0, %v2492
        %v2494 = vpop.f32.mrb[0].mxu0
        %v2495 = vadd.f32 0.0, %v2494
        %2496 = vdwg.mxu0
        %v2497 = vmul.f32 %v2350, %v2451
        %v2498 = vmul.f32 %v2352, %v2453
        %v2499 = vmul.f32 %v2350, %v2457
        %v2500 = vmul.f32 %v2352, %v2459
        %v2501 = vmul.f32 %v2350, %v2463
        %v2502 = vmul.f32 %v2352, %v2465
        %v2503 = vmul.f32 %v2350, %v2469
        %v2504 = vmul.f32 %v2352, %v2471
        %v2505 = vmul.f32 %v2350, %v2475
        %v2506 = vmul.f32 %v2352, %v2477
        %v2507 = vmul.f32 %v2350, %v2481
        %v2508 = vmul.f32 %v2352, %v2483
        %v2509 = vmul.f32 %v2350, %v2487
        %v2510 = vmul.f32 %v2352, %v2489
        %v2511 = vmul.f32 %v2350, %v2493
        %v2512 = vmul.f32 %v2352, %v2495
        %v2513 = vld [vmem:[%s53] sm:$0x1]
        %v2514 = vld [vmem:[%s55] sm:$0x1]
        %v2516 = vsel %vm1418, %v2514, 0
        %2518 = vmatprep.subr.mxu0 %v2116
        %2519 = vmatpush1.msra.mxu0 %v2115
        %2520 = vmatprep.subr.mxu0 %v2118
        %2521 = vmatpush1.msra.mxu0 %v2117
        %2522 = vmatprep.subr.mxu0 0.0
        %2523 = vmatpush1.msra.mxu0 0.0
        %2524 = vmatprep.subr.mxu0 0.0
        %2525 = vmatpush1.msra.mxu0 0.0
        %2526 = vmatprep.subr.mxu0 0.0
        %2527 = vmatpush1.msra.mxu0 0.0
        %2528 = vmatprep.subr.mxu0 0.0
        %2529 = vmatpush1.msra.mxu0 0.0
        %2530 = vmatprep.subr.mxu0 0.0
        %2531 = vmatpush1.msra.mxu0 0.0
        %2532 = vmatprep.subr.mxu0 0.0
        %2533 = vmatpush1.msra.mxu0 0.0
        %2534 = vmatprep.subr.mxu0 0.0
        %2535 = vmatpush1.msra.mxu0 0.0
        %2536 = vmatprep.subr.mxu0 0.0
        %2537 = vmatpush1.msra.mxu0 0.0
        %2538 = vmatprep.subr.mxu0 0.0
        %2539 = vmatpush1.msra.mxu0 0.0
        %2540 = vmatprep.subr.mxu0 0.0
        %2541 = vmatpush1.msra.mxu0 0.0
        %2542 = vmatprep.subr.mxu0 0.0
        %2543 = vmatpush1.msra.mxu0 0.0
        %2544 = vmatprep.subr.mxu0 0.0
        %2545 = vmatpush1.msra.mxu0 0.0
        %2546 = vmatprep.subr.mxu0 0.0
        %2547 = vmatpush1.msra.mxu0 0.0
        %2548 = vmatprep.subr.mxu0 0.0
        %2549 = vmatpush1.msra.mxu0 0.0
        %2550 = vmatprep.subr.mxu0 0.0
        %2551 = vmatpush1.msra.mxu0 0.0
        %2552 = vmatprep.subr.mxu0 0.0
        %2553 = vmatpush1.msra.mxu0 0.0
        %2554 = vmatprep.subr.mxu0 0.0
        %2555 = vmatpush1.msra.mxu0 0.0
        %2556 = vmatprep.subr.mxu0 0.0
        %2557 = vmatpush1.msra.mxu0 0.0
        %2558 = vmatprep.subr.mxu0 0.0
        %2559 = vmatpush1.msra.mxu0 0.0
        %2560 = vmatprep.subr.mxu0 0.0
        %2561 = vmatpush1.msra.mxu0 0.0
        %2562 = vmatprep.subr.mxu0 0.0
        %2563 = vmatpush1.msra.mxu0 0.0
        %2564 = vmatprep.subr.mxu0 0.0
        %2565 = vmatpush1.msra.mxu0 0.0
        %2566 = vmatprep.subr.mxu0 0.0
        %2567 = vmatpush1.msra.mxu0 0.0
        %2568 = vmatprep.subr.mxu0 0.0
        %2569 = vmatpush1.msra.mxu0 0.0
        %2570 = vmatprep.subr.mxu0 0.0
        %2571 = vmatpush1.msra.mxu0 0.0
        %2572 = vmatprep.subr.mxu0 0.0
        %2573 = vmatpush1.msra.mxu0 0.0
        %2574 = vmatprep.subr.mxu0 0.0
        %2575 = vmatpush1.msra.mxu0 0.0
        %2576 = vmatprep.subr.mxu0 0.0
        %2577 = vmatpush1.msra.mxu0 0.0
        %2578 = vmatprep.subr.mxu0 0.0
        %2579 = vmatpush1.msra.mxu0 0.0
        %2580 = vmatprep.subr.mxu0 0.0
        %2581 = vmatpush1.msra.mxu0 0.0
        %2582 = vmatprep.mubr.f32.mxu0 0.0
        %2583 = vmatmul.mubr.f32.gmra.mrb[0].mxu0 %v2516
        %v2584 = vpop.f32.mrb[0].mxu0
        %v2585 = vadd.f32 0.0, %v2584
        %v2586 = vpop.f32.mrb[0].mxu0
        %v2587 = vadd.f32 0.0, %v2586
        %2588 = vdwg.mxu0
        %v2590 = vsel %vm1272, %v2513, 0
        %2592 = vmatprep.subr.mxu0 %v1962
        %2593 = vmatpush1.msra.mxu0 %v1961
        %2594 = vmatprep.subr.mxu0 0.0
        %2595 = vmatpush1.msra.mxu0 0.0
        %2596 = vmatprep.subr.mxu0 0.0
        %2597 = vmatpush1.msra.mxu0 0.0
        %2598 = vmatprep.subr.mxu0 0.0
        %2599 = vmatpush1.msra.mxu0 0.0
        %2600 = vmatprep.subr.mxu0 0.0
        %2601 = vmatpush1.msra.mxu0 0.0
        %2602 = vmatprep.subr.mxu0 0.0
        %2603 = vmatpush1.msra.mxu0 0.0
        %2604 = vmatprep.subr.mxu0 0.0
        %2605 = vmatpush1.msra.mxu0 0.0
        %2606 = vmatprep.subr.mxu0 0.0
        %2607 = vmatpush1.msra.mxu0 0.0
        %2608 = vmatprep.subr.mxu0 0.0
        %2609 = vmatpush1.msra.mxu0 0.0
        %2610 = vmatprep.subr.mxu0 0.0
        %2611 = vmatpush1.msra.mxu0 0.0
        %2612 = vmatprep.subr.mxu0 0.0
        %2613 = vmatpush1.msra.mxu0 0.0
        %2614 = vmatprep.subr.mxu0 0.0
        %2615 = vmatpush1.msra.mxu0 0.0
        %2616 = vmatprep.subr.mxu0 0.0
        %2617 = vmatpush1.msra.mxu0 0.0
        %2618 = vmatprep.subr.mxu0 0.0
        %2619 = vmatpush1.msra.mxu0 0.0
        %2620 = vmatprep.subr.mxu0 0.0
        %2621 = vmatpush1.msra.mxu0 0.0
        %2622 = vmatprep.subr.mxu0 0.0
        %2623 = vmatpush1.msra.mxu0 0.0
        %2624 = vmatprep.subr.mxu0 0.0
        %2625 = vmatpush1.msra.mxu0 0.0
        %2626 = vmatprep.subr.mxu0 0.0
        %2627 = vmatpush1.msra.mxu0 0.0
        %2628 = vmatprep.subr.mxu0 0.0
        %2629 = vmatpush1.msra.mxu0 0.0
        %2630 = vmatprep.subr.mxu0 0.0
        %2631 = vmatpush1.msra.mxu0 0.0
        %2632 = vmatprep.subr.mxu0 0.0
        %2633 = vmatpush1.msra.mxu0 0.0
        %2634 = vmatprep.subr.mxu0 0.0
        %2635 = vmatpush1.msra.mxu0 0.0
        %2636 = vmatprep.subr.mxu0 0.0
        %2637 = vmatpush1.msra.mxu0 0.0
        %2638 = vmatprep.subr.mxu0 0.0
        %2639 = vmatpush1.msra.mxu0 0.0
        %2640 = vmatprep.subr.mxu0 0.0
        %2641 = vmatpush1.msra.mxu0 0.0
        %2642 = vmatprep.subr.mxu0 0.0
        %2643 = vmatpush1.msra.mxu0 0.0
        %2644 = vmatprep.subr.mxu0 0.0
        %2645 = vmatpush1.msra.mxu0 0.0
        %2646 = vmatprep.subr.mxu0 0.0
        %2647 = vmatpush1.msra.mxu0 0.0
        %2648 = vmatprep.subr.mxu0 0.0
        %2649 = vmatpush1.msra.mxu0 0.0
        %2650 = vmatprep.subr.mxu0 0.0
        %2651 = vmatpush1.msra.mxu0 0.0
        %2652 = vmatprep.subr.mxu0 0.0
        %2653 = vmatpush1.msra.mxu0 0.0
        %2654 = vmatprep.subr.mxu0 0.0
        %2655 = vmatpush1.msra.mxu0 0.0
        %2656 = vmatprep.mubr.f32.mxu0 0.0
        %2657 = vmatmul.mubr.f32.gmra.mrb[0].mxu0 %v2590
        %v2658 = vpop.f32.mrb[0].mxu0
        %v2659 = vadd.f32 %v2585, %v2658
        %v2660 = vpop.f32.mrb[0].mxu0
        %v2661 = vadd.f32 %v2587, %v2660
        %2662 = vdwg.mxu0
        %v2663 = vld [vmem:[%s57] sm:$0x1]
        %v2665 = vsel %vm1189, %v2663, 0
        %2667 = vmatprep.subr.mxu0 %v2281
        %2668 = vmatpush1.msra.mxu0 %v2280
        %2669 = vmatprep.subr.mxu0 %v2283
        %2670 = vmatpush1.msra.mxu0 %v2282
        %2671 = vmatprep.subr.mxu0 %v2285
        %2672 = vmatpush1.msra.mxu0 %v2284
        %2673 = vmatprep.subr.mxu0 %v2287
        %2674 = vmatpush1.msra.mxu0 %v2286
        %2675 = vmatprep.subr.mxu0 0.0
        %2676 = vmatpush1.msra.mxu0 0.0
        %2677 = vmatprep.subr.mxu0 0.0
        %2678 = vmatpush1.msra.mxu0 0.0
        %2679 = vmatprep.subr.mxu0 0.0
        %2680 = vmatpush1.msra.mxu0 0.0
        %2681 = vmatprep.subr.mxu0 0.0
        %2682 = vmatpush1.msra.mxu0 0.0
        %2683 = vmatprep.subr.mxu0 0.0
        %2684 = vmatpush1.msra.mxu0 0.0
        %2685 = vmatprep.subr.mxu0 0.0
        %2686 = vmatpush1.msra.mxu0 0.0
        %2687 = vmatprep.subr.mxu0 0.0
        %2688 = vmatpush1.msra.mxu0 0.0
        %2689 = vmatprep.subr.mxu0 0.0
        %2690 = vmatpush1.msra.mxu0 0.0
        %2691 = vmatprep.subr.mxu0 0.0
        %2692 = vmatpush1.msra.mxu0 0.0
        %2693 = vmatprep.subr.mxu0 0.0
        %2694 = vmatpush1.msra.mxu0 0.0
        %2695 = vmatprep.subr.mxu0 0.0
        %2696 = vmatpush1.msra.mxu0 0.0
        %2697 = vmatprep.subr.mxu0 0.0
        %2698 = vmatpush1.msra.mxu0 0.0
        %2699 = vmatprep.subr.mxu0 0.0
        %2700 = vmatpush1.msra.mxu0 0.0
        %2701 = vmatprep.subr.mxu0 0.0
        %2702 = vmatpush1.msra.mxu0 0.0
        %2703 = vmatprep.subr.mxu0 0.0
        %2704 = vmatpush1.msra.mxu0 0.0
        %2705 = vmatprep.subr.mxu0 0.0
        %2706 = vmatpush1.msra.mxu0 0.0
        %2707 = vmatprep.subr.mxu0 0.0
        %2708 = vmatpush1.msra.mxu0 0.0
        %2709 = vmatprep.subr.mxu0 0.0
        %2710 = vmatpush1.msra.mxu0 0.0
        %2711 = vmatprep.subr.mxu0 0.0
        %2712 = vmatpush1.msra.mxu0 0.0
        %2713 = vmatprep.subr.mxu0 0.0
        %2714 = vmatpush1.msra.mxu0 0.0
        %2715 = vmatprep.subr.mxu0 0.0
        %2716 = vmatpush1.msra.mxu0 0.0
        %2717 = vmatprep.subr.mxu0 0.0
        %2718 = vmatpush1.msra.mxu0 0.0
        %2719 = vmatprep.subr.mxu0 0.0
        %2720 = vmatpush1.msra.mxu0 0.0
        %2721 = vmatprep.subr.mxu0 0.0
        %2722 = vmatpush1.msra.mxu0 0.0
        %2723 = vmatprep.subr.mxu0 0.0
        %2724 = vmatpush1.msra.mxu0 0.0
        %2725 = vmatprep.subr.mxu0 0.0
        %2726 = vmatpush1.msra.mxu0 0.0
        %2727 = vmatprep.subr.mxu0 0.0
        %2728 = vmatpush1.msra.mxu0 0.0
        %2729 = vmatprep.subr.mxu0 0.0
        %2730 = vmatpush1.msra.mxu0 0.0
        %2731 = vmatprep.mubr.f32.mxu0 0.0
        %2732 = vmatmul.mubr.f32.gmra.mrb[0].mxu0 %v2665
        %v2733 = vpop.f32.mrb[0].mxu0
        %v2734 = vadd.f32 0.0, %v2733
        %v2735 = vpop.f32.mrb[0].mxu0
        %v2736 = vadd.f32 0.0, %v2735
        %2737 = vdwg.mxu0
        %v2738 = vadd.f32 %v2659, %v2734
        %v2739 = vadd.f32 %v2661, %v2736
        %v2740 = vld [vmem:[%s59] sm:$0x1]
        %v2742 = vsel %vm1089, %v2740, 0
        %2744 = vmatprep.subr.mxu0 %v2498
        %2745 = vmatpush1.msra.mxu0 %v2497
        %2746 = vmatprep.subr.mxu0 %v2500
        %2747 = vmatpush1.msra.mxu0 %v2499
        %2748 = vmatprep.subr.mxu0 %v2502
        %2749 = vmatpush1.msra.mxu0 %v2501
        %2750 = vmatprep.subr.mxu0 %v2504
        %2751 = vmatpush1.msra.mxu0 %v2503
        %2752 = vmatprep.subr.mxu0 %v2506
        %2753 = vmatpush1.msra.mxu0 %v2505
        %2754 = vmatprep.subr.mxu0 %v2508
        %2755 = vmatpush1.msra.mxu0 %v2507
        %2756 = vmatprep.subr.mxu0 %v2510
        %2757 = vmatpush1.msra.mxu0 %v2509
        %2758 = vmatprep.subr.mxu0 %v2512
        %2759 = vmatpush1.msra.mxu0 %v2511
        %2760 = vmatprep.subr.mxu0 0.0
        %2761 = vmatpush1.msra.mxu0 0.0
        %2762 = vmatprep.subr.mxu0 0.0
        %2763 = vmatpush1.msra.mxu0 0.0
        %2764 = vmatprep.subr.mxu0 0.0
        %2765 = vmatpush1.msra.mxu0 0.0
        %2766 = vmatprep.subr.mxu0 0.0
        %2767 = vmatpush1.msra.mxu0 0.0
        %2768 = vmatprep.subr.mxu0 0.0
        %2769 = vmatpush1.msra.mxu0 0.0
        %2770 = vmatprep.subr.mxu0 0.0
        %2771 = vmatpush1.msra.mxu0 0.0
        %2772 = vmatprep.subr.mxu0 0.0
        %2773 = vmatpush1.msra.mxu0 0.0
        %2774 = vmatprep.subr.mxu0 0.0
        %2775 = vmatpush1.msra.mxu0 0.0
        %2776 = vmatprep.subr.mxu0 0.0
        %2777 = vmatpush1.msra.mxu0 0.0
        %2778 = vmatprep.subr.mxu0 0.0
        %2779 = vmatpush1.msra.mxu0 0.0
        %2780 = vmatprep.subr.mxu0 0.0
        %2781 = vmatpush1.msra.mxu0 0.0
        %2782 = vmatprep.subr.mxu0 0.0
        %2783 = vmatpush1.msra.mxu0 0.0
        %2784 = vmatprep.subr.mxu0 0.0
        %2785 = vmatpush1.msra.mxu0 0.0
        %2786 = vmatprep.subr.mxu0 0.0
        %2787 = vmatpush1.msra.mxu0 0.0
        %2788 = vmatprep.subr.mxu0 0.0
        %2789 = vmatpush1.msra.mxu0 0.0
        %2790 = vmatprep.subr.mxu0 0.0
        %2791 = vmatpush1.msra.mxu0 0.0
        %2792 = vmatprep.subr.mxu0 0.0
        %2793 = vmatpush1.msra.mxu0 0.0
        %2794 = vmatprep.subr.mxu0 0.0
        %2795 = vmatpush1.msra.mxu0 0.0
        %2796 = vmatprep.subr.mxu0 0.0
        %2797 = vmatpush1.msra.mxu0 0.0
        %2798 = vmatprep.subr.mxu0 0.0
        %2799 = vmatpush1.msra.mxu0 0.0
        %2800 = vmatprep.subr.mxu0 0.0
        %2801 = vmatpush1.msra.mxu0 0.0
        %2802 = vmatprep.subr.mxu0 0.0
        %2803 = vmatpush1.msra.mxu0 0.0
        %2804 = vmatprep.subr.mxu0 0.0
        %2805 = vmatpush1.msra.mxu0 0.0
        %2806 = vmatprep.subr.mxu0 0.0
        %2807 = vmatpush1.msra.mxu0 0.0
        %2808 = vmatprep.mubr.f32.mxu0 0.0
        %2809 = vmatmul.mubr.f32.gmra.mrb[0].mxu0 %v2742
        %v2810 = vpop.f32.mrb[0].mxu0
        %v2811 = vadd.f32 0.0, %v2810
        %v2812 = vpop.f32.mrb[0].mxu0
        %v2813 = vadd.f32 0.0, %v2812
        %2814 = vdwg.mxu0
        %v2815 = vadd.f32 %v2738, %v2811
        %v2816 = vadd.f32 %v2739, %v2813
        %s2817 = sld [smem:[#allocation2 + $0x9]]
        %v2818 = vstv %s2817
        %v2819 = vadd.f32 %v2815, %v2818
        %v2820 = vadd.f32 %v2816, %v2818
        %v2821 = vpack.c.bf16 %v2819, %v2819
        %v2822 = vpack.c.bf16 %v2820, %v2820
        %v2823 = vld [vmem:[%s61] sm:$0xff]
        %v2824 = vld [vmem:[%s61 + $0x8] sm:$0xff]
        %v2825 = vld [vmem:[%s61 + $0x10] sm:$0xff]
        %v2826 = vld [vmem:[%s61 + $0x18] sm:$0xff]
        %v2827 = vld [vmem:[%s61 + $0x20] sm:$0xff]
        %v2828 = vld [vmem:[%s61 + $0x28] sm:$0xff]
        %v2829 = vld [vmem:[%s61 + $0x30] sm:$0xff]
        %v2830 = vld [vmem:[%s61 + $0x38] sm:$0xff]
        %v2831 = vld [vmem:[%s61 + $0x40] sm:$0xff]
        %v2832 = vld [vmem:[%s61 + $0x48] sm:$0xff]
        %v2833 = vld [vmem:[%s61 + $0x50] sm:$0xff]
        %v2834 = vld [vmem:[%s61 + $0x58] sm:$0xff]
        %v2835 = vld [vmem:[%s61 + $0x60] sm:$0xff]
        %v2836 = vld [vmem:[%s61 + $0x68] sm:$0xff]
        %v2837 = vld [vmem:[%s61 + $0x70] sm:$0xff]
        %v2838 = vld [vmem:[%s61 + $0x78] sm:$0xff]
        %v2839 = vld [vmem:[%s61 + $0x80] sm:$0xff]
        %v2840 = vld [vmem:[%s61 + $0x88] sm:$0xff]
        %v2841 = vld [vmem:[%s61 + $0x90] sm:$0xff]
        %v2842 = vld [vmem:[%s61 + $0x98] sm:$0xff]
        %v2843 = vld [vmem:[%s61 + $0xa0] sm:$0xff]
        %v2844 = vld [vmem:[%s61 + $0xa8] sm:$0xff]
        %v2845 = vld [vmem:[%s61 + $0xb0] sm:$0xff]
        %v2846 = vld [vmem:[%s61 + $0xb8] sm:$0xff]
        %v2847 = vld [vmem:[%s61 + $0xc0] sm:$0xff]
        %v2848 = vld [vmem:[%s61 + $0xc8] sm:$0xff]
        %v2849 = vld [vmem:[%s61 + $0xd0] sm:$0xff]
        %v2850 = vld [vmem:[%s61 + $0xd8] sm:$0xff]
        %v2851 = vld [vmem:[%s61 + $0xe0] sm:$0xff]
        %v2852 = vld [vmem:[%s61 + $0xe8] sm:$0xff]
        %v2853 = vld [vmem:[%s61 + $0xf0] sm:$0xff]
        %v2854 = vld [vmem:[%s61 + $0xf8] sm:$0xff]
        %v2855 = vld [vmem:[%s61 + $0x100] sm:$0xff]
        %v2856 = vld [vmem:[%s61 + $0x108] sm:$0xff]
        %v2857 = vld [vmem:[%s61 + $0x110] sm:$0xff]
        %v2858 = vld [vmem:[%s61 + $0x118] sm:$0xff]
        %v2859 = vld [vmem:[%s61 + $0x120] sm:$0xff]
        %v2860 = vld [vmem:[%s61 + $0x128] sm:$0xff]
        %v2861 = vld [vmem:[%s61 + $0x130] sm:$0xff]
        %v2862 = vld [vmem:[%s61 + $0x138] sm:$0xff]
        %v2863 = vld [vmem:[%s61 + $0x140] sm:$0xff]
        %v2864 = vld [vmem:[%s61 + $0x148] sm:$0xff]
        %v2865 = vld [vmem:[%s61 + $0x150] sm:$0xff]
        %v2866 = vld [vmem:[%s61 + $0x158] sm:$0xff]
        %v2867 = vld [vmem:[%s61 + $0x160] sm:$0xff]
        %v2868 = vld [vmem:[%s61 + $0x168] sm:$0xff]
        %v2869 = vld [vmem:[%s61 + $0x170] sm:$0xff]
        %v2870 = vld [vmem:[%s61 + $0x178] sm:$0xff]
        %v2871 = vld [vmem:[%s61 + $0x180] sm:$0xff]
        %v2872 = vld [vmem:[%s61 + $0x188] sm:$0xff]
        %v2873 = vld [vmem:[%s61 + $0x190] sm:$0xff]
        %v2874 = vld [vmem:[%s61 + $0x198] sm:$0xff]
        %v2875 = vld [vmem:[%s61 + $0x1a0] sm:$0xff]
        %v2876 = vld [vmem:[%s61 + $0x1a8] sm:$0xff]
        %v2877 = vld [vmem:[%s61 + $0x1b0] sm:$0xff]
        %v2878 = vld [vmem:[%s61 + $0x1b8] sm:$0xff]
        %v2879 = vld [vmem:[%s61 + $0x1c0] sm:$0xff]
        %v2880 = vld [vmem:[%s61 + $0x1c8] sm:$0xff]
        %v2881 = vld [vmem:[%s61 + $0x1d0] sm:$0xff]
        %v2882 = vld [vmem:[%s61 + $0x1d8] sm:$0xff]
        %v2883 = vld [vmem:[%s61 + $0x1e0] sm:$0xff]
        %v2884 = vld [vmem:[%s61 + $0x1e8] sm:$0xff]
        %v2885 = vld [vmem:[%s61 + $0x1f0] sm:$0xff]
        %v2886 = vld [vmem:[%s61 + $0x1f8] sm:$0xff]
        %v2887 = vld [vmem:[%s61 + $0x200] sm:$0xff]
        %v2888 = vld [vmem:[%s61 + $0x208] sm:$0xff]
        %v2889 = vld [vmem:[%s61 + $0x210] sm:$0xff]
        %v2890 = vld [vmem:[%s61 + $0x218] sm:$0xff]
        %v2891 = vld [vmem:[%s61 + $0x220] sm:$0xff]
        %v2892 = vld [vmem:[%s61 + $0x228] sm:$0xff]
        %v2893 = vld [vmem:[%s61 + $0x230] sm:$0xff]
        %v2894 = vld [vmem:[%s61 + $0x238] sm:$0xff]
        %v2895 = vld [vmem:[%s61 + $0x240] sm:$0xff]
        %v2896 = vld [vmem:[%s61 + $0x248] sm:$0xff]
        %v2897 = vld [vmem:[%s61 + $0x250] sm:$0xff]
        %v2898 = vld [vmem:[%s61 + $0x258] sm:$0xff]
        %v2899 = vld [vmem:[%s61 + $0x260] sm:$0xff]
        %v2900 = vld [vmem:[%s61 + $0x268] sm:$0xff]
        %v2901 = vld [vmem:[%s61 + $0x270] sm:$0xff]
        %v2902 = vld [vmem:[%s61 + $0x278] sm:$0xff]
        %v2903 = vld [vmem:[%s61 + $0x280] sm:$0xff]
        %v2904 = vld [vmem:[%s61 + $0x288] sm:$0xff]
        %v2905 = vld [vmem:[%s61 + $0x290] sm:$0xff]
        %v2906 = vld [vmem:[%s61 + $0x298] sm:$0xff]
        %v2907 = vld [vmem:[%s61 + $0x2a0] sm:$0xff]
        %v2908 = vld [vmem:[%s61 + $0x2a8] sm:$0xff]
        %v2909 = vld [vmem:[%s61 + $0x2b0] sm:$0xff]
        %v2910 = vld [vmem:[%s61 + $0x2b8] sm:$0xff]
        %v2911 = vld [vmem:[%s61 + $0x2c0] sm:$0xff]
        %v2912 = vld [vmem:[%s61 + $0x2c8] sm:$0xff]
        %v2913 = vld [vmem:[%s61 + $0x2d0] sm:$0xff]
        %v2914 = vld [vmem:[%s61 + $0x2d8] sm:$0xff]
        %v2915 = vld [vmem:[%s61 + $0x2e0] sm:$0xff]
        %v2916 = vld [vmem:[%s61 + $0x2e8] sm:$0xff]
        %v2917 = vld [vmem:[%s61 + $0x2f0] sm:$0xff]
        %v2918 = vld [vmem:[%s61 + $0x2f8] sm:$0xff]
        %v2919 = vld [vmem:[%s61 + $0x300] sm:$0xff]
        %v2920 = vld [vmem:[%s61 + $0x308] sm:$0xff]
        %v2921 = vld [vmem:[%s61 + $0x310] sm:$0xff]
        %v2922 = vld [vmem:[%s61 + $0x318] sm:$0xff]
        %v2923 = vld [vmem:[%s61 + $0x320] sm:$0xff]
        %v2924 = vld [vmem:[%s61 + $0x328] sm:$0xff]
        %v2925 = vld [vmem:[%s61 + $0x330] sm:$0xff]
        %v2926 = vld [vmem:[%s61 + $0x338] sm:$0xff]
        %v2927 = vld [vmem:[%s61 + $0x340] sm:$0xff]
        %v2928 = vld [vmem:[%s61 + $0x348] sm:$0xff]
        %v2929 = vld [vmem:[%s61 + $0x350] sm:$0xff]
        %v2930 = vld [vmem:[%s61 + $0x358] sm:$0xff]
        %v2931 = vld [vmem:[%s61 + $0x360] sm:$0xff]
        %v2932 = vld [vmem:[%s61 + $0x368] sm:$0xff]
        %v2933 = vld [vmem:[%s61 + $0x370] sm:$0xff]
        %v2934 = vld [vmem:[%s61 + $0x378] sm:$0xff]
        %v2935 = vld [vmem:[%s61 + $0x380] sm:$0xff]
        %v2936 = vld [vmem:[%s61 + $0x388] sm:$0xff]
        %v2937 = vld [vmem:[%s61 + $0x390] sm:$0xff]
        %v2938 = vld [vmem:[%s61 + $0x398] sm:$0xff]
        %v2939 = vld [vmem:[%s61 + $0x3a0] sm:$0xff]
        %v2940 = vld [vmem:[%s61 + $0x3a8] sm:$0xff]
        %v2941 = vld [vmem:[%s61 + $0x3b0] sm:$0xff]
        %v2942 = vld [vmem:[%s61 + $0x3b8] sm:$0xff]
        %v2943 = vld [vmem:[%s61 + $0x3c0] sm:$0xff]
        %v2944 = vld [vmem:[%s61 + $0x3c8] sm:$0xff]
        %v2945 = vld [vmem:[%s61 + $0x3d0] sm:$0xff]
        %v2946 = vld [vmem:[%s61 + $0x3d8] sm:$0xff]
        %v2947 = vld [vmem:[%s61 + $0x3e0] sm:$0xff]
        %v2948 = vld [vmem:[%s61 + $0x3e8] sm:$0xff]
        %v2949 = vld [vmem:[%s61 + $0x3f0] sm:$0xff]
        %v2950 = vld [vmem:[%s61 + $0x3f8] sm:$0xff]
        %v2951 = vld [vmem:[%s61 + $0x400] sm:$0xff]
        %v2952 = vld [vmem:[%s61 + $0x408] sm:$0xff]
        %v2953 = vld [vmem:[%s61 + $0x410] sm:$0xff]
        %v2954 = vld [vmem:[%s61 + $0x418] sm:$0xff]
        %v2955 = vld [vmem:[%s61 + $0x420] sm:$0xff]
        %v2956 = vld [vmem:[%s61 + $0x428] sm:$0xff]
        %v2957 = vld [vmem:[%s61 + $0x430] sm:$0xff]
        %v2958 = vld [vmem:[%s61 + $0x438] sm:$0xff]
        %v2959 = vld [vmem:[%s61 + $0x440] sm:$0xff]
        %v2960 = vld [vmem:[%s61 + $0x448] sm:$0xff]
        %v2961 = vld [vmem:[%s61 + $0x450] sm:$0xff]
        %v2962 = vld [vmem:[%s61 + $0x458] sm:$0xff]
        %v2963 = vld [vmem:[%s61 + $0x460] sm:$0xff]
        %v2964 = vld [vmem:[%s61 + $0x468] sm:$0xff]
        %v2965 = vld [vmem:[%s61 + $0x470] sm:$0xff]
        %v2966 = vld [vmem:[%s61 + $0x478] sm:$0xff]
        %v2967 = vld [vmem:[%s61 + $0x480] sm:$0xff]
        %v2968 = vld [vmem:[%s61 + $0x488] sm:$0xff]
        %v2969 = vld [vmem:[%s61 + $0x490] sm:$0xff]
        %v2970 = vld [vmem:[%s61 + $0x498] sm:$0xff]
        %v2971 = vld [vmem:[%s61 + $0x4a0] sm:$0xff]
        %v2972 = vld [vmem:[%s61 + $0x4a8] sm:$0xff]
        %v2973 = vld [vmem:[%s61 + $0x4b0] sm:$0xff]
        %v2974 = vld [vmem:[%s61 + $0x4b8] sm:$0xff]
        %v2975 = vld [vmem:[%s61 + $0x4c0] sm:$0xff]
        %v2976 = vld [vmem:[%s61 + $0x4c8] sm:$0xff]
        %v2977 = vld [vmem:[%s61 + $0x4d0] sm:$0xff]
        %v2978 = vld [vmem:[%s61 + $0x4d8] sm:$0xff]
        %v2979 = vld [vmem:[%s61 + $0x4e0] sm:$0xff]
        %v2980 = vld [vmem:[%s61 + $0x4e8] sm:$0xff]
        %v2981 = vld [vmem:[%s61 + $0x4f0] sm:$0xff]
        %v2982 = vld [vmem:[%s61 + $0x4f8] sm:$0xff]
        %v2983 = vld [vmem:[%s61 + $0x500] sm:$0xff]
        %v2984 = vld [vmem:[%s61 + $0x508] sm:$0xff]
        %v2985 = vld [vmem:[%s61 + $0x510] sm:$0xff]
        %v2986 = vld [vmem:[%s61 + $0x518] sm:$0xff]
        %v2987 = vld [vmem:[%s61 + $0x520] sm:$0xff]
        %v2988 = vld [vmem:[%s61 + $0x528] sm:$0xff]
        %v2989 = vld [vmem:[%s61 + $0x530] sm:$0xff]
        %v2990 = vld [vmem:[%s61 + $0x538] sm:$0xff]
        %v2991 = vld [vmem:[%s61 + $0x540] sm:$0xff]
        %v2992 = vld [vmem:[%s61 + $0x548] sm:$0xff]
        %v2993 = vld [vmem:[%s61 + $0x550] sm:$0xff]
        %v2994 = vld [vmem:[%s61 + $0x558] sm:$0xff]
        %v2995 = vld [vmem:[%s61 + $0x560] sm:$0xff]
        %v2996 = vld [vmem:[%s61 + $0x568] sm:$0xff]
        %v2997 = vld [vmem:[%s61 + $0x570] sm:$0xff]
        %v2998 = vld [vmem:[%s61 + $0x578] sm:$0xff]
        %v2999 = vld [vmem:[%s61 + $0x580] sm:$0xff]
        %v3000 = vld [vmem:[%s61 + $0x588] sm:$0xff]
        %v3001 = vld [vmem:[%s61 + $0x590] sm:$0xff]
        %v3002 = vld [vmem:[%s61 + $0x598] sm:$0xff]
        %v3003 = vld [vmem:[%s61 + $0x5a0] sm:$0xff]
        %v3004 = vld [vmem:[%s61 + $0x5a8] sm:$0xff]
        %v3005 = vld [vmem:[%s61 + $0x5b0] sm:$0xff]
        %v3006 = vld [vmem:[%s61 + $0x5b8] sm:$0xff]
        %v3007 = vld [vmem:[%s61 + $0x5c0] sm:$0xff]
        %v3008 = vld [vmem:[%s61 + $0x5c8] sm:$0xff]
        %v3009 = vld [vmem:[%s61 + $0x5d0] sm:$0xff]
        %v3010 = vld [vmem:[%s61 + $0x5d8] sm:$0xff]
        %v3011 = vld [vmem:[%s61 + $0x5e0] sm:$0xff]
        %v3012 = vld [vmem:[%s61 + $0x5e8] sm:$0xff]
        %v3013 = vld [vmem:[%s61 + $0x5f0] sm:$0xff]
        %v3014 = vld [vmem:[%s61 + $0x5f8] sm:$0xff]
        %v3015 = vld [vmem:[%s61 + $0x600] sm:$0xff]
        %v3016 = vld [vmem:[%s61 + $0x608] sm:$0xff]
        %v3017 = vld [vmem:[%s61 + $0x610] sm:$0xff]
        %v3018 = vld [vmem:[%s61 + $0x618] sm:$0xff]
        %v3019 = vld [vmem:[%s61 + $0x620] sm:$0xff]
        %v3020 = vld [vmem:[%s61 + $0x628] sm:$0xff]
        %v3021 = vld [vmem:[%s61 + $0x630] sm:$0xff]
        %v3022 = vld [vmem:[%s61 + $0x638] sm:$0xff]
        %v3023 = vld [vmem:[%s61 + $0x640] sm:$0xff]
        %v3024 = vld [vmem:[%s61 + $0x648] sm:$0xff]
        %v3025 = vld [vmem:[%s61 + $0x650] sm:$0xff]
        %v3026 = vld [vmem:[%s61 + $0x658] sm:$0xff]
        %v3027 = vld [vmem:[%s61 + $0x660] sm:$0xff]
        %v3028 = vld [vmem:[%s61 + $0x668] sm:$0xff]
        %v3029 = vld [vmem:[%s61 + $0x670] sm:$0xff]
        %v3030 = vld [vmem:[%s61 + $0x678] sm:$0xff]
        %v3031 = vld [vmem:[%s61 + $0x680] sm:$0xff]
        %v3032 = vld [vmem:[%s61 + $0x688] sm:$0xff]
        %v3033 = vld [vmem:[%s61 + $0x690] sm:$0xff]
        %v3034 = vld [vmem:[%s61 + $0x698] sm:$0xff]
        %v3035 = vld [vmem:[%s61 + $0x6a0] sm:$0xff]
        %v3036 = vld [vmem:[%s61 + $0x6a8] sm:$0xff]
        %v3037 = vld [vmem:[%s61 + $0x6b0] sm:$0xff]
        %v3038 = vld [vmem:[%s61 + $0x6b8] sm:$0xff]
        %v3039 = vld [vmem:[%s61 + $0x6c0] sm:$0xff]
        %v3040 = vld [vmem:[%s61 + $0x6c8] sm:$0xff]
        %v3041 = vld [vmem:[%s61 + $0x6d0] sm:$0xff]
        %v3042 = vld [vmem:[%s61 + $0x6d8] sm:$0xff]
        %v3043 = vld [vmem:[%s61 + $0x6e0] sm:$0xff]
        %v3044 = vld [vmem:[%s61 + $0x6e8] sm:$0xff]
        %v3045 = vld [vmem:[%s61 + $0x6f0] sm:$0xff]
        %v3046 = vld [vmem:[%s61 + $0x6f8] sm:$0xff]
        %v3047 = vld [vmem:[%s61 + $0x700] sm:$0xff]
        %v3048 = vld [vmem:[%s61 + $0x708] sm:$0xff]
        %v3049 = vld [vmem:[%s61 + $0x710] sm:$0xff]
        %v3050 = vld [vmem:[%s61 + $0x718] sm:$0xff]
        %v3051 = vld [vmem:[%s61 + $0x720] sm:$0xff]
        %v3052 = vld [vmem:[%s61 + $0x728] sm:$0xff]
        %v3053 = vld [vmem:[%s61 + $0x730] sm:$0xff]
        %v3054 = vld [vmem:[%s61 + $0x738] sm:$0xff]
        %v3055 = vld [vmem:[%s61 + $0x740] sm:$0xff]
        %v3056 = vld [vmem:[%s61 + $0x748] sm:$0xff]
        %v3057 = vld [vmem:[%s61 + $0x750] sm:$0xff]
        %v3058 = vld [vmem:[%s61 + $0x758] sm:$0xff]
        %v3059 = vld [vmem:[%s61 + $0x760] sm:$0xff]
        %v3060 = vld [vmem:[%s61 + $0x768] sm:$0xff]
        %v3061 = vld [vmem:[%s61 + $0x770] sm:$0xff]
        %v3062 = vld [vmem:[%s61 + $0x778] sm:$0xff]
        %v3063 = vld [vmem:[%s61 + $0x780] sm:$0xff]
        %v3064 = vld [vmem:[%s61 + $0x788] sm:$0xff]
        %v3065 = vld [vmem:[%s61 + $0x790] sm:$0xff]
        %v3066 = vld [vmem:[%s61 + $0x798] sm:$0xff]
        %v3067 = vld [vmem:[%s61 + $0x7a0] sm:$0xff]
        %v3068 = vld [vmem:[%s61 + $0x7a8] sm:$0xff]
        %v3069 = vld [vmem:[%s61 + $0x7b0] sm:$0xff]
        %v3070 = vld [vmem:[%s61 + $0x7b8] sm:$0xff]
        %v3071 = vld [vmem:[%s61 + $0x7c0] sm:$0xff]
        %v3072 = vld [vmem:[%s61 + $0x7c8] sm:$0xff]
        %v3073 = vld [vmem:[%s61 + $0x7d0] sm:$0xff]
        %v3074 = vld [vmem:[%s61 + $0x7d8] sm:$0xff]
        %v3075 = vld [vmem:[%s61 + $0x7e0] sm:$0xff]
        %v3076 = vld [vmem:[%s61 + $0x7e8] sm:$0xff]
        %v3077 = vld [vmem:[%s61 + $0x7f0] sm:$0xff]
        %v3078 = vld [vmem:[%s61 + $0x7f8] sm:$0xff]
        %v3079 = vld [vmem:[%s61 + $0x800] sm:$0xff]
        %v3080 = vld [vmem:[%s61 + $0x808] sm:$0xff]
        %v3081 = vld [vmem:[%s61 + $0x810] sm:$0xff]
        %v3082 = vld [vmem:[%s61 + $0x818] sm:$0xff]
        %v3083 = vld [vmem:[%s61 + $0x820] sm:$0xff]
        %v3084 = vld [vmem:[%s61 + $0x828] sm:$0xff]
        %v3085 = vld [vmem:[%s61 + $0x830] sm:$0xff]
        %v3086 = vld [vmem:[%s61 + $0x838] sm:$0xff]
        %v3087 = vld [vmem:[%s61 + $0x840] sm:$0xff]
        %v3088 = vld [vmem:[%s61 + $0x848] sm:$0xff]
        %v3089 = vld [vmem:[%s61 + $0x850] sm:$0xff]
        %v3090 = vld [vmem:[%s61 + $0x858] sm:$0xff]
        %v3091 = vld [vmem:[%s61 + $0x860] sm:$0xff]
        %v3092 = vld [vmem:[%s61 + $0x868] sm:$0xff]
        %v3093 = vld [vmem:[%s61 + $0x870] sm:$0xff]
        %v3094 = vld [vmem:[%s61 + $0x878] sm:$0xff]
        %v3095 = vld [vmem:[%s61 + $0x880] sm:$0xff]
        %v3096 = vld [vmem:[%s61 + $0x888] sm:$0xff]
        %v3097 = vld [vmem:[%s61 + $0x890] sm:$0xff]
        %v3098 = vld [vmem:[%s61 + $0x898] sm:$0xff]
        %v3099 = vld [vmem:[%s61 + $0x8a0] sm:$0xff]
        %v3100 = vld [vmem:[%s61 + $0x8a8] sm:$0xff]
        %v3101 = vld [vmem:[%s61 + $0x8b0] sm:$0xff]
        %v3102 = vld [vmem:[%s61 + $0x8b8] sm:$0xff]
        %v3103 = vld [vmem:[%s61 + $0x8c0] sm:$0xff]
        %v3104 = vld [vmem:[%s61 + $0x8c8] sm:$0xff]
        %v3105 = vld [vmem:[%s61 + $0x8d0] sm:$0xff]
        %v3106 = vld [vmem:[%s61 + $0x8d8] sm:$0xff]
        %v3107 = vld [vmem:[%s61 + $0x8e0] sm:$0xff]
        %v3108 = vld [vmem:[%s61 + $0x8e8] sm:$0xff]
        %v3109 = vld [vmem:[%s61 + $0x8f0] sm:$0xff]
        %v3110 = vld [vmem:[%s61 + $0x8f8] sm:$0xff]
        %v3111 = vld [vmem:[%s61 + $0x900] sm:$0xff]
        %v3112 = vld [vmem:[%s61 + $0x908] sm:$0xff]
        %v3113 = vld [vmem:[%s61 + $0x910] sm:$0xff]
        %v3114 = vld [vmem:[%s61 + $0x918] sm:$0xff]
        %v3115 = vld [vmem:[%s61 + $0x920] sm:$0xff]
        %v3116 = vld [vmem:[%s61 + $0x928] sm:$0xff]
        %v3117 = vld [vmem:[%s61 + $0x930] sm:$0xff]
        %v3118 = vld [vmem:[%s61 + $0x938] sm:$0xff]
        %v3119 = vld [vmem:[%s61 + $0x940] sm:$0xff]
        %v3120 = vld [vmem:[%s61 + $0x948] sm:$0xff]
        %v3121 = vld [vmem:[%s61 + $0x950] sm:$0xff]
        %v3122 = vld [vmem:[%s61 + $0x958] sm:$0xff]
        %v3123 = vld [vmem:[%s61 + $0x960] sm:$0xff]
        %v3124 = vld [vmem:[%s61 + $0x968] sm:$0xff]
        %v3125 = vld [vmem:[%s61 + $0x970] sm:$0xff]
        %v3126 = vld [vmem:[%s61 + $0x978] sm:$0xff]
        %v3127 = vld [vmem:[%s61 + $0x980] sm:$0xff]
        %v3128 = vld [vmem:[%s61 + $0x988] sm:$0xff]
        %v3129 = vld [vmem:[%s61 + $0x990] sm:$0xff]
        %v3130 = vld [vmem:[%s61 + $0x998] sm:$0xff]
        %v3131 = vld [vmem:[%s61 + $0x9a0] sm:$0xff]
        %v3132 = vld [vmem:[%s61 + $0x9a8] sm:$0xff]
        %v3133 = vld [vmem:[%s61 + $0x9b0] sm:$0xff]
        %v3134 = vld [vmem:[%s61 + $0x9b8] sm:$0xff]
        %v3135 = vld [vmem:[%s61 + $0x9c0] sm:$0xff]
        %v3136 = vld [vmem:[%s61 + $0x9c8] sm:$0xff]
        %v3137 = vld [vmem:[%s61 + $0x9d0] sm:$0xff]
        %v3138 = vld [vmem:[%s61 + $0x9d8] sm:$0xff]
        %v3139 = vld [vmem:[%s61 + $0x9e0] sm:$0xff]
        %v3140 = vld [vmem:[%s61 + $0x9e8] sm:$0xff]
        %v3141 = vld [vmem:[%s61 + $0x9f0] sm:$0xff]
        %v3142 = vld [vmem:[%s61 + $0x9f8] sm:$0xff]
        %v3143 = vld [vmem:[%s61 + $0xa00] sm:$0xff]
        %v3144 = vld [vmem:[%s61 + $0xa08] sm:$0xff]
        %v3145 = vld [vmem:[%s61 + $0xa10] sm:$0xff]
        %v3146 = vld [vmem:[%s61 + $0xa18] sm:$0xff]
        %v3147 = vld [vmem:[%s61 + $0xa20] sm:$0xff]
        %v3148 = vld [vmem:[%s61 + $0xa28] sm:$0xff]
        %v3149 = vld [vmem:[%s61 + $0xa30] sm:$0xff]
        %v3150 = vld [vmem:[%s61 + $0xa38] sm:$0xff]
        %v3151 = vld [vmem:[%s61 + $0xa40] sm:$0xff]
        %v3152 = vld [vmem:[%s61 + $0xa48] sm:$0xff]
        %v3153 = vld [vmem:[%s61 + $0xa50] sm:$0xff]
        %v3154 = vld [vmem:[%s61 + $0xa58] sm:$0xff]
        %v3155 = vld [vmem:[%s61 + $0xa60] sm:$0xff]
        %v3156 = vld [vmem:[%s61 + $0xa68] sm:$0xff]
        %v3157 = vld [vmem:[%s61 + $0xa70] sm:$0xff]
        %v3158 = vld [vmem:[%s61 + $0xa78] sm:$0xff]
        %v3159 = vld [vmem:[%s61 + $0xa80] sm:$0xff]
        %v3160 = vld [vmem:[%s61 + $0xa88] sm:$0xff]
        %v3161 = vld [vmem:[%s61 + $0xa90] sm:$0xff]
        %v3162 = vld [vmem:[%s61 + $0xa98] sm:$0xff]
        %v3163 = vld [vmem:[%s61 + $0xaa0] sm:$0xff]
        %v3164 = vld [vmem:[%s61 + $0xaa8] sm:$0xff]
        %v3165 = vld [vmem:[%s61 + $0xab0] sm:$0xff]
        %v3166 = vld [vmem:[%s61 + $0xab8] sm:$0xff]
        %v3167 = vld [vmem:[%s61 + $0xac0] sm:$0xff]
        %v3168 = vld [vmem:[%s61 + $0xac8] sm:$0xff]
        %v3169 = vld [vmem:[%s61 + $0xad0] sm:$0xff]
        %v3170 = vld [vmem:[%s61 + $0xad8] sm:$0xff]
        %v3171 = vld [vmem:[%s61 + $0xae0] sm:$0xff]
        %v3172 = vld [vmem:[%s61 + $0xae8] sm:$0xff]
        %v3173 = vld [vmem:[%s61 + $0xaf0] sm:$0xff]
        %v3174 = vld [vmem:[%s61 + $0xaf8] sm:$0xff]
        %v3175 = vld [vmem:[%s61 + $0xb00] sm:$0xff]
        %v3176 = vld [vmem:[%s61 + $0xb08] sm:$0xff]
        %v3177 = vld [vmem:[%s61 + $0xb10] sm:$0xff]
        %v3178 = vld [vmem:[%s61 + $0xb18] sm:$0xff]
        %v3179 = vld [vmem:[%s61 + $0xb20] sm:$0xff]
        %v3180 = vld [vmem:[%s61 + $0xb28] sm:$0xff]
        %v3181 = vld [vmem:[%s61 + $0xb30] sm:$0xff]
        %v3182 = vld [vmem:[%s61 + $0xb38] sm:$0xff]
        %v3183 = vld [vmem:[%s61 + $0xb40] sm:$0xff]
        %v3184 = vld [vmem:[%s61 + $0xb48] sm:$0xff]
        %v3185 = vld [vmem:[%s61 + $0xb50] sm:$0xff]
        %v3186 = vld [vmem:[%s61 + $0xb58] sm:$0xff]
        %v3187 = vld [vmem:[%s61 + $0xb60] sm:$0xff]
        %v3188 = vld [vmem:[%s61 + $0xb68] sm:$0xff]
        %v3189 = vld [vmem:[%s61 + $0xb70] sm:$0xff]
        %v3190 = vld [vmem:[%s61 + $0xb78] sm:$0xff]
        %v3191 = vld [vmem:[%s61 + $0xb80] sm:$0xff]
        %v3192 = vld [vmem:[%s61 + $0xb88] sm:$0xff]
        %v3193 = vld [vmem:[%s61 + $0xb90] sm:$0xff]
        %v3194 = vld [vmem:[%s61 + $0xb98] sm:$0xff]
        %v3195 = vld [vmem:[%s61 + $0xba0] sm:$0xff]
        %v3196 = vld [vmem:[%s61 + $0xba8] sm:$0xff]
        %v3197 = vld [vmem:[%s61 + $0xbb0] sm:$0xff]
        %v3198 = vld [vmem:[%s61 + $0xbb8] sm:$0xff]
        %v3199 = vld [vmem:[%s61 + $0xbc0] sm:$0xff]
        %v3200 = vld [vmem:[%s61 + $0xbc8] sm:$0xff]
        %v3201 = vld [vmem:[%s61 + $0xbd0] sm:$0xff]
        %v3202 = vld [vmem:[%s61 + $0xbd8] sm:$0xff]
        %v3203 = vld [vmem:[%s61 + $0xbe0] sm:$0xff]
        %v3204 = vld [vmem:[%s61 + $0xbe8] sm:$0xff]
        %v3205 = vld [vmem:[%s61 + $0xbf0] sm:$0xff]
        %v3206 = vld [vmem:[%s61 + $0xbf8] sm:$0xff]
        %v3207 = vld [vmem:[%s61 + $0xc00] sm:$0xff]
        %v3208 = vld [vmem:[%s61 + $0xc08] sm:$0xff]
        %v3209 = vld [vmem:[%s61 + $0xc10] sm:$0xff]
        %v3210 = vld [vmem:[%s61 + $0xc18] sm:$0xff]
        %v3211 = vld [vmem:[%s61 + $0xc20] sm:$0xff]
        %v3212 = vld [vmem:[%s61 + $0xc28] sm:$0xff]
        %v3213 = vld [vmem:[%s61 + $0xc30] sm:$0xff]
        %v3214 = vld [vmem:[%s61 + $0xc38] sm:$0xff]
        %v3215 = vld [vmem:[%s61 + $0xc40] sm:$0xff]
        %v3216 = vld [vmem:[%s61 + $0xc48] sm:$0xff]
        %v3217 = vld [vmem:[%s61 + $0xc50] sm:$0xff]
        %v3218 = vld [vmem:[%s61 + $0xc58] sm:$0xff]
        %v3219 = vld [vmem:[%s61 + $0xc60] sm:$0xff]
        %v3220 = vld [vmem:[%s61 + $0xc68] sm:$0xff]
        %v3221 = vld [vmem:[%s61 + $0xc70] sm:$0xff]
        %v3222 = vld [vmem:[%s61 + $0xc78] sm:$0xff]
        %v3223 = vld [vmem:[%s61 + $0xc80] sm:$0xff]
        %v3224 = vld [vmem:[%s61 + $0xc88] sm:$0xff]
        %v3225 = vld [vmem:[%s61 + $0xc90] sm:$0xff]
        %v3226 = vld [vmem:[%s61 + $0xc98] sm:$0xff]
        %v3227 = vld [vmem:[%s61 + $0xca0] sm:$0xff]
        %v3228 = vld [vmem:[%s61 + $0xca8] sm:$0xff]
        %v3229 = vld [vmem:[%s61 + $0xcb0] sm:$0xff]
        %v3230 = vld [vmem:[%s61 + $0xcb8] sm:$0xff]
        %v3231 = vld [vmem:[%s61 + $0xcc0] sm:$0xff]
        %v3232 = vld [vmem:[%s61 + $0xcc8] sm:$0xff]
        %v3233 = vld [vmem:[%s61 + $0xcd0] sm:$0xff]
        %v3234 = vld [vmem:[%s61 + $0xcd8] sm:$0xff]
        %v3235 = vld [vmem:[%s61 + $0xce0] sm:$0xff]
        %v3236 = vld [vmem:[%s61 + $0xce8] sm:$0xff]
        %v3237 = vld [vmem:[%s61 + $0xcf0] sm:$0xff]
        %v3238 = vld [vmem:[%s61 + $0xcf8] sm:$0xff]
        %v3239 = vld [vmem:[%s61 + $0xd00] sm:$0xff]
        %v3240 = vld [vmem:[%s61 + $0xd08] sm:$0xff]
        %v3241 = vld [vmem:[%s61 + $0xd10] sm:$0xff]
        %v3242 = vld [vmem:[%s61 + $0xd18] sm:$0xff]
        %v3243 = vld [vmem:[%s61 + $0xd20] sm:$0xff]
        %v3244 = vld [vmem:[%s61 + $0xd28] sm:$0xff]
        %v3245 = vld [vmem:[%s61 + $0xd30] sm:$0xff]
        %v3246 = vld [vmem:[%s61 + $0xd38] sm:$0xff]
        %v3247 = vld [vmem:[%s61 + $0xd40] sm:$0xff]
        %v3248 = vld [vmem:[%s61 + $0xd48] sm:$0xff]
        %v3249 = vld [vmem:[%s61 + $0xd50] sm:$0xff]
        %v3250 = vld [vmem:[%s61 + $0xd58] sm:$0xff]
        %v3251 = vld [vmem:[%s61 + $0xd60] sm:$0xff]
        %v3252 = vld [vmem:[%s61 + $0xd68] sm:$0xff]
        %v3253 = vld [vmem:[%s61 + $0xd70] sm:$0xff]
        %v3254 = vld [vmem:[%s61 + $0xd78] sm:$0xff]
        %v3255 = vld [vmem:[%s61 + $0xd80] sm:$0xff]
        %v3256 = vld [vmem:[%s61 + $0xd88] sm:$0xff]
        %v3257 = vld [vmem:[%s61 + $0xd90] sm:$0xff]
        %v3258 = vld [vmem:[%s61 + $0xd98] sm:$0xff]
        %v3259 = vld [vmem:[%s61 + $0xda0] sm:$0xff]
        %v3260 = vld [vmem:[%s61 + $0xda8] sm:$0xff]
        %v3261 = vld [vmem:[%s61 + $0xdb0] sm:$0xff]
        %v3262 = vld [vmem:[%s61 + $0xdb8] sm:$0xff]
        %v3263 = vld [vmem:[%s61 + $0xdc0] sm:$0xff]
        %v3264 = vld [vmem:[%s61 + $0xdc8] sm:$0xff]
        %v3265 = vld [vmem:[%s61 + $0xdd0] sm:$0xff]
        %v3266 = vld [vmem:[%s61 + $0xdd8] sm:$0xff]
        %v3267 = vld [vmem:[%s61 + $0xde0] sm:$0xff]
        %v3268 = vld [vmem:[%s61 + $0xde8] sm:$0xff]
        %v3269 = vld [vmem:[%s61 + $0xdf0] sm:$0xff]
        %v3270 = vld [vmem:[%s61 + $0xdf8] sm:$0xff]
        %v3271 = vld [vmem:[%s61 + $0xe00] sm:$0xff]
        %v3272 = vld [vmem:[%s61 + $0xe08] sm:$0xff]
        %v3273 = vld [vmem:[%s61 + $0xe10] sm:$0xff]
        %v3274 = vld [vmem:[%s61 + $0xe18] sm:$0xff]
        %v3275 = vld [vmem:[%s61 + $0xe20] sm:$0xff]
        %v3276 = vld [vmem:[%s61 + $0xe28] sm:$0xff]
        %v3277 = vld [vmem:[%s61 + $0xe30] sm:$0xff]
        %v3278 = vld [vmem:[%s61 + $0xe38] sm:$0xff]
        %v3279 = vld [vmem:[%s61 + $0xe40] sm:$0xff]
        %v3280 = vld [vmem:[%s61 + $0xe48] sm:$0xff]
        %v3281 = vld [vmem:[%s61 + $0xe50] sm:$0xff]
        %v3282 = vld [vmem:[%s61 + $0xe58] sm:$0xff]
        %v3283 = vld [vmem:[%s61 + $0xe60] sm:$0xff]
        %v3284 = vld [vmem:[%s61 + $0xe68] sm:$0xff]
        %v3285 = vld [vmem:[%s61 + $0xe70] sm:$0xff]
        %v3286 = vld [vmem:[%s61 + $0xe78] sm:$0xff]
        %v3287 = vld [vmem:[%s61 + $0xe80] sm:$0xff]
        %v3288 = vld [vmem:[%s61 + $0xe88] sm:$0xff]
        %v3289 = vld [vmem:[%s61 + $0xe90] sm:$0xff]
        %v3290 = vld [vmem:[%s61 + $0xe98] sm:$0xff]
        %v3291 = vld [vmem:[%s61 + $0xea0] sm:$0xff]
        %v3292 = vld [vmem:[%s61 + $0xea8] sm:$0xff]
        %v3293 = vld [vmem:[%s61 + $0xeb0] sm:$0xff]
        %v3294 = vld [vmem:[%s61 + $0xeb8] sm:$0xff]
        %v3295 = vld [vmem:[%s61 + $0xec0] sm:$0xff]
        %v3296 = vld [vmem:[%s61 + $0xec8] sm:$0xff]
        %v3297 = vld [vmem:[%s61 + $0xed0] sm:$0xff]
        %v3298 = vld [vmem:[%s61 + $0xed8] sm:$0xff]
        %v3299 = vld [vmem:[%s61 + $0xee0] sm:$0xff]
        %v3300 = vld [vmem:[%s61 + $0xee8] sm:$0xff]
        %v3301 = vld [vmem:[%s61 + $0xef0] sm:$0xff]
        %v3302 = vld [vmem:[%s61 + $0xef8] sm:$0xff]
        %v3303 = vld [vmem:[%s61 + $0xf00] sm:$0xff]
        %v3304 = vld [vmem:[%s61 + $0xf08] sm:$0xff]
        %v3305 = vld [vmem:[%s61 + $0xf10] sm:$0xff]
        %v3306 = vld [vmem:[%s61 + $0xf18] sm:$0xff]
        %v3307 = vld [vmem:[%s61 + $0xf20] sm:$0xff]
        %v3308 = vld [vmem:[%s61 + $0xf28] sm:$0xff]
        %v3309 = vld [vmem:[%s61 + $0xf30] sm:$0xff]
        %v3310 = vld [vmem:[%s61 + $0xf38] sm:$0xff]
        %v3311 = vld [vmem:[%s61 + $0xf40] sm:$0xff]
        %v3312 = vld [vmem:[%s61 + $0xf48] sm:$0xff]
        %v3313 = vld [vmem:[%s61 + $0xf50] sm:$0xff]
        %v3314 = vld [vmem:[%s61 + $0xf58] sm:$0xff]
        %v3315 = vld [vmem:[%s61 + $0xf60] sm:$0xff]
        %v3316 = vld [vmem:[%s61 + $0xf68] sm:$0xff]
        %v3317 = vld [vmem:[%s61 + $0xf70] sm:$0xff]
        %v3318 = vld [vmem:[%s61 + $0xf78] sm:$0xff]
        %v3319 = vld [vmem:[%s61 + $0xf80] sm:$0xff]
        %v3320 = vld [vmem:[%s61 + $0xf88] sm:$0xff]
        %v3321 = vld [vmem:[%s61 + $0xf90] sm:$0xff]
        %v3322 = vld [vmem:[%s61 + $0xf98] sm:$0xff]
        %v3323 = vld [vmem:[%s61 + $0xfa0] sm:$0xff]
        %v3324 = vld [vmem:[%s61 + $0xfa8] sm:$0xff]
        %v3325 = vld [vmem:[%s61 + $0xfb0] sm:$0xff]
        %v3326 = vld [vmem:[%s61 + $0xfb8] sm:$0xff]
        %v3327 = vld [vmem:[%s61 + $0xfc0] sm:$0xff]
        %v3328 = vld [vmem:[%s61 + $0xfc8] sm:$0xff]
        %v3329 = vld [vmem:[%s61 + $0xfd0] sm:$0xff]
        %v3330 = vld [vmem:[%s61 + $0xfd8] sm:$0xff]
        %v3331 = vld [vmem:[%s61 + $0xfe0] sm:$0xff]
        %v3332 = vld [vmem:[%s61 + $0xfe8] sm:$0xff]
        %v3333 = vld [vmem:[%s61 + $0xff0] sm:$0xff]
        %v3334 = vld [vmem:[%s61 + $0xff8] sm:$0xff]
        %v3847 = vunpack.c.l.b16 %v2823
        %v3848 = vunpack.c.h.b16 %v2823
        %v3849 = vunpack.c.l.b16 %v2824
        %v3850 = vunpack.c.h.b16 %v2824
        %v3851 = vunpack.c.l.b16 %v2825
        %v3852 = vunpack.c.h.b16 %v2825
        %v3853 = vunpack.c.l.b16 %v2826
        %v3854 = vunpack.c.h.b16 %v2826
        %v3855 = vunpack.c.l.b16 %v2827
        %v3856 = vunpack.c.h.b16 %v2827
        %v3857 = vunpack.c.l.b16 %v2828
        %v3858 = vunpack.c.h.b16 %v2828
        %v3859 = vunpack.c.l.b16 %v2829
        %v3860 = vunpack.c.h.b16 %v2829
        %v3861 = vunpack.c.l.b16 %v2830
        %v3862 = vunpack.c.h.b16 %v2830
        %v3863 = vunpack.c.l.b16 %v2831
        %v3864 = vunpack.c.h.b16 %v2831
        %v3865 = vunpack.c.l.b16 %v2832
        %v3866 = vunpack.c.h.b16 %v2832
        %v3867 = vunpack.c.l.b16 %v2833
        %v3868 = vunpack.c.h.b16 %v2833
        %v3869 = vunpack.c.l.b16 %v2834
        %v3870 = vunpack.c.h.b16 %v2834
        %v3871 = vunpack.c.l.b16 %v2835
        %v3872 = vunpack.c.h.b16 %v2835
        %v3873 = vunpack.c.l.b16 %v2836
        %v3874 = vunpack.c.h.b16 %v2836
        %v3875 = vunpack.c.l.b16 %v2837
        %v3876 = vunpack.c.h.b16 %v2837
        %v3877 = vunpack.c.l.b16 %v2838
        %v3878 = vunpack.c.h.b16 %v2838
        %v3879 = vunpack.c.l.b16 %v2839
        %v3880 = vunpack.c.h.b16 %v2839
        %v3881 = vunpack.c.l.b16 %v2840
        %v3882 = vunpack.c.h.b16 %v2840
        %v3883 = vunpack.c.l.b16 %v2841
        %v3884 = vunpack.c.h.b16 %v2841
        %v3885 = vunpack.c.l.b16 %v2842
        %v3886 = vunpack.c.h.b16 %v2842
        %v3887 = vunpack.c.l.b16 %v2843
        %v3888 = vunpack.c.h.b16 %v2843
        %v3889 = vunpack.c.l.b16 %v2844
        %v3890 = vunpack.c.h.b16 %v2844
        %v3891 = vunpack.c.l.b16 %v2845
        %v3892 = vunpack.c.h.b16 %v2845
        %v3893 = vunpack.c.l.b16 %v2846
        %v3894 = vunpack.c.h.b16 %v2846
        %v3895 = vunpack.c.l.b16 %v2847
        %v3896 = vunpack.c.h.b16 %v2847
        %v3897 = vunpack.c.l.b16 %v2848
        %v3898 = vunpack.c.h.b16 %v2848
        %v3899 = vunpack.c.l.b16 %v2849
        %v3900 = vunpack.c.h.b16 %v2849
        %v3901 = vunpack.c.l.b16 %v2850
        %v3902 = vunpack.c.h.b16 %v2850
        %v3903 = vunpack.c.l.b16 %v2851
        %v3904 = vunpack.c.h.b16 %v2851
        %v3905 = vunpack.c.l.b16 %v2852
        %v3906 = vunpack.c.h.b16 %v2852
        %v3907 = vunpack.c.l.b16 %v2853
        %v3908 = vunpack.c.h.b16 %v2853
        %v3909 = vunpack.c.l.b16 %v2854
        %v3910 = vunpack.c.h.b16 %v2854
        %v3911 = vunpack.c.l.b16 %v2855
        %v3912 = vunpack.c.h.b16 %v2855
        %v3913 = vunpack.c.l.b16 %v2856
        %v3914 = vunpack.c.h.b16 %v2856
        %v3915 = vunpack.c.l.b16 %v2857
        %v3916 = vunpack.c.h.b16 %v2857
        %v3917 = vunpack.c.l.b16 %v2858
        %v3918 = vunpack.c.h.b16 %v2858
        %v3919 = vunpack.c.l.b16 %v2859
        %v3920 = vunpack.c.h.b16 %v2859
        %v3921 = vunpack.c.l.b16 %v2860
        %v3922 = vunpack.c.h.b16 %v2860
        %v3923 = vunpack.c.l.b16 %v2861
        %v3924 = vunpack.c.h.b16 %v2861
        %v3925 = vunpack.c.l.b16 %v2862
        %v3926 = vunpack.c.h.b16 %v2862
        %v3927 = vunpack.c.l.b16 %v2863
        %v3928 = vunpack.c.h.b16 %v2863
        %v3929 = vunpack.c.l.b16 %v2864
        %v3930 = vunpack.c.h.b16 %v2864
        %v3931 = vunpack.c.l.b16 %v2865
        %v3932 = vunpack.c.h.b16 %v2865
        %v3933 = vunpack.c.l.b16 %v2866
        %v3934 = vunpack.c.h.b16 %v2866
        %v3935 = vunpack.c.l.b16 %v2867
        %v3936 = vunpack.c.h.b16 %v2867
        %v3937 = vunpack.c.l.b16 %v2868
        %v3938 = vunpack.c.h.b16 %v2868
        %v3939 = vunpack.c.l.b16 %v2869
        %v3940 = vunpack.c.h.b16 %v2869
        %v3941 = vunpack.c.l.b16 %v2870
        %v3942 = vunpack.c.h.b16 %v2870
        %v3943 = vunpack.c.l.b16 %v2871
        %v3944 = vunpack.c.h.b16 %v2871
        %v3945 = vunpack.c.l.b16 %v2872
        %v3946 = vunpack.c.h.b16 %v2872
        %v3947 = vunpack.c.l.b16 %v2873
        %v3948 = vunpack.c.h.b16 %v2873
        %v3949 = vunpack.c.l.b16 %v2874
        %v3950 = vunpack.c.h.b16 %v2874
        %v3951 = vunpack.c.l.b16 %v2875
        %v3952 = vunpack.c.h.b16 %v2875
        %v3953 = vunpack.c.l.b16 %v2876
        %v3954 = vunpack.c.h.b16 %v2876
        %v3955 = vunpack.c.l.b16 %v2877
        %v3956 = vunpack.c.h.b16 %v2877
        %v3957 = vunpack.c.l.b16 %v2878
        %v3958 = vunpack.c.h.b16 %v2878
        %v3959 = vunpack.c.l.b16 %v2879
        %v3960 = vunpack.c.h.b16 %v2879
        %v3961 = vunpack.c.l.b16 %v2880
        %v3962 = vunpack.c.h.b16 %v2880
        %v3963 = vunpack.c.l.b16 %v2881
        %v3964 = vunpack.c.h.b16 %v2881
        %v3965 = vunpack.c.l.b16 %v2882
        %v3966 = vunpack.c.h.b16 %v2882
        %v3967 = vunpack.c.l.b16 %v2883
        %v3968 = vunpack.c.h.b16 %v2883
        %v3969 = vunpack.c.l.b16 %v2884
        %v3970 = vunpack.c.h.b16 %v2884
        %v3971 = vunpack.c.l.b16 %v2885
        %v3972 = vunpack.c.h.b16 %v2885
        %v3973 = vunpack.c.l.b16 %v2886
        %v3974 = vunpack.c.h.b16 %v2886
        %v3975 = vunpack.c.l.b16 %v2887
        %v3976 = vunpack.c.h.b16 %v2887
        %v3977 = vunpack.c.l.b16 %v2888
        %v3978 = vunpack.c.h.b16 %v2888
        %v3979 = vunpack.c.l.b16 %v2889
        %v3980 = vunpack.c.h.b16 %v2889
        %v3981 = vunpack.c.l.b16 %v2890
        %v3982 = vunpack.c.h.b16 %v2890
        %v3983 = vunpack.c.l.b16 %v2891
        %v3984 = vunpack.c.h.b16 %v2891
        %v3985 = vunpack.c.l.b16 %v2892
        %v3986 = vunpack.c.h.b16 %v2892
        %v3987 = vunpack.c.l.b16 %v2893
        %v3988 = vunpack.c.h.b16 %v2893
        %v3989 = vunpack.c.l.b16 %v2894
        %v3990 = vunpack.c.h.b16 %v2894
        %v3991 = vunpack.c.l.b16 %v2895
        %v3992 = vunpack.c.h.b16 %v2895
        %v3993 = vunpack.c.l.b16 %v2896
        %v3994 = vunpack.c.h.b16 %v2896
        %v3995 = vunpack.c.l.b16 %v2897
        %v3996 = vunpack.c.h.b16 %v2897
        %v3997 = vunpack.c.l.b16 %v2898
        %v3998 = vunpack.c.h.b16 %v2898
        %v3999 = vunpack.c.l.b16 %v2899
        %v4000 = vunpack.c.h.b16 %v2899
        %v4001 = vunpack.c.l.b16 %v2900
        %v4002 = vunpack.c.h.b16 %v2900
        %v4003 = vunpack.c.l.b16 %v2901
        %v4004 = vunpack.c.h.b16 %v2901
        %v4005 = vunpack.c.l.b16 %v2902
        %v4006 = vunpack.c.h.b16 %v2902
        %v4007 = vunpack.c.l.b16 %v2903
        %v4008 = vunpack.c.h.b16 %v2903
        %v4009 = vunpack.c.l.b16 %v2904
        %v4010 = vunpack.c.h.b16 %v2904
        %v4011 = vunpack.c.l.b16 %v2905
        %v4012 = vunpack.c.h.b16 %v2905
        %v4013 = vunpack.c.l.b16 %v2906
        %v4014 = vunpack.c.h.b16 %v2906
        %v4015 = vunpack.c.l.b16 %v2907
        %v4016 = vunpack.c.h.b16 %v2907
        %v4017 = vunpack.c.l.b16 %v2908
        %v4018 = vunpack.c.h.b16 %v2908
        %v4019 = vunpack.c.l.b16 %v2909
        %v4020 = vunpack.c.h.b16 %v2909
        %v4021 = vunpack.c.l.b16 %v2910
        %v4022 = vunpack.c.h.b16 %v2910
        %v4023 = vunpack.c.l.b16 %v2911
        %v4024 = vunpack.c.h.b16 %v2911
        %v4025 = vunpack.c.l.b16 %v2912
        %v4026 = vunpack.c.h.b16 %v2912
        %v4027 = vunpack.c.l.b16 %v2913
        %v4028 = vunpack.c.h.b16 %v2913
        %v4029 = vunpack.c.l.b16 %v2914
        %v4030 = vunpack.c.h.b16 %v2914
        %v4031 = vunpack.c.l.b16 %v2915
        %v4032 = vunpack.c.h.b16 %v2915
        %v4033 = vunpack.c.l.b16 %v2916
        %v4034 = vunpack.c.h.b16 %v2916
        %v4035 = vunpack.c.l.b16 %v2917
        %v4036 = vunpack.c.h.b16 %v2917
        %v4037 = vunpack.c.l.b16 %v2918
        %v4038 = vunpack.c.h.b16 %v2918
        %v4039 = vunpack.c.l.b16 %v2919
        %v4040 = vunpack.c.h.b16 %v2919
        %v4041 = vunpack.c.l.b16 %v2920
        %v4042 = vunpack.c.h.b16 %v2920
        %v4043 = vunpack.c.l.b16 %v2921
        %v4044 = vunpack.c.h.b16 %v2921
        %v4045 = vunpack.c.l.b16 %v2922
        %v4046 = vunpack.c.h.b16 %v2922
        %v4047 = vunpack.c.l.b16 %v2923
        %v4048 = vunpack.c.h.b16 %v2923
        %v4049 = vunpack.c.l.b16 %v2924
        %v4050 = vunpack.c.h.b16 %v2924
        %v4051 = vunpack.c.l.b16 %v2925
        %v4052 = vunpack.c.h.b16 %v2925
        %v4053 = vunpack.c.l.b16 %v2926
        %v4054 = vunpack.c.h.b16 %v2926
        %v4055 = vunpack.c.l.b16 %v2927
        %v4056 = vunpack.c.h.b16 %v2927
        %v4057 = vunpack.c.l.b16 %v2928
        %v4058 = vunpack.c.h.b16 %v2928
        %v4059 = vunpack.c.l.b16 %v2929
        %v4060 = vunpack.c.h.b16 %v2929
        %v4061 = vunpack.c.l.b16 %v2930
        %v4062 = vunpack.c.h.b16 %v2930
        %v4063 = vunpack.c.l.b16 %v2931
        %v4064 = vunpack.c.h.b16 %v2931
        %v4065 = vunpack.c.l.b16 %v2932
        %v4066 = vunpack.c.h.b16 %v2932
        %v4067 = vunpack.c.l.b16 %v2933
        %v4068 = vunpack.c.h.b16 %v2933
        %v4069 = vunpack.c.l.b16 %v2934
        %v4070 = vunpack.c.h.b16 %v2934
        %v4071 = vunpack.c.l.b16 %v2935
        %v4072 = vunpack.c.h.b16 %v2935
        %v4073 = vunpack.c.l.b16 %v2936
        %v4074 = vunpack.c.h.b16 %v2936
        %v4075 = vunpack.c.l.b16 %v2937
        %v4076 = vunpack.c.h.b16 %v2937
        %v4077 = vunpack.c.l.b16 %v2938
        %v4078 = vunpack.c.h.b16 %v2938
        %v4079 = vunpack.c.l.b16 %v2939
        %v4080 = vunpack.c.h.b16 %v2939
        %v4081 = vunpack.c.l.b16 %v2940
        %v4082 = vunpack.c.h.b16 %v2940
        %v4083 = vunpack.c.l.b16 %v2941
        %v4084 = vunpack.c.h.b16 %v2941
        %v4085 = vunpack.c.l.b16 %v2942
        %v4086 = vunpack.c.h.b16 %v2942
        %v4087 = vunpack.c.l.b16 %v2943
        %v4088 = vunpack.c.h.b16 %v2943
        %v4089 = vunpack.c.l.b16 %v2944
        %v4090 = vunpack.c.h.b16 %v2944
        %v4091 = vunpack.c.l.b16 %v2945
        %v4092 = vunpack.c.h.b16 %v2945
        %v4093 = vunpack.c.l.b16 %v2946
        %v4094 = vunpack.c.h.b16 %v2946
        %v4095 = vunpack.c.l.b16 %v2947
        %v4096 = vunpack.c.h.b16 %v2947
        %v4097 = vunpack.c.l.b16 %v2948
        %v4098 = vunpack.c.h.b16 %v2948
        %v4099 = vunpack.c.l.b16 %v2949
        %v4100 = vunpack.c.h.b16 %v2949
        %v4101 = vunpack.c.l.b16 %v2950
        %v4102 = vunpack.c.h.b16 %v2950
        %v4103 = vunpack.c.l.b16 %v2951
        %v4104 = vunpack.c.h.b16 %v2951
        %v4105 = vunpack.c.l.b16 %v2952
        %v4106 = vunpack.c.h.b16 %v2952
        %v4107 = vunpack.c.l.b16 %v2953
        %v4108 = vunpack.c.h.b16 %v2953
        %v4109 = vunpack.c.l.b16 %v2954
        %v4110 = vunpack.c.h.b16 %v2954
        %v4111 = vunpack.c.l.b16 %v2955
        %v4112 = vunpack.c.h.b16 %v2955
        %v4113 = vunpack.c.l.b16 %v2956
        %v4114 = vunpack.c.h.b16 %v2956
        %v4115 = vunpack.c.l.b16 %v2957
        %v4116 = vunpack.c.h.b16 %v2957
        %v4117 = vunpack.c.l.b16 %v2958
        %v4118 = vunpack.c.h.b16 %v2958
        %v4119 = vunpack.c.l.b16 %v2959
        %v4120 = vunpack.c.h.b16 %v2959
        %v4121 = vunpack.c.l.b16 %v2960
        %v4122 = vunpack.c.h.b16 %v2960
        %v4123 = vunpack.c.l.b16 %v2961
        %v4124 = vunpack.c.h.b16 %v2961
        %v4125 = vunpack.c.l.b16 %v2962
        %v4126 = vunpack.c.h.b16 %v2962
        %v4127 = vunpack.c.l.b16 %v2963
        %v4128 = vunpack.c.h.b16 %v2963
        %v4129 = vunpack.c.l.b16 %v2964
        %v4130 = vunpack.c.h.b16 %v2964
        %v4131 = vunpack.c.l.b16 %v2965
        %v4132 = vunpack.c.h.b16 %v2965
        %v4133 = vunpack.c.l.b16 %v2966
        %v4134 = vunpack.c.h.b16 %v2966
        %v4135 = vunpack.c.l.b16 %v2967
        %v4136 = vunpack.c.h.b16 %v2967
        %v4137 = vunpack.c.l.b16 %v2968
        %v4138 = vunpack.c.h.b16 %v2968
        %v4139 = vunpack.c.l.b16 %v2969
        %v4140 = vunpack.c.h.b16 %v2969
        %v4141 = vunpack.c.l.b16 %v2970
        %v4142 = vunpack.c.h.b16 %v2970
        %v4143 = vunpack.c.l.b16 %v2971
        %v4144 = vunpack.c.h.b16 %v2971
        %v4145 = vunpack.c.l.b16 %v2972
        %v4146 = vunpack.c.h.b16 %v2972
        %v4147 = vunpack.c.l.b16 %v2973
        %v4148 = vunpack.c.h.b16 %v2973
        %v4149 = vunpack.c.l.b16 %v2974
        %v4150 = vunpack.c.h.b16 %v2974
        %v4151 = vunpack.c.l.b16 %v2975
        %v4152 = vunpack.c.h.b16 %v2975
        %v4153 = vunpack.c.l.b16 %v2976
        %v4154 = vunpack.c.h.b16 %v2976
        %v4155 = vunpack.c.l.b16 %v2977
        %v4156 = vunpack.c.h.b16 %v2977
        %v4157 = vunpack.c.l.b16 %v2978
        %v4158 = vunpack.c.h.b16 %v2978
        %v4159 = vunpack.c.l.b16 %v2979
        %v4160 = vunpack.c.h.b16 %v2979
        %v4161 = vunpack.c.l.b16 %v2980
        %v4162 = vunpack.c.h.b16 %v2980
        %v4163 = vunpack.c.l.b16 %v2981
        %v4164 = vunpack.c.h.b16 %v2981
        %v4165 = vunpack.c.l.b16 %v2982
        %v4166 = vunpack.c.h.b16 %v2982
        %v4167 = vunpack.c.l.b16 %v2983
        %v4168 = vunpack.c.h.b16 %v2983
        %v4169 = vunpack.c.l.b16 %v2984
        %v4170 = vunpack.c.h.b16 %v2984
        %v4171 = vunpack.c.l.b16 %v2985
        %v4172 = vunpack.c.h.b16 %v2985
        %v4173 = vunpack.c.l.b16 %v2986
        %v4174 = vunpack.c.h.b16 %v2986
        %v4175 = vunpack.c.l.b16 %v2987
        %v4176 = vunpack.c.h.b16 %v2987
        %v4177 = vunpack.c.l.b16 %v2988
        %v4178 = vunpack.c.h.b16 %v2988
        %v4179 = vunpack.c.l.b16 %v2989
        %v4180 = vunpack.c.h.b16 %v2989
        %v4181 = vunpack.c.l.b16 %v2990
        %v4182 = vunpack.c.h.b16 %v2990
        %v4183 = vunpack.c.l.b16 %v2991
        %v4184 = vunpack.c.h.b16 %v2991
        %v4185 = vunpack.c.l.b16 %v2992
        %v4186 = vunpack.c.h.b16 %v2992
        %v4187 = vunpack.c.l.b16 %v2993
        %v4188 = vunpack.c.h.b16 %v2993
        %v4189 = vunpack.c.l.b16 %v2994
        %v4190 = vunpack.c.h.b16 %v2994
        %v4191 = vunpack.c.l.b16 %v2995
        %v4192 = vunpack.c.h.b16 %v2995
        %v4193 = vunpack.c.l.b16 %v2996
        %v4194 = vunpack.c.h.b16 %v2996
        %v4195 = vunpack.c.l.b16 %v2997
        %v4196 = vunpack.c.h.b16 %v2997
        %v4197 = vunpack.c.l.b16 %v2998
        %v4198 = vunpack.c.h.b16 %v2998
        %v4199 = vunpack.c.l.b16 %v2999
        %v4200 = vunpack.c.h.b16 %v2999
        %v4201 = vunpack.c.l.b16 %v3000
        %v4202 = vunpack.c.h.b16 %v3000
        %v4203 = vunpack.c.l.b16 %v3001
        %v4204 = vunpack.c.h.b16 %v3001
        %v4205 = vunpack.c.l.b16 %v3002
        %v4206 = vunpack.c.h.b16 %v3002
        %v4207 = vunpack.c.l.b16 %v3003
        %v4208 = vunpack.c.h.b16 %v3003
        %v4209 = vunpack.c.l.b16 %v3004
        %v4210 = vunpack.c.h.b16 %v3004
        %v4211 = vunpack.c.l.b16 %v3005
        %v4212 = vunpack.c.h.b16 %v3005
        %v4213 = vunpack.c.l.b16 %v3006
        %v4214 = vunpack.c.h.b16 %v3006
        %v4215 = vunpack.c.l.b16 %v3007
        %v4216 = vunpack.c.h.b16 %v3007
        %v4217 = vunpack.c.l.b16 %v3008
        %v4218 = vunpack.c.h.b16 %v3008
        %v4219 = vunpack.c.l.b16 %v3009
        %v4220 = vunpack.c.h.b16 %v3009
        %v4221 = vunpack.c.l.b16 %v3010
        %v4222 = vunpack.c.h.b16 %v3010
        %v4223 = vunpack.c.l.b16 %v3011
        %v4224 = vunpack.c.h.b16 %v3011
        %v4225 = vunpack.c.l.b16 %v3012
        %v4226 = vunpack.c.h.b16 %v3012
        %v4227 = vunpack.c.l.b16 %v3013
        %v4228 = vunpack.c.h.b16 %v3013
        %v4229 = vunpack.c.l.b16 %v3014
        %v4230 = vunpack.c.h.b16 %v3014
        %v4231 = vunpack.c.l.b16 %v3015
        %v4232 = vunpack.c.h.b16 %v3015
        %v4233 = vunpack.c.l.b16 %v3016
        %v4234 = vunpack.c.h.b16 %v3016
        %v4235 = vunpack.c.l.b16 %v3017
        %v4236 = vunpack.c.h.b16 %v3017
        %v4237 = vunpack.c.l.b16 %v3018
        %v4238 = vunpack.c.h.b16 %v3018
        %v4239 = vunpack.c.l.b16 %v3019
        %v4240 = vunpack.c.h.b16 %v3019
        %v4241 = vunpack.c.l.b16 %v3020
        %v4242 = vunpack.c.h.b16 %v3020
        %v4243 = vunpack.c.l.b16 %v3021
        %v4244 = vunpack.c.h.b16 %v3021
        %v4245 = vunpack.c.l.b16 %v3022
        %v4246 = vunpack.c.h.b16 %v3022
        %v4247 = vunpack.c.l.b16 %v3023
        %v4248 = vunpack.c.h.b16 %v3023
        %v4249 = vunpack.c.l.b16 %v3024
        %v4250 = vunpack.c.h.b16 %v3024
        %v4251 = vunpack.c.l.b16 %v3025
        %v4252 = vunpack.c.h.b16 %v3025
        %v4253 = vunpack.c.l.b16 %v3026
        %v4254 = vunpack.c.h.b16 %v3026
        %v4255 = vunpack.c.l.b16 %v3027
        %v4256 = vunpack.c.h.b16 %v3027
        %v4257 = vunpack.c.l.b16 %v3028
        %v4258 = vunpack.c.h.b16 %v3028
        %v4259 = vunpack.c.l.b16 %v3029
        %v4260 = vunpack.c.h.b16 %v3029
        %v4261 = vunpack.c.l.b16 %v3030
        %v4262 = vunpack.c.h.b16 %v3030
        %v4263 = vunpack.c.l.b16 %v3031
        %v4264 = vunpack.c.h.b16 %v3031
        %v4265 = vunpack.c.l.b16 %v3032
        %v4266 = vunpack.c.h.b16 %v3032
        %v4267 = vunpack.c.l.b16 %v3033
        %v4268 = vunpack.c.h.b16 %v3033
        %v4269 = vunpack.c.l.b16 %v3034
        %v4270 = vunpack.c.h.b16 %v3034
        %v4271 = vunpack.c.l.b16 %v3035
        %v4272 = vunpack.c.h.b16 %v3035
        %v4273 = vunpack.c.l.b16 %v3036
        %v4274 = vunpack.c.h.b16 %v3036
        %v4275 = vunpack.c.l.b16 %v3037
        %v4276 = vunpack.c.h.b16 %v3037
        %v4277 = vunpack.c.l.b16 %v3038
        %v4278 = vunpack.c.h.b16 %v3038
        %v4279 = vunpack.c.l.b16 %v3039
        %v4280 = vunpack.c.h.b16 %v3039
        %v4281 = vunpack.c.l.b16 %v3040
        %v4282 = vunpack.c.h.b16 %v3040
        %v4283 = vunpack.c.l.b16 %v3041
        %v4284 = vunpack.c.h.b16 %v3041
        %v4285 = vunpack.c.l.b16 %v3042
        %v4286 = vunpack.c.h.b16 %v3042
        %v4287 = vunpack.c.l.b16 %v3043
        %v4288 = vunpack.c.h.b16 %v3043
        %v4289 = vunpack.c.l.b16 %v3044
        %v4290 = vunpack.c.h.b16 %v3044
        %v4291 = vunpack.c.l.b16 %v3045
        %v4292 = vunpack.c.h.b16 %v3045
        %v4293 = vunpack.c.l.b16 %v3046
        %v4294 = vunpack.c.h.b16 %v3046
        %v4295 = vunpack.c.l.b16 %v3047
        %v4296 = vunpack.c.h.b16 %v3047
        %v4297 = vunpack.c.l.b16 %v3048
        %v4298 = vunpack.c.h.b16 %v3048
        %v4299 = vunpack.c.l.b16 %v3049
        %v4300 = vunpack.c.h.b16 %v3049
        %v4301 = vunpack.c.l.b16 %v3050
        %v4302 = vunpack.c.h.b16 %v3050
        %v4303 = vunpack.c.l.b16 %v3051
        %v4304 = vunpack.c.h.b16 %v3051
        %v4305 = vunpack.c.l.b16 %v3052
        %v4306 = vunpack.c.h.b16 %v3052
        %v4307 = vunpack.c.l.b16 %v3053
        %v4308 = vunpack.c.h.b16 %v3053
        %v4309 = vunpack.c.l.b16 %v3054
        %v4310 = vunpack.c.h.b16 %v3054
        %v4311 = vunpack.c.l.b16 %v3055
        %v4312 = vunpack.c.h.b16 %v3055
        %v4313 = vunpack.c.l.b16 %v3056
        %v4314 = vunpack.c.h.b16 %v3056
        %v4315 = vunpack.c.l.b16 %v3057
        %v4316 = vunpack.c.h.b16 %v3057
        %v4317 = vunpack.c.l.b16 %v3058
        %v4318 = vunpack.c.h.b16 %v3058
        %v4319 = vunpack.c.l.b16 %v3059
        %v4320 = vunpack.c.h.b16 %v3059
        %v4321 = vunpack.c.l.b16 %v3060
        %v4322 = vunpack.c.h.b16 %v3060
        %v4323 = vunpack.c.l.b16 %v3061
        %v4324 = vunpack.c.h.b16 %v3061
        %v4325 = vunpack.c.l.b16 %v3062
        %v4326 = vunpack.c.h.b16 %v3062
        %v4327 = vunpack.c.l.b16 %v3063
        %v4328 = vunpack.c.h.b16 %v3063
        %v4329 = vunpack.c.l.b16 %v3064
        %v4330 = vunpack.c.h.b16 %v3064
        %v4331 = vunpack.c.l.b16 %v3065
        %v4332 = vunpack.c.h.b16 %v3065
        %v4333 = vunpack.c.l.b16 %v3066
        %v4334 = vunpack.c.h.b16 %v3066
        %v4335 = vunpack.c.l.b16 %v3067
        %v4336 = vunpack.c.h.b16 %v3067
        %v4337 = vunpack.c.l.b16 %v3068
        %v4338 = vunpack.c.h.b16 %v3068
        %v4339 = vunpack.c.l.b16 %v3069
        %v4340 = vunpack.c.h.b16 %v3069
        %v4341 = vunpack.c.l.b16 %v3070
        %v4342 = vunpack.c.h.b16 %v3070
        %v4343 = vunpack.c.l.b16 %v3071
        %v4344 = vunpack.c.h.b16 %v3071
        %v4345 = vunpack.c.l.b16 %v3072
        %v4346 = vunpack.c.h.b16 %v3072
        %v4347 = vunpack.c.l.b16 %v3073
        %v4348 = vunpack.c.h.b16 %v3073
        %v4349 = vunpack.c.l.b16 %v3074
        %v4350 = vunpack.c.h.b16 %v3074
        %v4351 = vunpack.c.l.b16 %v3075
        %v4352 = vunpack.c.h.b16 %v3075
        %v4353 = vunpack.c.l.b16 %v3076
        %v4354 = vunpack.c.h.b16 %v3076
        %v4355 = vunpack.c.l.b16 %v3077
        %v4356 = vunpack.c.h.b16 %v3077
        %v4357 = vunpack.c.l.b16 %v3078
        %v4358 = vunpack.c.h.b16 %v3078
        %v4359 = vunpack.c.l.b16 %v3079
        %v4360 = vunpack.c.h.b16 %v3079
        %v4361 = vunpack.c.l.b16 %v3080
        %v4362 = vunpack.c.h.b16 %v3080
        %v4363 = vunpack.c.l.b16 %v3081
        %v4364 = vunpack.c.h.b16 %v3081
        %v4365 = vunpack.c.l.b16 %v3082
        %v4366 = vunpack.c.h.b16 %v3082
        %v4367 = vunpack.c.l.b16 %v3083
        %v4368 = vunpack.c.h.b16 %v3083
        %v4369 = vunpack.c.l.b16 %v3084
        %v4370 = vunpack.c.h.b16 %v3084
        %v4371 = vunpack.c.l.b16 %v3085
        %v4372 = vunpack.c.h.b16 %v3085
        %v4373 = vunpack.c.l.b16 %v3086
        %v4374 = vunpack.c.h.b16 %v3086
        %v4375 = vunpack.c.l.b16 %v3087
        %v4376 = vunpack.c.h.b16 %v3087
        %v4377 = vunpack.c.l.b16 %v3088
        %v4378 = vunpack.c.h.b16 %v3088
        %v4379 = vunpack.c.l.b16 %v3089
        %v4380 = vunpack.c.h.b16 %v3089
        %v4381 = vunpack.c.l.b16 %v3090
        %v4382 = vunpack.c.h.b16 %v3090
        %v4383 = vunpack.c.l.b16 %v3091
        %v4384 = vunpack.c.h.b16 %v3091
        %v4385 = vunpack.c.l.b16 %v3092
        %v4386 = vunpack.c.h.b16 %v3092
        %v4387 = vunpack.c.l.b16 %v3093
        %v4388 = vunpack.c.h.b16 %v3093
        %v4389 = vunpack.c.l.b16 %v3094
        %v4390 = vunpack.c.h.b16 %v3094
        %v4391 = vunpack.c.l.b16 %v3095
        %v4392 = vunpack.c.h.b16 %v3095
        %v4393 = vunpack.c.l.b16 %v3096
        %v4394 = vunpack.c.h.b16 %v3096
        %v4395 = vunpack.c.l.b16 %v3097
        %v4396 = vunpack.c.h.b16 %v3097
        %v4397 = vunpack.c.l.b16 %v3098
        %v4398 = vunpack.c.h.b16 %v3098
        %v4399 = vunpack.c.l.b16 %v3099
        %v4400 = vunpack.c.h.b16 %v3099
        %v4401 = vunpack.c.l.b16 %v3100
        %v4402 = vunpack.c.h.b16 %v3100
        %v4403 = vunpack.c.l.b16 %v3101
        %v4404 = vunpack.c.h.b16 %v3101
        %v4405 = vunpack.c.l.b16 %v3102
        %v4406 = vunpack.c.h.b16 %v3102
        %v4407 = vunpack.c.l.b16 %v3103
        %v4408 = vunpack.c.h.b16 %v3103
        %v4409 = vunpack.c.l.b16 %v3104
        %v4410 = vunpack.c.h.b16 %v3104
        %v4411 = vunpack.c.l.b16 %v3105
        %v4412 = vunpack.c.h.b16 %v3105
        %v4413 = vunpack.c.l.b16 %v3106
        %v4414 = vunpack.c.h.b16 %v3106
        %v4415 = vunpack.c.l.b16 %v3107
        %v4416 = vunpack.c.h.b16 %v3107
        %v4417 = vunpack.c.l.b16 %v3108
        %v4418 = vunpack.c.h.b16 %v3108
        %v4419 = vunpack.c.l.b16 %v3109
        %v4420 = vunpack.c.h.b16 %v3109
        %v4421 = vunpack.c.l.b16 %v3110
        %v4422 = vunpack.c.h.b16 %v3110
        %v4423 = vunpack.c.l.b16 %v3111
        %v4424 = vunpack.c.h.b16 %v3111
        %v4425 = vunpack.c.l.b16 %v3112
        %v4426 = vunpack.c.h.b16 %v3112
        %v4427 = vunpack.c.l.b16 %v3113
        %v4428 = vunpack.c.h.b16 %v3113
        %v4429 = vunpack.c.l.b16 %v3114
        %v4430 = vunpack.c.h.b16 %v3114
        %v4431 = vunpack.c.l.b16 %v3115
        %v4432 = vunpack.c.h.b16 %v3115
        %v4433 = vunpack.c.l.b16 %v3116
        %v4434 = vunpack.c.h.b16 %v3116
        %v4435 = vunpack.c.l.b16 %v3117
        %v4436 = vunpack.c.h.b16 %v3117
        %v4437 = vunpack.c.l.b16 %v3118
        %v4438 = vunpack.c.h.b16 %v3118
        %v4439 = vunpack.c.l.b16 %v3119
        %v4440 = vunpack.c.h.b16 %v3119
        %v4441 = vunpack.c.l.b16 %v3120
        %v4442 = vunpack.c.h.b16 %v3120
        %v4443 = vunpack.c.l.b16 %v3121
        %v4444 = vunpack.c.h.b16 %v3121
        %v4445 = vunpack.c.l.b16 %v3122
        %v4446 = vunpack.c.h.b16 %v3122
        %v4447 = vunpack.c.l.b16 %v3123
        %v4448 = vunpack.c.h.b16 %v3123
        %v4449 = vunpack.c.l.b16 %v3124
        %v4450 = vunpack.c.h.b16 %v3124
        %v4451 = vunpack.c.l.b16 %v3125
        %v4452 = vunpack.c.h.b16 %v3125
        %v4453 = vunpack.c.l.b16 %v3126
        %v4454 = vunpack.c.h.b16 %v3126
        %v4455 = vunpack.c.l.b16 %v3127
        %v4456 = vunpack.c.h.b16 %v3127
        %v4457 = vunpack.c.l.b16 %v3128
        %v4458 = vunpack.c.h.b16 %v3128
        %v4459 = vunpack.c.l.b16 %v3129
        %v4460 = vunpack.c.h.b16 %v3129
        %v4461 = vunpack.c.l.b16 %v3130
        %v4462 = vunpack.c.h.b16 %v3130
        %v4463 = vunpack.c.l.b16 %v3131
        %v4464 = vunpack.c.h.b16 %v3131
        %v4465 = vunpack.c.l.b16 %v3132
        %v4466 = vunpack.c.h.b16 %v3132
        %v4467 = vunpack.c.l.b16 %v3133
        %v4468 = vunpack.c.h.b16 %v3133
        %v4469 = vunpack.c.l.b16 %v3134
        %v4470 = vunpack.c.h.b16 %v3134
        %v4471 = vunpack.c.l.b16 %v3135
        %v4472 = vunpack.c.h.b16 %v3135
        %v4473 = vunpack.c.l.b16 %v3136
        %v4474 = vunpack.c.h.b16 %v3136
        %v4475 = vunpack.c.l.b16 %v3137
        %v4476 = vunpack.c.h.b16 %v3137
        %v4477 = vunpack.c.l.b16 %v3138
        %v4478 = vunpack.c.h.b16 %v3138
        %v4479 = vunpack.c.l.b16 %v3139
        %v4480 = vunpack.c.h.b16 %v3139
        %v4481 = vunpack.c.l.b16 %v3140
        %v4482 = vunpack.c.h.b16 %v3140
        %v4483 = vunpack.c.l.b16 %v3141
        %v4484 = vunpack.c.h.b16 %v3141
        %v4485 = vunpack.c.l.b16 %v3142
        %v4486 = vunpack.c.h.b16 %v3142
        %v4487 = vunpack.c.l.b16 %v3143
        %v4488 = vunpack.c.h.b16 %v3143
        %v4489 = vunpack.c.l.b16 %v3144
        %v4490 = vunpack.c.h.b16 %v3144
        %v4491 = vunpack.c.l.b16 %v3145
        %v4492 = vunpack.c.h.b16 %v3145
        %v4493 = vunpack.c.l.b16 %v3146
        %v4494 = vunpack.c.h.b16 %v3146
        %v4495 = vunpack.c.l.b16 %v3147
        %v4496 = vunpack.c.h.b16 %v3147
        %v4497 = vunpack.c.l.b16 %v3148
        %v4498 = vunpack.c.h.b16 %v3148
        %v4499 = vunpack.c.l.b16 %v3149
        %v4500 = vunpack.c.h.b16 %v3149
        %v4501 = vunpack.c.l.b16 %v3150
        %v4502 = vunpack.c.h.b16 %v3150
        %v4503 = vunpack.c.l.b16 %v3151
        %v4504 = vunpack.c.h.b16 %v3151
        %v4505 = vunpack.c.l.b16 %v3152
        %v4506 = vunpack.c.h.b16 %v3152
        %v4507 = vunpack.c.l.b16 %v3153
        %v4508 = vunpack.c.h.b16 %v3153
        %v4509 = vunpack.c.l.b16 %v3154
        %v4510 = vunpack.c.h.b16 %v3154
        %v4511 = vunpack.c.l.b16 %v3155
        %v4512 = vunpack.c.h.b16 %v3155
        %v4513 = vunpack.c.l.b16 %v3156
        %v4514 = vunpack.c.h.b16 %v3156
        %v4515 = vunpack.c.l.b16 %v3157
        %v4516 = vunpack.c.h.b16 %v3157
        %v4517 = vunpack.c.l.b16 %v3158
        %v4518 = vunpack.c.h.b16 %v3158
        %v4519 = vunpack.c.l.b16 %v3159
        %v4520 = vunpack.c.h.b16 %v3159
        %v4521 = vunpack.c.l.b16 %v3160
        %v4522 = vunpack.c.h.b16 %v3160
        %v4523 = vunpack.c.l.b16 %v3161
        %v4524 = vunpack.c.h.b16 %v3161
        %v4525 = vunpack.c.l.b16 %v3162
        %v4526 = vunpack.c.h.b16 %v3162
        %v4527 = vunpack.c.l.b16 %v3163
        %v4528 = vunpack.c.h.b16 %v3163
        %v4529 = vunpack.c.l.b16 %v3164
        %v4530 = vunpack.c.h.b16 %v3164
        %v4531 = vunpack.c.l.b16 %v3165
        %v4532 = vunpack.c.h.b16 %v3165
        %v4533 = vunpack.c.l.b16 %v3166
        %v4534 = vunpack.c.h.b16 %v3166
        %v4535 = vunpack.c.l.b16 %v3167
        %v4536 = vunpack.c.h.b16 %v3167
        %v4537 = vunpack.c.l.b16 %v3168
        %v4538 = vunpack.c.h.b16 %v3168
        %v4539 = vunpack.c.l.b16 %v3169
        %v4540 = vunpack.c.h.b16 %v3169
        %v4541 = vunpack.c.l.b16 %v3170
        %v4542 = vunpack.c.h.b16 %v3170
        %v4543 = vunpack.c.l.b16 %v3171
        %v4544 = vunpack.c.h.b16 %v3171
        %v4545 = vunpack.c.l.b16 %v3172
        %v4546 = vunpack.c.h.b16 %v3172
        %v4547 = vunpack.c.l.b16 %v3173
        %v4548 = vunpack.c.h.b16 %v3173
        %v4549 = vunpack.c.l.b16 %v3174
        %v4550 = vunpack.c.h.b16 %v3174
        %v4551 = vunpack.c.l.b16 %v3175
        %v4552 = vunpack.c.h.b16 %v3175
        %v4553 = vunpack.c.l.b16 %v3176
        %v4554 = vunpack.c.h.b16 %v3176
        %v4555 = vunpack.c.l.b16 %v3177
        %v4556 = vunpack.c.h.b16 %v3177
        %v4557 = vunpack.c.l.b16 %v3178
        %v4558 = vunpack.c.h.b16 %v3178
        %v4559 = vunpack.c.l.b16 %v3179
        %v4560 = vunpack.c.h.b16 %v3179
        %v4561 = vunpack.c.l.b16 %v3180
        %v4562 = vunpack.c.h.b16 %v3180
        %v4563 = vunpack.c.l.b16 %v3181
        %v4564 = vunpack.c.h.b16 %v3181
        %v4565 = vunpack.c.l.b16 %v3182
        %v4566 = vunpack.c.h.b16 %v3182
        %v4567 = vunpack.c.l.b16 %v3183
        %v4568 = vunpack.c.h.b16 %v3183
        %v4569 = vunpack.c.l.b16 %v3184
        %v4570 = vunpack.c.h.b16 %v3184
        %v4571 = vunpack.c.l.b16 %v3185
        %v4572 = vunpack.c.h.b16 %v3185
        %v4573 = vunpack.c.l.b16 %v3186
        %v4574 = vunpack.c.h.b16 %v3186
        %v4575 = vunpack.c.l.b16 %v3187
        %v4576 = vunpack.c.h.b16 %v3187
        %v4577 = vunpack.c.l.b16 %v3188
        %v4578 = vunpack.c.h.b16 %v3188
        %v4579 = vunpack.c.l.b16 %v3189
        %v4580 = vunpack.c.h.b16 %v3189
        %v4581 = vunpack.c.l.b16 %v3190
        %v4582 = vunpack.c.h.b16 %v3190
        %v4583 = vunpack.c.l.b16 %v3191
        %v4584 = vunpack.c.h.b16 %v3191
        %v4585 = vunpack.c.l.b16 %v3192
        %v4586 = vunpack.c.h.b16 %v3192
        %v4587 = vunpack.c.l.b16 %v3193
        %v4588 = vunpack.c.h.b16 %v3193
        %v4589 = vunpack.c.l.b16 %v3194
        %v4590 = vunpack.c.h.b16 %v3194
        %v4591 = vunpack.c.l.b16 %v3195
        %v4592 = vunpack.c.h.b16 %v3195
        %v4593 = vunpack.c.l.b16 %v3196
        %v4594 = vunpack.c.h.b16 %v3196
        %v4595 = vunpack.c.l.b16 %v3197
        %v4596 = vunpack.c.h.b16 %v3197
        %v4597 = vunpack.c.l.b16 %v3198
        %v4598 = vunpack.c.h.b16 %v3198
        %v4599 = vunpack.c.l.b16 %v3199
        %v4600 = vunpack.c.h.b16 %v3199
        %v4601 = vunpack.c.l.b16 %v3200
        %v4602 = vunpack.c.h.b16 %v3200
        %v4603 = vunpack.c.l.b16 %v3201
        %v4604 = vunpack.c.h.b16 %v3201
        %v4605 = vunpack.c.l.b16 %v3202
        %v4606 = vunpack.c.h.b16 %v3202
        %v4607 = vunpack.c.l.b16 %v3203
        %v4608 = vunpack.c.h.b16 %v3203
        %v4609 = vunpack.c.l.b16 %v3204
        %v4610 = vunpack.c.h.b16 %v3204
        %v4611 = vunpack.c.l.b16 %v3205
        %v4612 = vunpack.c.h.b16 %v3205
        %v4613 = vunpack.c.l.b16 %v3206
        %v4614 = vunpack.c.h.b16 %v3206
        %v4615 = vunpack.c.l.b16 %v3207
        %v4616 = vunpack.c.h.b16 %v3207
        %v4617 = vunpack.c.l.b16 %v3208
        %v4618 = vunpack.c.h.b16 %v3208
        %v4619 = vunpack.c.l.b16 %v3209
        %v4620 = vunpack.c.h.b16 %v3209
        %v4621 = vunpack.c.l.b16 %v3210
        %v4622 = vunpack.c.h.b16 %v3210
        %v4623 = vunpack.c.l.b16 %v3211
        %v4624 = vunpack.c.h.b16 %v3211
        %v4625 = vunpack.c.l.b16 %v3212
        %v4626 = vunpack.c.h.b16 %v3212
        %v4627 = vunpack.c.l.b16 %v3213
        %v4628 = vunpack.c.h.b16 %v3213
        %v4629 = vunpack.c.l.b16 %v3214
        %v4630 = vunpack.c.h.b16 %v3214
        %v4631 = vunpack.c.l.b16 %v3215
        %v4632 = vunpack.c.h.b16 %v3215
        %v4633 = vunpack.c.l.b16 %v3216
        %v4634 = vunpack.c.h.b16 %v3216
        %v4635 = vunpack.c.l.b16 %v3217
        %v4636 = vunpack.c.h.b16 %v3217
        %v4637 = vunpack.c.l.b16 %v3218
        %v4638 = vunpack.c.h.b16 %v3218
        %v4639 = vunpack.c.l.b16 %v3219
        %v4640 = vunpack.c.h.b16 %v3219
        %v4641 = vunpack.c.l.b16 %v3220
        %v4642 = vunpack.c.h.b16 %v3220
        %v4643 = vunpack.c.l.b16 %v3221
        %v4644 = vunpack.c.h.b16 %v3221
        %v4645 = vunpack.c.l.b16 %v3222
        %v4646 = vunpack.c.h.b16 %v3222
        %v4647 = vunpack.c.l.b16 %v3223
        %v4648 = vunpack.c.h.b16 %v3223
        %v4649 = vunpack.c.l.b16 %v3224
        %v4650 = vunpack.c.h.b16 %v3224
        %v4651 = vunpack.c.l.b16 %v3225
        %v4652 = vunpack.c.h.b16 %v3225
        %v4653 = vunpack.c.l.b16 %v3226
        %v4654 = vunpack.c.h.b16 %v3226
        %v4655 = vunpack.c.l.b16 %v3227
        %v4656 = vunpack.c.h.b16 %v3227
        %v4657 = vunpack.c.l.b16 %v3228
        %v4658 = vunpack.c.h.b16 %v3228
        %v4659 = vunpack.c.l.b16 %v3229
        %v4660 = vunpack.c.h.b16 %v3229
        %v4661 = vunpack.c.l.b16 %v3230
        %v4662 = vunpack.c.h.b16 %v3230
        %v4663 = vunpack.c.l.b16 %v3231
        %v4664 = vunpack.c.h.b16 %v3231
        %v4665 = vunpack.c.l.b16 %v3232
        %v4666 = vunpack.c.h.b16 %v3232
        %v4667 = vunpack.c.l.b16 %v3233
        %v4668 = vunpack.c.h.b16 %v3233
        %v4669 = vunpack.c.l.b16 %v3234
        %v4670 = vunpack.c.h.b16 %v3234
        %v4671 = vunpack.c.l.b16 %v3235
        %v4672 = vunpack.c.h.b16 %v3235
        %v4673 = vunpack.c.l.b16 %v3236
        %v4674 = vunpack.c.h.b16 %v3236
        %v4675 = vunpack.c.l.b16 %v3237
        %v4676 = vunpack.c.h.b16 %v3237
        %v4677 = vunpack.c.l.b16 %v3238
        %v4678 = vunpack.c.h.b16 %v3238
        %v4679 = vunpack.c.l.b16 %v3239
        %v4680 = vunpack.c.h.b16 %v3239
        %v4681 = vunpack.c.l.b16 %v3240
        %v4682 = vunpack.c.h.b16 %v3240
        %v4683 = vunpack.c.l.b16 %v3241
        %v4684 = vunpack.c.h.b16 %v3241
        %v4685 = vunpack.c.l.b16 %v3242
        %v4686 = vunpack.c.h.b16 %v3242
        %v4687 = vunpack.c.l.b16 %v3243
        %v4688 = vunpack.c.h.b16 %v3243
        %v4689 = vunpack.c.l.b16 %v3244
        %v4690 = vunpack.c.h.b16 %v3244
        %v4691 = vunpack.c.l.b16 %v3245
        %v4692 = vunpack.c.h.b16 %v3245
        %v4693 = vunpack.c.l.b16 %v3246
        %v4694 = vunpack.c.h.b16 %v3246
        %v4695 = vunpack.c.l.b16 %v3247
        %v4696 = vunpack.c.h.b16 %v3247
        %v4697 = vunpack.c.l.b16 %v3248
        %v4698 = vunpack.c.h.b16 %v3248
        %v4699 = vunpack.c.l.b16 %v3249
        %v4700 = vunpack.c.h.b16 %v3249
        %v4701 = vunpack.c.l.b16 %v3250
        %v4702 = vunpack.c.h.b16 %v3250
        %v4703 = vunpack.c.l.b16 %v3251
        %v4704 = vunpack.c.h.b16 %v3251
        %v4705 = vunpack.c.l.b16 %v3252
        %v4706 = vunpack.c.h.b16 %v3252
        %v4707 = vunpack.c.l.b16 %v3253
        %v4708 = vunpack.c.h.b16 %v3253
        %v4709 = vunpack.c.l.b16 %v3254
        %v4710 = vunpack.c.h.b16 %v3254
        %v4711 = vunpack.c.l.b16 %v3255
        %v4712 = vunpack.c.h.b16 %v3255
        %v4713 = vunpack.c.l.b16 %v3256
        %v4714 = vunpack.c.h.b16 %v3256
        %v4715 = vunpack.c.l.b16 %v3257
        %v4716 = vunpack.c.h.b16 %v3257
        %v4717 = vunpack.c.l.b16 %v3258
        %v4718 = vunpack.c.h.b16 %v3258
        %v4719 = vunpack.c.l.b16 %v3259
        %v4720 = vunpack.c.h.b16 %v3259
        %v4721 = vunpack.c.l.b16 %v3260
        %v4722 = vunpack.c.h.b16 %v3260
        %v4723 = vunpack.c.l.b16 %v3261
        %v4724 = vunpack.c.h.b16 %v3261
        %v4725 = vunpack.c.l.b16 %v3262
        %v4726 = vunpack.c.h.b16 %v3262
        %v4727 = vunpack.c.l.b16 %v3263
        %v4728 = vunpack.c.h.b16 %v3263
        %v4729 = vunpack.c.l.b16 %v3264
        %v4730 = vunpack.c.h.b16 %v3264
        %v4731 = vunpack.c.l.b16 %v3265
        %v4732 = vunpack.c.h.b16 %v3265
        %v4733 = vunpack.c.l.b16 %v3266
        %v4734 = vunpack.c.h.b16 %v3266
        %v4735 = vunpack.c.l.b16 %v3267
        %v4736 = vunpack.c.h.b16 %v3267
        %v4737 = vunpack.c.l.b16 %v3268
        %v4738 = vunpack.c.h.b16 %v3268
        %v4739 = vunpack.c.l.b16 %v3269
        %v4740 = vunpack.c.h.b16 %v3269
        %v4741 = vunpack.c.l.b16 %v3270
        %v4742 = vunpack.c.h.b16 %v3270
        %v4743 = vunpack.c.l.b16 %v3271
        %v4744 = vunpack.c.h.b16 %v3271
        %v4745 = vunpack.c.l.b16 %v3272
        %v4746 = vunpack.c.h.b16 %v3272
        %v4747 = vunpack.c.l.b16 %v3273
        %v4748 = vunpack.c.h.b16 %v3273
        %v4749 = vunpack.c.l.b16 %v3274
        %v4750 = vunpack.c.h.b16 %v3274
        %v4751 = vunpack.c.l.b16 %v3275
        %v4752 = vunpack.c.h.b16 %v3275
        %v4753 = vunpack.c.l.b16 %v3276
        %v4754 = vunpack.c.h.b16 %v3276
        %v4755 = vunpack.c.l.b16 %v3277
        %v4756 = vunpack.c.h.b16 %v3277
        %v4757 = vunpack.c.l.b16 %v3278
        %v4758 = vunpack.c.h.b16 %v3278
        %v4759 = vunpack.c.l.b16 %v3279
        %v4760 = vunpack.c.h.b16 %v3279
        %v4761 = vunpack.c.l.b16 %v3280
        %v4762 = vunpack.c.h.b16 %v3280
        %v4763 = vunpack.c.l.b16 %v3281
        %v4764 = vunpack.c.h.b16 %v3281
        %v4765 = vunpack.c.l.b16 %v3282
        %v4766 = vunpack.c.h.b16 %v3282
        %v4767 = vunpack.c.l.b16 %v3283
        %v4768 = vunpack.c.h.b16 %v3283
        %v4769 = vunpack.c.l.b16 %v3284
        %v4770 = vunpack.c.h.b16 %v3284
        %v4771 = vunpack.c.l.b16 %v3285
        %v4772 = vunpack.c.h.b16 %v3285
        %v4773 = vunpack.c.l.b16 %v3286
        %v4774 = vunpack.c.h.b16 %v3286
        %v4775 = vunpack.c.l.b16 %v3287
        %v4776 = vunpack.c.h.b16 %v3287
        %v4777 = vunpack.c.l.b16 %v3288
        %v4778 = vunpack.c.h.b16 %v3288
        %v4779 = vunpack.c.l.b16 %v3289
        %v4780 = vunpack.c.h.b16 %v3289
        %v4781 = vunpack.c.l.b16 %v3290
        %v4782 = vunpack.c.h.b16 %v3290
        %v4783 = vunpack.c.l.b16 %v3291
        %v4784 = vunpack.c.h.b16 %v3291
        %v4785 = vunpack.c.l.b16 %v3292
        %v4786 = vunpack.c.h.b16 %v3292
        %v4787 = vunpack.c.l.b16 %v3293
        %v4788 = vunpack.c.h.b16 %v3293
        %v4789 = vunpack.c.l.b16 %v3294
        %v4790 = vunpack.c.h.b16 %v3294
        %v4791 = vunpack.c.l.b16 %v3295
        %v4792 = vunpack.c.h.b16 %v3295
        %v4793 = vunpack.c.l.b16 %v3296
        %v4794 = vunpack.c.h.b16 %v3296
        %v4795 = vunpack.c.l.b16 %v3297
        %v4796 = vunpack.c.h.b16 %v3297
        %v4797 = vunpack.c.l.b16 %v3298
        %v4798 = vunpack.c.h.b16 %v3298
        %v4799 = vunpack.c.l.b16 %v3299
        %v4800 = vunpack.c.h.b16 %v3299
        %v4801 = vunpack.c.l.b16 %v3300
        %v4802 = vunpack.c.h.b16 %v3300
        %v4803 = vunpack.c.l.b16 %v3301
        %v4804 = vunpack.c.h.b16 %v3301
        %v4805 = vunpack.c.l.b16 %v3302
        %v4806 = vunpack.c.h.b16 %v3302
        %v4807 = vunpack.c.l.b16 %v3303
        %v4808 = vunpack.c.h.b16 %v3303
        %v4809 = vunpack.c.l.b16 %v3304
        %v4810 = vunpack.c.h.b16 %v3304
        %v4811 = vunpack.c.l.b16 %v3305
        %v4812 = vunpack.c.h.b16 %v3305
        %v4813 = vunpack.c.l.b16 %v3306
        %v4814 = vunpack.c.h.b16 %v3306
        %v4815 = vunpack.c.l.b16 %v3307
        %v4816 = vunpack.c.h.b16 %v3307
        %v4817 = vunpack.c.l.b16 %v3308
        %v4818 = vunpack.c.h.b16 %v3308
        %v4819 = vunpack.c.l.b16 %v3309
        %v4820 = vunpack.c.h.b16 %v3309
        %v4821 = vunpack.c.l.b16 %v3310
        %v4822 = vunpack.c.h.b16 %v3310
        %v4823 = vunpack.c.l.b16 %v3311
        %v4824 = vunpack.c.h.b16 %v3311
        %v4825 = vunpack.c.l.b16 %v3312
        %v4826 = vunpack.c.h.b16 %v3312
        %v4827 = vunpack.c.l.b16 %v3313
        %v4828 = vunpack.c.h.b16 %v3313
        %v4829 = vunpack.c.l.b16 %v3314
        %v4830 = vunpack.c.h.b16 %v3314
        %v4831 = vunpack.c.l.b16 %v3315
        %v4832 = vunpack.c.h.b16 %v3315
        %v4833 = vunpack.c.l.b16 %v3316
        %v4834 = vunpack.c.h.b16 %v3316
        %v4835 = vunpack.c.l.b16 %v3317
        %v4836 = vunpack.c.h.b16 %v3317
        %v4837 = vunpack.c.l.b16 %v3318
        %v4838 = vunpack.c.h.b16 %v3318
        %v4839 = vunpack.c.l.b16 %v3319
        %v4840 = vunpack.c.h.b16 %v3319
        %v4841 = vunpack.c.l.b16 %v3320
        %v4842 = vunpack.c.h.b16 %v3320
        %v4843 = vunpack.c.l.b16 %v3321
        %v4844 = vunpack.c.h.b16 %v3321
        %v4845 = vunpack.c.l.b16 %v3322
        %v4846 = vunpack.c.h.b16 %v3322
        %v4847 = vunpack.c.l.b16 %v3323
        %v4848 = vunpack.c.h.b16 %v3323
        %v4849 = vunpack.c.l.b16 %v3324
        %v4850 = vunpack.c.h.b16 %v3324
        %v4851 = vunpack.c.l.b16 %v3325
        %v4852 = vunpack.c.h.b16 %v3325
        %v4853 = vunpack.c.l.b16 %v3326
        %v4854 = vunpack.c.h.b16 %v3326
        %v4855 = vunpack.c.l.b16 %v3327
        %v4856 = vunpack.c.h.b16 %v3327
        %v4857 = vunpack.c.l.b16 %v3328
        %v4858 = vunpack.c.h.b16 %v3328
        %v4859 = vunpack.c.l.b16 %v3329
        %v4860 = vunpack.c.h.b16 %v3329
        %v4861 = vunpack.c.l.b16 %v3330
        %v4862 = vunpack.c.h.b16 %v3330
        %v4863 = vunpack.c.l.b16 %v3331
        %v4864 = vunpack.c.h.b16 %v3331
        %v4865 = vunpack.c.l.b16 %v3332
        %v4866 = vunpack.c.h.b16 %v3332
        %v4867 = vunpack.c.l.b16 %v3333
        %v4868 = vunpack.c.h.b16 %v3333
        %v4869 = vunpack.c.l.b16 %v3334
        %v4870 = vunpack.c.h.b16 %v3334
        %v4871 = vpack.c.b16 %v3879, %v3847
        %v4872 = vpack.c.b16 %v3880, %v3848
        %v4873 = vpack.c.b16 %v3881, %v3849
        %v4874 = vpack.c.b16 %v3882, %v3850
        %v4875 = vpack.c.b16 %v3883, %v3851
        %v4876 = vpack.c.b16 %v3884, %v3852
        %v4877 = vpack.c.b16 %v3885, %v3853
        %v4878 = vpack.c.b16 %v3886, %v3854
        %v4879 = vpack.c.b16 %v3887, %v3855
        %v4880 = vpack.c.b16 %v3888, %v3856
        %v4881 = vpack.c.b16 %v3889, %v3857
        %v4882 = vpack.c.b16 %v3890, %v3858
        %v4883 = vpack.c.b16 %v3891, %v3859
        %v4884 = vpack.c.b16 %v3892, %v3860
        %v4885 = vpack.c.b16 %v3893, %v3861
        %v4886 = vpack.c.b16 %v3894, %v3862
        %v4887 = vpack.c.b16 %v3895, %v3863
        %v4888 = vpack.c.b16 %v3896, %v3864
        %v4889 = vpack.c.b16 %v3897, %v3865
        %v4890 = vpack.c.b16 %v3898, %v3866
        %v4891 = vpack.c.b16 %v3899, %v3867
        %v4892 = vpack.c.b16 %v3900, %v3868
        %v4893 = vpack.c.b16 %v3901, %v3869
        %v4894 = vpack.c.b16 %v3902, %v3870
        %v4895 = vpack.c.b16 %v3903, %v3871
        %v4896 = vpack.c.b16 %v3904, %v3872
        %v4897 = vpack.c.b16 %v3905, %v3873
        %v4898 = vpack.c.b16 %v3906, %v3874
        %v4899 = vpack.c.b16 %v3907, %v3875
        %v4900 = vpack.c.b16 %v3908, %v3876
        %v4901 = vpack.c.b16 %v3909, %v3877
        %v4902 = vpack.c.b16 %v3910, %v3878
        %v4903 = vpack.c.b16 %v3943, %v3911
        %v4904 = vpack.c.b16 %v3944, %v3912
        %v4905 = vpack.c.b16 %v3945, %v3913
        %v4906 = vpack.c.b16 %v3946, %v3914
        %v4907 = vpack.c.b16 %v3947, %v3915
        %v4908 = vpack.c.b16 %v3948, %v3916
        %v4909 = vpack.c.b16 %v3949, %v3917
        %v4910 = vpack.c.b16 %v3950, %v3918
        %v4911 = vpack.c.b16 %v3951, %v3919
        %v4912 = vpack.c.b16 %v3952, %v3920
        %v4913 = vpack.c.b16 %v3953, %v3921
        %v4914 = vpack.c.b16 %v3954, %v3922
        %v4915 = vpack.c.b16 %v3955, %v3923
        %v4916 = vpack.c.b16 %v3956, %v3924
        %v4917 = vpack.c.b16 %v3957, %v3925
        %v4918 = vpack.c.b16 %v3958, %v3926
        %v4919 = vpack.c.b16 %v3959, %v3927
        %v4920 = vpack.c.b16 %v3960, %v3928
        %v4921 = vpack.c.b16 %v3961, %v3929
        %v4922 = vpack.c.b16 %v3962, %v3930
        %v4923 = vpack.c.b16 %v3963, %v3931
        %v4924 = vpack.c.b16 %v3964, %v3932
        %v4925 = vpack.c.b16 %v3965, %v3933
        %v4926 = vpack.c.b16 %v3966, %v3934
        %v4927 = vpack.c.b16 %v3967, %v3935
        %v4928 = vpack.c.b16 %v3968, %v3936
        %v4929 = vpack.c.b16 %v3969, %v3937
        %v4930 = vpack.c.b16 %v3970, %v3938
        %v4931 = vpack.c.b16 %v3971, %v3939
        %v4932 = vpack.c.b16 %v3972, %v3940
        %v4933 = vpack.c.b16 %v3973, %v3941
        %v4934 = vpack.c.b16 %v3974, %v3942
        %v4935 = vpack.c.b16 %v4007, %v3975
        %v4936 = vpack.c.b16 %v4008, %v3976
        %v4937 = vpack.c.b16 %v4009, %v3977
        %v4938 = vpack.c.b16 %v4010, %v3978
        %v4939 = vpack.c.b16 %v4011, %v3979
        %v4940 = vpack.c.b16 %v4012, %v3980
        %v4941 = vpack.c.b16 %v4013, %v3981
        %v4942 = vpack.c.b16 %v4014, %v3982
        %v4943 = vpack.c.b16 %v4015, %v3983
        %v4944 = vpack.c.b16 %v4016, %v3984
        %v4945 = vpack.c.b16 %v4017, %v3985
        %v4946 = vpack.c.b16 %v4018, %v3986
        %v4947 = vpack.c.b16 %v4019, %v3987
        %v4948 = vpack.c.b16 %v4020, %v3988
        %v4949 = vpack.c.b16 %v4021, %v3989
        %v4950 = vpack.c.b16 %v4022, %v3990
        %v4951 = vpack.c.b16 %v4023, %v3991
        %v4952 = vpack.c.b16 %v4024, %v3992
        %v4953 = vpack.c.b16 %v4025, %v3993
        %v4954 = vpack.c.b16 %v4026, %v3994
        %v4955 = vpack.c.b16 %v4027, %v3995
        %v4956 = vpack.c.b16 %v4028, %v3996
        %v4957 = vpack.c.b16 %v4029, %v3997
        %v4958 = vpack.c.b16 %v4030, %v3998
        %v4959 = vpack.c.b16 %v4031, %v3999
        %v4960 = vpack.c.b16 %v4032, %v4000
        %v4961 = vpack.c.b16 %v4033, %v4001
        %v4962 = vpack.c.b16 %v4034, %v4002
        %v4963 = vpack.c.b16 %v4035, %v4003
        %v4964 = vpack.c.b16 %v4036, %v4004
        %v4965 = vpack.c.b16 %v4037, %v4005
        %v4966 = vpack.c.b16 %v4038, %v4006
        %v4967 = vpack.c.b16 %v4071, %v4039
        %v4968 = vpack.c.b16 %v4072, %v4040
        %v4969 = vpack.c.b16 %v4073, %v4041
        %v4970 = vpack.c.b16 %v4074, %v4042
        %v4971 = vpack.c.b16 %v4075, %v4043
        %v4972 = vpack.c.b16 %v4076, %v4044
        %v4973 = vpack.c.b16 %v4077, %v4045
        %v4974 = vpack.c.b16 %v4078, %v4046
        %v4975 = vpack.c.b16 %v4079, %v4047
        %v4976 = vpack.c.b16 %v4080, %v4048
        %v4977 = vpack.c.b16 %v4081, %v4049
        %v4978 = vpack.c.b16 %v4082, %v4050
        %v4979 = vpack.c.b16 %v4083, %v4051
        %v4980 = vpack.c.b16 %v4084, %v4052
        %v4981 = vpack.c.b16 %v4085, %v4053
        %v4982 = vpack.c.b16 %v4086, %v4054
        %v4983 = vpack.c.b16 %v4087, %v4055
        %v4984 = vpack.c.b16 %v4088, %v4056
        %v4985 = vpack.c.b16 %v4089, %v4057
        %v4986 = vpack.c.b16 %v4090, %v4058
        %v4987 = vpack.c.b16 %v4091, %v4059
        %v4988 = vpack.c.b16 %v4092, %v4060
        %v4989 = vpack.c.b16 %v4093, %v4061
        %v4990 = vpack.c.b16 %v4094, %v4062
        %v4991 = vpack.c.b16 %v4095, %v4063
        %v4992 = vpack.c.b16 %v4096, %v4064
        %v4993 = vpack.c.b16 %v4097, %v4065
        %v4994 = vpack.c.b16 %v4098, %v4066
        %v4995 = vpack.c.b16 %v4099, %v4067
        %v4996 = vpack.c.b16 %v4100, %v4068
        %v4997 = vpack.c.b16 %v4101, %v4069
        %v4998 = vpack.c.b16 %v4102, %v4070
        %v4999 = vpack.c.b16 %v4135, %v4103
        %v5000 = vpack.c.b16 %v4136, %v4104
        %v5001 = vpack.c.b16 %v4137, %v4105
        %v5002 = vpack.c.b16 %v4138, %v4106
        %v5003 = vpack.c.b16 %v4139, %v4107
        %v5004 = vpack.c.b16 %v4140, %v4108
        %v5005 = vpack.c.b16 %v4141, %v4109
        %v5006 = vpack.c.b16 %v4142, %v4110
        %v5007 = vpack.c.b16 %v4143, %v4111
        %v5008 = vpack.c.b16 %v4144, %v4112
        %v5009 = vpack.c.b16 %v4145, %v4113
        %v5010 = vpack.c.b16 %v4146, %v4114
        %v5011 = vpack.c.b16 %v4147, %v4115
        %v5012 = vpack.c.b16 %v4148, %v4116
        %v5013 = vpack.c.b16 %v4149, %v4117
        %v5014 = vpack.c.b16 %v4150, %v4118
        %v5015 = vpack.c.b16 %v4151, %v4119
        %v5016 = vpack.c.b16 %v4152, %v4120
        %v5017 = vpack.c.b16 %v4153, %v4121
        %v5018 = vpack.c.b16 %v4154, %v4122
        %v5019 = vpack.c.b16 %v4155, %v4123
        %v5020 = vpack.c.b16 %v4156, %v4124
        %v5021 = vpack.c.b16 %v4157, %v4125
        %v5022 = vpack.c.b16 %v4158, %v4126
        %v5023 = vpack.c.b16 %v4159, %v4127
        %v5024 = vpack.c.b16 %v4160, %v4128
        %v5025 = vpack.c.b16 %v4161, %v4129
        %v5026 = vpack.c.b16 %v4162, %v4130
        %v5027 = vpack.c.b16 %v4163, %v4131
        %v5028 = vpack.c.b16 %v4164, %v4132
        %v5029 = vpack.c.b16 %v4165, %v4133
        %v5030 = vpack.c.b16 %v4166, %v4134
        %v5031 = vpack.c.b16 %v4199, %v4167
        %v5032 = vpack.c.b16 %v4200, %v4168
        %v5033 = vpack.c.b16 %v4201, %v4169
        %v5034 = vpack.c.b16 %v4202, %v4170
        %v5035 = vpack.c.b16 %v4203, %v4171
        %v5036 = vpack.c.b16 %v4204, %v4172
        %v5037 = vpack.c.b16 %v4205, %v4173
        %v5038 = vpack.c.b16 %v4206, %v4174
        %v5039 = vpack.c.b16 %v4207, %v4175
        %v5040 = vpack.c.b16 %v4208, %v4176
        %v5041 = vpack.c.b16 %v4209, %v4177
        %v5042 = vpack.c.b16 %v4210, %v4178
        %v5043 = vpack.c.b16 %v4211, %v4179
        %v5044 = vpack.c.b16 %v4212, %v4180
        %v5045 = vpack.c.b16 %v4213, %v4181
        %v5046 = vpack.c.b16 %v4214, %v4182
        %v5047 = vpack.c.b16 %v4215, %v4183
        %v5048 = vpack.c.b16 %v4216, %v4184
        %v5049 = vpack.c.b16 %v4217, %v4185
        %v5050 = vpack.c.b16 %v4218, %v4186
        %v5051 = vpack.c.b16 %v4219, %v4187
        %v5052 = vpack.c.b16 %v4220, %v4188
        %v5053 = vpack.c.b16 %v4221, %v4189
        %v5054 = vpack.c.b16 %v4222, %v4190
        %v5055 = vpack.c.b16 %v4223, %v4191
        %v5056 = vpack.c.b16 %v4224, %v4192
        %v5057 = vpack.c.b16 %v4225, %v4193
        %v5058 = vpack.c.b16 %v4226, %v4194
        %v5059 = vpack.c.b16 %v4227, %v4195
        %v5060 = vpack.c.b16 %v4228, %v4196
        %v5061 = vpack.c.b16 %v4229, %v4197
        %v5062 = vpack.c.b16 %v4230, %v4198
        %v5063 = vpack.c.b16 %v4263, %v4231
        %v5064 = vpack.c.b16 %v4264, %v4232
        %v5065 = vpack.c.b16 %v4265, %v4233
        %v5066 = vpack.c.b16 %v4266, %v4234
        %v5067 = vpack.c.b16 %v4267, %v4235
        %v5068 = vpack.c.b16 %v4268, %v4236
        %v5069 = vpack.c.b16 %v4269, %v4237
        %v5070 = vpack.c.b16 %v4270, %v4238
        %v5071 = vpack.c.b16 %v4271, %v4239
        %v5072 = vpack.c.b16 %v4272, %v4240
        %v5073 = vpack.c.b16 %v4273, %v4241
        %v5074 = vpack.c.b16 %v4274, %v4242
        %v5075 = vpack.c.b16 %v4275, %v4243
        %v5076 = vpack.c.b16 %v4276, %v4244
        %v5077 = vpack.c.b16 %v4277, %v4245
        %v5078 = vpack.c.b16 %v4278, %v4246
        %v5079 = vpack.c.b16 %v4279, %v4247
        %v5080 = vpack.c.b16 %v4280, %v4248
        %v5081 = vpack.c.b16 %v4281, %v4249
        %v5082 = vpack.c.b16 %v4282, %v4250
        %v5083 = vpack.c.b16 %v4283, %v4251
        %v5084 = vpack.c.b16 %v4284, %v4252
        %v5085 = vpack.c.b16 %v4285, %v4253
        %v5086 = vpack.c.b16 %v4286, %v4254
        %v5087 = vpack.c.b16 %v4287, %v4255
        %v5088 = vpack.c.b16 %v4288, %v4256
        %v5089 = vpack.c.b16 %v4289, %v4257
        %v5090 = vpack.c.b16 %v4290, %v4258
        %v5091 = vpack.c.b16 %v4291, %v4259
        %v5092 = vpack.c.b16 %v4292, %v4260
        %v5093 = vpack.c.b16 %v4293, %v4261
        %v5094 = vpack.c.b16 %v4294, %v4262
        %v5095 = vpack.c.b16 %v4327, %v4295
        %v5096 = vpack.c.b16 %v4328, %v4296
        %v5097 = vpack.c.b16 %v4329, %v4297
        %v5098 = vpack.c.b16 %v4330, %v4298
        %v5099 = vpack.c.b16 %v4331, %v4299
        %v5100 = vpack.c.b16 %v4332, %v4300
        %v5101 = vpack.c.b16 %v4333, %v4301
        %v5102 = vpack.c.b16 %v4334, %v4302
        %v5103 = vpack.c.b16 %v4335, %v4303
        %v5104 = vpack.c.b16 %v4336, %v4304
        %v5105 = vpack.c.b16 %v4337, %v4305
        %v5106 = vpack.c.b16 %v4338, %v4306
        %v5107 = vpack.c.b16 %v4339, %v4307
        %v5108 = vpack.c.b16 %v4340, %v4308
        %v5109 = vpack.c.b16 %v4341, %v4309
        %v5110 = vpack.c.b16 %v4342, %v4310
        %v5111 = vpack.c.b16 %v4343, %v4311
        %v5112 = vpack.c.b16 %v4344, %v4312
        %v5113 = vpack.c.b16 %v4345, %v4313
        %v5114 = vpack.c.b16 %v4346, %v4314
        %v5115 = vpack.c.b16 %v4347, %v4315
        %v5116 = vpack.c.b16 %v4348, %v4316
        %v5117 = vpack.c.b16 %v4349, %v4317
        %v5118 = vpack.c.b16 %v4350, %v4318
        %v5119 = vpack.c.b16 %v4351, %v4319
        %v5120 = vpack.c.b16 %v4352, %v4320
        %v5121 = vpack.c.b16 %v4353, %v4321
        %v5122 = vpack.c.b16 %v4354, %v4322
        %v5123 = vpack.c.b16 %v4355, %v4323
        %v5124 = vpack.c.b16 %v4356, %v4324
        %v5125 = vpack.c.b16 %v4357, %v4325
        %v5126 = vpack.c.b16 %v4358, %v4326
        %v5127 = vpack.c.b16 %v4391, %v4359
        %v5128 = vpack.c.b16 %v4392, %v4360
        %v5129 = vpack.c.b16 %v4393, %v4361
        %v5130 = vpack.c.b16 %v4394, %v4362
        %v5131 = vpack.c.b16 %v4395, %v4363
        %v5132 = vpack.c.b16 %v4396, %v4364
        %v5133 = vpack.c.b16 %v4397, %v4365
        %v5134 = vpack.c.b16 %v4398, %v4366
        %v5135 = vpack.c.b16 %v4399, %v4367
        %v5136 = vpack.c.b16 %v4400, %v4368
        %v5137 = vpack.c.b16 %v4401, %v4369
        %v5138 = vpack.c.b16 %v4402, %v4370
        %v5139 = vpack.c.b16 %v4403, %v4371
        %v5140 = vpack.c.b16 %v4404, %v4372
        %v5141 = vpack.c.b16 %v4405, %v4373
        %v5142 = vpack.c.b16 %v4406, %v4374
        %v5143 = vpack.c.b16 %v4407, %v4375
        %v5144 = vpack.c.b16 %v4408, %v4376
        %v5145 = vpack.c.b16 %v4409, %v4377
        %v5146 = vpack.c.b16 %v4410, %v4378
        %v5147 = vpack.c.b16 %v4411, %v4379
        %v5148 = vpack.c.b16 %v4412, %v4380
        %v5149 = vpack.c.b16 %v4413, %v4381
        %v5150 = vpack.c.b16 %v4414, %v4382
        %v5151 = vpack.c.b16 %v4415, %v4383
        %v5152 = vpack.c.b16 %v4416, %v4384
        %v5153 = vpack.c.b16 %v4417, %v4385
        %v5154 = vpack.c.b16 %v4418, %v4386
        %v5155 = vpack.c.b16 %v4419, %v4387
        %v5156 = vpack.c.b16 %v4420, %v4388
        %v5157 = vpack.c.b16 %v4421, %v4389
        %v5158 = vpack.c.b16 %v4422, %v4390
        %v5159 = vpack.c.b16 %v4455, %v4423
        %v5160 = vpack.c.b16 %v4456, %v4424
        %v5161 = vpack.c.b16 %v4457, %v4425
        %v5162 = vpack.c.b16 %v4458, %v4426
        %v5163 = vpack.c.b16 %v4459, %v4427
        %v5164 = vpack.c.b16 %v4460, %v4428
        %v5165 = vpack.c.b16 %v4461, %v4429
        %v5166 = vpack.c.b16 %v4462, %v4430
        %v5167 = vpack.c.b16 %v4463, %v4431
        %v5168 = vpack.c.b16 %v4464, %v4432
        %v5169 = vpack.c.b16 %v4465, %v4433
        %v5170 = vpack.c.b16 %v4466, %v4434
        %v5171 = vpack.c.b16 %v4467, %v4435
        %v5172 = vpack.c.b16 %v4468, %v4436
        %v5173 = vpack.c.b16 %v4469, %v4437
        %v5174 = vpack.c.b16 %v4470, %v4438
        %v5175 = vpack.c.b16 %v4471, %v4439
        %v5176 = vpack.c.b16 %v4472, %v4440
        %v5177 = vpack.c.b16 %v4473, %v4441
        %v5178 = vpack.c.b16 %v4474, %v4442
        %v5179 = vpack.c.b16 %v4475, %v4443
        %v5180 = vpack.c.b16 %v4476, %v4444
        %v5181 = vpack.c.b16 %v4477, %v4445
        %v5182 = vpack.c.b16 %v4478, %v4446
        %v5183 = vpack.c.b16 %v4479, %v4447
        %v5184 = vpack.c.b16 %v4480, %v4448
        %v5185 = vpack.c.b16 %v4481, %v4449
        %v5186 = vpack.c.b16 %v4482, %v4450
        %v5187 = vpack.c.b16 %v4483, %v4451
        %v5188 = vpack.c.b16 %v4484, %v4452
        %v5189 = vpack.c.b16 %v4485, %v4453
        %v5190 = vpack.c.b16 %v4486, %v4454
        %v5191 = vpack.c.b16 %v4519, %v4487
        %v5192 = vpack.c.b16 %v4520, %v4488
        %v5193 = vpack.c.b16 %v4521, %v4489
        %v5194 = vpack.c.b16 %v4522, %v4490
        %v5195 = vpack.c.b16 %v4523, %v4491
        %v5196 = vpack.c.b16 %v4524, %v4492
        %v5197 = vpack.c.b16 %v4525, %v4493
        %v5198 = vpack.c.b16 %v4526, %v4494
        %v5199 = vpack.c.b16 %v4527, %v4495
        %v5200 = vpack.c.b16 %v4528, %v4496
        %v5201 = vpack.c.b16 %v4529, %v4497
        %v5202 = vpack.c.b16 %v4530, %v4498
        %v5203 = vpack.c.b16 %v4531, %v4499
        %v5204 = vpack.c.b16 %v4532, %v4500
        %v5205 = vpack.c.b16 %v4533, %v4501
        %v5206 = vpack.c.b16 %v4534, %v4502
        %v5207 = vpack.c.b16 %v4535, %v4503
        %v5208 = vpack.c.b16 %v4536, %v4504
        %v5209 = vpack.c.b16 %v4537, %v4505
        %v5210 = vpack.c.b16 %v4538, %v4506
        %v5211 = vpack.c.b16 %v4539, %v4507
        %v5212 = vpack.c.b16 %v4540, %v4508
        %v5213 = vpack.c.b16 %v4541, %v4509
        %v5214 = vpack.c.b16 %v4542, %v4510
        %v5215 = vpack.c.b16 %v4543, %v4511
        %v5216 = vpack.c.b16 %v4544, %v4512
        %v5217 = vpack.c.b16 %v4545, %v4513
        %v5218 = vpack.c.b16 %v4546, %v4514
        %v5219 = vpack.c.b16 %v4547, %v4515
        %v5220 = vpack.c.b16 %v4548, %v4516
        %v5221 = vpack.c.b16 %v4549, %v4517
        %v5222 = vpack.c.b16 %v4550, %v4518
        %v5223 = vpack.c.b16 %v4583, %v4551
        %v5224 = vpack.c.b16 %v4584, %v4552
        %v5225 = vpack.c.b16 %v4585, %v4553
        %v5226 = vpack.c.b16 %v4586, %v4554
        %v5227 = vpack.c.b16 %v4587, %v4555
        %v5228 = vpack.c.b16 %v4588, %v4556
        %v5229 = vpack.c.b16 %v4589, %v4557
        %v5230 = vpack.c.b16 %v4590, %v4558
        %v5231 = vpack.c.b16 %v4591, %v4559
        %v5232 = vpack.c.b16 %v4592, %v4560
        %v5233 = vpack.c.b16 %v4593, %v4561
        %v5234 = vpack.c.b16 %v4594, %v4562
        %v5235 = vpack.c.b16 %v4595, %v4563
        %v5236 = vpack.c.b16 %v4596, %v4564
        %v5237 = vpack.c.b16 %v4597, %v4565
        %v5238 = vpack.c.b16 %v4598, %v4566
        %v5239 = vpack.c.b16 %v4599, %v4567
        %v5240 = vpack.c.b16 %v4600, %v4568
        %v5241 = vpack.c.b16 %v4601, %v4569
        %v5242 = vpack.c.b16 %v4602, %v4570
        %v5243 = vpack.c.b16 %v4603, %v4571
        %v5244 = vpack.c.b16 %v4604, %v4572
        %v5245 = vpack.c.b16 %v4605, %v4573
        %v5246 = vpack.c.b16 %v4606, %v4574
        %v5247 = vpack.c.b16 %v4607, %v4575
        %v5248 = vpack.c.b16 %v4608, %v4576
        %v5249 = vpack.c.b16 %v4609, %v4577
        %v5250 = vpack.c.b16 %v4610, %v4578
        %v5251 = vpack.c.b16 %v4611, %v4579
        %v5252 = vpack.c.b16 %v4612, %v4580
        %v5253 = vpack.c.b16 %v4613, %v4581
        %v5254 = vpack.c.b16 %v4614, %v4582
        %v5255 = vpack.c.b16 %v4647, %v4615
        %v5256 = vpack.c.b16 %v4648, %v4616
        %v5257 = vpack.c.b16 %v4649, %v4617
        %v5258 = vpack.c.b16 %v4650, %v4618
        %v5259 = vpack.c.b16 %v4651, %v4619
        %v5260 = vpack.c.b16 %v4652, %v4620
        %v5261 = vpack.c.b16 %v4653, %v4621
        %v5262 = vpack.c.b16 %v4654, %v4622
        %v5263 = vpack.c.b16 %v4655, %v4623
        %v5264 = vpack.c.b16 %v4656, %v4624
        %v5265 = vpack.c.b16 %v4657, %v4625
        %v5266 = vpack.c.b16 %v4658, %v4626
        %v5267 = vpack.c.b16 %v4659, %v4627
        %v5268 = vpack.c.b16 %v4660, %v4628
        %v5269 = vpack.c.b16 %v4661, %v4629
        %v5270 = vpack.c.b16 %v4662, %v4630
        %v5271 = vpack.c.b16 %v4663, %v4631
        %v5272 = vpack.c.b16 %v4664, %v4632
        %v5273 = vpack.c.b16 %v4665, %v4633
        %v5274 = vpack.c.b16 %v4666, %v4634
        %v5275 = vpack.c.b16 %v4667, %v4635
        %v5276 = vpack.c.b16 %v4668, %v4636
        %v5277 = vpack.c.b16 %v4669, %v4637
        %v5278 = vpack.c.b16 %v4670, %v4638
        %v5279 = vpack.c.b16 %v4671, %v4639
        %v5280 = vpack.c.b16 %v4672, %v4640
        %v5281 = vpack.c.b16 %v4673, %v4641
        %v5282 = vpack.c.b16 %v4674, %v4642
        %v5283 = vpack.c.b16 %v4675, %v4643
        %v5284 = vpack.c.b16 %v4676, %v4644
        %v5285 = vpack.c.b16 %v4677, %v4645
        %v5286 = vpack.c.b16 %v4678, %v4646
        %v5287 = vpack.c.b16 %v4711, %v4679
        %v5288 = vpack.c.b16 %v4712, %v4680
        %v5289 = vpack.c.b16 %v4713, %v4681
        %v5290 = vpack.c.b16 %v4714, %v4682
        %v5291 = vpack.c.b16 %v4715, %v4683
        %v5292 = vpack.c.b16 %v4716, %v4684
        %v5293 = vpack.c.b16 %v4717, %v4685
        %v5294 = vpack.c.b16 %v4718, %v4686
        %v5295 = vpack.c.b16 %v4719, %v4687
        %v5296 = vpack.c.b16 %v4720, %v4688
        %v5297 = vpack.c.b16 %v4721, %v4689
        %v5298 = vpack.c.b16 %v4722, %v4690
        %v5299 = vpack.c.b16 %v4723, %v4691
        %v5300 = vpack.c.b16 %v4724, %v4692
        %v5301 = vpack.c.b16 %v4725, %v4693
        %v5302 = vpack.c.b16 %v4726, %v4694
        %v5303 = vpack.c.b16 %v4727, %v4695
        %v5304 = vpack.c.b16 %v4728, %v4696
        %v5305 = vpack.c.b16 %v4729, %v4697
        %v5306 = vpack.c.b16 %v4730, %v4698
        %v5307 = vpack.c.b16 %v4731, %v4699
        %v5308 = vpack.c.b16 %v4732, %v4700
        %v5309 = vpack.c.b16 %v4733, %v4701
        %v5310 = vpack.c.b16 %v4734, %v4702
        %v5311 = vpack.c.b16 %v4735, %v4703
        %v5312 = vpack.c.b16 %v4736, %v4704
        %v5313 = vpack.c.b16 %v4737, %v4705
        %v5314 = vpack.c.b16 %v4738, %v4706
        %v5315 = vpack.c.b16 %v4739, %v4707
        %v5316 = vpack.c.b16 %v4740, %v4708
        %v5317 = vpack.c.b16 %v4741, %v4709
        %v5318 = vpack.c.b16 %v4742, %v4710
        %v5319 = vpack.c.b16 %v4775, %v4743
        %v5320 = vpack.c.b16 %v4776, %v4744
        %v5321 = vpack.c.b16 %v4777, %v4745
        %v5322 = vpack.c.b16 %v4778, %v4746
        %v5323 = vpack.c.b16 %v4779, %v4747
        %v5324 = vpack.c.b16 %v4780, %v4748
        %v5325 = vpack.c.b16 %v4781, %v4749
        %v5326 = vpack.c.b16 %v4782, %v4750
        %v5327 = vpack.c.b16 %v4783, %v4751
        %v5328 = vpack.c.b16 %v4784, %v4752
        %v5329 = vpack.c.b16 %v4785, %v4753
        %v5330 = vpack.c.b16 %v4786, %v4754
        %v5331 = vpack.c.b16 %v4787, %v4755
        %v5332 = vpack.c.b16 %v4788, %v4756
        %v5333 = vpack.c.b16 %v4789, %v4757
        %v5334 = vpack.c.b16 %v4790, %v4758
        %v5335 = vpack.c.b16 %v4791, %v4759
        %v5336 = vpack.c.b16 %v4792, %v4760
        %v5337 = vpack.c.b16 %v4793, %v4761
        %v5338 = vpack.c.b16 %v4794, %v4762
        %v5339 = vpack.c.b16 %v4795, %v4763
        %v5340 = vpack.c.b16 %v4796, %v4764
        %v5341 = vpack.c.b16 %v4797, %v4765
        %v5342 = vpack.c.b16 %v4798, %v4766
        %v5343 = vpack.c.b16 %v4799, %v4767
        %v5344 = vpack.c.b16 %v4800, %v4768
        %v5345 = vpack.c.b16 %v4801, %v4769
        %v5346 = vpack.c.b16 %v4802, %v4770
        %v5347 = vpack.c.b16 %v4803, %v4771
        %v5348 = vpack.c.b16 %v4804, %v4772
        %v5349 = vpack.c.b16 %v4805, %v4773
        %v5350 = vpack.c.b16 %v4806, %v4774
        %v5351 = vpack.c.b16 %v4839, %v4807
        %v5352 = vpack.c.b16 %v4840, %v4808
        %v5353 = vpack.c.b16 %v4841, %v4809
        %v5354 = vpack.c.b16 %v4842, %v4810
        %v5355 = vpack.c.b16 %v4843, %v4811
        %v5356 = vpack.c.b16 %v4844, %v4812
        %v5357 = vpack.c.b16 %v4845, %v4813
        %v5358 = vpack.c.b16 %v4846, %v4814
        %v5359 = vpack.c.b16 %v4847, %v4815
        %v5360 = vpack.c.b16 %v4848, %v4816
        %v5361 = vpack.c.b16 %v4849, %v4817
        %v5362 = vpack.c.b16 %v4850, %v4818
        %v5363 = vpack.c.b16 %v4851, %v4819
        %v5364 = vpack.c.b16 %v4852, %v4820
        %v5365 = vpack.c.b16 %v4853, %v4821
        %v5366 = vpack.c.b16 %v4854, %v4822
        %v5367 = vpack.c.b16 %v4855, %v4823
        %v5368 = vpack.c.b16 %v4856, %v4824
        %v5369 = vpack.c.b16 %v4857, %v4825
        %v5370 = vpack.c.b16 %v4858, %v4826
        %v5371 = vpack.c.b16 %v4859, %v4827
        %v5372 = vpack.c.b16 %v4860, %v4828
        %v5373 = vpack.c.b16 %v4861, %v4829
        %v5374 = vpack.c.b16 %v4862, %v4830
        %v5375 = vpack.c.b16 %v4863, %v4831
        %v5376 = vpack.c.b16 %v4864, %v4832
        %v5377 = vpack.c.b16 %v4865, %v4833
        %v5378 = vpack.c.b16 %v4866, %v4834
        %v5379 = vpack.c.b16 %v4867, %v4835
        %v5380 = vpack.c.b16 %v4868, %v4836
        %v5381 = vpack.c.b16 %v4869, %v4837
        %v5382 = vpack.c.b16 %v4870, %v4838
        %5895 = vmatprep.subr.bf16.mxu0 %v4872
        %5896 = vmatpush1.bf16.msra.mxu0 %v4871
        %5897 = vmatprep.subr.bf16.mxu0 %v4904
        %5898 = vmatpush1.bf16.msra.mxu0 %v4903
        %5899 = vmatprep.subr.bf16.mxu0 %v4936
        %5900 = vmatpush1.bf16.msra.mxu0 %v4935
        %5901 = vmatprep.subr.bf16.mxu0 %v4968
        %5902 = vmatpush1.bf16.msra.mxu0 %v4967
        %5903 = vmatprep.subr.bf16.mxu0 %v5000
        %5904 = vmatpush1.bf16.msra.mxu0 %v4999
        %5905 = vmatprep.subr.bf16.mxu0 %v5032
        %5906 = vmatpush1.bf16.msra.mxu0 %v5031
        %5907 = vmatprep.subr.bf16.mxu0 %v5064
        %5908 = vmatpush1.bf16.msra.mxu0 %v5063
        %5909 = vmatprep.subr.bf16.mxu0 %v5096
        %5910 = vmatpush1.bf16.msra.mxu0 %v5095
        %5911 = vmatprep.subr.bf16.mxu0 %v5128
        %5912 = vmatpush1.bf16.msra.mxu0 %v5127
        %5913 = vmatprep.subr.bf16.mxu0 %v5160
        %5914 = vmatpush1.bf16.msra.mxu0 %v5159
        %5915 = vmatprep.subr.bf16.mxu0 %v5192
        %5916 = vmatpush1.bf16.msra.mxu0 %v5191
        %5917 = vmatprep.subr.bf16.mxu0 %v5224
        %5918 = vmatpush1.bf16.msra.mxu0 %v5223
        %5919 = vmatprep.subr.bf16.mxu0 %v5256
        %5920 = vmatpush1.bf16.msra.mxu0 %v5255
        %5921 = vmatprep.subr.bf16.mxu0 %v5288
        %5922 = vmatpush1.bf16.msra.mxu0 %v5287
        %5923 = vmatprep.subr.bf16.mxu0 %v5320
        %5924 = vmatpush1.bf16.msra.mxu0 %v5319
        %5925 = vmatprep.subr.bf16.mxu0 %v5352
        %5926 = vmatpush1.bf16.msra.mxu0 %v5351
        %5927 = vmatprep.mubr.bf16.mxu0 %v2822
        %5928 = vmatmul.mubr.bf16.gmra.mrb[0].mxu0 %v2821
        %v5929 = vpop.f32.mrb[0].mxu0
        %v5930 = vadd.f32 0.0, %v5929
        %v5931 = vpop.f32.mrb[0].mxu0
        %v5932 = vadd.f32 0.0, %v5931
        %v5933 = vpop.f32.mrb[0].mxu0
        %v5934 = vpop.f32.mrb[0].mxu0
        %5935 = vdwg.mxu0
        %5936 = vmatprep.subr.bf16.mxu0 %v4874
        %5937 = vmatpush1.bf16.msra.mxu0 %v4873
        %5938 = vmatprep.subr.bf16.mxu0 %v4906
        %5939 = vmatpush1.bf16.msra.mxu0 %v4905
        %5940 = vmatprep.subr.bf16.mxu0 %v4938
        %5941 = vmatpush1.bf16.msra.mxu0 %v4937
        %5942 = vmatprep.subr.bf16.mxu0 %v4970
        %5943 = vmatpush1.bf16.msra.mxu0 %v4969
        %5944 = vmatprep.subr.bf16.mxu0 %v5002
        %5945 = vmatpush1.bf16.msra.mxu0 %v5001
        %5946 = vmatprep.subr.bf16.mxu0 %v5034
        %5947 = vmatpush1.bf16.msra.mxu0 %v5033
        %5948 = vmatprep.subr.bf16.mxu0 %v5066
        %5949 = vmatpush1.bf16.msra.mxu0 %v5065
        %5950 = vmatprep.subr.bf16.mxu0 %v5098
        %5951 = vmatpush1.bf16.msra.mxu0 %v5097
        %5952 = vmatprep.subr.bf16.mxu0 %v5130
        %5953 = vmatpush1.bf16.msra.mxu0 %v5129
        %5954 = vmatprep.subr.bf16.mxu0 %v5162
        %5955 = vmatpush1.bf16.msra.mxu0 %v5161
        %5956 = vmatprep.subr.bf16.mxu0 %v5194
        %5957 = vmatpush1.bf16.msra.mxu0 %v5193
        %5958 = vmatprep.subr.bf16.mxu0 %v5226
        %5959 = vmatpush1.bf16.msra.mxu0 %v5225
        %5960 = vmatprep.subr.bf16.mxu0 %v5258
        %5961 = vmatpush1.bf16.msra.mxu0 %v5257
        %5962 = vmatprep.subr.bf16.mxu0 %v5290
        %5963 = vmatpush1.bf16.msra.mxu0 %v5289
        %5964 = vmatprep.subr.bf16.mxu0 %v5322
        %5965 = vmatpush1.bf16.msra.mxu0 %v5321
        %5966 = vmatprep.subr.bf16.mxu0 %v5354
        %5967 = vmatpush1.bf16.msra.mxu0 %v5353
        %5968 = vmatprep.mubr.bf16.mxu0 %v2822
        %5969 = vmatmul.mubr.bf16.gmra.mrb[0].mxu0 %v2821
        %v5970 = vpop.f32.mrb[0].mxu0
        %v5971 = vadd.f32 0.0, %v5970
        %v5972 = vpop.f32.mrb[0].mxu0
        %v5973 = vadd.f32 0.0, %v5972
        %v5974 = vpop.f32.mrb[0].mxu0
        %v5975 = vpop.f32.mrb[0].mxu0
        %5976 = vdwg.mxu0
        %5977 = vmatprep.subr.bf16.mxu0 %v4876
        %5978 = vmatpush1.bf16.msra.mxu0 %v4875
        %5979 = vmatprep.subr.bf16.mxu0 %v4908
        %5980 = vmatpush1.bf16.msra.mxu0 %v4907
        %5981 = vmatprep.subr.bf16.mxu0 %v4940
        %5982 = vmatpush1.bf16.msra.mxu0 %v4939
        %5983 = vmatprep.subr.bf16.mxu0 %v4972
        %5984 = vmatpush1.bf16.msra.mxu0 %v4971
        %5985 = vmatprep.subr.bf16.mxu0 %v5004
        %5986 = vmatpush1.bf16.msra.mxu0 %v5003
        %5987 = vmatprep.subr.bf16.mxu0 %v5036
        %5988 = vmatpush1.bf16.msra.mxu0 %v5035
        %5989 = vmatprep.subr.bf16.mxu0 %v5068
        %5990 = vmatpush1.bf16.msra.mxu0 %v5067
        %5991 = vmatprep.subr.bf16.mxu0 %v5100
        %5992 = vmatpush1.bf16.msra.mxu0 %v5099
        %5993 = vmatprep.subr.bf16.mxu0 %v5132
        %5994 = vmatpush1.bf16.msra.mxu0 %v5131
        %5995 = vmatprep.subr.bf16.mxu0 %v5164
        %5996 = vmatpush1.bf16.msra.mxu0 %v5163
        %5997 = vmatprep.subr.bf16.mxu0 %v5196
        %5998 = vmatpush1.bf16.msra.mxu0 %v5195
        %5999 = vmatprep.subr.bf16.mxu0 %v5228
        %6000 = vmatpush1.bf16.msra.mxu0 %v5227
        %6001 = vmatprep.subr.bf16.mxu0 %v5260
        %6002 = vmatpush1.bf16.msra.mxu0 %v5259
        %6003 = vmatprep.subr.bf16.mxu0 %v5292
        %6004 = vmatpush1.bf16.msra.mxu0 %v5291
        %6005 = vmatprep.subr.bf16.mxu0 %v5324
        %6006 = vmatpush1.bf16.msra.mxu0 %v5323
        %6007 = vmatprep.subr.bf16.mxu0 %v5356
        %6008 = vmatpush1.bf16.msra.mxu0 %v5355
        %6009 = vmatprep.mubr.bf16.mxu0 %v2822
        %6010 = vmatmul.mubr.bf16.gmra.mrb[0].mxu0 %v2821
        %v6011 = vpop.f32.mrb[0].mxu0
        %v6012 = vadd.f32 0.0, %v6011
        %v6013 = vpop.f32.mrb[0].mxu0
        %v6014 = vadd.f32 0.0, %v6013
        %v6015 = vpop.f32.mrb[0].mxu0
        %v6016 = vpop.f32.mrb[0].mxu0
        %6017 = vdwg.mxu0
        %6018 = vmatprep.subr.bf16.mxu0 %v4878
        %6019 = vmatpush1.bf16.msra.mxu0 %v4877
        %6020 = vmatprep.subr.bf16.mxu0 %v4910
        %6021 = vmatpush1.bf16.msra.mxu0 %v4909
        %6022 = vmatprep.subr.bf16.mxu0 %v4942
        %6023 = vmatpush1.bf16.msra.mxu0 %v4941
        %6024 = vmatprep.subr.bf16.mxu0 %v4974
        %6025 = vmatpush1.bf16.msra.mxu0 %v4973
        %6026 = vmatprep.subr.bf16.mxu0 %v5006
        %6027 = vmatpush1.bf16.msra.mxu0 %v5005
        %6028 = vmatprep.subr.bf16.mxu0 %v5038
        %6029 = vmatpush1.bf16.msra.mxu0 %v5037
        %6030 = vmatprep.subr.bf16.mxu0 %v5070
        %6031 = vmatpush1.bf16.msra.mxu0 %v5069
        %6032 = vmatprep.subr.bf16.mxu0 %v5102
        %6033 = vmatpush1.bf16.msra.mxu0 %v5101
        %6034 = vmatprep.subr.bf16.mxu0 %v5134
        %6035 = vmatpush1.bf16.msra.mxu0 %v5133
        %6036 = vmatprep.subr.bf16.mxu0 %v5166
        %6037 = vmatpush1.bf16.msra.mxu0 %v5165
        %6038 = vmatprep.subr.bf16.mxu0 %v5198
        %6039 = vmatpush1.bf16.msra.mxu0 %v5197
        %6040 = vmatprep.subr.bf16.mxu0 %v5230
        %6041 = vmatpush1.bf16.msra.mxu0 %v5229
        %6042 = vmatprep.subr.bf16.mxu0 %v5262
        %6043 = vmatpush1.bf16.msra.mxu0 %v5261
        %6044 = vmatprep.subr.bf16.mxu0 %v5294
        %6045 = vmatpush1.bf16.msra.mxu0 %v5293
        %6046 = vmatprep.subr.bf16.mxu0 %v5326
        %6047 = vmatpush1.bf16.msra.mxu0 %v5325
        %6048 = vmatprep.subr.bf16.mxu0 %v5358
        %6049 = vmatpush1.bf16.msra.mxu0 %v5357
        %6050 = vmatprep.mubr.bf16.mxu0 %v2822
        %6051 = vmatmul.mubr.bf16.gmra.mrb[0].mxu0 %v2821
        %v6052 = vpop.f32.mrb[0].mxu0
        %v6053 = vadd.f32 0.0, %v6052
        %v6054 = vpop.f32.mrb[0].mxu0
        %v6055 = vadd.f32 0.0, %v6054
        %v6056 = vpop.f32.mrb[0].mxu0
        %v6057 = vpop.f32.mrb[0].mxu0
        %6058 = vdwg.mxu0
        %6059 = vmatprep.subr.bf16.mxu0 %v4880
        %6060 = vmatpush1.bf16.msra.mxu0 %v4879
        %6061 = vmatprep.subr.bf16.mxu0 %v4912
        %6062 = vmatpush1.bf16.msra.mxu0 %v4911
        %6063 = vmatprep.subr.bf16.mxu0 %v4944
        %6064 = vmatpush1.bf16.msra.mxu0 %v4943
        %6065 = vmatprep.subr.bf16.mxu0 %v4976
        %6066 = vmatpush1.bf16.msra.mxu0 %v4975
        %6067 = vmatprep.subr.bf16.mxu0 %v5008
        %6068 = vmatpush1.bf16.msra.mxu0 %v5007
        %6069 = vmatprep.subr.bf16.mxu0 %v5040
        %6070 = vmatpush1.bf16.msra.mxu0 %v5039
        %6071 = vmatprep.subr.bf16.mxu0 %v5072
        %6072 = vmatpush1.bf16.msra.mxu0 %v5071
        %6073 = vmatprep.subr.bf16.mxu0 %v5104
        %6074 = vmatpush1.bf16.msra.mxu0 %v5103
        %6075 = vmatprep.subr.bf16.mxu0 %v5136
        %6076 = vmatpush1.bf16.msra.mxu0 %v5135
        %6077 = vmatprep.subr.bf16.mxu0 %v5168
        %6078 = vmatpush1.bf16.msra.mxu0 %v5167
        %6079 = vmatprep.subr.bf16.mxu0 %v5200
        %6080 = vmatpush1.bf16.msra.mxu0 %v5199
        %6081 = vmatprep.subr.bf16.mxu0 %v5232
        %6082 = vmatpush1.bf16.msra.mxu0 %v5231
        %6083 = vmatprep.subr.bf16.mxu0 %v5264
        %6084 = vmatpush1.bf16.msra.mxu0 %v5263
        %6085 = vmatprep.subr.bf16.mxu0 %v5296
        %6086 = vmatpush1.bf16.msra.mxu0 %v5295
        %6087 = vmatprep.subr.bf16.mxu0 %v5328
        %6088 = vmatpush1.bf16.msra.mxu0 %v5327
        %6089 = vmatprep.subr.bf16.mxu0 %v5360
        %6090 = vmatpush1.bf16.msra.mxu0 %v5359
        %6091 = vmatprep.mubr.bf16.mxu0 %v2822
        %6092 = vmatmul.mubr.bf16.gmra.mrb[0].mxu0 %v2821
        %v6093 = vpop.f32.mrb[0].mxu0
        %v6094 = vadd.f32 0.0, %v6093
        %v6095 = vpop.f32.mrb[0].mxu0
        %v6096 = vadd.f32 0.0, %v6095
        %v6097 = vpop.f32.mrb[0].mxu0
        %v6098 = vpop.f32.mrb[0].mxu0
        %6099 = vdwg.mxu0
        %6100 = vmatprep.subr.bf16.mxu0 %v4882
        %6101 = vmatpush1.bf16.msra.mxu0 %v4881
        %6102 = vmatprep.subr.bf16.mxu0 %v4914
        %6103 = vmatpush1.bf16.msra.mxu0 %v4913
        %6104 = vmatprep.subr.bf16.mxu0 %v4946
        %6105 = vmatpush1.bf16.msra.mxu0 %v4945
        %6106 = vmatprep.subr.bf16.mxu0 %v4978
        %6107 = vmatpush1.bf16.msra.mxu0 %v4977
        %6108 = vmatprep.subr.bf16.mxu0 %v5010
        %6109 = vmatpush1.bf16.msra.mxu0 %v5009
        %6110 = vmatprep.subr.bf16.mxu0 %v5042
        %6111 = vmatpush1.bf16.msra.mxu0 %v5041
        %6112 = vmatprep.subr.bf16.mxu0 %v5074
        %6113 = vmatpush1.bf16.msra.mxu0 %v5073
        %6114 = vmatprep.subr.bf16.mxu0 %v5106
        %6115 = vmatpush1.bf16.msra.mxu0 %v5105
        %6116 = vmatprep.subr.bf16.mxu0 %v5138
        %6117 = vmatpush1.bf16.msra.mxu0 %v5137
        %6118 = vmatprep.subr.bf16.mxu0 %v5170
        %6119 = vmatpush1.bf16.msra.mxu0 %v5169
        %6120 = vmatprep.subr.bf16.mxu0 %v5202
        %6121 = vmatpush1.bf16.msra.mxu0 %v5201
        %6122 = vmatprep.subr.bf16.mxu0 %v5234
        %6123 = vmatpush1.bf16.msra.mxu0 %v5233
        %6124 = vmatprep.subr.bf16.mxu0 %v5266
        %6125 = vmatpush1.bf16.msra.mxu0 %v5265
        %6126 = vmatprep.subr.bf16.mxu0 %v5298
        %6127 = vmatpush1.bf16.msra.mxu0 %v5297
        %6128 = vmatprep.subr.bf16.mxu0 %v5330
        %6129 = vmatpush1.bf16.msra.mxu0 %v5329
        %6130 = vmatprep.subr.bf16.mxu0 %v5362
        %6131 = vmatpush1.bf16.msra.mxu0 %v5361
        %6132 = vmatprep.mubr.bf16.mxu0 %v2822
        %6133 = vmatmul.mubr.bf16.gmra.mrb[0].mxu0 %v2821
        %v6134 = vpop.f32.mrb[0].mxu0
        %v6135 = vadd.f32 0.0, %v6134
        %v6136 = vpop.f32.mrb[0].mxu0
        %v6137 = vadd.f32 0.0, %v6136
        %v6138 = vpop.f32.mrb[0].mxu0
        %v6139 = vpop.f32.mrb[0].mxu0
        %6140 = vdwg.mxu0
        %6141 = vmatprep.subr.bf16.mxu0 %v4884
        %6142 = vmatpush1.bf16.msra.mxu0 %v4883
        %6143 = vmatprep.subr.bf16.mxu0 %v4916
        %6144 = vmatpush1.bf16.msra.mxu0 %v4915
        %6145 = vmatprep.subr.bf16.mxu0 %v4948
        %6146 = vmatpush1.bf16.msra.mxu0 %v4947
        %6147 = vmatprep.subr.bf16.mxu0 %v4980
        %6148 = vmatpush1.bf16.msra.mxu0 %v4979
        %6149 = vmatprep.subr.bf16.mxu0 %v5012
        %6150 = vmatpush1.bf16.msra.mxu0 %v5011
        %6151 = vmatprep.subr.bf16.mxu0 %v5044
        %6152 = vmatpush1.bf16.msra.mxu0 %v5043
        %6153 = vmatprep.subr.bf16.mxu0 %v5076
        %6154 = vmatpush1.bf16.msra.mxu0 %v5075
        %6155 = vmatprep.subr.bf16.mxu0 %v5108
        %6156 = vmatpush1.bf16.msra.mxu0 %v5107
        %6157 = vmatprep.subr.bf16.mxu0 %v5140
        %6158 = vmatpush1.bf16.msra.mxu0 %v5139
        %6159 = vmatprep.subr.bf16.mxu0 %v5172
        %6160 = vmatpush1.bf16.msra.mxu0 %v5171
        %6161 = vmatprep.subr.bf16.mxu0 %v5204
        %6162 = vmatpush1.bf16.msra.mxu0 %v5203
        %6163 = vmatprep.subr.bf16.mxu0 %v5236
        %6164 = vmatpush1.bf16.msra.mxu0 %v5235
        %6165 = vmatprep.subr.bf16.mxu0 %v5268
        %6166 = vmatpush1.bf16.msra.mxu0 %v5267
        %6167 = vmatprep.subr.bf16.mxu0 %v5300
        %6168 = vmatpush1.bf16.msra.mxu0 %v5299
        %6169 = vmatprep.subr.bf16.mxu0 %v5332
        %6170 = vmatpush1.bf16.msra.mxu0 %v5331
        %6171 = vmatprep.subr.bf16.mxu0 %v5364
        %6172 = vmatpush1.bf16.msra.mxu0 %v5363
        %6173 = vmatprep.mubr.bf16.mxu0 %v2822
        %6174 = vmatmul.mubr.bf16.gmra.mrb[0].mxu0 %v2821
        %v6175 = vpop.f32.mrb[0].mxu0
        %v6176 = vadd.f32 0.0, %v6175
        %v6177 = vpop.f32.mrb[0].mxu0
        %v6178 = vadd.f32 0.0, %v6177
        %v6179 = vpop.f32.mrb[0].mxu0
        %v6180 = vpop.f32.mrb[0].mxu0
        %6181 = vdwg.mxu0
        %6182 = vmatprep.subr.bf16.mxu0 %v4886
        %6183 = vmatpush1.bf16.msra.mxu0 %v4885
        %6184 = vmatprep.subr.bf16.mxu0 %v4918
        %6185 = vmatpush1.bf16.msra.mxu0 %v4917
        %6186 = vmatprep.subr.bf16.mxu0 %v4950
        %6187 = vmatpush1.bf16.msra.mxu0 %v4949
        %6188 = vmatprep.subr.bf16.mxu0 %v4982
        %6189 = vmatpush1.bf16.msra.mxu0 %v4981
        %6190 = vmatprep.subr.bf16.mxu0 %v5014
        %6191 = vmatpush1.bf16.msra.mxu0 %v5013
        %6192 = vmatprep.subr.bf16.mxu0 %v5046
        %6193 = vmatpush1.bf16.msra.mxu0 %v5045
        %6194 = vmatprep.subr.bf16.mxu0 %v5078
        %6195 = vmatpush1.bf16.msra.mxu0 %v5077
        %6196 = vmatprep.subr.bf16.mxu0 %v5110
        %6197 = vmatpush1.bf16.msra.mxu0 %v5109
        %6198 = vmatprep.subr.bf16.mxu0 %v5142
        %6199 = vmatpush1.bf16.msra.mxu0 %v5141
        %6200 = vmatprep.subr.bf16.mxu0 %v5174
        %6201 = vmatpush1.bf16.msra.mxu0 %v5173
        %6202 = vmatprep.subr.bf16.mxu0 %v5206
        %6203 = vmatpush1.bf16.msra.mxu0 %v5205
        %6204 = vmatprep.subr.bf16.mxu0 %v5238
        %6205 = vmatpush1.bf16.msra.mxu0 %v5237
        %6206 = vmatprep.subr.bf16.mxu0 %v5270
        %6207 = vmatpush1.bf16.msra.mxu0 %v5269
        %6208 = vmatprep.subr.bf16.mxu0 %v5302
        %6209 = vmatpush1.bf16.msra.mxu0 %v5301
        %6210 = vmatprep.subr.bf16.mxu0 %v5334
        %6211 = vmatpush1.bf16.msra.mxu0 %v5333
        %6212 = vmatprep.subr.bf16.mxu0 %v5366
        %6213 = vmatpush1.bf16.msra.mxu0 %v5365
        %6214 = vmatprep.mubr.bf16.mxu0 %v2822
        %6215 = vmatmul.mubr.bf16.gmra.mrb[0].mxu0 %v2821
        %v6216 = vpop.f32.mrb[0].mxu0
        %v6217 = vadd.f32 0.0, %v6216
        %v6218 = vpop.f32.mrb[0].mxu0
        %v6219 = vadd.f32 0.0, %v6218
        %v6220 = vpop.f32.mrb[0].mxu0
        %v6221 = vpop.f32.mrb[0].mxu0
        %6222 = vdwg.mxu0
        %6223 = vmatprep.subr.bf16.mxu0 %v4888
        %6224 = vmatpush1.bf16.msra.mxu0 %v4887
        %6225 = vmatprep.subr.bf16.mxu0 %v4920
        %6226 = vmatpush1.bf16.msra.mxu0 %v4919
        %6227 = vmatprep.subr.bf16.mxu0 %v4952
        %6228 = vmatpush1.bf16.msra.mxu0 %v4951
        %6229 = vmatprep.subr.bf16.mxu0 %v4984
        %6230 = vmatpush1.bf16.msra.mxu0 %v4983
        %6231 = vmatprep.subr.bf16.mxu0 %v5016
        %6232 = vmatpush1.bf16.msra.mxu0 %v5015
        %6233 = vmatprep.subr.bf16.mxu0 %v5048
        %6234 = vmatpush1.bf16.msra.mxu0 %v5047
        %6235 = vmatprep.subr.bf16.mxu0 %v5080
        %6236 = vmatpush1.bf16.msra.mxu0 %v5079
        %6237 = vmatprep.subr.bf16.mxu0 %v5112
        %6238 = vmatpush1.bf16.msra.mxu0 %v5111
        %6239 = vmatprep.subr.bf16.mxu0 %v5144
        %6240 = vmatpush1.bf16.msra.mxu0 %v5143
        %6241 = vmatprep.subr.bf16.mxu0 %v5176
        %6242 = vmatpush1.bf16.msra.mxu0 %v5175
        %6243 = vmatprep.subr.bf16.mxu0 %v5208
        %6244 = vmatpush1.bf16.msra.mxu0 %v5207
        %6245 = vmatprep.subr.bf16.mxu0 %v5240
        %6246 = vmatpush1.bf16.msra.mxu0 %v5239
        %6247 = vmatprep.subr.bf16.mxu0 %v5272
        %6248 = vmatpush1.bf16.msra.mxu0 %v5271
        %6249 = vmatprep.subr.bf16.mxu0 %v5304
        %6250 = vmatpush1.bf16.msra.mxu0 %v5303
        %6251 = vmatprep.subr.bf16.mxu0 %v5336
        %6252 = vmatpush1.bf16.msra.mxu0 %v5335
        %6253 = vmatprep.subr.bf16.mxu0 %v5368
        %6254 = vmatpush1.bf16.msra.mxu0 %v5367
        %6255 = vmatprep.mubr.bf16.mxu0 %v2822
        %6256 = vmatmul.mubr.bf16.gmra.mrb[0].mxu0 %v2821
        %v6257 = vpop.f32.mrb[0].mxu0
        %v6258 = vadd.f32 0.0, %v6257
        %v6259 = vpop.f32.mrb[0].mxu0
        %v6260 = vadd.f32 0.0, %v6259
        %v6261 = vpop.f32.mrb[0].mxu0
        %v6262 = vpop.f32.mrb[0].mxu0
        %6263 = vdwg.mxu0
        %6264 = vmatprep.subr.bf16.mxu0 %v4890
        %6265 = vmatpush1.bf16.msra.mxu0 %v4889
        %6266 = vmatprep.subr.bf16.mxu0 %v4922
        %6267 = vmatpush1.bf16.msra.mxu0 %v4921
        %6268 = vmatprep.subr.bf16.mxu0 %v4954
        %6269 = vmatpush1.bf16.msra.mxu0 %v4953
        %6270 = vmatprep.subr.bf16.mxu0 %v4986
        %6271 = vmatpush1.bf16.msra.mxu0 %v4985
        %6272 = vmatprep.subr.bf16.mxu0 %v5018
        %6273 = vmatpush1.bf16.msra.mxu0 %v5017
        %6274 = vmatprep.subr.bf16.mxu0 %v5050
        %6275 = vmatpush1.bf16.msra.mxu0 %v5049
        %6276 = vmatprep.subr.bf16.mxu0 %v5082
        %6277 = vmatpush1.bf16.msra.mxu0 %v5081
        %6278 = vmatprep.subr.bf16.mxu0 %v5114
        %6279 = vmatpush1.bf16.msra.mxu0 %v5113
        %6280 = vmatprep.subr.bf16.mxu0 %v5146
        %6281 = vmatpush1.bf16.msra.mxu0 %v5145
        %6282 = vmatprep.subr.bf16.mxu0 %v5178
        %6283 = vmatpush1.bf16.msra.mxu0 %v5177
        %6284 = vmatprep.subr.bf16.mxu0 %v5210
        %6285 = vmatpush1.bf16.msra.mxu0 %v5209
        %6286 = vmatprep.subr.bf16.mxu0 %v5242
        %6287 = vmatpush1.bf16.msra.mxu0 %v5241
        %6288 = vmatprep.subr.bf16.mxu0 %v5274
        %6289 = vmatpush1.bf16.msra.mxu0 %v5273
        %6290 = vmatprep.subr.bf16.mxu0 %v5306
        %6291 = vmatpush1.bf16.msra.mxu0 %v5305
        %6292 = vmatprep.subr.bf16.mxu0 %v5338
        %6293 = vmatpush1.bf16.msra.mxu0 %v5337
        %6294 = vmatprep.subr.bf16.mxu0 %v5370
        %6295 = vmatpush1.bf16.msra.mxu0 %v5369
        %6296 = vmatprep.mubr.bf16.mxu0 %v2822
        %6297 = vmatmul.mubr.bf16.gmra.mrb[0].mxu0 %v2821
        %v6298 = vpop.f32.mrb[0].mxu0
        %v6299 = vadd.f32 0.0, %v6298
        %v6300 = vpop.f32.mrb[0].mxu0
        %v6301 = vadd.f32 0.0, %v6300
        %v6302 = vpop.f32.mrb[0].mxu0
        %v6303 = vpop.f32.mrb[0].mxu0
        %6304 = vdwg.mxu0
        %6305 = vmatprep.subr.bf16.mxu0 %v4892
        %6306 = vmatpush1.bf16.msra.mxu0 %v4891
        %6307 = vmatprep.subr.bf16.mxu0 %v4924
        %6308 = vmatpush1.bf16.msra.mxu0 %v4923
        %6309 = vmatprep.subr.bf16.mxu0 %v4956
        %6310 = vmatpush1.bf16.msra.mxu0 %v4955
        %6311 = vmatprep.subr.bf16.mxu0 %v4988
        %6312 = vmatpush1.bf16.msra.mxu0 %v4987
        %6313 = vmatprep.subr.bf16.mxu0 %v5020
        %6314 = vmatpush1.bf16.msra.mxu0 %v5019
        %6315 = vmatprep.subr.bf16.mxu0 %v5052
        %6316 = vmatpush1.bf16.msra.mxu0 %v5051
        %6317 = vmatprep.subr.bf16.mxu0 %v5084
        %6318 = vmatpush1.bf16.msra.mxu0 %v5083
        %6319 = vmatprep.subr.bf16.mxu0 %v5116
        %6320 = vmatpush1.bf16.msra.mxu0 %v5115
        %6321 = vmatprep.subr.bf16.mxu0 %v5148
        %6322 = vmatpush1.bf16.msra.mxu0 %v5147
        %6323 = vmatprep.subr.bf16.mxu0 %v5180
        %6324 = vmatpush1.bf16.msra.mxu0 %v5179
        %6325 = vmatprep.subr.bf16.mxu0 %v5212
        %6326 = vmatpush1.bf16.msra.mxu0 %v5211
        %6327 = vmatprep.subr.bf16.mxu0 %v5244
        %6328 = vmatpush1.bf16.msra.mxu0 %v5243
        %6329 = vmatprep.subr.bf16.mxu0 %v5276
        %6330 = vmatpush1.bf16.msra.mxu0 %v5275
        %6331 = vmatprep.subr.bf16.mxu0 %v5308
        %6332 = vmatpush1.bf16.msra.mxu0 %v5307
        %6333 = vmatprep.subr.bf16.mxu0 %v5340
        %6334 = vmatpush1.bf16.msra.mxu0 %v5339
        %6335 = vmatprep.subr.bf16.mxu0 %v5372
        %6336 = vmatpush1.bf16.msra.mxu0 %v5371
        %6337 = vmatprep.mubr.bf16.mxu0 %v2822
        %6338 = vmatmul.mubr.bf16.gmra.mrb[0].mxu0 %v2821
        %v6339 = vpop.f32.mrb[0].mxu0
        %v6340 = vadd.f32 0.0, %v6339
        %v6341 = vpop.f32.mrb[0].mxu0
        %v6342 = vadd.f32 0.0, %v6341
        %v6343 = vpop.f32.mrb[0].mxu0
        %v6344 = vpop.f32.mrb[0].mxu0
        %6345 = vdwg.mxu0
        %6346 = vmatprep.subr.bf16.mxu0 %v4894
        %6347 = vmatpush1.bf16.msra.mxu0 %v4893
        %6348 = vmatprep.subr.bf16.mxu0 %v4926
        %6349 = vmatpush1.bf16.msra.mxu0 %v4925
        %6350 = vmatprep.subr.bf16.mxu0 %v4958
        %6351 = vmatpush1.bf16.msra.mxu0 %v4957
        %6352 = vmatprep.subr.bf16.mxu0 %v4990
        %6353 = vmatpush1.bf16.msra.mxu0 %v4989
        %6354 = vmatprep.subr.bf16.mxu0 %v5022
        %6355 = vmatpush1.bf16.msra.mxu0 %v5021
        %6356 = vmatprep.subr.bf16.mxu0 %v5054
        %6357 = vmatpush1.bf16.msra.mxu0 %v5053
        %6358 = vmatprep.subr.bf16.mxu0 %v5086
        %6359 = vmatpush1.bf16.msra.mxu0 %v5085
        %6360 = vmatprep.subr.bf16.mxu0 %v5118
        %6361 = vmatpush1.bf16.msra.mxu0 %v5117
        %6362 = vmatprep.subr.bf16.mxu0 %v5150
        %6363 = vmatpush1.bf16.msra.mxu0 %v5149
        %6364 = vmatprep.subr.bf16.mxu0 %v5182
        %6365 = vmatpush1.bf16.msra.mxu0 %v5181
        %6366 = vmatprep.subr.bf16.mxu0 %v5214
        %6367 = vmatpush1.bf16.msra.mxu0 %v5213
        %6368 = vmatprep.subr.bf16.mxu0 %v5246
        %6369 = vmatpush1.bf16.msra.mxu0 %v5245
        %6370 = vmatprep.subr.bf16.mxu0 %v5278
        %6371 = vmatpush1.bf16.msra.mxu0 %v5277
        %6372 = vmatprep.subr.bf16.mxu0 %v5310
        %6373 = vmatpush1.bf16.msra.mxu0 %v5309
        %6374 = vmatprep.subr.bf16.mxu0 %v5342
        %6375 = vmatpush1.bf16.msra.mxu0 %v5341
        %6376 = vmatprep.subr.bf16.mxu0 %v5374
        %6377 = vmatpush1.bf16.msra.mxu0 %v5373
        %6378 = vmatprep.mubr.bf16.mxu0 %v2822
        %6379 = vmatmul.mubr.bf16.gmra.mrb[0].mxu0 %v2821
        %v6380 = vpop.f32.mrb[0].mxu0
        %v6381 = vadd.f32 0.0, %v6380
        %v6382 = vpop.f32.mrb[0].mxu0
        %v6383 = vadd.f32 0.0, %v6382
        %v6384 = vpop.f32.mrb[0].mxu0
        %v6385 = vpop.f32.mrb[0].mxu0
        %6386 = vdwg.mxu0
        %6387 = vmatprep.subr.bf16.mxu0 %v4896
        %6388 = vmatpush1.bf16.msra.mxu0 %v4895
        %6389 = vmatprep.subr.bf16.mxu0 %v4928
        %6390 = vmatpush1.bf16.msra.mxu0 %v4927
        %6391 = vmatprep.subr.bf16.mxu0 %v4960
        %6392 = vmatpush1.bf16.msra.mxu0 %v4959
        %6393 = vmatprep.subr.bf16.mxu0 %v4992
        %6394 = vmatpush1.bf16.msra.mxu0 %v4991
        %6395 = vmatprep.subr.bf16.mxu0 %v5024
        %6396 = vmatpush1.bf16.msra.mxu0 %v5023
        %6397 = vmatprep.subr.bf16.mxu0 %v5056
        %6398 = vmatpush1.bf16.msra.mxu0 %v5055
        %6399 = vmatprep.subr.bf16.mxu0 %v5088
        %6400 = vmatpush1.bf16.msra.mxu0 %v5087
        %6401 = vmatprep.subr.bf16.mxu0 %v5120
        %6402 = vmatpush1.bf16.msra.mxu0 %v5119
        %6403 = vmatprep.subr.bf16.mxu0 %v5152
        %6404 = vmatpush1.bf16.msra.mxu0 %v5151
        %6405 = vmatprep.subr.bf16.mxu0 %v5184
        %6406 = vmatpush1.bf16.msra.mxu0 %v5183
        %6407 = vmatprep.subr.bf16.mxu0 %v5216
        %6408 = vmatpush1.bf16.msra.mxu0 %v5215
        %6409 = vmatprep.subr.bf16.mxu0 %v5248
        %6410 = vmatpush1.bf16.msra.mxu0 %v5247
        %6411 = vmatprep.subr.bf16.mxu0 %v5280
        %6412 = vmatpush1.bf16.msra.mxu0 %v5279
        %6413 = vmatprep.subr.bf16.mxu0 %v5312
        %6414 = vmatpush1.bf16.msra.mxu0 %v5311
        %6415 = vmatprep.subr.bf16.mxu0 %v5344
        %6416 = vmatpush1.bf16.msra.mxu0 %v5343
        %6417 = vmatprep.subr.bf16.mxu0 %v5376
        %6418 = vmatpush1.bf16.msra.mxu0 %v5375
        %6419 = vmatprep.mubr.bf16.mxu0 %v2822
        %6420 = vmatmul.mubr.bf16.gmra.mrb[0].mxu0 %v2821
        %v6421 = vpop.f32.mrb[0].mxu0
        %v6422 = vadd.f32 0.0, %v6421
        %v6423 = vpop.f32.mrb[0].mxu0
        %v6424 = vadd.f32 0.0, %v6423
        %v6425 = vpop.f32.mrb[0].mxu0
        %v6426 = vpop.f32.mrb[0].mxu0
        %6427 = vdwg.mxu0
        %6428 = vmatprep.subr.bf16.mxu0 %v4898
        %6429 = vmatpush1.bf16.msra.mxu0 %v4897
        %6430 = vmatprep.subr.bf16.mxu0 %v4930
        %6431 = vmatpush1.bf16.msra.mxu0 %v4929
        %6432 = vmatprep.subr.bf16.mxu0 %v4962
        %6433 = vmatpush1.bf16.msra.mxu0 %v4961
        %6434 = vmatprep.subr.bf16.mxu0 %v4994
        %6435 = vmatpush1.bf16.msra.mxu0 %v4993
        %6436 = vmatprep.subr.bf16.mxu0 %v5026
        %6437 = vmatpush1.bf16.msra.mxu0 %v5025
        %6438 = vmatprep.subr.bf16.mxu0 %v5058
        %6439 = vmatpush1.bf16.msra.mxu0 %v5057
        %6440 = vmatprep.subr.bf16.mxu0 %v5090
        %6441 = vmatpush1.bf16.msra.mxu0 %v5089
        %6442 = vmatprep.subr.bf16.mxu0 %v5122
        %6443 = vmatpush1.bf16.msra.mxu0 %v5121
        %6444 = vmatprep.subr.bf16.mxu0 %v5154
        %6445 = vmatpush1.bf16.msra.mxu0 %v5153
        %6446 = vmatprep.subr.bf16.mxu0 %v5186
        %6447 = vmatpush1.bf16.msra.mxu0 %v5185
        %6448 = vmatprep.subr.bf16.mxu0 %v5218
        %6449 = vmatpush1.bf16.msra.mxu0 %v5217
        %6450 = vmatprep.subr.bf16.mxu0 %v5250
        %6451 = vmatpush1.bf16.msra.mxu0 %v5249
        %6452 = vmatprep.subr.bf16.mxu0 %v5282
        %6453 = vmatpush1.bf16.msra.mxu0 %v5281
        %6454 = vmatprep.subr.bf16.mxu0 %v5314
        %6455 = vmatpush1.bf16.msra.mxu0 %v5313
        %6456 = vmatprep.subr.bf16.mxu0 %v5346
        %6457 = vmatpush1.bf16.msra.mxu0 %v5345
        %6458 = vmatprep.subr.bf16.mxu0 %v5378
        %6459 = vmatpush1.bf16.msra.mxu0 %v5377
        %6460 = vmatprep.mubr.bf16.mxu0 %v2822
        %6461 = vmatmul.mubr.bf16.gmra.mrb[0].mxu0 %v2821
        %v6462 = vpop.f32.mrb[0].mxu0
        %v6463 = vadd.f32 0.0, %v6462
        %v6464 = vpop.f32.mrb[0].mxu0
        %v6465 = vadd.f32 0.0, %v6464
        %v6466 = vpop.f32.mrb[0].mxu0
        %v6467 = vpop.f32.mrb[0].mxu0
        %6468 = vdwg.mxu0
        %6469 = vmatprep.subr.bf16.mxu0 %v4900
        %6470 = vmatpush1.bf16.msra.mxu0 %v4899
        %6471 = vmatprep.subr.bf16.mxu0 %v4932
        %6472 = vmatpush1.bf16.msra.mxu0 %v4931
        %6473 = vmatprep.subr.bf16.mxu0 %v4964
        %6474 = vmatpush1.bf16.msra.mxu0 %v4963
        %6475 = vmatprep.subr.bf16.mxu0 %v4996
        %6476 = vmatpush1.bf16.msra.mxu0 %v4995
        %6477 = vmatprep.subr.bf16.mxu0 %v5028
        %6478 = vmatpush1.bf16.msra.mxu0 %v5027
        %6479 = vmatprep.subr.bf16.mxu0 %v5060
        %6480 = vmatpush1.bf16.msra.mxu0 %v5059
        %6481 = vmatprep.subr.bf16.mxu0 %v5092
        %6482 = vmatpush1.bf16.msra.mxu0 %v5091
        %6483 = vmatprep.subr.bf16.mxu0 %v5124
        %6484 = vmatpush1.bf16.msra.mxu0 %v5123
        %6485 = vmatprep.subr.bf16.mxu0 %v5156
        %6486 = vmatpush1.bf16.msra.mxu0 %v5155
        %6487 = vmatprep.subr.bf16.mxu0 %v5188
        %6488 = vmatpush1.bf16.msra.mxu0 %v5187
        %6489 = vmatprep.subr.bf16.mxu0 %v5220
        %6490 = vmatpush1.bf16.msra.mxu0 %v5219
        %6491 = vmatprep.subr.bf16.mxu0 %v5252
        %6492 = vmatpush1.bf16.msra.mxu0 %v5251
        %6493 = vmatprep.subr.bf16.mxu0 %v5284
        %6494 = vmatpush1.bf16.msra.mxu0 %v5283
        %6495 = vmatprep.subr.bf16.mxu0 %v5316
        %6496 = vmatpush1.bf16.msra.mxu0 %v5315
        %6497 = vmatprep.subr.bf16.mxu0 %v5348
        %6498 = vmatpush1.bf16.msra.mxu0 %v5347
        %6499 = vmatprep.subr.bf16.mxu0 %v5380
        %6500 = vmatpush1.bf16.msra.mxu0 %v5379
        %6501 = vmatprep.mubr.bf16.mxu0 %v2822
        %6502 = vmatmul.mubr.bf16.gmra.mrb[0].mxu0 %v2821
        %v6503 = vpop.f32.mrb[0].mxu0
        %v6504 = vadd.f32 0.0, %v6503
        %v6505 = vpop.f32.mrb[0].mxu0
        %v6506 = vadd.f32 0.0, %v6505
        %v6507 = vpop.f32.mrb[0].mxu0
        %v6508 = vpop.f32.mrb[0].mxu0
        %6509 = vdwg.mxu0
        %6510 = vmatprep.subr.bf16.mxu0 %v4902
        %6511 = vmatpush1.bf16.msra.mxu0 %v4901
        %6512 = vmatprep.subr.bf16.mxu0 %v4934
        %6513 = vmatpush1.bf16.msra.mxu0 %v4933
        %6514 = vmatprep.subr.bf16.mxu0 %v4966
        %6515 = vmatpush1.bf16.msra.mxu0 %v4965
        %6516 = vmatprep.subr.bf16.mxu0 %v4998
        %6517 = vmatpush1.bf16.msra.mxu0 %v4997
        %6518 = vmatprep.subr.bf16.mxu0 %v5030
        %6519 = vmatpush1.bf16.msra.mxu0 %v5029
        %6520 = vmatprep.subr.bf16.mxu0 %v5062
        %6521 = vmatpush1.bf16.msra.mxu0 %v5061
        %6522 = vmatprep.subr.bf16.mxu0 %v5094
        %6523 = vmatpush1.bf16.msra.mxu0 %v5093
        %6524 = vmatprep.subr.bf16.mxu0 %v5126
        %6525 = vmatpush1.bf16.msra.mxu0 %v5125
        %6526 = vmatprep.subr.bf16.mxu0 %v5158
        %6527 = vmatpush1.bf16.msra.mxu0 %v5157
        %6528 = vmatprep.subr.bf16.mxu0 %v5190
        %6529 = vmatpush1.bf16.msra.mxu0 %v5189
        %6530 = vmatprep.subr.bf16.mxu0 %v5222
        %6531 = vmatpush1.bf16.msra.mxu0 %v5221
        %6532 = vmatprep.subr.bf16.mxu0 %v5254
        %6533 = vmatpush1.bf16.msra.mxu0 %v5253
        %6534 = vmatprep.subr.bf16.mxu0 %v5286
        %6535 = vmatpush1.bf16.msra.mxu0 %v5285
        %6536 = vmatprep.subr.bf16.mxu0 %v5318
        %6537 = vmatpush1.bf16.msra.mxu0 %v5317
        %6538 = vmatprep.subr.bf16.mxu0 %v5350
        %6539 = vmatpush1.bf16.msra.mxu0 %v5349
        %6540 = vmatprep.subr.bf16.mxu0 %v5382
        %6541 = vmatpush1.bf16.msra.mxu0 %v5381
        %6542 = vmatprep.mubr.bf16.mxu0 %v2822
        %6543 = vmatmul.mubr.bf16.gmra.mrb[0].mxu0 %v2821
        %v6544 = vpop.f32.mrb[0].mxu0
        %v6545 = vadd.f32 0.0, %v6544
        %v6546 = vpop.f32.mrb[0].mxu0
        %v6547 = vadd.f32 0.0, %v6546
        %v6548 = vpop.f32.mrb[0].mxu0
        %v6549 = vpop.f32.mrb[0].mxu0
        %6550 = vdwg.mxu0
        %v6551 = vxor.u32 %v5930, 2147483648
        %v6552 = vxor.u32 %v5932, 2147483648
        %v6553 = vxor.u32 %v5971, 2147483648
        %v6554 = vxor.u32 %v5973, 2147483648
        %v6555 = vxor.u32 %v6012, 2147483648
        %v6556 = vxor.u32 %v6014, 2147483648
        %v6557 = vxor.u32 %v6053, 2147483648
        %v6558 = vxor.u32 %v6055, 2147483648
        %v6559 = vxor.u32 %v6094, 2147483648
        %v6560 = vxor.u32 %v6096, 2147483648
        %v6561 = vxor.u32 %v6135, 2147483648
        %v6562 = vxor.u32 %v6137, 2147483648
        %v6563 = vxor.u32 %v6176, 2147483648
        %v6564 = vxor.u32 %v6178, 2147483648
        %v6565 = vxor.u32 %v6217, 2147483648
        %v6566 = vxor.u32 %v6219, 2147483648
        %v6567 = vxor.u32 %v6258, 2147483648
        %v6568 = vxor.u32 %v6260, 2147483648
        %v6569 = vxor.u32 %v6299, 2147483648
        %v6570 = vxor.u32 %v6301, 2147483648
        %v6571 = vxor.u32 %v6340, 2147483648
        %v6572 = vxor.u32 %v6342, 2147483648
        %v6573 = vxor.u32 %v6381, 2147483648
        %v6574 = vxor.u32 %v6383, 2147483648
        %v6575 = vxor.u32 %v6422, 2147483648
        %v6576 = vxor.u32 %v6424, 2147483648
        %v6577 = vxor.u32 %v6463, 2147483648
        %v6578 = vxor.u32 %v6465, 2147483648
        %v6579 = vxor.u32 %v6504, 2147483648
        %v6580 = vxor.u32 %v6506, 2147483648
        %v6581 = vxor.u32 %v6545, 2147483648
        %v6582 = vxor.u32 %v6547, 2147483648
        %v6583 = vmul.f32 %v6551, 1.442695
        %v6584 = vpow.pop %v6583
        %v6585 = vmul.f32 %v6552, 1.442695
        %v6586 = vpow.pop %v6585
        %v6587 = vmul.f32 %v6553, 1.442695
        %v6588 = vpow.pop %v6587
        %v6589 = vmul.f32 %v6554, 1.442695
        %v6590 = vpow.pop %v6589
        %v6591 = vmul.f32 %v6555, 1.442695
        %v6592 = vpow.pop %v6591
        %v6593 = vmul.f32 %v6556, 1.442695
        %v6594 = vpow.pop %v6593
        %v6595 = vmul.f32 %v6557, 1.442695
        %v6596 = vpow.pop %v6595
        %v6597 = vmul.f32 %v6558, 1.442695
        %v6598 = vpow.pop %v6597
        %v6599 = vmul.f32 %v6559, 1.442695
        %v6600 = vpow.pop %v6599
        %v6601 = vmul.f32 %v6560, 1.442695
        %v6602 = vpow.pop %v6601
        %v6603 = vmul.f32 %v6561, 1.442695
        %v6604 = vpow.pop %v6603
        %v6605 = vmul.f32 %v6562, 1.442695
        %v6606 = vpow.pop %v6605
        %v6607 = vmul.f32 %v6563, 1.442695
        %v6608 = vpow.pop %v6607
        %v6609 = vmul.f32 %v6564, 1.442695
        %v6610 = vpow.pop %v6609
        %v6611 = vmul.f32 %v6565, 1.442695
        %v6612 = vpow.pop %v6611
        %v6613 = vmul.f32 %v6566, 1.442695
        %v6614 = vpow.pop %v6613
        %v6615 = vmul.f32 %v6567, 1.442695
        %v6616 = vpow.pop %v6615
        %v6617 = vmul.f32 %v6568, 1.442695
        %v6618 = vpow.pop %v6617
        %v6619 = vmul.f32 %v6569, 1.442695
        %v6620 = vpow.pop %v6619
        %v6621 = vmul.f32 %v6570, 1.442695
        %v6622 = vpow.pop %v6621
        %v6623 = vmul.f32 %v6571, 1.442695
        %v6624 = vpow.pop %v6623
        %v6625 = vmul.f32 %v6572, 1.442695
        %v6626 = vpow.pop %v6625
        %v6627 = vmul.f32 %v6573, 1.442695
        %v6628 = vpow.pop %v6627
        %v6629 = vmul.f32 %v6574, 1.442695
        %v6630 = vpow.pop %v6629
        %v6631 = vmul.f32 %v6575, 1.442695
        %v6632 = vpow.pop %v6631
        %v6633 = vmul.f32 %v6576, 1.442695
        %v6634 = vpow.pop %v6633
        %v6635 = vmul.f32 %v6577, 1.442695
        %v6636 = vpow.pop %v6635
        %v6637 = vmul.f32 %v6578, 1.442695
        %v6638 = vpow.pop %v6637
        %v6639 = vmul.f32 %v6579, 1.442695
        %v6640 = vpow.pop %v6639
        %v6641 = vmul.f32 %v6580, 1.442695
        %v6642 = vpow.pop %v6641
        %v6643 = vmul.f32 %v6581, 1.442695
        %v6644 = vpow.pop %v6643
        %v6645 = vmul.f32 %v6582, 1.442695
        %v6646 = vpow.pop %v6645
        %v6647 = vadd.f32 %v6584, 1.0
        %v6648 = vadd.f32 %v6586, 1.0
        %v6649 = vadd.f32 %v6588, 1.0
        %v6650 = vadd.f32 %v6590, 1.0
        %v6651 = vadd.f32 %v6592, 1.0
        %v6652 = vadd.f32 %v6594, 1.0
        %v6653 = vadd.f32 %v6596, 1.0
        %v6654 = vadd.f32 %v6598, 1.0
        %v6655 = vadd.f32 %v6600, 1.0
        %v6656 = vadd.f32 %v6602, 1.0
        %v6657 = vadd.f32 %v6604, 1.0
        %v6658 = vadd.f32 %v6606, 1.0
        %v6659 = vadd.f32 %v6608, 1.0
        %v6660 = vadd.f32 %v6610, 1.0
        %v6661 = vadd.f32 %v6612, 1.0
        %v6662 = vadd.f32 %v6614, 1.0
        %v6663 = vadd.f32 %v6616, 1.0
        %v6664 = vadd.f32 %v6618, 1.0
        %v6665 = vadd.f32 %v6620, 1.0
        %v6666 = vadd.f32 %v6622, 1.0
        %v6667 = vadd.f32 %v6624, 1.0
        %v6668 = vadd.f32 %v6626, 1.0
        %v6669 = vadd.f32 %v6628, 1.0
        %v6670 = vadd.f32 %v6630, 1.0
        %v6671 = vadd.f32 %v6632, 1.0
        %v6672 = vadd.f32 %v6634, 1.0
        %v6673 = vadd.f32 %v6636, 1.0
        %v6674 = vadd.f32 %v6638, 1.0
        %v6675 = vadd.f32 %v6640, 1.0
        %v6676 = vadd.f32 %v6642, 1.0
        %v6677 = vadd.f32 %v6644, 1.0
        %v6678 = vadd.f32 %v6646, 1.0
        %v6679 = vrcp.pop %v6647
        %v6680 = vmul.f32 1.0, %v6679
        %v6681 = vrcp.pop %v6648
        %v6682 = vmul.f32 1.0, %v6681
        %v6683 = vrcp.pop %v6649
        %v6684 = vmul.f32 1.0, %v6683
        %v6685 = vrcp.pop %v6650
        %v6686 = vmul.f32 1.0, %v6685
        %v6687 = vrcp.pop %v6651
        %v6688 = vmul.f32 1.0, %v6687
        %v6689 = vrcp.pop %v6652
        %v6690 = vmul.f32 1.0, %v6689
        %v6691 = vrcp.pop %v6653
        %v6692 = vmul.f32 1.0, %v6691
        %v6693 = vrcp.pop %v6654
        %v6694 = vmul.f32 1.0, %v6693
        %v6695 = vrcp.pop %v6655
        %v6696 = vmul.f32 1.0, %v6695
        %v6697 = vrcp.pop %v6656
        %v6698 = vmul.f32 1.0, %v6697
        %v6699 = vrcp.pop %v6657
        %v6700 = vmul.f32 1.0, %v6699
        %v6701 = vrcp.pop %v6658
        %v6702 = vmul.f32 1.0, %v6701
        %v6703 = vrcp.pop %v6659
        %v6704 = vmul.f32 1.0, %v6703
        %v6705 = vrcp.pop %v6660
        %v6706 = vmul.f32 1.0, %v6705
        %v6707 = vrcp.pop %v6661
        %v6708 = vmul.f32 1.0, %v6707
        %v6709 = vrcp.pop %v6662
        %v6710 = vmul.f32 1.0, %v6709
        %v6711 = vrcp.pop %v6663
        %v6712 = vmul.f32 1.0, %v6711
        %v6713 = vrcp.pop %v6664
        %v6714 = vmul.f32 1.0, %v6713
        %v6715 = vrcp.pop %v6665
        %v6716 = vmul.f32 1.0, %v6715
        %v6717 = vrcp.pop %v6666
        %v6718 = vmul.f32 1.0, %v6717
        %v6719 = vrcp.pop %v6667
        %v6720 = vmul.f32 1.0, %v6719
        %v6721 = vrcp.pop %v6668
        %v6722 = vmul.f32 1.0, %v6721
        %v6723 = vrcp.pop %v6669
        %v6724 = vmul.f32 1.0, %v6723
        %v6725 = vrcp.pop %v6670
        %v6726 = vmul.f32 1.0, %v6725
        %v6727 = vrcp.pop %v6671
        %v6728 = vmul.f32 1.0, %v6727
        %v6729 = vrcp.pop %v6672
        %v6730 = vmul.f32 1.0, %v6729
        %v6731 = vrcp.pop %v6673
        %v6732 = vmul.f32 1.0, %v6731
        %v6733 = vrcp.pop %v6674
        %v6734 = vmul.f32 1.0, %v6733
        %v6735 = vrcp.pop %v6675
        %v6736 = vmul.f32 1.0, %v6735
        %v6737 = vrcp.pop %v6676
        %v6738 = vmul.f32 1.0, %v6737
        %v6739 = vrcp.pop %v6677
        %v6740 = vmul.f32 1.0, %v6739
        %v6741 = vrcp.pop %v6678
        %v6742 = vmul.f32 1.0, %v6741
        %v6775 = vcombine.low %v6680, %v6682
        %v6776 = vcombine.low %v6684, %v6686
        %v6777 = vcombine.low %v6688, %v6690
        %v6778 = vcombine.low %v6692, %v6694
        %v6780 = vunpack.c.l.s4 1966171168
        %v6781 = vunpack.c.0.s8 %v6780
        %v6782 = vlaneseq
        %v6783 = vshrl.u32 %v6782, 7
        %v6784 = vsub.s32 %v6781, %v6783
        %v6785 = vrot.slane %v6775, %v6784
        %v6787 = vunpack.c.l.s4 1966171168
        %v6788 = vunpack.c.0.s8 %v6787
        %v6789 = vlaneseq
        %v6790 = vshrl.u32 %v6789, 7
        %v6791 = vsub.s32 %v6788, %v6790
        %v6792 = vrot.slane %v6776, %v6791
        %v6794 = vunpack.c.l.s4 1966171168
        %v6795 = vunpack.c.0.s8 %v6794
        %v6796 = vlaneseq
        %v6797 = vshrl.u32 %v6796, 7
        %v6798 = vsub.s32 %v6795, %v6797
        %v6799 = vrot.slane %v6777, %v6798
        %v6801 = vunpack.c.l.s4 1966171168
        %v6802 = vunpack.c.0.s8 %v6801
        %v6803 = vlaneseq
        %v6804 = vshrl.u32 %v6803, 7
        %v6805 = vsub.s32 %v6802, %v6804
        %v6806 = vrot.slane %v6778, %v6805
        %v6807 = vcombine.low %v6785, %v6792
        %v6808 = vcombine.low %v6799, %v6806
        %v6810 = vunpack.c.l.s4 1966171168
        %v6811 = vunpack.c.0.s8 %v6810
        %v6812 = vlaneseq
        %v6813 = vshrl.u32 %v6812, 7
        %v6814 = vsub.s32 %v6811, %v6813
        %v6815 = vrot.slane %v6807, %v6814
        %v6817 = vunpack.c.l.s4 1966171168
        %v6818 = vunpack.c.0.s8 %v6817
        %v6819 = vlaneseq
        %v6820 = vshrl.u32 %v6819, 7
        %v6821 = vsub.s32 %v6818, %v6820
        %v6822 = vrot.slane %v6808, %v6821
        %v6823 = vcombine.low %v6815, %v6822
        %v6824 = vcombine.low %v6696, %v6698
        %v6825 = vcombine.low %v6700, %v6702
        %v6826 = vcombine.low %v6704, %v6706
        %v6827 = vcombine.low %v6708, %v6710
        %v6829 = vunpack.c.l.s4 1966171168
        %v6830 = vunpack.c.0.s8 %v6829
        %v6831 = vlaneseq
        %v6832 = vshrl.u32 %v6831, 7
        %v6833 = vsub.s32 %v6830, %v6832
        %v6834 = vrot.slane %v6824, %v6833
        %v6836 = vunpack.c.l.s4 1966171168
        %v6837 = vunpack.c.0.s8 %v6836
        %v6838 = vlaneseq
        %v6839 = vshrl.u32 %v6838, 7
        %v6840 = vsub.s32 %v6837, %v6839
        %v6841 = vrot.slane %v6825, %v6840
        %v6843 = vunpack.c.l.s4 1966171168
        %v6844 = vunpack.c.0.s8 %v6843
        %v6845 = vlaneseq
        %v6846 = vshrl.u32 %v6845, 7
        %v6847 = vsub.s32 %v6844, %v6846
        %v6848 = vrot.slane %v6826, %v6847
        %v6850 = vunpack.c.l.s4 1966171168
        %v6851 = vunpack.c.0.s8 %v6850
        %v6852 = vlaneseq
        %v6853 = vshrl.u32 %v6852, 7
        %v6854 = vsub.s32 %v6851, %v6853
        %v6855 = vrot.slane %v6827, %v6854
        %v6856 = vcombine.low %v6834, %v6841
        %v6857 = vcombine.low %v6848, %v6855
        %v6859 = vunpack.c.l.s4 1966171168
        %v6860 = vunpack.c.0.s8 %v6859
        %v6861 = vlaneseq
        %v6862 = vshrl.u32 %v6861, 7
        %v6863 = vsub.s32 %v6860, %v6862
        %v6864 = vrot.slane %v6856, %v6863
        %v6866 = vunpack.c.l.s4 1966171168
        %v6867 = vunpack.c.0.s8 %v6866
        %v6868 = vlaneseq
        %v6869 = vshrl.u32 %v6868, 7
        %v6870 = vsub.s32 %v6867, %v6869
        %v6871 = vrot.slane %v6857, %v6870
        %v6872 = vcombine.low %v6864, %v6871
        %v6873 = vcombine.low %v6712, %v6714
        %v6874 = vcombine.low %v6716, %v6718
        %v6875 = vcombine.low %v6720, %v6722
        %v6876 = vcombine.low %v6724, %v6726
        %v6878 = vunpack.c.l.s4 1966171168
        %v6879 = vunpack.c.0.s8 %v6878
        %v6880 = vlaneseq
        %v6881 = vshrl.u32 %v6880, 7
        %v6882 = vsub.s32 %v6879, %v6881
        %v6883 = vrot.slane %v6873, %v6882
        %v6885 = vunpack.c.l.s4 1966171168
        %v6886 = vunpack.c.0.s8 %v6885
        %v6887 = vlaneseq
        %v6888 = vshrl.u32 %v6887, 7
        %v6889 = vsub.s32 %v6886, %v6888
        %v6890 = vrot.slane %v6874, %v6889
        %v6892 = vunpack.c.l.s4 1966171168
        %v6893 = vunpack.c.0.s8 %v6892
        %v6894 = vlaneseq
        %v6895 = vshrl.u32 %v6894, 7
        %v6896 = vsub.s32 %v6893, %v6895
        %v6897 = vrot.slane %v6875, %v6896
        %v6899 = vunpack.c.l.s4 1966171168
        %v6900 = vunpack.c.0.s8 %v6899
        %v6901 = vlaneseq
        %v6902 = vshrl.u32 %v6901, 7
        %v6903 = vsub.s32 %v6900, %v6902
        %v6904 = vrot.slane %v6876, %v6903
        %v6905 = vcombine.low %v6883, %v6890
        %v6906 = vcombine.low %v6897, %v6904
        %v6908 = vunpack.c.l.s4 1966171168
        %v6909 = vunpack.c.0.s8 %v6908
        %v6910 = vlaneseq
        %v6911 = vshrl.u32 %v6910, 7
        %v6912 = vsub.s32 %v6909, %v6911
        %v6913 = vrot.slane %v6905, %v6912
        %v6915 = vunpack.c.l.s4 1966171168
        %v6916 = vunpack.c.0.s8 %v6915
        %v6917 = vlaneseq
        %v6918 = vshrl.u32 %v6917, 7
        %v6919 = vsub.s32 %v6916, %v6918
        %v6920 = vrot.slane %v6906, %v6919
        %v6921 = vcombine.low %v6913, %v6920
        %v6922 = vcombine.low %v6728, %v6730
        %v6923 = vcombine.low %v6732, %v6734
        %v6924 = vcombine.low %v6736, %v6738
        %v6925 = vcombine.low %v6740, %v6742
        %v6927 = vunpack.c.l.s4 1966171168
        %v6928 = vunpack.c.0.s8 %v6927
        %v6929 = vlaneseq
        %v6930 = vshrl.u32 %v6929, 7
        %v6931 = vsub.s32 %v6928, %v6930
        %v6932 = vrot.slane %v6922, %v6931
        %v6934 = vunpack.c.l.s4 1966171168
        %v6935 = vunpack.c.0.s8 %v6934
        %v6936 = vlaneseq
        %v6937 = vshrl.u32 %v6936, 7
        %v6938 = vsub.s32 %v6935, %v6937
        %v6939 = vrot.slane %v6923, %v6938
        %v6941 = vunpack.c.l.s4 1966171168
        %v6942 = vunpack.c.0.s8 %v6941
        %v6943 = vlaneseq
        %v6944 = vshrl.u32 %v6943, 7
        %v6945 = vsub.s32 %v6942, %v6944
        %v6946 = vrot.slane %v6924, %v6945
        %v6948 = vunpack.c.l.s4 1966171168
        %v6949 = vunpack.c.0.s8 %v6948
        %v6950 = vlaneseq
        %v6951 = vshrl.u32 %v6950, 7
        %v6952 = vsub.s32 %v6949, %v6951
        %v6953 = vrot.slane %v6925, %v6952
        %v6954 = vcombine.low %v6932, %v6939
        %v6955 = vcombine.low %v6946, %v6953
        %v6957 = vunpack.c.l.s4 1966171168
        %v6958 = vunpack.c.0.s8 %v6957
        %v6959 = vlaneseq
        %v6960 = vshrl.u32 %v6959, 7
        %v6961 = vsub.s32 %v6958, %v6960
        %v6962 = vrot.slane %v6954, %v6961
        %v6964 = vunpack.c.l.s4 1966171168
        %v6965 = vunpack.c.0.s8 %v6964
        %v6966 = vlaneseq
        %v6967 = vshrl.u32 %v6966, 7
        %v6968 = vsub.s32 %v6965, %v6967
        %v6969 = vrot.slane %v6955, %v6968
        %v6970 = vcombine.low %v6962, %v6969
        %6975 = vst [vmem:[%s1030] sm:$0xff] %v6823
        %6976 = vst [vmem:[%s1030 + $0x8] sm:$0xff] %v6872
        %6977 = vst [vmem:[%s1030 + $0x10] sm:$0xff] %v6921
        %6978 = vst [vmem:[%s1030 + $0x18] sm:$0xff] %v6970
        %p6979 = scmp.lt.s32.totalorder %s75, 1
        %s6980 = scalar_select %p6979, %s75, 1
        %s6981 = smul.addr %s6980, 32
        %s6982 = scalar_lea.vmem %s63, %s6981
        // Predicated region
        $region149: #{two_branch_forward.1} parent=143 // pred_check
          %p6983 = pneg %p764
        $region150: #{two_branch_forward.1} parent=143 // pred_check_branch
          %6985 = sbr.rel (%p6983) target = $region152
        $region151: #{two_branch_forward.1} parent=143 // pred_region
          _
        $region152: #{two_branch_forward.1} parent=143 // pred_fallthru
          _
      $region144: #{two_branch_forward.1} parent=5 // pred_fallthru
        _
      %p6986 = scmp.le.s32.totalorder 2, %s70
      // Predicated region
      $region153: #{two_branch_forward.1} parent=5 // pred_check
        %p6987 = pneg %p6986
      $region154: #{two_branch_forward.1} parent=5 // pred_check_branch
        %6989 = sbr.rel (%p6987) target = $region156
      $region155: #{two_branch_forward.1} parent=5 // pred_region
        %s6990 = ssub.s32 %s70, 2
        // Predicated region
        $region157: #{two_branch_forward.1} parent=155 // pred_check
          %p6991 = pneg %p770
        $region158: #{two_branch_forward.1} parent=155 // pred_check_branch
          %6993 = sbr.rel (%p6991) target = $region160
        $region159: #{two_branch_forward.1} parent=155 // pred_region
          %p6994 = scmp.lt.s32.totalorder %s76, 1
          %s6995 = scalar_select %p6994, %s76, 1
          %s6996 = smul.addr %s6995, 32
          %s6997 = scalar_lea.vmem %s63, %s6996
        $region160: #{two_branch_forward.1} parent=155 // pred_fallthru
          _
      $region156: #{two_branch_forward.1} parent=5 // pred_fallthru
        _
    $region6: #{two_branch_forward.1} parent=1 // loop_footer
      %s74 = sadd.s32 1, %s70
    $region7: #{two_branch_forward.1} parent=1 // loop_footer_branch
      %69 = sbr.rel target = $region3
    $region8: #{two_branch_forward.1} parent=1 // loop_exit
      _
    %6998 = vsyncpa [#allocation3], 1
    %s6999 = scalar_lea.sflag [#allocation3], 1
    %7000 = vsyncpa %s6999, 1

</llo_original>
